<compile_context>
chip_gen: v5e
topology: v5e:2x2
jax: 0.10.0
libtpu: 0.0.40
codegen_flags: <defaults>
</compile_context>

<pallas_src>
import math
import functools

import jax
import jax.numpy as jnp
from jax import lax
from jax.experimental import pallas as pl
from jax.experimental.pallas import tpu as pltpu


# ---------------------------------------------------------------------------
# Fused Pallas kernel: 5 x TransformerConv -> global_max_pool -> Linear
# (processes one block of graphs; the adjacency is block-diagonal per graph)
# ---------------------------------------------------------------------------

def _gcn_fused_kernel(x_ref, bias_ref, gate_ref,
                      w1_ref, b1_ref, wr_ref, br_ref,
                      lw_ref, lb_ref, o_ref,
                      *, hidden, num_layers, nodes_per_graph, graphs_per_block):
    bias = bias_ref[...]            # (Nb, Nb) f32: 0 where edge j->i, -1e30 else
    gate = gate_ref[...]            # (Nb, 1)  f32: 1.0 iff node has in-edges
    scale = jnp.float32(1.0 / math.sqrt(hidden))
    bf16 = jnp.bfloat16

    def conv(x_in, w_bf16, b_f32, apply_relu):
        # Single fused lane-dense projection: [q | k | v | skip] = x @ [Wq|Wk|Wv|Ws] + b
        proj = jnp.dot(x_in.astype(bf16), w_bf16,
                       preferred_element_type=jnp.float32) + b_f32   # (Nb, 4H) f32
        q = proj[:, 0 * hidden:1 * hidden]
        k = proj[:, 1 * hidden:2 * hidden]
        v = proj[:, 2 * hidden:3 * hidden]
        skip = proj[:, 3 * hidden:4 * hidden]

        # scores_ij = q_i . k_j / sqrt(d) + mask_bias  (contract last dims, no k.T)
        scores = lax.dot_general(
            q.astype(bf16), k.astype(bf16),
            dimension_numbers=(((1,), (1,)), ((), ())),
            preferred_element_type=jnp.float32) * scale + bias

        # Row-wise softmax over neighbors (f32 math, EUP reciprocal).
        row_max = jnp.max(scores, axis=-1, keepdims=True)
        e = jnp.exp(scores - row_max)                  # masked entries underflow to 0
        denom = jnp.sum(e, axis=-1, keepdims=True)
        attn = e * pl.reciprocal(denom, approx=True)

        agg = jnp.dot(attn.astype(bf16), v.astype(bf16),
                      preferred_element_type=jnp.float32)
        out = agg * gate + skip                        # zero message for isolated nodes + root/skip
        if apply_relu:
            out = jnp.maximum(out, 0.0)
        return out

    # Layer 1 (in_dim = num_features), then layers 2..5 (in_dim = hidden).
    x = conv(x_ref[...], w1_ref[...], b1_ref[...], apply_relu=True)
    for l in range(num_layers - 1):
        x = conv(x, wr_ref[l], br_ref[l], apply_relu=(l < num_layers - 2))

    # global_max_pool: node rows of each graph are contiguous -> reshape + max.
    # TODO(synk): variable-size graphs need a mask/segment-max pool instead.
    pooled = jnp.max(
        x.reshape(graphs_per_block, nodes_per_graph, hidden), axis=1)   # (Gb, H)

    o_ref[...] = (jnp.dot(pooled.astype(bf16), lw_ref[...],
                          preferred_element_type=jnp.float32) + lb_ref[...])


# ---------------------------------------------------------------------------
# Python wrapper
# ---------------------------------------------------------------------------

def _default_graph_blocks(num_graphs, num_nodes):
    """Split the block-diagonal graph batch across TensorCores only on v7x."""
    try:
        kind = jax.devices()[0].device_kind.lower()
    except Exception:
        return 1
    if ("v7" in kind and num_graphs % 2 == 0 and num_nodes % 2 == 0
            and (num_nodes // 2) % 128 == 0):
        return 2   # two TCs per chip; each takes half the graphs
    return 1       # v5e/v6e: single TC, a grid would only add per-step overhead


def gcn_forward(params, x, adj_bias, has_edge, num_graphs, nodes_per_graph,
                graph_blocks=None):
    n, num_features = x.shape
    hidden = params["lin_w"].shape[0]
    num_classes = params["lin_w"].shape[1]
    num_layers = 5

    if graph_blocks is None:
        graph_blocks = _default_graph_blocks(num_graphs, n)
    graphs_per_block = num_graphs // graph_blocks
    nb = n // graph_blocks                     # nodes per graph block

    kernel = functools.partial(
        _gcn_fused_kernel, hidden=hidden, num_layers=num_layers,
        nodes_per_graph=nodes_per_graph, graphs_per_block=graphs_per_block)

    # --- cost estimate (helps XLA schedule around the custom call) ----------
    flops = 0
    in_dim = num_features
    for _ in range(num_layers):
        flops += 2 * n * in_dim * 4 * hidden          # fused QKVS projection
        flops += 2 * 2 * n * nb * hidden              # scores + attn @ v (block-diag)
        in_dim = hidden
    flops += 2 * num_graphs * hidden * num_classes    # final linear
    transcendentals = num_layers * n * nb             # softmax exp
    weight_bytes = sum(int(a.size) * a.dtype.itemsize
                       for a in (params["w1"], params["b1"], params["w_rest"],
                                 params["b_rest"], params["lin_w"], params["lin_b"]))
    bytes_accessed = (x.size * 4 + adj_bias.size * 4 + has_edge.size * 4
                      + weight_bytes + num_graphs * num_classes * 4)
    cost = pl.CostEstimate(flops=flops, transcendentals=transcendentals,
                           bytes_accessed=bytes_accessed)

    # --- raise the scoped-VMEM limit only once the dense N^2 set needs it ---
    vmem_est = (5 * nb * nb + 12 * nb * 4 * hidden) * 4 + (2 << 20)
    cp_kwargs = dict(dimension_semantics=("parallel",))
    if vmem_est > (16 << 20):                         # v5e default scoped limit
        cp_kwargs["vmem_limit_bytes"] = int(min(64 << 20, vmem_est))

    grid_spec = pltpu.PrefetchScalarGridSpec(
        num_scalar_prefetch=0,
        grid=(graph_blocks,),
        in_specs=[
            pl.BlockSpec((nb, num_features), lambda g: (g, 0)),       # x
            pl.BlockSpec((nb, nb), lambda g: (g, g)),                 # additive edge bias (diag block)
            pl.BlockSpec((nb, 1), lambda g: (g, 0)),                  # has-in-edge gate
            pl.BlockSpec(params["w1"].shape, lambda g: (0, 0)),
            pl.BlockSpec(params["b1"].shape, lambda g: (0, 0)),
            pl.BlockSpec(params["w_rest"].shape, lambda g: (0, 0, 0)),
            pl.BlockSpec(params["b_rest"].shape, lambda g: (0, 0, 0)),
            pl.BlockSpec(params["lin_w"].shape, lambda g: (0, 0)),
            pl.BlockSpec(params["lin_b"].shape, lambda g: (0, 0)),
        ],
        out_specs=pl.BlockSpec((graphs_per_block, num_classes), lambda g: (g, 0)),
    )

    return pl.pallas_call(
        kernel,
        out_shape=jax.ShapeDtypeStruct((num_graphs, num_classes), jnp.float32),
        grid_spec=grid_spec,
        compiler_params=pltpu.CompilerParams(**cp_kwargs),
        cost_estimate=cost,
    )(x, adj_bias, has_edge,
      params["w1"], params["b1"], params["w_rest"], params["b_rest"],
      params["lin_w"], params["lin_b"])


# ---------------------------------------------------------------------------
# Deterministic parameter / input construction
# ---------------------------------------------------------------------------

def _init_linear(key, fan_in, fan_out):
    kw, kb = jax.random.split(key)
    bound = 1.0 / math.sqrt(fan_in)
    w = jax.random.uniform(kw, (fan_in, fan_out), jnp.float32, -bound, bound)
    b = jax.random.uniform(kb, (1, fan_out), jnp.float32, -bound, bound)
    return w, b


def init_params(key, num_features, hidden, num_classes):
    bf16 = jnp.bfloat16
    conv_w, conv_b = [], []
    in_dim = num_features
    for _ in range(5):
        keys = jax.random.split(key, 5)
        key = keys[0]
        ws, bs = [], []
        for kk in keys[1:]:                              # order: Wq, Wk, Wv, Ws
            w, b = _init_linear(kk, in_dim, hidden)
            ws.append(w)
            bs.append(b)
        conv_w.append(jnp.concatenate(ws, axis=1))        # (in_dim, 4*hidden)
        conv_b.append(jnp.concatenate(bs, axis=1))        # (1, 4*hidden)
        in_dim = hidden
    key, klin = jax.random.split(key)
    lin_w, lin_b = _init_linear(klin, hidden, num_classes)
    # MXU operands stored in bf16 once (f32 accumulation in-kernel); biases f32.
    return dict(
        w1=conv_w[0].astype(bf16), b1=conv_b[0],                       # layer 1
        w_rest=jnp.stack(conv_w[1:], axis=0).astype(bf16),             # (4, H, 4H)
        b_rest=jnp.stack(conv_b[1:], axis=0),                          # (4, 1, 4H)
        lin_w=lin_w.astype(bf16), lin_b=lin_b)


def build_graph(num_graphs, nodes_per_graph):
    """Bidirectional ring inside each graph (deterministic, block-diagonal)."""
    srcs, dsts = [], []
    for g in range(num_graphs):
        off = g * nodes_per_graph
        for i in range(nodes_per_graph):
            a = off + i
            b = off + (i + 1) % nodes_per_graph
            srcs += [a, b]
            dsts += [b, a]
    edge_index = jnp.array([srcs, dsts], dtype=jnp.int32)              # (2, E)
    n = num_graphs * nodes_per_graph
    batch = jnp.repeat(jnp.arange(num_graphs, dtype=jnp.int32), nodes_per_graph)
    adj = jnp.zeros((n, n), jnp.float32).at[edge_index[1], edge_index[0]].set(1.0)
    return edge_index, batch, adj


def preprocess_graph(adj):
    """Wrapper-side adjacency preprocessing (kept out of the kernel)."""
    # TODO(synk): at large N pass an int8 edge mask instead to cut the (N,N) DMA 4x.
    adj_bias = jnp.where(adj > 0.0, 0.0, -1e30).astype(jnp.float32)    # additive softmax bias
    has_edge = (jnp.sum(adj, axis=-1, keepdims=True) > 0.0).astype(jnp.float32)
    return adj_bias, has_edge


# ---------------------------------------------------------------------------

if __name__ == "__main__":
    NUM_FEATURES = 8        # dataset.num_node_features
    HIDDEN = 32             # hidden_channels
    NUM_CLASSES = 4         # dataset.num_classes
    NUM_GRAPHS = 16
    NODES_PER_GRAPH = 16    # N = 256: fills the MXU row dimension
    N = NUM_GRAPHS * NODES_PER_GRAPH

    key = jax.random.PRNGKey(0)
    k_params, k_x = jax.random.split(key)
    params = init_params(k_params, NUM_FEATURES, HIDDEN, NUM_CLASSES)

    x = jax.random.normal(k_x, (N, NUM_FEATURES), jnp.float32)
    edge_index, batch, adj = build_graph(NUM_GRAPHS, NODES_PER_GRAPH)
    adj_bias, has_edge = preprocess_graph(adj)

    logits = gcn_forward(params, x, adj_bias, has_edge,
                         NUM_GRAPHS, NODES_PER_GRAPH)
    jax.block_until_ready(logits)
    assert logits.shape == (NUM_GRAPHS, NUM_CLASSES)
    print("KERNEL_OK")
</pallas_src>

<mosaic_0001>
module attributes {stable_mosaic.version = 11 : i64} {
  func.func @_gcn_fused_kernel(%arg0: i32, %arg1: memref<256x8xf32, #tpu.memory_space<vmem>>, %arg2: memref<256x256xf32, #tpu.memory_space<vmem>>, %arg3: memref<256x1xf32, #tpu.memory_space<vmem>>, %arg4: memref<8x128xbf16, #tpu.memory_space<vmem>>, %arg5: memref<1x128xf32, #tpu.memory_space<vmem>>, %arg6: memref<4x32x128xbf16, #tpu.memory_space<vmem>>, %arg7: memref<4x1x128xf32, #tpu.memory_space<vmem>>, %arg8: memref<32x4xbf16, #tpu.memory_space<vmem>>, %arg9: memref<1x4xf32, #tpu.memory_space<vmem>>, %arg10: memref<16x4xf32, #tpu.memory_space<vmem>>) attributes {dimension_semantics = [#tpu.dimension_semantics<parallel>], iteration_bounds = array<i64: 1>, scalar_prefetch = 0 : i64, scratch_operands = 0 : i64, tpu.core_type = #tpu.core_type<tc>, window_params = [{transform_indices = @transform_0, window_bounds = array<i64: 256, 8>}, {transform_indices = @transform_1, window_bounds = array<i64: 256, 256>}, {transform_indices = @transform_2, window_bounds = array<i64: 256, 1>}, {pipeline_mode = #tpu.pipeline_mode<synchronous>, transform_indices = @transform_3, window_bounds = array<i64: 8, 128>}, {pipeline_mode = #tpu.pipeline_mode<synchronous>, transform_indices = @transform_4, window_bounds = array<i64: 1, 128>}, {pipeline_mode = #tpu.pipeline_mode<synchronous>, transform_indices = @transform_5, window_bounds = array<i64: 4, 32, 128>}, {pipeline_mode = #tpu.pipeline_mode<synchronous>, transform_indices = @transform_6, window_bounds = array<i64: 4, 1, 128>}, {pipeline_mode = #tpu.pipeline_mode<synchronous>, transform_indices = @transform_7, window_bounds = array<i64: 32, 4>}, {pipeline_mode = #tpu.pipeline_mode<synchronous>, transform_indices = @transform_8, window_bounds = array<i64: 1, 4>}, {transform_indices = @transform_9, window_bounds = array<i64: 16, 4>}]} {
    %c0 = arith.constant 0 : index
    %c0_0 = arith.constant 0 : index
    %0 = vector.load %arg2[%c0, %c0_0] : memref<256x256xf32, #tpu.memory_space<vmem>>, vector<256x256xf32>
    %c0_1 = arith.constant 0 : index
    %c0_2 = arith.constant 0 : index
    %1 = vector.load %arg3[%c0_1, %c0_2] : memref<256x1xf32, #tpu.memory_space<vmem>>, vector<256x1xf32>
    %c0_3 = arith.constant 0 : index
    %c0_4 = arith.constant 0 : index
    %2 = vector.load %arg1[%c0_3, %c0_4] : memref<256x8xf32, #tpu.memory_space<vmem>>, vector<256x8xf32>
    %c0_5 = arith.constant 0 : index
    %c0_6 = arith.constant 0 : index
    %3 = vector.load %arg4[%c0_5, %c0_6] : memref<8x128xbf16, #tpu.memory_space<vmem>>, vector<8x128xbf16>
    %c0_7 = arith.constant 0 : index
    %c0_8 = arith.constant 0 : index
    %4 = vector.load %arg5[%c0_7, %c0_8] : memref<1x128xf32, #tpu.memory_space<vmem>>, vector<1x128xf32>
    %5 = arith.truncf %2 : vector<256x8xf32> to vector<256x8xbf16>
    %cst = arith.constant dense<0.000000e+00> : vector<256x128xf32>
    %6 = tpu.matmul %5, %3, %cst {dimension_numbers = #tpu.dot_dimension_numbers<[1], [0], [0], [1], [0, 0, 1, 1], [], []>} : vector<256x8xbf16>, vector<8x128xbf16>, vector<256x128xf32> -> vector<256x128xf32>
    %7 = vector.broadcast %4 : vector<1x128xf32> to vector<256x128xf32>
    %8 = arith.addf %6, %7 : vector<256x128xf32>
    %9 = vector.extract_strided_slice %8 {offsets = [0, 0], sizes = [256, 32], strides = [1, 1]} : vector<256x128xf32> to vector<256x32xf32>
    %10 = vector.extract_strided_slice %8 {offsets = [0, 32], sizes = [256, 32], strides = [1, 1]} : vector<256x128xf32> to vector<256x32xf32>
    %11 = vector.extract_strided_slice %8 {offsets = [0, 64], sizes = [256, 32], strides = [1, 1]} : vector<256x128xf32> to vector<256x32xf32>
    %12 = vector.extract_strided_slice %8 {offsets = [0, 96], sizes = [256, 32], strides = [1, 1]} : vector<256x128xf32> to vector<256x32xf32>
    %13 = arith.truncf %9 : vector<256x32xf32> to vector<256x32xbf16>
    %14 = arith.truncf %10 : vector<256x32xf32> to vector<256x32xbf16>
    %cst_9 = arith.constant dense<0.000000e+00> : vector<256x256xf32>
    %15 = tpu.matmul %13, %14, %cst_9 {dimension_numbers = #tpu.dot_dimension_numbers<[1], [1], [0], [0], [0, 0, 1, 0], [], []>} : vector<256x32xbf16>, vector<256x32xbf16>, vector<256x256xf32> -> vector<256x256xf32>
    %cst_10 = arith.constant 0.176776692 : f32
    %16 = vector.broadcast %cst_10 : f32 to vector<256x256xf32>
    %17 = arith.mulf %15, %16 : vector<256x256xf32>
    %18 = arith.addf %17, %0 : vector<256x256xf32>
    %cst_11 = arith.constant dense<0xFF800000> : vector<256xf32>
    %19 = vector.multi_reduction <maximumf>, %18, %cst_11 [1] : vector<256x256xf32> to vector<256xf32>
    %20 = vector.shape_cast %19 : vector<256xf32> to vector<256x1xf32>
    %21 = vector.broadcast %20 : vector<256x1xf32> to vector<256x256xf32>
    %22 = arith.subf %18, %21 : vector<256x256xf32>
    %23 = math.exp %22 : vector<256x256xf32>
    %cst_12 = arith.constant dense<0.000000e+00> : vector<256xf32>
    %24 = vector.multi_reduction <add>, %23, %cst_12 [1] : vector<256x256xf32> to vector<256xf32>
    %25 = vector.shape_cast %24 : vector<256xf32> to vector<256x1xf32>
    %26 = tpu.reciprocal %25 {approx = true} : vector<256x1xf32> -> vector<256x1xf32>
    %27 = vector.broadcast %26 : vector<256x1xf32> to vector<256x256xf32>
    %28 = arith.mulf %23, %27 : vector<256x256xf32>
    %29 = arith.truncf %28 : vector<256x256xf32> to vector<256x256xbf16>
    %30 = arith.truncf %11 : vector<256x32xf32> to vector<256x32xbf16>
    %cst_13 = arith.constant dense<0.000000e+00> : vector<256x32xf32>
    %31 = tpu.matmul %29, %30, %cst_13 {dimension_numbers = #tpu.dot_dimension_numbers<[1], [0], [0], [1], [0, 0, 1, 1], [], []>} : vector<256x256xbf16>, vector<256x32xbf16>, vector<256x32xf32> -> vector<256x32xf32>
    %32 = vector.broadcast %1 : vector<256x1xf32> to vector<256x32xf32>
    %33 = arith.mulf %31, %32 : vector<256x32xf32>
    %34 = arith.addf %33, %12 : vector<256x32xf32>
    %cst_14 = arith.constant 0.000000e+00 : f32
    %35 = vector.broadcast %cst_14 : f32 to vector<256x32xf32>
    %36 = arith.maximumf %34, %35 : vector<256x32xf32>
    %c0_15 = arith.constant 0 : index
    %c0_16 = arith.constant 0 : index
    %c0_17 = arith.constant 0 : index
    %37 = vector.load %arg6[%c0_15, %c0_16, %c0_17] : memref<4x32x128xbf16, #tpu.memory_space<vmem>>, vector<1x32x128xbf16>
    %38 = vector.shape_cast %37 : vector<1x32x128xbf16> to vector<32x128xbf16>
    %c0_18 = arith.constant 0 : index
    %c0_19 = arith.constant 0 : index
    %c0_20 = arith.constant 0 : index
    %39 = vector.load %arg7[%c0_18, %c0_19, %c0_20] : memref<4x1x128xf32, #tpu.memory_space<vmem>>, vector<1x1x128xf32>
    %40 = vector.shape_cast %39 : vector<1x1x128xf32> to vector<1x128xf32>
    %41 = arith.truncf %36 : vector<256x32xf32> to vector<256x32xbf16>
    %cst_21 = arith.constant dense<0.000000e+00> : vector<256x128xf32>
    %42 = tpu.matmul %41, %38, %cst_21 {dimension_numbers = #tpu.dot_dimension_numbers<[1], [0], [0], [1], [0, 0, 1, 1], [], []>} : vector<256x32xbf16>, vector<32x128xbf16>, vector<256x128xf32> -> vector<256x128xf32>
    %43 = vector.broadcast %40 : vector<1x128xf32> to vector<256x128xf32>
    %44 = arith.addf %42, %43 : vector<256x128xf32>
    %45 = vector.extract_strided_slice %44 {offsets = [0, 0], sizes = [256, 32], strides = [1, 1]} : vector<256x128xf32> to vector<256x32xf32>
    %46 = vector.extract_strided_slice %44 {offsets = [0, 32], sizes = [256, 32], strides = [1, 1]} : vector<256x128xf32> to vector<256x32xf32>
    %47 = vector.extract_strided_slice %44 {offsets = [0, 64], sizes = [256, 32], strides = [1, 1]} : vector<256x128xf32> to vector<256x32xf32>
    %48 = vector.extract_strided_slice %44 {offsets = [0, 96], sizes = [256, 32], strides = [1, 1]} : vector<256x128xf32> to vector<256x32xf32>
    %49 = arith.truncf %45 : vector<256x32xf32> to vector<256x32xbf16>
    %50 = arith.truncf %46 : vector<256x32xf32> to vector<256x32xbf16>
    %cst_22 = arith.constant dense<0.000000e+00> : vector<256x256xf32>
    %51 = tpu.matmul %49, %50, %cst_22 {dimension_numbers = #tpu.dot_dimension_numbers<[1], [1], [0], [0], [0, 0, 1, 0], [], []>} : vector<256x32xbf16>, vector<256x32xbf16>, vector<256x256xf32> -> vector<256x256xf32>
    %cst_23 = arith.constant 0.176776692 : f32
    %52 = vector.broadcast %cst_23 : f32 to vector<256x256xf32>
    %53 = arith.mulf %51, %52 : vector<256x256xf32>
    %54 = arith.addf %53, %0 : vector<256x256xf32>
    %cst_24 = arith.constant dense<0xFF800000> : vector<256xf32>
    %55 = vector.multi_reduction <maximumf>, %54, %cst_24 [1] : vector<256x256xf32> to vector<256xf32>
    %56 = vector.shape_cast %55 : vector<256xf32> to vector<256x1xf32>
    %57 = vector.broadcast %56 : vector<256x1xf32> to vector<256x256xf32>
    %58 = arith.subf %54, %57 : vector<256x256xf32>
    %59 = math.exp %58 : vector<256x256xf32>
    %cst_25 = arith.constant dense<0.000000e+00> : vector<256xf32>
    %60 = vector.multi_reduction <add>, %59, %cst_25 [1] : vector<256x256xf32> to vector<256xf32>
    %61 = vector.shape_cast %60 : vector<256xf32> to vector<256x1xf32>
    %62 = tpu.reciprocal %61 {approx = true} : vector<256x1xf32> -> vector<256x1xf32>
    %63 = vector.broadcast %62 : vector<256x1xf32> to vector<256x256xf32>
    %64 = arith.mulf %59, %63 : vector<256x256xf32>
    %65 = arith.truncf %64 : vector<256x256xf32> to vector<256x256xbf16>
    %66 = arith.truncf %47 : vector<256x32xf32> to vector<256x32xbf16>
    %cst_26 = arith.constant dense<0.000000e+00> : vector<256x32xf32>
    %67 = tpu.matmul %65, %66, %cst_26 {dimension_numbers = #tpu.dot_dimension_numbers<[1], [0], [0], [1], [0, 0, 1, 1], [], []>} : vector<256x256xbf16>, vector<256x32xbf16>, vector<256x32xf32> -> vector<256x32xf32>
    %68 = vector.broadcast %1 : vector<256x1xf32> to vector<256x32xf32>
    %69 = arith.mulf %67, %68 : vector<256x32xf32>
    %70 = arith.addf %69, %48 : vector<256x32xf32>
    %cst_27 = arith.constant 0.000000e+00 : f32
    %71 = vector.broadcast %cst_27 : f32 to vector<256x32xf32>
    %72 = arith.maximumf %70, %71 : vector<256x32xf32>
    %c1 = arith.constant 1 : index
    %c0_28 = arith.constant 0 : index
    %c0_29 = arith.constant 0 : index
    %73 = vector.load %arg6[%c1, %c0_28, %c0_29] : memref<4x32x128xbf16, #tpu.memory_space<vmem>>, vector<1x32x128xbf16>
    %74 = vector.shape_cast %73 : vector<1x32x128xbf16> to vector<32x128xbf16>
    %c1_30 = arith.constant 1 : index
    %c0_31 = arith.constant 0 : index
    %c0_32 = arith.constant 0 : index
    %75 = vector.load %arg7[%c1_30, %c0_31, %c0_32] : memref<4x1x128xf32, #tpu.memory_space<vmem>>, vector<1x1x128xf32>
    %76 = vector.shape_cast %75 : vector<1x1x128xf32> to vector<1x128xf32>
    %77 = arith.truncf %72 : vector<256x32xf32> to vector<256x32xbf16>
    %cst_33 = arith.constant dense<0.000000e+00> : vector<256x128xf32>
    %78 = tpu.matmul %77, %74, %cst_33 {dimension_numbers = #tpu.dot_dimension_numbers<[1], [0], [0], [1], [0, 0, 1, 1], [], []>} : vector<256x32xbf16>, vector<32x128xbf16>, vector<256x128xf32> -> vector<256x128xf32>
    %79 = vector.broadcast %76 : vector<1x128xf32> to vector<256x128xf32>
    %80 = arith.addf %78, %79 : vector<256x128xf32>
    %81 = vector.extract_strided_slice %80 {offsets = [0, 0], sizes = [256, 32], strides = [1, 1]} : vector<256x128xf32> to vector<256x32xf32>
    %82 = vector.extract_strided_slice %80 {offsets = [0, 32], sizes = [256, 32], strides = [1, 1]} : vector<256x128xf32> to vector<256x32xf32>
    %83 = vector.extract_strided_slice %80 {offsets = [0, 64], sizes = [256, 32], strides = [1, 1]} : vector<256x128xf32> to vector<256x32xf32>
    %84 = vector.extract_strided_slice %80 {offsets = [0, 96], sizes = [256, 32], strides = [1, 1]} : vector<256x128xf32> to vector<256x32xf32>
    %85 = arith.truncf %81 : vector<256x32xf32> to vector<256x32xbf16>
    %86 = arith.truncf %82 : vector<256x32xf32> to vector<256x32xbf16>
    %cst_34 = arith.constant dense<0.000000e+00> : vector<256x256xf32>
    %87 = tpu.matmul %85, %86, %cst_34 {dimension_numbers = #tpu.dot_dimension_numbers<[1], [1], [0], [0], [0, 0, 1, 0], [], []>} : vector<256x32xbf16>, vector<256x32xbf16>, vector<256x256xf32> -> vector<256x256xf32>
    %cst_35 = arith.constant 0.176776692 : f32
    %88 = vector.broadcast %cst_35 : f32 to vector<256x256xf32>
    %89 = arith.mulf %87, %88 : vector<256x256xf32>
    %90 = arith.addf %89, %0 : vector<256x256xf32>
    %cst_36 = arith.constant dense<0xFF800000> : vector<256xf32>
    %91 = vector.multi_reduction <maximumf>, %90, %cst_36 [1] : vector<256x256xf32> to vector<256xf32>
    %92 = vector.shape_cast %91 : vector<256xf32> to vector<256x1xf32>
    %93 = vector.broadcast %92 : vector<256x1xf32> to vector<256x256xf32>
    %94 = arith.subf %90, %93 : vector<256x256xf32>
    %95 = math.exp %94 : vector<256x256xf32>
    %cst_37 = arith.constant dense<0.000000e+00> : vector<256xf32>
    %96 = vector.multi_reduction <add>, %95, %cst_37 [1] : vector<256x256xf32> to vector<256xf32>
    %97 = vector.shape_cast %96 : vector<256xf32> to vector<256x1xf32>
    %98 = tpu.reciprocal %97 {approx = true} : vector<256x1xf32> -> vector<256x1xf32>
    %99 = vector.broadcast %98 : vector<256x1xf32> to vector<256x256xf32>
    %100 = arith.mulf %95, %99 : vector<256x256xf32>
    %101 = arith.truncf %100 : vector<256x256xf32> to vector<256x256xbf16>
    %102 = arith.truncf %83 : vector<256x32xf32> to vector<256x32xbf16>
    %cst_38 = arith.constant dense<0.000000e+00> : vector<256x32xf32>
    %103 = tpu.matmul %101, %102, %cst_38 {dimension_numbers = #tpu.dot_dimension_numbers<[1], [0], [0], [1], [0, 0, 1, 1], [], []>} : vector<256x256xbf16>, vector<256x32xbf16>, vector<256x32xf32> -> vector<256x32xf32>
    %104 = vector.broadcast %1 : vector<256x1xf32> to vector<256x32xf32>
    %105 = arith.mulf %103, %104 : vector<256x32xf32>
    %106 = arith.addf %105, %84 : vector<256x32xf32>
    %cst_39 = arith.constant 0.000000e+00 : f32
    %107 = vector.broadcast %cst_39 : f32 to vector<256x32xf32>
    %108 = arith.maximumf %106, %107 : vector<256x32xf32>
    %c2 = arith.constant 2 : index
    %c0_40 = arith.constant 0 : index
    %c0_41 = arith.constant 0 : index
    %109 = vector.load %arg6[%c2, %c0_40, %c0_41] : memref<4x32x128xbf16, #tpu.memory_space<vmem>>, vector<1x32x128xbf16>
    %110 = vector.shape_cast %109 : vector<1x32x128xbf16> to vector<32x128xbf16>
    %c2_42 = arith.constant 2 : index
    %c0_43 = arith.constant 0 : index
    %c0_44 = arith.constant 0 : index
    %111 = vector.load %arg7[%c2_42, %c0_43, %c0_44] : memref<4x1x128xf32, #tpu.memory_space<vmem>>, vector<1x1x128xf32>
    %112 = vector.shape_cast %111 : vector<1x1x128xf32> to vector<1x128xf32>
    %113 = arith.truncf %108 : vector<256x32xf32> to vector<256x32xbf16>
    %cst_45 = arith.constant dense<0.000000e+00> : vector<256x128xf32>
    %114 = tpu.matmul %113, %110, %cst_45 {dimension_numbers = #tpu.dot_dimension_numbers<[1], [0], [0], [1], [0, 0, 1, 1], [], []>} : vector<256x32xbf16>, vector<32x128xbf16>, vector<256x128xf32> -> vector<256x128xf32>
    %115 = vector.broadcast %112 : vector<1x128xf32> to vector<256x128xf32>
    %116 = arith.addf %114, %115 : vector<256x128xf32>
    %117 = vector.extract_strided_slice %116 {offsets = [0, 0], sizes = [256, 32], strides = [1, 1]} : vector<256x128xf32> to vector<256x32xf32>
    %118 = vector.extract_strided_slice %116 {offsets = [0, 32], sizes = [256, 32], strides = [1, 1]} : vector<256x128xf32> to vector<256x32xf32>
    %119 = vector.extract_strided_slice %116 {offsets = [0, 64], sizes = [256, 32], strides = [1, 1]} : vector<256x128xf32> to vector<256x32xf32>
    %120 = vector.extract_strided_slice %116 {offsets = [0, 96], sizes = [256, 32], strides = [1, 1]} : vector<256x128xf32> to vector<256x32xf32>
    %121 = arith.truncf %117 : vector<256x32xf32> to vector<256x32xbf16>
    %122 = arith.truncf %118 : vector<256x32xf32> to vector<256x32xbf16>
    %cst_46 = arith.constant dense<0.000000e+00> : vector<256x256xf32>
    %123 = tpu.matmul %121, %122, %cst_46 {dimension_numbers = #tpu.dot_dimension_numbers<[1], [1], [0], [0], [0, 0, 1, 0], [], []>} : vector<256x32xbf16>, vector<256x32xbf16>, vector<256x256xf32> -> vector<256x256xf32>
    %cst_47 = arith.constant 0.176776692 : f32
    %124 = vector.broadcast %cst_47 : f32 to vector<256x256xf32>
    %125 = arith.mulf %123, %124 : vector<256x256xf32>
    %126 = arith.addf %125, %0 : vector<256x256xf32>
    %cst_48 = arith.constant dense<0xFF800000> : vector<256xf32>
    %127 = vector.multi_reduction <maximumf>, %126, %cst_48 [1] : vector<256x256xf32> to vector<256xf32>
    %128 = vector.shape_cast %127 : vector<256xf32> to vector<256x1xf32>
    %129 = vector.broadcast %128 : vector<256x1xf32> to vector<256x256xf32>
    %130 = arith.subf %126, %129 : vector<256x256xf32>
    %131 = math.exp %130 : vector<256x256xf32>
    %cst_49 = arith.constant dense<0.000000e+00> : vector<256xf32>
    %132 = vector.multi_reduction <add>, %131, %cst_49 [1] : vector<256x256xf32> to vector<256xf32>
    %133 = vector.shape_cast %132 : vector<256xf32> to vector<256x1xf32>
    %134 = tpu.reciprocal %133 {approx = true} : vector<256x1xf32> -> vector<256x1xf32>
    %135 = vector.broadcast %134 : vector<256x1xf32> to vector<256x256xf32>
    %136 = arith.mulf %131, %135 : vector<256x256xf32>
    %137 = arith.truncf %136 : vector<256x256xf32> to vector<256x256xbf16>
    %138 = arith.truncf %119 : vector<256x32xf32> to vector<256x32xbf16>
    %cst_50 = arith.constant dense<0.000000e+00> : vector<256x32xf32>
    %139 = tpu.matmul %137, %138, %cst_50 {dimension_numbers = #tpu.dot_dimension_numbers<[1], [0], [0], [1], [0, 0, 1, 1], [], []>} : vector<256x256xbf16>, vector<256x32xbf16>, vector<256x32xf32> -> vector<256x32xf32>
    %140 = vector.broadcast %1 : vector<256x1xf32> to vector<256x32xf32>
    %141 = arith.mulf %139, %140 : vector<256x32xf32>
    %142 = arith.addf %141, %120 : vector<256x32xf32>
    %cst_51 = arith.constant 0.000000e+00 : f32
    %143 = vector.broadcast %cst_51 : f32 to vector<256x32xf32>
    %144 = arith.maximumf %142, %143 : vector<256x32xf32>
    %c3 = arith.constant 3 : index
    %c0_52 = arith.constant 0 : index
    %c0_53 = arith.constant 0 : index
    %145 = vector.load %arg6[%c3, %c0_52, %c0_53] : memref<4x32x128xbf16, #tpu.memory_space<vmem>>, vector<1x32x128xbf16>
    %146 = vector.shape_cast %145 : vector<1x32x128xbf16> to vector<32x128xbf16>
    %c3_54 = arith.constant 3 : index
    %c0_55 = arith.constant 0 : index
    %c0_56 = arith.constant 0 : index
    %147 = vector.load %arg7[%c3_54, %c0_55, %c0_56] : memref<4x1x128xf32, #tpu.memory_space<vmem>>, vector<1x1x128xf32>
    %148 = vector.shape_cast %147 : vector<1x1x128xf32> to vector<1x128xf32>
    %149 = arith.truncf %144 : vector<256x32xf32> to vector<256x32xbf16>
    %cst_57 = arith.constant dense<0.000000e+00> : vector<256x128xf32>
    %150 = tpu.matmul %149, %146, %cst_57 {dimension_numbers = #tpu.dot_dimension_numbers<[1], [0], [0], [1], [0, 0, 1, 1], [], []>} : vector<256x32xbf16>, vector<32x128xbf16>, vector<256x128xf32> -> vector<256x128xf32>
    %151 = vector.broadcast %148 : vector<1x128xf32> to vector<256x128xf32>
    %152 = arith.addf %150, %151 : vector<256x128xf32>
    %153 = vector.extract_strided_slice %152 {offsets = [0, 0], sizes = [256, 32], strides = [1, 1]} : vector<256x128xf32> to vector<256x32xf32>
    %154 = vector.extract_strided_slice %152 {offsets = [0, 32], sizes = [256, 32], strides = [1, 1]} : vector<256x128xf32> to vector<256x32xf32>
    %155 = vector.extract_strided_slice %152 {offsets = [0, 64], sizes = [256, 32], strides = [1, 1]} : vector<256x128xf32> to vector<256x32xf32>
    %156 = vector.extract_strided_slice %152 {offsets = [0, 96], sizes = [256, 32], strides = [1, 1]} : vector<256x128xf32> to vector<256x32xf32>
    %157 = arith.truncf %153 : vector<256x32xf32> to vector<256x32xbf16>
    %158 = arith.truncf %154 : vector<256x32xf32> to vector<256x32xbf16>
    %cst_58 = arith.constant dense<0.000000e+00> : vector<256x256xf32>
    %159 = tpu.matmul %157, %158, %cst_58 {dimension_numbers = #tpu.dot_dimension_numbers<[1], [1], [0], [0], [0, 0, 1, 0], [], []>} : vector<256x32xbf16>, vector<256x32xbf16>, vector<256x256xf32> -> vector<256x256xf32>
    %cst_59 = arith.constant 0.176776692 : f32
    %160 = vector.broadcast %cst_59 : f32 to vector<256x256xf32>
    %161 = arith.mulf %159, %160 : vector<256x256xf32>
    %162 = arith.addf %161, %0 : vector<256x256xf32>
    %cst_60 = arith.constant dense<0xFF800000> : vector<256xf32>
    %163 = vector.multi_reduction <maximumf>, %162, %cst_60 [1] : vector<256x256xf32> to vector<256xf32>
    %164 = vector.shape_cast %163 : vector<256xf32> to vector<256x1xf32>
    %165 = vector.broadcast %164 : vector<256x1xf32> to vector<256x256xf32>
    %166 = arith.subf %162, %165 : vector<256x256xf32>
    %167 = math.exp %166 : vector<256x256xf32>
    %cst_61 = arith.constant dense<0.000000e+00> : vector<256xf32>
    %168 = vector.multi_reduction <add>, %167, %cst_61 [1] : vector<256x256xf32> to vector<256xf32>
    %169 = vector.shape_cast %168 : vector<256xf32> to vector<256x1xf32>
    %170 = tpu.reciprocal %169 {approx = true} : vector<256x1xf32> -> vector<256x1xf32>
    %171 = vector.broadcast %170 : vector<256x1xf32> to vector<256x256xf32>
    %172 = arith.mulf %167, %171 : vector<256x256xf32>
    %173 = arith.truncf %172 : vector<256x256xf32> to vector<256x256xbf16>
    %174 = arith.truncf %155 : vector<256x32xf32> to vector<256x32xbf16>
    %cst_62 = arith.constant dense<0.000000e+00> : vector<256x32xf32>
    %175 = tpu.matmul %173, %174, %cst_62 {dimension_numbers = #tpu.dot_dimension_numbers<[1], [0], [0], [1], [0, 0, 1, 1], [], []>} : vector<256x256xbf16>, vector<256x32xbf16>, vector<256x32xf32> -> vector<256x32xf32>
    %176 = vector.broadcast %1 : vector<256x1xf32> to vector<256x32xf32>
    %177 = arith.mulf %175, %176 : vector<256x32xf32>
    %178 = arith.addf %177, %156 : vector<256x32xf32>
    %179 = vector.shape_cast %178 : vector<256x32xf32> to vector<16x16x32xf32>
    %cst_63 = arith.constant dense<0xFF800000> : vector<16x32xf32>
    %180 = vector.multi_reduction <maximumf>, %179, %cst_63 [1] : vector<16x16x32xf32> to vector<16x32xf32>
    %181 = arith.truncf %180 : vector<16x32xf32> to vector<16x32xbf16>
    %c0_64 = arith.constant 0 : index
    %c0_65 = arith.constant 0 : index
    %182 = vector.load %arg8[%c0_64, %c0_65] : memref<32x4xbf16, #tpu.memory_space<vmem>>, vector<32x4xbf16>
    %cst_66 = arith.constant dense<0.000000e+00> : vector<16x4xf32>
    %183 = tpu.matmul %181, %182, %cst_66 {dimension_numbers = #tpu.dot_dimension_numbers<[1], [0], [0], [1], [0, 0, 1, 1], [], []>} : vector<16x32xbf16>, vector<32x4xbf16>, vector<16x4xf32> -> vector<16x4xf32>
    %c0_67 = arith.constant 0 : index
    %c0_68 = arith.constant 0 : index
    %184 = vector.load %arg9[%c0_67, %c0_68] : memref<1x4xf32, #tpu.memory_space<vmem>>, vector<1x4xf32>
    %185 = vector.broadcast %184 : vector<1x4xf32> to vector<16x4xf32>
    %186 = arith.addf %183, %185 : vector<16x4xf32>
    %c0_69 = arith.constant 0 : index
    %c0_70 = arith.constant 0 : index
    %187 = vector.load %arg10[%c0_69, %c0_70] : memref<16x4xf32, #tpu.memory_space<vmem>>, vector<16x4xf32>
    tpu.vector_store %arg10[%c0_69, %c0_70], %186 {strides = array<i32>} : memref<16x4xf32, #tpu.memory_space<vmem>>, vector<16x4xf32>,
    return
  }
  func.func @transform_0(%arg0: i32) -> (i32, i32) {
    %c0_i32 = arith.constant 0 : i32
    %c0_i32_0 = arith.constant 0 : i32
    return %arg0, %c0_i32 : i32, i32
  }
  func.func @transform_1(%arg0: i32) -> (i32, i32) {
    %c0_i32 = arith.constant 0 : i32
    return %arg0, %arg0 : i32, i32
  }
  func.func @transform_2(%arg0: i32) -> (i32, i32) {
    %c0_i32 = arith.constant 0 : i32
    %c0_i32_0 = arith.constant 0 : i32
    return %arg0, %c0_i32 : i32, i32
  }
  func.func @transform_3(%arg0: i32) -> (i32, i32) {
    %c0_i32 = arith.constant 0 : i32
    %c0_i32_0 = arith.constant 0 : i32
    %c0_i32_1 = arith.constant 0 : i32
    return %c0_i32, %c0_i32_0 : i32, i32
  }
  func.func @transform_4(%arg0: i32) -> (i32, i32) {
    %c0_i32 = arith.constant 0 : i32
    %c0_i32_0 = arith.constant 0 : i32
    %c0_i32_1 = arith.constant 0 : i32
    return %c0_i32, %c0_i32_0 : i32, i32
  }
  func.func @transform_5(%arg0: i32) -> (i32, i32, i32) {
    %c0_i32 = arith.constant 0 : i32
    %c0_i32_0 = arith.constant 0 : i32
    %c0_i32_1 = arith.constant 0 : i32
    %c0_i32_2 = arith.constant 0 : i32
    return %c0_i32, %c0_i32_0, %c0_i32_1 : i32, i32, i32
  }
  func.func @transform_6(%arg0: i32) -> (i32, i32, i32) {
    %c0_i32 = arith.constant 0 : i32
    %c0_i32_0 = arith.constant 0 : i32
    %c0_i32_1 = arith.constant 0 : i32
    %c0_i32_2 = arith.constant 0 : i32
    return %c0_i32, %c0_i32_0, %c0_i32_1 : i32, i32, i32
  }
  func.func @transform_7(%arg0: i32) -> (i32, i32) {
    %c0_i32 = arith.constant 0 : i32
    %c0_i32_0 = arith.constant 0 : i32
    %c0_i32_1 = arith.constant 0 : i32
    return %c0_i32, %c0_i32_0 : i32, i32
  }
  func.func @transform_8(%arg0: i32) -> (i32, i32) {
    %c0_i32 = arith.constant 0 : i32
    %c0_i32_0 = arith.constant 0 : i32
    %c0_i32_1 = arith.constant 0 : i32
    return %c0_i32, %c0_i32_0 : i32, i32
  }
  func.func @transform_9(%arg0: i32) -> (i32, i32) {
    %c0_i32 = arith.constant 0 : i32
    %c0_i32_0 = arith.constant 0 : i32
    return %arg0, %c0_i32 : i32, i32
  }
}

</mosaic_0001>

<llo_original>
// kernel: tpu_custom_call.1
$region0: #{tpu_custom_call.1}
  #allocation0 [shape = 'u32[]', space=smem, size = 0x4, offset = 0x4, fixed_abs, tag = 'smem constant byte address 0x4 - core index']
  #allocation1 [shape = 'u32[72,128]{1,0:T(1,128)}', space=vmem, size = 0x9000, scoped, tag = 'internal scratch']
  %s0 = inlined_call_operand.vmem [shape: f32[256,8], index: 0, kind: input, shape index: {}]
  %s1 = inlined_call_operand.vmem [shape: f32[256,256], index: 1, kind: input, shape index: {}]
  %s2 = inlined_call_operand.vmem [shape: f32[256,1], index: 2, kind: input, shape index: {}]
  %s3 = inlined_call_operand.vmem [shape: bf16[8,128], index: 3, kind: input, shape index: {}]
  %s4 = inlined_call_operand.vmem [shape: f32[1,128], index: 4, kind: input, shape index: {}]
  %s5 = inlined_call_operand.hbm [shape: bf16[4,32,128], index: 5, kind: input, shape index: {}]
  %s6 = inlined_call_operand.vmem [shape: f32[4,1,128], index: 6, kind: input, shape index: {}]
  %s7 = inlined_call_operand.vmem [shape: bf16[32,4], index: 7, kind: input, shape index: {}]
  %s8 = inlined_call_operand.vmem [shape: f32[1,4], index: 8, kind: input, shape index: {}]
  %s9 = inlined_call_operand.vmem [shape: f32[16,4], index: 9, kind: output, shape index: {}]
  %s10 = sld [smem:[#allocation0]]
  $region50: #{tpu_custom_call.1} parent=0
    _
  %s12 = ssub.s32 1, %s10
  %s13 = scalar_select 0, %s12, %s10
  $region1: #{tpu_custom_call.1} parent=0
    #allocation2 [shape = 'u8[32768]{0}', space=vmem, size = 0x8000, scoped, tag = 'input window, operand 5, single buffered']
    #allocation3 [shape = 's32[1]{0}', space=sflag, size = 0x4, scoped, tag = 'scoped memory for tpu_custom_call.1']
    %14 = vsyncpa [#allocation3], 0
    // Predicated region
    $region2: #{tpu_custom_call.1} parent=1 // pred_check
      _
    $region3: #{tpu_custom_call.1} parent=1 // pred_check_branch
      %16 = sbr.rel (0) target = $region5
    $region4: #{tpu_custom_call.1} parent=1 // pred_region
      _
    $region5: #{tpu_custom_call.1} parent=1 // pred_fallthru
      _
    // Predicated region
    $region6: #{tpu_custom_call.1} parent=1 // pred_check
      _
    $region7: #{tpu_custom_call.1} parent=1 // pred_check_branch
      %18 = sbr.rel (0) target = $region9
    $region8: #{tpu_custom_call.1} parent=1 // pred_region
      _
    $region9: #{tpu_custom_call.1} parent=1 // pred_fallthru
      _
    // Predicated region
    $region10: #{tpu_custom_call.1} parent=1 // pred_check
      _
    $region11: #{tpu_custom_call.1} parent=1 // pred_check_branch
      %20 = sbr.rel (0) target = $region13
    $region12: #{tpu_custom_call.1} parent=1 // pred_region
      _
    $region13: #{tpu_custom_call.1} parent=1 // pred_fallthru
      _
    // Predicated region
    $region14: #{tpu_custom_call.1} parent=1 // pred_check
      _
    $region15: #{tpu_custom_call.1} parent=1 // pred_check_branch
      %22 = sbr.rel (0) target = $region17
    $region16: #{tpu_custom_call.1} parent=1 // pred_region
      _
    $region17: #{tpu_custom_call.1} parent=1 // pred_fallthru
      _
    // Predicated region
    $region18: #{tpu_custom_call.1} parent=1 // pred_check
      _
    $region19: #{tpu_custom_call.1} parent=1 // pred_check_branch
      %24 = sbr.rel (0) target = $region21
    $region20: #{tpu_custom_call.1} parent=1 // pred_region
      _
    $region21: #{tpu_custom_call.1} parent=1 // pred_fallthru
      _
    // Predicated region
    $region22: #{tpu_custom_call.1} parent=1 // pred_check
      _
    $region23: #{tpu_custom_call.1} parent=1 // pred_check_branch
      %26 = sbr.rel (0) target = $region25
    $region24: #{tpu_custom_call.1} parent=1 // pred_region
      %28 = vsyncadd [#allocation3], 0
      %s29 = sshll.u32 %s5, 4
      %s30 = int_to_ptr.hbm [resolvable:$true] %s29
      %s31 = sshll.u32 [#allocation2], 4
      %s32 = int_to_ptr.vmem [resolvable:$true] %s31
      %37 = dma.hbm_to_vmem [thread:$0]  %s30, 1024, %s32, [#allocation3], 64, 64, 4
    $region25: #{tpu_custom_call.1} parent=1 // pred_fallthru
      _
    // Predicated region
    $region26: #{tpu_custom_call.1} parent=1 // pred_check
      _
    $region27: #{tpu_custom_call.1} parent=1 // pred_check_branch
      %39 = sbr.rel (0) target = $region29
    $region28: #{tpu_custom_call.1} parent=1 // pred_region
      _
    $region29: #{tpu_custom_call.1} parent=1 // pred_fallthru
      _
    // Predicated region
    $region30: #{tpu_custom_call.1} parent=1 // pred_check
      _
    $region31: #{tpu_custom_call.1} parent=1 // pred_check_branch
      %41 = sbr.rel (0) target = $region33
    $region32: #{tpu_custom_call.1} parent=1 // pred_region
      _
    $region33: #{tpu_custom_call.1} parent=1 // pred_fallthru
      _
    // Predicated region
    $region34: #{tpu_custom_call.1} parent=1 // pred_check
      _
    $region35: #{tpu_custom_call.1} parent=1 // pred_check_branch
      %43 = sbr.rel (0) target = $region37
    $region36: #{tpu_custom_call.1} parent=1 // pred_region
      _
    $region37: #{tpu_custom_call.1} parent=1 // pred_fallthru
      _
    // Predicated region
    $region38: #{tpu_custom_call.1} parent=1 // pred_check
      _
    $region39: #{tpu_custom_call.1} parent=1 // pred_check_branch
      %45 = sbr.rel (0) target = $region41
    $region40: #{tpu_custom_call.1} parent=1 // pred_region
      %47 = dma.done [#allocation3], 1024
    $region41: #{tpu_custom_call.1} parent=1 // pred_fallthru
      _
    %v49 = vld [vmem:[%s1] sm:$0xff]
    %v50 = vld [vmem:[%s1 + $0x8] sm:$0xff]
    %v51 = vld [vmem:[%s1 + $0x10] sm:$0xff]
    %v52 = vld [vmem:[%s1 + $0x18] sm:$0xff]
    %v53 = vld [vmem:[%s1 + $0x20] sm:$0xff]
    %v54 = vld [vmem:[%s1 + $0x28] sm:$0xff]
    %v55 = vld [vmem:[%s1 + $0x30] sm:$0xff]
    %v56 = vld [vmem:[%s1 + $0x38] sm:$0xff]
    %v57 = vld [vmem:[%s1 + $0x40] sm:$0xff]
    %v58 = vld [vmem:[%s1 + $0x48] sm:$0xff]
    %v59 = vld [vmem:[%s1 + $0x50] sm:$0xff]
    %v60 = vld [vmem:[%s1 + $0x58] sm:$0xff]
    %v61 = vld [vmem:[%s1 + $0x60] sm:$0xff]
    %v62 = vld [vmem:[%s1 + $0x68] sm:$0xff]
    %v63 = vld [vmem:[%s1 + $0x70] sm:$0xff]
    %v64 = vld [vmem:[%s1 + $0x78] sm:$0xff]
    %v65 = vld [vmem:[%s1 + $0x80] sm:$0xff]
    %v66 = vld [vmem:[%s1 + $0x88] sm:$0xff]
    %v67 = vld [vmem:[%s1 + $0x90] sm:$0xff]
    %v68 = vld [vmem:[%s1 + $0x98] sm:$0xff]
    %v69 = vld [vmem:[%s1 + $0xa0] sm:$0xff]
    %v70 = vld [vmem:[%s1 + $0xa8] sm:$0xff]
    %v71 = vld [vmem:[%s1 + $0xb0] sm:$0xff]
    %v72 = vld [vmem:[%s1 + $0xb8] sm:$0xff]
    %v73 = vld [vmem:[%s1 + $0xc0] sm:$0xff]
    %v74 = vld [vmem:[%s1 + $0xc8] sm:$0xff]
    %v75 = vld [vmem:[%s1 + $0xd0] sm:$0xff]
    %v76 = vld [vmem:[%s1 + $0xd8] sm:$0xff]
    %v77 = vld [vmem:[%s1 + $0xe0] sm:$0xff]
    %v78 = vld [vmem:[%s1 + $0xe8] sm:$0xff]
    %v79 = vld [vmem:[%s1 + $0xf0] sm:$0xff]
    %v80 = vld [vmem:[%s1 + $0xf8] sm:$0xff]
    %v81 = vld [vmem:[%s1 + $0x100] sm:$0xff]
    %v82 = vld [vmem:[%s1 + $0x108] sm:$0xff]
    %v83 = vld [vmem:[%s1 + $0x110] sm:$0xff]
    %v84 = vld [vmem:[%s1 + $0x118] sm:$0xff]
    %v85 = vld [vmem:[%s1 + $0x120] sm:$0xff]
    %v86 = vld [vmem:[%s1 + $0x128] sm:$0xff]
    %v87 = vld [vmem:[%s1 + $0x130] sm:$0xff]
    %v88 = vld [vmem:[%s1 + $0x138] sm:$0xff]
    %v89 = vld [vmem:[%s1 + $0x140] sm:$0xff]
    %v90 = vld [vmem:[%s1 + $0x148] sm:$0xff]
    %v91 = vld [vmem:[%s1 + $0x150] sm:$0xff]
    %v92 = vld [vmem:[%s1 + $0x158] sm:$0xff]
    %v93 = vld [vmem:[%s1 + $0x160] sm:$0xff]
    %v94 = vld [vmem:[%s1 + $0x168] sm:$0xff]
    %v95 = vld [vmem:[%s1 + $0x170] sm:$0xff]
    %v96 = vld [vmem:[%s1 + $0x178] sm:$0xff]
    %v97 = vld [vmem:[%s1 + $0x180] sm:$0xff]
    %v98 = vld [vmem:[%s1 + $0x188] sm:$0xff]
    %v99 = vld [vmem:[%s1 + $0x190] sm:$0xff]
    %v100 = vld [vmem:[%s1 + $0x198] sm:$0xff]
    %v101 = vld [vmem:[%s1 + $0x1a0] sm:$0xff]
    %v102 = vld [vmem:[%s1 + $0x1a8] sm:$0xff]
    %v103 = vld [vmem:[%s1 + $0x1b0] sm:$0xff]
    %v104 = vld [vmem:[%s1 + $0x1b8] sm:$0xff]
    %v105 = vld [vmem:[%s1 + $0x1c0] sm:$0xff]
    %v106 = vld [vmem:[%s1 + $0x1c8] sm:$0xff]
    %v107 = vld [vmem:[%s1 + $0x1d0] sm:$0xff]
    %v108 = vld [vmem:[%s1 + $0x1d8] sm:$0xff]
    %v109 = vld [vmem:[%s1 + $0x1e0] sm:$0xff]
    %v110 = vld [vmem:[%s1 + $0x1e8] sm:$0xff]
    %v111 = vld [vmem:[%s1 + $0x1f0] sm:$0xff]
    %v112 = vld [vmem:[%s1 + $0x1f8] sm:$0xff]
    %v113 = vld [vmem:[%s2] sm:$0xff]
    %v114 = vld [vmem:[%s2 + $0x8] sm:$0xff]
    %v115 = vld [vmem:[%s2 + $0x10] sm:$0xff]
    %v116 = vld [vmem:[%s2 + $0x18] sm:$0xff]
    %v117 = vld [vmem:[%s2 + $0x20] sm:$0xff]
    %v118 = vld [vmem:[%s2 + $0x28] sm:$0xff]
    %v119 = vld [vmem:[%s2 + $0x30] sm:$0xff]
    %v120 = vld [vmem:[%s2 + $0x38] sm:$0xff]
    %v121 = vld [vmem:[%s2 + $0x40] sm:$0xff]
    %v122 = vld [vmem:[%s2 + $0x48] sm:$0xff]
    %v123 = vld [vmem:[%s2 + $0x50] sm:$0xff]
    %v124 = vld [vmem:[%s2 + $0x58] sm:$0xff]
    %v125 = vld [vmem:[%s2 + $0x60] sm:$0xff]
    %v126 = vld [vmem:[%s2 + $0x68] sm:$0xff]
    %v127 = vld [vmem:[%s2 + $0x70] sm:$0xff]
    %v128 = vld [vmem:[%s2 + $0x78] sm:$0xff]
    %v129 = vld [vmem:[%s2 + $0x80] sm:$0xff]
    %v130 = vld [vmem:[%s2 + $0x88] sm:$0xff]
    %v131 = vld [vmem:[%s2 + $0x90] sm:$0xff]
    %v132 = vld [vmem:[%s2 + $0x98] sm:$0xff]
    %v133 = vld [vmem:[%s2 + $0xa0] sm:$0xff]
    %v134 = vld [vmem:[%s2 + $0xa8] sm:$0xff]
    %v135 = vld [vmem:[%s2 + $0xb0] sm:$0xff]
    %v136 = vld [vmem:[%s2 + $0xb8] sm:$0xff]
    %v137 = vld [vmem:[%s2 + $0xc0] sm:$0xff]
    %v138 = vld [vmem:[%s2 + $0xc8] sm:$0xff]
    %v139 = vld [vmem:[%s2 + $0xd0] sm:$0xff]
    %v140 = vld [vmem:[%s2 + $0xd8] sm:$0xff]
    %v141 = vld [vmem:[%s2 + $0xe0] sm:$0xff]
    %v142 = vld [vmem:[%s2 + $0xe8] sm:$0xff]
    %v143 = vld [vmem:[%s2 + $0xf0] sm:$0xff]
    %v144 = vld [vmem:[%s2 + $0xf8] sm:$0xff]
    %v145 = vld [vmem:[%s0] sm:$0xff]
    %v146 = vld [vmem:[%s0 + $0x8] sm:$0xff]
    %v147 = vld [vmem:[%s0 + $0x10] sm:$0xff]
    %v148 = vld [vmem:[%s0 + $0x18] sm:$0xff]
    %v149 = vld [vmem:[%s0 + $0x20] sm:$0xff]
    %v150 = vld [vmem:[%s0 + $0x28] sm:$0xff]
    %v151 = vld [vmem:[%s0 + $0x30] sm:$0xff]
    %v152 = vld [vmem:[%s0 + $0x38] sm:$0xff]
    %v153 = vld [vmem:[%s0 + $0x40] sm:$0xff]
    %v154 = vld [vmem:[%s0 + $0x48] sm:$0xff]
    %v155 = vld [vmem:[%s0 + $0x50] sm:$0xff]
    %v156 = vld [vmem:[%s0 + $0x58] sm:$0xff]
    %v157 = vld [vmem:[%s0 + $0x60] sm:$0xff]
    %v158 = vld [vmem:[%s0 + $0x68] sm:$0xff]
    %v159 = vld [vmem:[%s0 + $0x70] sm:$0xff]
    %v160 = vld [vmem:[%s0 + $0x78] sm:$0xff]
    %v161 = vld [vmem:[%s0 + $0x80] sm:$0xff]
    %v162 = vld [vmem:[%s0 + $0x88] sm:$0xff]
    %v163 = vld [vmem:[%s0 + $0x90] sm:$0xff]
    %v164 = vld [vmem:[%s0 + $0x98] sm:$0xff]
    %v165 = vld [vmem:[%s0 + $0xa0] sm:$0xff]
    %v166 = vld [vmem:[%s0 + $0xa8] sm:$0xff]
    %v167 = vld [vmem:[%s0 + $0xb0] sm:$0xff]
    %v168 = vld [vmem:[%s0 + $0xb8] sm:$0xff]
    %v169 = vld [vmem:[%s0 + $0xc0] sm:$0xff]
    %v170 = vld [vmem:[%s0 + $0xc8] sm:$0xff]
    %v171 = vld [vmem:[%s0 + $0xd0] sm:$0xff]
    %v172 = vld [vmem:[%s0 + $0xd8] sm:$0xff]
    %v173 = vld [vmem:[%s0 + $0xe0] sm:$0xff]
    %v174 = vld [vmem:[%s0 + $0xe8] sm:$0xff]
    %v175 = vld [vmem:[%s0 + $0xf0] sm:$0xff]
    %v176 = vld [vmem:[%s0 + $0xf8] sm:$0xff]
    %v177 = vld [vmem:[%s3] sm:$0xf]
    %v178 = vld [vmem:[%s4] sm:$0x1]
    %v179 = vpack.c.bf16 %v146, %v145
    %v180 = vpack.c.bf16 %v148, %v147
    %v181 = vpack.c.bf16 %v150, %v149
    %v182 = vpack.c.bf16 %v152, %v151
    %v183 = vpack.c.bf16 %v154, %v153
    %v184 = vpack.c.bf16 %v156, %v155
    %v185 = vpack.c.bf16 %v158, %v157
    %v186 = vpack.c.bf16 %v160, %v159
    %v187 = vpack.c.bf16 %v162, %v161
    %v188 = vpack.c.bf16 %v164, %v163
    %v189 = vpack.c.bf16 %v166, %v165
    %v190 = vpack.c.bf16 %v168, %v167
    %v191 = vpack.c.bf16 %v170, %v169
    %v192 = vpack.c.bf16 %v172, %v171
    %v193 = vpack.c.bf16 %v174, %v173
    %v194 = vpack.c.bf16 %v176, %v175
    %v196 = vperm.slane %v178, 0
    %vm198 = vcmask 64512
    %v200 = vsel %vm198, %v179, 0
    %v203 = vsel %vm198, %v180, 0
    %v206 = vsel %vm198, %v181, 0
    %v209 = vsel %vm198, %v182, 0
    %v212 = vsel %vm198, %v183, 0
    %v215 = vsel %vm198, %v184, 0
    %v218 = vsel %vm198, %v185, 0
    %v221 = vsel %vm198, %v186, 0
    %v224 = vsel %vm198, %v187, 0
    %v227 = vsel %vm198, %v188, 0
    %v230 = vsel %vm198, %v189, 0
    %v233 = vsel %vm198, %v190, 0
    %v236 = vsel %vm198, %v191, 0
    %v239 = vsel %vm198, %v192, 0
    %v242 = vsel %vm198, %v193, 0
    %v245 = vsel %vm198, %v194, 0
    %vm247 = vcmask 1043456
    %v249 = vsel %vm247, %v177, 0
    %251 = vmatpush.bf16.msra.mxu0 0
    %252 = vmatpush.bf16.msra.mxu0 0
    %253 = vmatpush.bf16.msra.mxu0 0
    %254 = vmatpush.bf16.msra.mxu0 0
    %255 = vmatpush.bf16.msra.mxu0 0
    %256 = vmatpush.bf16.msra.mxu0 0
    %257 = vmatpush.bf16.msra.mxu0 0
    %258 = vmatpush.bf16.msra.mxu0 %v249
    %259 = vmatmul.bf16.gmra.mxu0 %v200
    %v260 = vpop.f32.mrf.mxu0
    %v261 = vadd.f32 %v196, %v260
    %v262 = vpop.f32.mrf.mxu0
    %v263 = vadd.f32 %v196, %v262
    %264 = vmatmul.bf16.gmra.mxu0 %v203
    %v265 = vpop.f32.mrf.mxu0
    %v266 = vadd.f32 %v196, %v265
    %v267 = vpop.f32.mrf.mxu0
    %v268 = vadd.f32 %v196, %v267
    %269 = vmatmul.bf16.gmra.mxu0 %v206
    %v270 = vpop.f32.mrf.mxu0
    %v271 = vadd.f32 %v196, %v270
    %v272 = vpop.f32.mrf.mxu0
    %v273 = vadd.f32 %v196, %v272
    %274 = vmatmul.bf16.gmra.mxu0 %v209
    %v275 = vpop.f32.mrf.mxu0
    %v276 = vadd.f32 %v196, %v275
    %v277 = vpop.f32.mrf.mxu0
    %v278 = vadd.f32 %v196, %v277
    %279 = vmatmul.bf16.gmra.mxu0 %v212
    %v280 = vpop.f32.mrf.mxu0
    %v281 = vadd.f32 %v196, %v280
    %v282 = vpop.f32.mrf.mxu0
    %v283 = vadd.f32 %v196, %v282
    %284 = vmatmul.bf16.gmra.mxu0 %v215
    %v285 = vpop.f32.mrf.mxu0
    %v286 = vadd.f32 %v196, %v285
    %v287 = vpop.f32.mrf.mxu0
    %v288 = vadd.f32 %v196, %v287
    %289 = vmatmul.bf16.gmra.mxu0 %v218
    %v290 = vpop.f32.mrf.mxu0
    %v291 = vadd.f32 %v196, %v290
    %v292 = vpop.f32.mrf.mxu0
    %v293 = vadd.f32 %v196, %v292
    %294 = vmatmul.bf16.gmra.mxu0 %v221
    %v295 = vpop.f32.mrf.mxu0
    %v296 = vadd.f32 %v196, %v295
    %v297 = vpop.f32.mrf.mxu0
    %v298 = vadd.f32 %v196, %v297
    %299 = vmatmul.bf16.gmra.mxu0 %v224
    %v300 = vpop.f32.mrf.mxu0
    %v301 = vadd.f32 %v196, %v300
    %v302 = vpop.f32.mrf.mxu0
    %v303 = vadd.f32 %v196, %v302
    %304 = vmatmul.bf16.gmra.mxu0 %v227
    %v305 = vpop.f32.mrf.mxu0
    %v306 = vadd.f32 %v196, %v305
    %v307 = vpop.f32.mrf.mxu0
    %v308 = vadd.f32 %v196, %v307
    %309 = vmatmul.bf16.gmra.mxu0 %v230
    %v310 = vpop.f32.mrf.mxu0
    %v311 = vadd.f32 %v196, %v310
    %v312 = vpop.f32.mrf.mxu0
    %v313 = vadd.f32 %v196, %v312
    %314 = vmatmul.bf16.gmra.mxu0 %v233
    %v315 = vpop.f32.mrf.mxu0
    %v316 = vadd.f32 %v196, %v315
    %v317 = vpop.f32.mrf.mxu0
    %v318 = vadd.f32 %v196, %v317
    %319 = vmatmul.bf16.gmra.mxu0 %v236
    %v320 = vpop.f32.mrf.mxu0
    %v321 = vadd.f32 %v196, %v320
    %v322 = vpop.f32.mrf.mxu0
    %v323 = vadd.f32 %v196, %v322
    %324 = vmatmul.bf16.gmra.mxu0 %v239
    %v325 = vpop.f32.mrf.mxu0
    %v326 = vadd.f32 %v196, %v325
    %v327 = vpop.f32.mrf.mxu0
    %v328 = vadd.f32 %v196, %v327
    %329 = vmatmul.bf16.gmra.mxu0 %v242
    %v330 = vpop.f32.mrf.mxu0
    %v331 = vadd.f32 %v196, %v330
    %v332 = vpop.f32.mrf.mxu0
    %v333 = vadd.f32 %v196, %v332
    %334 = vmatmul.bf16.gmra.mxu0 %v245
    %v335 = vpop.f32.mrf.mxu0
    %v336 = vadd.f32 %v196, %v335
    %v337 = vpop.f32.mrf.mxu0
    %v338 = vadd.f32 %v196, %v337
    %339 = vdwg.mxu0
    %v340 = vpack.c.bf16 %v263, %v261
    %v341 = vpack.c.bf16 %v268, %v266
    %v342 = vpack.c.bf16 %v273, %v271
    %v343 = vpack.c.bf16 %v278, %v276
    %v344 = vpack.c.bf16 %v283, %v281
    %v345 = vpack.c.bf16 %v288, %v286
    %v346 = vpack.c.bf16 %v293, %v291
    %v347 = vpack.c.bf16 %v298, %v296
    %v348 = vpack.c.bf16 %v303, %v301
    %v349 = vpack.c.bf16 %v308, %v306
    %v350 = vpack.c.bf16 %v313, %v311
    %v351 = vpack.c.bf16 %v318, %v316
    %v352 = vpack.c.bf16 %v323, %v321
    %v353 = vpack.c.bf16 %v328, %v326
    %v354 = vpack.c.bf16 %v333, %v331
    %v355 = vpack.c.bf16 %v338, %v336
    %372 = vrot.lane.b32.xlu0 %v340, 96
    %v373 = vpop.permute.xlu0 %372
    %374 = vrot.lane.b32.xlu0 %v341, 96
    %v375 = vpop.permute.xlu0 %374
    %376 = vrot.lane.b32.xlu0 %v342, 96
    %v377 = vpop.permute.xlu0 %376
    %378 = vrot.lane.b32.xlu0 %v343, 96
    %v379 = vpop.permute.xlu0 %378
    %380 = vrot.lane.b32.xlu0 %v344, 96
    %v381 = vpop.permute.xlu0 %380
    %382 = vrot.lane.b32.xlu0 %v345, 96
    %v383 = vpop.permute.xlu0 %382
    %384 = vrot.lane.b32.xlu0 %v346, 96
    %v385 = vpop.permute.xlu0 %384
    %386 = vrot.lane.b32.xlu0 %v347, 96
    %v387 = vpop.permute.xlu0 %386
    %388 = vrot.lane.b32.xlu0 %v348, 96
    %v389 = vpop.permute.xlu0 %388
    %390 = vrot.lane.b32.xlu0 %v349, 96
    %v391 = vpop.permute.xlu0 %390
    %392 = vrot.lane.b32.xlu0 %v350, 96
    %v393 = vpop.permute.xlu0 %392
    %394 = vrot.lane.b32.xlu0 %v351, 96
    %v395 = vpop.permute.xlu0 %394
    %396 = vrot.lane.b32.xlu0 %v352, 96
    %v397 = vpop.permute.xlu0 %396
    %398 = vrot.lane.b32.xlu0 %v353, 96
    %v399 = vpop.permute.xlu0 %398
    %400 = vrot.lane.b32.xlu0 %v354, 96
    %v401 = vpop.permute.xlu0 %400
    %402 = vrot.lane.b32.xlu0 %v355, 96
    %v403 = vpop.permute.xlu0 %402
    %vm404 = vcmask 261120
    %v406 = vsel %vm404, %v340, 0
    %v409 = vsel %vm404, %v341, 0
    %v412 = vsel %vm404, %v342, 0
    %v415 = vsel %vm404, %v343, 0
    %v418 = vsel %vm404, %v344, 0
    %v421 = vsel %vm404, %v345, 0
    %v424 = vsel %vm404, %v346, 0
    %v427 = vsel %vm404, %v347, 0
    %v430 = vsel %vm404, %v348, 0
    %v433 = vsel %vm404, %v349, 0
    %v436 = vsel %vm404, %v350, 0
    %v439 = vsel %vm404, %v351, 0
    %v442 = vsel %vm404, %v352, 0
    %v445 = vsel %vm404, %v353, 0
    %v448 = vsel %vm404, %v354, 0
    %v451 = vsel %vm404, %v355, 0
    %v454 = vsel %vm404, %v373, 0
    %v457 = vsel %vm404, %v375, 0
    %v460 = vsel %vm404, %v377, 0
    %v463 = vsel %vm404, %v379, 0
    %v466 = vsel %vm404, %v381, 0
    %v469 = vsel %vm404, %v383, 0
    %v472 = vsel %vm404, %v385, 0
    %v475 = vsel %vm404, %v387, 0
    %v478 = vsel %vm404, %v389, 0
    %v481 = vsel %vm404, %v391, 0
    %v484 = vsel %vm404, %v393, 0
    %v487 = vsel %vm404, %v395, 0
    %v490 = vsel %vm404, %v397, 0
    %v493 = vsel %vm404, %v399, 0
    %v496 = vsel %vm404, %v401, 0
    %v499 = vsel %vm404, %v403, 0
    %501 = vmatpush.bf16.xpose.msra.mxu0 %v475
    %502 = vmatpush.bf16.xpose.msra.mxu0 %v472
    %503 = vmatpush.bf16.xpose.msra.mxu0 %v469
    %504 = vmatpush.bf16.xpose.msra.mxu0 %v466
    %505 = vmatpush.bf16.xpose.msra.mxu0 %v463
    %506 = vmatpush.bf16.xpose.msra.mxu0 %v460
    %507 = vmatpush.bf16.xpose.msra.mxu0 %v457
    %508 = vmatpush.bf16.xpose.msra.mxu0 %v454
    %509 = vmatmul.bf16.gmra.mxu0 %v406
    %v510 = vpop.f32.mrf.mxu0
    %v511 = vadd.f32 0.0, %v510
    %v512 = vpop.f32.mrf.mxu0
    %v513 = vadd.f32 0.0, %v512
    %514 = vmatmul.bf16.gmra.mxu0 %v409
    %v515 = vpop.f32.mrf.mxu0
    %v516 = vadd.f32 0.0, %v515
    %v517 = vpop.f32.mrf.mxu0
    %v518 = vadd.f32 0.0, %v517
    %519 = vmatmul.bf16.gmra.mxu0 %v412
    %v520 = vpop.f32.mrf.mxu0
    %v521 = vadd.f32 0.0, %v520
    %v522 = vpop.f32.mrf.mxu0
    %v523 = vadd.f32 0.0, %v522
    %524 = vmatmul.bf16.gmra.mxu0 %v415
    %v525 = vpop.f32.mrf.mxu0
    %v526 = vadd.f32 0.0, %v525
    %v527 = vpop.f32.mrf.mxu0
    %v528 = vadd.f32 0.0, %v527
    %529 = vmatmul.bf16.gmra.mxu0 %v418
    %v530 = vpop.f32.mrf.mxu0
    %v531 = vadd.f32 0.0, %v530
    %v532 = vpop.f32.mrf.mxu0
    %v533 = vadd.f32 0.0, %v532
    %534 = vmatmul.bf16.gmra.mxu0 %v421
    %v535 = vpop.f32.mrf.mxu0
    %v536 = vadd.f32 0.0, %v535
    %v537 = vpop.f32.mrf.mxu0
    %v538 = vadd.f32 0.0, %v537
    %539 = vmatmul.bf16.gmra.mxu0 %v424
    %v540 = vpop.f32.mrf.mxu0
    %v541 = vadd.f32 0.0, %v540
    %v542 = vpop.f32.mrf.mxu0
    %v543 = vadd.f32 0.0, %v542
    %544 = vmatmul.bf16.gmra.mxu0 %v427
    %v545 = vpop.f32.mrf.mxu0
    %v546 = vadd.f32 0.0, %v545
    %v547 = vpop.f32.mrf.mxu0
    %v548 = vadd.f32 0.0, %v547
    %549 = vmatmul.bf16.gmra.mxu0 %v430
    %v550 = vpop.f32.mrf.mxu0
    %v551 = vadd.f32 0.0, %v550
    %v552 = vpop.f32.mrf.mxu0
    %v553 = vadd.f32 0.0, %v552
    %554 = vmatmul.bf16.gmra.mxu0 %v433
    %v555 = vpop.f32.mrf.mxu0
    %v556 = vadd.f32 0.0, %v555
    %v557 = vpop.f32.mrf.mxu0
    %v558 = vadd.f32 0.0, %v557
    %559 = vmatmul.bf16.gmra.mxu0 %v436
    %v560 = vpop.f32.mrf.mxu0
    %v561 = vadd.f32 0.0, %v560
    %v562 = vpop.f32.mrf.mxu0
    %v563 = vadd.f32 0.0, %v562
    %564 = vmatmul.bf16.gmra.mxu0 %v439
    %v565 = vpop.f32.mrf.mxu0
    %v566 = vadd.f32 0.0, %v565
    %v567 = vpop.f32.mrf.mxu0
    %v568 = vadd.f32 0.0, %v567
    %569 = vmatmul.bf16.gmra.mxu0 %v442
    %v570 = vpop.f32.mrf.mxu0
    %v571 = vadd.f32 0.0, %v570
    %v572 = vpop.f32.mrf.mxu0
    %v573 = vadd.f32 0.0, %v572
    %574 = vmatmul.bf16.gmra.mxu0 %v445
    %v575 = vpop.f32.mrf.mxu0
    %v576 = vadd.f32 0.0, %v575
    %v577 = vpop.f32.mrf.mxu0
    %v578 = vadd.f32 0.0, %v577
    %579 = vmatmul.bf16.gmra.mxu0 %v448
    %v580 = vpop.f32.mrf.mxu0
    %v581 = vadd.f32 0.0, %v580
    %v582 = vpop.f32.mrf.mxu0
    %v583 = vadd.f32 0.0, %v582
    %584 = vmatmul.bf16.gmra.mxu0 %v451
    %v585 = vpop.f32.mrf.mxu0
    %v586 = vadd.f32 0.0, %v585
    %v587 = vpop.f32.mrf.mxu0
    %v588 = vadd.f32 0.0, %v587
    %589 = vdwg.mxu0
    %590 = vmatpush.bf16.xpose.msra.mxu0 %v499
    %591 = vmatpush.bf16.xpose.msra.mxu0 %v496
    %592 = vmatpush.bf16.xpose.msra.mxu0 %v493
    %593 = vmatpush.bf16.xpose.msra.mxu0 %v490
    %594 = vmatpush.bf16.xpose.msra.mxu0 %v487
    %595 = vmatpush.bf16.xpose.msra.mxu0 %v484
    %596 = vmatpush.bf16.xpose.msra.mxu0 %v481
    %597 = vmatpush.bf16.xpose.msra.mxu0 %v478
    %598 = vmatmul.bf16.gmra.mxu0 %v406
    %v599 = vpop.f32.mrf.mxu0
    %v600 = vadd.f32 0.0, %v599
    %v601 = vpop.f32.mrf.mxu0
    %v602 = vadd.f32 0.0, %v601
    %603 = vmatmul.bf16.gmra.mxu0 %v409
    %v604 = vpop.f32.mrf.mxu0
    %v605 = vadd.f32 0.0, %v604
    %v606 = vpop.f32.mrf.mxu0
    %v607 = vadd.f32 0.0, %v606
    %608 = vmatmul.bf16.gmra.mxu0 %v412
    %v609 = vpop.f32.mrf.mxu0
    %v610 = vadd.f32 0.0, %v609
    %v611 = vpop.f32.mrf.mxu0
    %v612 = vadd.f32 0.0, %v611
    %613 = vmatmul.bf16.gmra.mxu0 %v415
    %v614 = vpop.f32.mrf.mxu0
    %v615 = vadd.f32 0.0, %v614
    %v616 = vpop.f32.mrf.mxu0
    %v617 = vadd.f32 0.0, %v616
    %618 = vmatmul.bf16.gmra.mxu0 %v418
    %v619 = vpop.f32.mrf.mxu0
    %v620 = vadd.f32 0.0, %v619
    %v621 = vpop.f32.mrf.mxu0
    %v622 = vadd.f32 0.0, %v621
    %623 = vmatmul.bf16.gmra.mxu0 %v421
    %v624 = vpop.f32.mrf.mxu0
    %v625 = vadd.f32 0.0, %v624
    %v626 = vpop.f32.mrf.mxu0
    %v627 = vadd.f32 0.0, %v626
    %628 = vmatmul.bf16.gmra.mxu0 %v424
    %v629 = vpop.f32.mrf.mxu0
    %v630 = vadd.f32 0.0, %v629
    %v631 = vpop.f32.mrf.mxu0
    %v632 = vadd.f32 0.0, %v631
    %633 = vmatmul.bf16.gmra.mxu0 %v427
    %v634 = vpop.f32.mrf.mxu0
    %v635 = vadd.f32 0.0, %v634
    %v636 = vpop.f32.mrf.mxu0
    %v637 = vadd.f32 0.0, %v636
    %638 = vmatmul.bf16.gmra.mxu0 %v430
    %v639 = vpop.f32.mrf.mxu0
    %v640 = vadd.f32 0.0, %v639
    %v641 = vpop.f32.mrf.mxu0
    %v642 = vadd.f32 0.0, %v641
    %643 = vmatmul.bf16.gmra.mxu0 %v433
    %v644 = vpop.f32.mrf.mxu0
    %v645 = vadd.f32 0.0, %v644
    %v646 = vpop.f32.mrf.mxu0
    %v647 = vadd.f32 0.0, %v646
    %648 = vmatmul.bf16.gmra.mxu0 %v436
    %v649 = vpop.f32.mrf.mxu0
    %v650 = vadd.f32 0.0, %v649
    %v651 = vpop.f32.mrf.mxu0
    %v652 = vadd.f32 0.0, %v651
    %653 = vmatmul.bf16.gmra.mxu0 %v439
    %v654 = vpop.f32.mrf.mxu0
    %v655 = vadd.f32 0.0, %v654
    %v656 = vpop.f32.mrf.mxu0
    %v657 = vadd.f32 0.0, %v656
    %658 = vmatmul.bf16.gmra.mxu0 %v442
    %v659 = vpop.f32.mrf.mxu0
    %v660 = vadd.f32 0.0, %v659
    %v661 = vpop.f32.mrf.mxu0
    %v662 = vadd.f32 0.0, %v661
    %663 = vmatmul.bf16.gmra.mxu0 %v445
    %v664 = vpop.f32.mrf.mxu0
    %v665 = vadd.f32 0.0, %v664
    %v666 = vpop.f32.mrf.mxu0
    %v667 = vadd.f32 0.0, %v666
    %668 = vmatmul.bf16.gmra.mxu0 %v448
    %v669 = vpop.f32.mrf.mxu0
    %v670 = vadd.f32 0.0, %v669
    %v671 = vpop.f32.mrf.mxu0
    %v672 = vadd.f32 0.0, %v671
    %673 = vmatmul.bf16.gmra.mxu0 %v451
    %v674 = vpop.f32.mrf.mxu0
    %v675 = vadd.f32 0.0, %v674
    %v676 = vpop.f32.mrf.mxu0
    %v677 = vadd.f32 0.0, %v676
    %678 = vdwg.mxu0
    %v679 = vmul.f32 %v511, 0.17677669
    %v680 = vmul.f32 %v600, 0.17677669
    %v681 = vmul.f32 %v513, 0.17677669
    %v682 = vmul.f32 %v602, 0.17677669
    %v683 = vmul.f32 %v516, 0.17677669
    %v684 = vmul.f32 %v605, 0.17677669
    %v685 = vmul.f32 %v518, 0.17677669
    %v686 = vmul.f32 %v607, 0.17677669
    %v687 = vmul.f32 %v521, 0.17677669
    %v688 = vmul.f32 %v610, 0.17677669
    %v689 = vmul.f32 %v523, 0.17677669
    %v690 = vmul.f32 %v612, 0.17677669
    %v691 = vmul.f32 %v526, 0.17677669
    %v692 = vmul.f32 %v615, 0.17677669
    %v693 = vmul.f32 %v528, 0.17677669
    %v694 = vmul.f32 %v617, 0.17677669
    %v695 = vmul.f32 %v531, 0.17677669
    %v696 = vmul.f32 %v620, 0.17677669
    %v697 = vmul.f32 %v533, 0.17677669
    %v698 = vmul.f32 %v622, 0.17677669
    %v699 = vmul.f32 %v536, 0.17677669
    %v700 = vmul.f32 %v625, 0.17677669
    %v701 = vmul.f32 %v538, 0.17677669
    %v702 = vmul.f32 %v627, 0.17677669
    %v703 = vmul.f32 %v541, 0.17677669
    %v704 = vmul.f32 %v630, 0.17677669
    %v705 = vmul.f32 %v543, 0.17677669
    %v706 = vmul.f32 %v632, 0.17677669
    %v707 = vmul.f32 %v546, 0.17677669
    %v708 = vmul.f32 %v635, 0.17677669
    %v709 = vmul.f32 %v548, 0.17677669
    %v710 = vmul.f32 %v637, 0.17677669
    %v711 = vmul.f32 %v551, 0.17677669
    %v712 = vmul.f32 %v640, 0.17677669
    %v713 = vmul.f32 %v553, 0.17677669
    %v714 = vmul.f32 %v642, 0.17677669
    %v715 = vmul.f32 %v556, 0.17677669
    %v716 = vmul.f32 %v645, 0.17677669
    %v717 = vmul.f32 %v558, 0.17677669
    %v718 = vmul.f32 %v647, 0.17677669
    %v719 = vmul.f32 %v561, 0.17677669
    %v720 = vmul.f32 %v650, 0.17677669
    %v721 = vmul.f32 %v563, 0.17677669
    %v722 = vmul.f32 %v652, 0.17677669
    %v723 = vmul.f32 %v566, 0.17677669
    %v724 = vmul.f32 %v655, 0.17677669
    %v725 = vmul.f32 %v568, 0.17677669
    %v726 = vmul.f32 %v657, 0.17677669
    %v727 = vmul.f32 %v571, 0.17677669
    %v728 = vmul.f32 %v660, 0.17677669
    %v729 = vmul.f32 %v573, 0.17677669
    %v730 = vmul.f32 %v662, 0.17677669
    %v731 = vmul.f32 %v576, 0.17677669
    %v732 = vmul.f32 %v665, 0.17677669
    %v733 = vmul.f32 %v578, 0.17677669
    %v734 = vmul.f32 %v667, 0.17677669
    %v735 = vmul.f32 %v581, 0.17677669
    %v736 = vmul.f32 %v670, 0.17677669
    %v737 = vmul.f32 %v583, 0.17677669
    %v738 = vmul.f32 %v672, 0.17677669
    %v739 = vmul.f32 %v586, 0.17677669
    %v740 = vmul.f32 %v675, 0.17677669
    %v741 = vmul.f32 %v588, 0.17677669
    %v742 = vmul.f32 %v677, 0.17677669
    %v743 = vadd.f32 %v679, %v49
    %v744 = vadd.f32 %v680, %v50
    %v745 = vadd.f32 %v681, %v51
    %v746 = vadd.f32 %v682, %v52
    %v747 = vadd.f32 %v683, %v53
    %v748 = vadd.f32 %v684, %v54
    %v749 = vadd.f32 %v685, %v55
    %v750 = vadd.f32 %v686, %v56
    %v751 = vadd.f32 %v687, %v57
    %v752 = vadd.f32 %v688, %v58
    %v753 = vadd.f32 %v689, %v59
    %v754 = vadd.f32 %v690, %v60
    %v755 = vadd.f32 %v691, %v61
    %v756 = vadd.f32 %v692, %v62
    %v757 = vadd.f32 %v693, %v63
    %v758 = vadd.f32 %v694, %v64
    %v759 = vadd.f32 %v695, %v65
    %v760 = vadd.f32 %v696, %v66
    %v761 = vadd.f32 %v697, %v67
    %v762 = vadd.f32 %v698, %v68
    %v763 = vadd.f32 %v699, %v69
    %v764 = vadd.f32 %v700, %v70
    %v765 = vadd.f32 %v701, %v71
    %v766 = vadd.f32 %v702, %v72
    %v767 = vadd.f32 %v703, %v73
    %v768 = vadd.f32 %v704, %v74
    %v769 = vadd.f32 %v705, %v75
    %v770 = vadd.f32 %v706, %v76
    %v771 = vadd.f32 %v707, %v77
    %v772 = vadd.f32 %v708, %v78
    %v773 = vadd.f32 %v709, %v79
    %v774 = vadd.f32 %v710, %v80
    %v775 = vadd.f32 %v711, %v81
    %v776 = vadd.f32 %v712, %v82
    %v777 = vadd.f32 %v713, %v83
    %v778 = vadd.f32 %v714, %v84
    %v779 = vadd.f32 %v715, %v85
    %v780 = vadd.f32 %v716, %v86
    %v781 = vadd.f32 %v717, %v87
    %v782 = vadd.f32 %v718, %v88
    %v783 = vadd.f32 %v719, %v89
    %v784 = vadd.f32 %v720, %v90
    %v785 = vadd.f32 %v721, %v91
    %v786 = vadd.f32 %v722, %v92
    %v787 = vadd.f32 %v723, %v93
    %v788 = vadd.f32 %v724, %v94
    %v789 = vadd.f32 %v725, %v95
    %v790 = vadd.f32 %v726, %v96
    %v791 = vadd.f32 %v727, %v97
    %v792 = vadd.f32 %v728, %v98
    %v793 = vadd.f32 %v729, %v99
    %v794 = vadd.f32 %v730, %v100
    %v795 = vadd.f32 %v731, %v101
    %v796 = vadd.f32 %v732, %v102
    %v797 = vadd.f32 %v733, %v103
    %v798 = vadd.f32 %v734, %v104
    %v799 = vadd.f32 %v735, %v105
    %v800 = vadd.f32 %v736, %v106
    %v801 = vadd.f32 %v737, %v107
    %v802 = vadd.f32 %v738, %v108
    %v803 = vadd.f32 %v739, %v109
    %v804 = vadd.f32 %v740, %v110
    %v805 = vadd.f32 %v741, %v111
    %v806 = vadd.f32 %v742, %v112
    %v807 = vmax.f32 %v743, %v744
    %808 = vmax.xlane.f32.xlu0 %v807
    %v809 = vpop.xlane.xlu0 %808
    %v810 = vmax.f32 %v745, %v746
    %811 = vmax.xlane.f32.xlu0 %v810
    %v812 = vpop.xlane.xlu0 %811
    %v813 = vmax.f32 %v747, %v748
    %814 = vmax.xlane.f32.xlu0 %v813
    %v815 = vpop.xlane.xlu0 %814
    %v816 = vmax.f32 %v749, %v750
    %817 = vmax.xlane.f32.xlu0 %v816
    %v818 = vpop.xlane.xlu0 %817
    %v819 = vmax.f32 %v751, %v752
    %820 = vmax.xlane.f32.xlu0 %v819
    %v821 = vpop.xlane.xlu0 %820
    %v822 = vmax.f32 %v753, %v754
    %823 = vmax.xlane.f32.xlu0 %v822
    %v824 = vpop.xlane.xlu0 %823
    %v825 = vmax.f32 %v755, %v756
    %826 = vmax.xlane.f32.xlu0 %v825
    %v827 = vpop.xlane.xlu0 %826
    %v828 = vmax.f32 %v757, %v758
    %829 = vmax.xlane.f32.xlu0 %v828
    %v830 = vpop.xlane.xlu0 %829
    %v831 = vmax.f32 %v759, %v760
    %832 = vmax.xlane.f32.xlu0 %v831
    %v833 = vpop.xlane.xlu0 %832
    %v834 = vmax.f32 %v761, %v762
    %835 = vmax.xlane.f32.xlu0 %v834
    %v836 = vpop.xlane.xlu0 %835
    %v837 = vmax.f32 %v763, %v764
    %838 = vmax.xlane.f32.xlu0 %v837
    %v839 = vpop.xlane.xlu0 %838
    %v840 = vmax.f32 %v765, %v766
    %841 = vmax.xlane.f32.xlu0 %v840
    %v842 = vpop.xlane.xlu0 %841
    %v843 = vmax.f32 %v767, %v768
    %844 = vmax.xlane.f32.xlu0 %v843
    %v845 = vpop.xlane.xlu0 %844
    %v846 = vmax.f32 %v769, %v770
    %847 = vmax.xlane.f32.xlu0 %v846
    %v848 = vpop.xlane.xlu0 %847
    %v849 = vmax.f32 %v771, %v772
    %850 = vmax.xlane.f32.xlu0 %v849
    %v851 = vpop.xlane.xlu0 %850
    %v852 = vmax.f32 %v773, %v774
    %853 = vmax.xlane.f32.xlu0 %v852
    %v854 = vpop.xlane.xlu0 %853
    %v855 = vmax.f32 %v775, %v776
    %856 = vmax.xlane.f32.xlu0 %v855
    %v857 = vpop.xlane.xlu0 %856
    %v858 = vmax.f32 %v777, %v778
    %859 = vmax.xlane.f32.xlu0 %v858
    %v860 = vpop.xlane.xlu0 %859
    %v861 = vmax.f32 %v779, %v780
    %862 = vmax.xlane.f32.xlu0 %v861
    %v863 = vpop.xlane.xlu0 %862
    %v864 = vmax.f32 %v781, %v782
    %865 = vmax.xlane.f32.xlu0 %v864
    %v866 = vpop.xlane.xlu0 %865
    %v867 = vmax.f32 %v783, %v784
    %868 = vmax.xlane.f32.xlu0 %v867
    %v869 = vpop.xlane.xlu0 %868
    %v870 = vmax.f32 %v785, %v786
    %871 = vmax.xlane.f32.xlu0 %v870
    %v872 = vpop.xlane.xlu0 %871
    %v873 = vmax.f32 %v787, %v788
    %874 = vmax.xlane.f32.xlu0 %v873
    %v875 = vpop.xlane.xlu0 %874
    %v876 = vmax.f32 %v789, %v790
    %877 = vmax.xlane.f32.xlu0 %v876
    %v878 = vpop.xlane.xlu0 %877
    %v879 = vmax.f32 %v791, %v792
    %880 = vmax.xlane.f32.xlu0 %v879
    %v881 = vpop.xlane.xlu0 %880
    %v882 = vmax.f32 %v793, %v794
    %883 = vmax.xlane.f32.xlu0 %v882
    %v884 = vpop.xlane.xlu0 %883
    %v885 = vmax.f32 %v795, %v796
    %886 = vmax.xlane.f32.xlu0 %v885
    %v887 = vpop.xlane.xlu0 %886
    %v888 = vmax.f32 %v797, %v798
    %889 = vmax.xlane.f32.xlu0 %v888
    %v890 = vpop.xlane.xlu0 %889
    %v891 = vmax.f32 %v799, %v800
    %892 = vmax.xlane.f32.xlu0 %v891
    %v893 = vpop.xlane.xlu0 %892
    %v894 = vmax.f32 %v801, %v802
    %895 = vmax.xlane.f32.xlu0 %v894
    %v896 = vpop.xlane.xlu0 %895
    %v897 = vmax.f32 %v803, %v804
    %898 = vmax.xlane.f32.xlu0 %v897
    %v899 = vpop.xlane.xlu0 %898
    %v900 = vmax.f32 %v805, %v806
    %901 = vmax.xlane.f32.xlu0 %v900
    %v902 = vpop.xlane.xlu0 %901
    %v903 = vsub.f32 %v743, %v809
    %v904 = vsub.f32 %v744, %v809
    %v905 = vsub.f32 %v745, %v812
    %v906 = vsub.f32 %v746, %v812
    %v907 = vsub.f32 %v747, %v815
    %v908 = vsub.f32 %v748, %v815
    %v909 = vsub.f32 %v749, %v818
    %v910 = vsub.f32 %v750, %v818
    %v911 = vsub.f32 %v751, %v821
    %v912 = vsub.f32 %v752, %v821
    %v913 = vsub.f32 %v753, %v824
    %v914 = vsub.f32 %v754, %v824
    %v915 = vsub.f32 %v755, %v827
    %v916 = vsub.f32 %v756, %v827
    %v917 = vsub.f32 %v757, %v830
    %v918 = vsub.f32 %v758, %v830
    %v919 = vsub.f32 %v759, %v833
    %v920 = vsub.f32 %v760, %v833
    %v921 = vsub.f32 %v761, %v836
    %v922 = vsub.f32 %v762, %v836
    %v923 = vsub.f32 %v763, %v839
    %v924 = vsub.f32 %v764, %v839
    %v925 = vsub.f32 %v765, %v842
    %v926 = vsub.f32 %v766, %v842
    %v927 = vsub.f32 %v767, %v845
    %v928 = vsub.f32 %v768, %v845
    %v929 = vsub.f32 %v769, %v848
    %v930 = vsub.f32 %v770, %v848
    %v931 = vsub.f32 %v771, %v851
    %v932 = vsub.f32 %v772, %v851
    %v933 = vsub.f32 %v773, %v854
    %v934 = vsub.f32 %v774, %v854
    %v935 = vsub.f32 %v775, %v857
    %v936 = vsub.f32 %v776, %v857
    %v937 = vsub.f32 %v777, %v860
    %v938 = vsub.f32 %v778, %v860
    %v939 = vsub.f32 %v779, %v863
    %v940 = vsub.f32 %v780, %v863
    %v941 = vsub.f32 %v781, %v866
    %v942 = vsub.f32 %v782, %v866
    %v943 = vsub.f32 %v783, %v869
    %v944 = vsub.f32 %v784, %v869
    %v945 = vsub.f32 %v785, %v872
    %v946 = vsub.f32 %v786, %v872
    %v947 = vsub.f32 %v787, %v875
    %v948 = vsub.f32 %v788, %v875
    %v949 = vsub.f32 %v789, %v878
    %v950 = vsub.f32 %v790, %v878
    %v951 = vsub.f32 %v791, %v881
    %v952 = vsub.f32 %v792, %v881
    %v953 = vsub.f32 %v793, %v884
    %v954 = vsub.f32 %v794, %v884
    %v955 = vsub.f32 %v795, %v887
    %v956 = vsub.f32 %v796, %v887
    %v957 = vsub.f32 %v797, %v890
    %v958 = vsub.f32 %v798, %v890
    %v959 = vsub.f32 %v799, %v893
    %v960 = vsub.f32 %v800, %v893
    %v961 = vsub.f32 %v801, %v896
    %v962 = vsub.f32 %v802, %v896
    %v963 = vsub.f32 %v803, %v899
    %v964 = vsub.f32 %v804, %v899
    %v965 = vsub.f32 %v805, %v902
    %v966 = vsub.f32 %v806, %v902
    %v967 = vmul.f32 %v903, 1.442695
    %v968 = vpow.pop %v967
    %v969 = vmul.f32 %v904, 1.442695
    %v970 = vpow.pop %v969
    %v971 = vmul.f32 %v905, 1.442695
    %v972 = vpow.pop %v971
    %v973 = vmul.f32 %v906, 1.442695
    %v974 = vpow.pop %v973
    %v975 = vmul.f32 %v907, 1.442695
    %v976 = vpow.pop %v975
    %v977 = vmul.f32 %v908, 1.442695
    %v978 = vpow.pop %v977
    %v979 = vmul.f32 %v909, 1.442695
    %v980 = vpow.pop %v979
    %v981 = vmul.f32 %v910, 1.442695
    %v982 = vpow.pop %v981
    %v983 = vmul.f32 %v911, 1.442695
    %v984 = vpow.pop %v983
    %v985 = vmul.f32 %v912, 1.442695
    %v986 = vpow.pop %v985
    %v987 = vmul.f32 %v913, 1.442695
    %v988 = vpow.pop %v987
    %v989 = vmul.f32 %v914, 1.442695
    %v990 = vpow.pop %v989
    %v991 = vmul.f32 %v915, 1.442695
    %v992 = vpow.pop %v991
    %v993 = vmul.f32 %v916, 1.442695
    %v994 = vpow.pop %v993
    %v995 = vmul.f32 %v917, 1.442695
    %v996 = vpow.pop %v995
    %v997 = vmul.f32 %v918, 1.442695
    %v998 = vpow.pop %v997
    %v999 = vmul.f32 %v919, 1.442695
    %v1000 = vpow.pop %v999
    %v1001 = vmul.f32 %v920, 1.442695
    %v1002 = vpow.pop %v1001
    %v1003 = vmul.f32 %v921, 1.442695
    %v1004 = vpow.pop %v1003
    %v1005 = vmul.f32 %v922, 1.442695
    %v1006 = vpow.pop %v1005
    %v1007 = vmul.f32 %v923, 1.442695
    %v1008 = vpow.pop %v1007
    %v1009 = vmul.f32 %v924, 1.442695
    %v1010 = vpow.pop %v1009
    %v1011 = vmul.f32 %v925, 1.442695
    %v1012 = vpow.pop %v1011
    %v1013 = vmul.f32 %v926, 1.442695
    %v1014 = vpow.pop %v1013
    %v1015 = vmul.f32 %v927, 1.442695
    %v1016 = vpow.pop %v1015
    %v1017 = vmul.f32 %v928, 1.442695
    %v1018 = vpow.pop %v1017
    %v1019 = vmul.f32 %v929, 1.442695
    %v1020 = vpow.pop %v1019
    %v1021 = vmul.f32 %v930, 1.442695
    %v1022 = vpow.pop %v1021
    %v1023 = vmul.f32 %v931, 1.442695
    %v1024 = vpow.pop %v1023
    %v1025 = vmul.f32 %v932, 1.442695
    %v1026 = vpow.pop %v1025
    %v1027 = vmul.f32 %v933, 1.442695
    %v1028 = vpow.pop %v1027
    %v1029 = vmul.f32 %v934, 1.442695
    %v1030 = vpow.pop %v1029
    %v1031 = vmul.f32 %v935, 1.442695
    %v1032 = vpow.pop %v1031
    %v1033 = vmul.f32 %v936, 1.442695
    %v1034 = vpow.pop %v1033
    %v1035 = vmul.f32 %v937, 1.442695
    %v1036 = vpow.pop %v1035
    %v1037 = vmul.f32 %v938, 1.442695
    %v1038 = vpow.pop %v1037
    %v1039 = vmul.f32 %v939, 1.442695
    %v1040 = vpow.pop %v1039
    %v1041 = vmul.f32 %v940, 1.442695
    %v1042 = vpow.pop %v1041
    %v1043 = vmul.f32 %v941, 1.442695
    %v1044 = vpow.pop %v1043
    %v1045 = vmul.f32 %v942, 1.442695
    %v1046 = vpow.pop %v1045
    %v1047 = vmul.f32 %v943, 1.442695
    %v1048 = vpow.pop %v1047
    %v1049 = vmul.f32 %v944, 1.442695
    %v1050 = vpow.pop %v1049
    %v1051 = vmul.f32 %v945, 1.442695
    %v1052 = vpow.pop %v1051
    %v1053 = vmul.f32 %v946, 1.442695
    %v1054 = vpow.pop %v1053
    %v1055 = vmul.f32 %v947, 1.442695
    %v1056 = vpow.pop %v1055
    %v1057 = vmul.f32 %v948, 1.442695
    %v1058 = vpow.pop %v1057
    %v1059 = vmul.f32 %v949, 1.442695
    %v1060 = vpow.pop %v1059
    %v1061 = vmul.f32 %v950, 1.442695
    %v1062 = vpow.pop %v1061
    %v1063 = vmul.f32 %v951, 1.442695
    %v1064 = vpow.pop %v1063
    %v1065 = vmul.f32 %v952, 1.442695
    %v1066 = vpow.pop %v1065
    %v1067 = vmul.f32 %v953, 1.442695
    %v1068 = vpow.pop %v1067
    %v1069 = vmul.f32 %v954, 1.442695
    %v1070 = vpow.pop %v1069
    %v1071 = vmul.f32 %v955, 1.442695
    %v1072 = vpow.pop %v1071
    %v1073 = vmul.f32 %v956, 1.442695
    %v1074 = vpow.pop %v1073
    %v1075 = vmul.f32 %v957, 1.442695
    %v1076 = vpow.pop %v1075
    %v1077 = vmul.f32 %v958, 1.442695
    %v1078 = vpow.pop %v1077
    %v1079 = vmul.f32 %v959, 1.442695
    %v1080 = vpow.pop %v1079
    %v1081 = vmul.f32 %v960, 1.442695
    %v1082 = vpow.pop %v1081
    %v1083 = vmul.f32 %v961, 1.442695
    %v1084 = vpow.pop %v1083
    %v1085 = vmul.f32 %v962, 1.442695
    %v1086 = vpow.pop %v1085
    %v1087 = vmul.f32 %v963, 1.442695
    %v1088 = vpow.pop %v1087
    %v1089 = vmul.f32 %v964, 1.442695
    %v1090 = vpow.pop %v1089
    %v1091 = vmul.f32 %v965, 1.442695
    %v1092 = vpow.pop %v1091
    %v1093 = vmul.f32 %v966, 1.442695
    %v1094 = vpow.pop %v1093
    %v1095 = vadd.f32 %v968, %v970
    %1096 = vadd.xlane.f32.xlu0 %v1095
    %v1097 = vpop.xlane.xlu0 %1096
    %v1098 = vadd.f32 %v972, %v974
    %1099 = vadd.xlane.f32.xlu0 %v1098
    %v1100 = vpop.xlane.xlu0 %1099
    %v1101 = vadd.f32 %v976, %v978
    %1102 = vadd.xlane.f32.xlu0 %v1101
    %v1103 = vpop.xlane.xlu0 %1102
    %v1104 = vadd.f32 %v980, %v982
    %1105 = vadd.xlane.f32.xlu0 %v1104
    %v1106 = vpop.xlane.xlu0 %1105
    %v1107 = vadd.f32 %v984, %v986
    %1108 = vadd.xlane.f32.xlu0 %v1107
    %v1109 = vpop.xlane.xlu0 %1108
    %v1110 = vadd.f32 %v988, %v990
    %1111 = vadd.xlane.f32.xlu0 %v1110
    %v1112 = vpop.xlane.xlu0 %1111
    %v1113 = vadd.f32 %v992, %v994
    %1114 = vadd.xlane.f32.xlu0 %v1113
    %v1115 = vpop.xlane.xlu0 %1114
    %v1116 = vadd.f32 %v996, %v998
    %1117 = vadd.xlane.f32.xlu0 %v1116
    %v1118 = vpop.xlane.xlu0 %1117
    %v1119 = vadd.f32 %v1000, %v1002
    %1120 = vadd.xlane.f32.xlu0 %v1119
    %v1121 = vpop.xlane.xlu0 %1120
    %v1122 = vadd.f32 %v1004, %v1006
    %1123 = vadd.xlane.f32.xlu0 %v1122
    %v1124 = vpop.xlane.xlu0 %1123
    %v1125 = vadd.f32 %v1008, %v1010
    %1126 = vadd.xlane.f32.xlu0 %v1125
    %v1127 = vpop.xlane.xlu0 %1126
    %v1128 = vadd.f32 %v1012, %v1014
    %1129 = vadd.xlane.f32.xlu0 %v1128
    %v1130 = vpop.xlane.xlu0 %1129
    %v1131 = vadd.f32 %v1016, %v1018
    %1132 = vadd.xlane.f32.xlu0 %v1131
    %v1133 = vpop.xlane.xlu0 %1132
    %v1134 = vadd.f32 %v1020, %v1022
    %1135 = vadd.xlane.f32.xlu0 %v1134
    %v1136 = vpop.xlane.xlu0 %1135
    %v1137 = vadd.f32 %v1024, %v1026
    %1138 = vadd.xlane.f32.xlu0 %v1137
    %v1139 = vpop.xlane.xlu0 %1138
    %v1140 = vadd.f32 %v1028, %v1030
    %1141 = vadd.xlane.f32.xlu0 %v1140
    %v1142 = vpop.xlane.xlu0 %1141
    %v1143 = vadd.f32 %v1032, %v1034
    %1144 = vadd.xlane.f32.xlu0 %v1143
    %v1145 = vpop.xlane.xlu0 %1144
    %v1146 = vadd.f32 %v1036, %v1038
    %1147 = vadd.xlane.f32.xlu0 %v1146
    %v1148 = vpop.xlane.xlu0 %1147
    %v1149 = vadd.f32 %v1040, %v1042
    %1150 = vadd.xlane.f32.xlu0 %v1149
    %v1151 = vpop.xlane.xlu0 %1150
    %v1152 = vadd.f32 %v1044, %v1046
    %1153 = vadd.xlane.f32.xlu0 %v1152
    %v1154 = vpop.xlane.xlu0 %1153
    %v1155 = vadd.f32 %v1048, %v1050
    %1156 = vadd.xlane.f32.xlu0 %v1155
    %v1157 = vpop.xlane.xlu0 %1156
    %v1158 = vadd.f32 %v1052, %v1054
    %1159 = vadd.xlane.f32.xlu0 %v1158
    %v1160 = vpop.xlane.xlu0 %1159
    %v1161 = vadd.f32 %v1056, %v1058
    %1162 = vadd.xlane.f32.xlu0 %v1161
    %v1163 = vpop.xlane.xlu0 %1162
    %v1164 = vadd.f32 %v1060, %v1062
    %1165 = vadd.xlane.f32.xlu0 %v1164
    %v1166 = vpop.xlane.xlu0 %1165
    %v1167 = vadd.f32 %v1064, %v1066
    %1168 = vadd.xlane.f32.xlu0 %v1167
    %v1169 = vpop.xlane.xlu0 %1168
    %v1170 = vadd.f32 %v1068, %v1070
    %1171 = vadd.xlane.f32.xlu0 %v1170
    %v1172 = vpop.xlane.xlu0 %1171
    %v1173 = vadd.f32 %v1072, %v1074
    %1174 = vadd.xlane.f32.xlu0 %v1173
    %v1175 = vpop.xlane.xlu0 %1174
    %v1176 = vadd.f32 %v1076, %v1078
    %1177 = vadd.xlane.f32.xlu0 %v1176
    %v1178 = vpop.xlane.xlu0 %1177
    %v1179 = vadd.f32 %v1080, %v1082
    %1180 = vadd.xlane.f32.xlu0 %v1179
    %v1181 = vpop.xlane.xlu0 %1180
    %v1182 = vadd.f32 %v1084, %v1086
    %1183 = vadd.xlane.f32.xlu0 %v1182
    %v1184 = vpop.xlane.xlu0 %1183
    %v1185 = vadd.f32 %v1088, %v1090
    %1186 = vadd.xlane.f32.xlu0 %v1185
    %v1187 = vpop.xlane.xlu0 %1186
    %v1188 = vadd.f32 %v1092, %v1094
    %1189 = vadd.xlane.f32.xlu0 %v1188
    %v1190 = vpop.xlane.xlu0 %1189
    %v1191 = vrcp.pop %v1097
    %v1192 = vrcp.pop %v1100
    %v1193 = vrcp.pop %v1103
    %v1194 = vrcp.pop %v1106
    %v1195 = vrcp.pop %v1109
    %v1196 = vrcp.pop %v1112
    %v1197 = vrcp.pop %v1115
    %v1198 = vrcp.pop %v1118
    %v1199 = vrcp.pop %v1121
    %v1200 = vrcp.pop %v1124
    %v1201 = vrcp.pop %v1127
    %v1202 = vrcp.pop %v1130
    %v1203 = vrcp.pop %v1133
    %v1204 = vrcp.pop %v1136
    %v1205 = vrcp.pop %v1139
    %v1206 = vrcp.pop %v1142
    %v1207 = vrcp.pop %v1145
    %v1208 = vrcp.pop %v1148
    %v1209 = vrcp.pop %v1151
    %v1210 = vrcp.pop %v1154
    %v1211 = vrcp.pop %v1157
    %v1212 = vrcp.pop %v1160
    %v1213 = vrcp.pop %v1163
    %v1214 = vrcp.pop %v1166
    %v1215 = vrcp.pop %v1169
    %v1216 = vrcp.pop %v1172
    %v1217 = vrcp.pop %v1175
    %v1218 = vrcp.pop %v1178
    %v1219 = vrcp.pop %v1181
    %v1220 = vrcp.pop %v1184
    %v1221 = vrcp.pop %v1187
    %v1222 = vrcp.pop %v1190
    %v1223 = vmul.f32 %v968, %v1191
    %v1224 = vmul.f32 %v970, %v1191
    %v1225 = vmul.f32 %v972, %v1192
    %v1226 = vmul.f32 %v974, %v1192
    %v1227 = vmul.f32 %v976, %v1193
    %v1228 = vmul.f32 %v978, %v1193
    %v1229 = vmul.f32 %v980, %v1194
    %v1230 = vmul.f32 %v982, %v1194
    %v1231 = vmul.f32 %v984, %v1195
    %v1232 = vmul.f32 %v986, %v1195
    %v1233 = vmul.f32 %v988, %v1196
    %v1234 = vmul.f32 %v990, %v1196
    %v1235 = vmul.f32 %v992, %v1197
    %v1236 = vmul.f32 %v994, %v1197
    %v1237 = vmul.f32 %v996, %v1198
    %v1238 = vmul.f32 %v998, %v1198
    %v1239 = vmul.f32 %v1000, %v1199
    %v1240 = vmul.f32 %v1002, %v1199
    %v1241 = vmul.f32 %v1004, %v1200
    %v1242 = vmul.f32 %v1006, %v1200
    %v1243 = vmul.f32 %v1008, %v1201
    %v1244 = vmul.f32 %v1010, %v1201
    %v1245 = vmul.f32 %v1012, %v1202
    %v1246 = vmul.f32 %v1014, %v1202
    %v1247 = vmul.f32 %v1016, %v1203
    %v1248 = vmul.f32 %v1018, %v1203
    %v1249 = vmul.f32 %v1020, %v1204
    %v1250 = vmul.f32 %v1022, %v1204
    %v1251 = vmul.f32 %v1024, %v1205
    %v1252 = vmul.f32 %v1026, %v1205
    %v1253 = vmul.f32 %v1028, %v1206
    %v1254 = vmul.f32 %v1030, %v1206
    %v1255 = vmul.f32 %v1032, %v1207
    %v1256 = vmul.f32 %v1034, %v1207
    %v1257 = vmul.f32 %v1036, %v1208
    %v1258 = vmul.f32 %v1038, %v1208
    %v1259 = vmul.f32 %v1040, %v1209
    %v1260 = vmul.f32 %v1042, %v1209
    %v1261 = vmul.f32 %v1044, %v1210
    %v1262 = vmul.f32 %v1046, %v1210
    %v1263 = vmul.f32 %v1048, %v1211
    %v1264 = vmul.f32 %v1050, %v1211
    %v1265 = vmul.f32 %v1052, %v1212
    %v1266 = vmul.f32 %v1054, %v1212
    %v1267 = vmul.f32 %v1056, %v1213
    %v1268 = vmul.f32 %v1058, %v1213
    %v1269 = vmul.f32 %v1060, %v1214
    %v1270 = vmul.f32 %v1062, %v1214
    %v1271 = vmul.f32 %v1064, %v1215
    %v1272 = vmul.f32 %v1066, %v1215
    %v1273 = vmul.f32 %v1068, %v1216
    %v1274 = vmul.f32 %v1070, %v1216
    %v1275 = vmul.f32 %v1072, %v1217
    %v1276 = vmul.f32 %v1074, %v1217
    %v1277 = vmul.f32 %v1076, %v1218
    %v1278 = vmul.f32 %v1078, %v1218
    %v1279 = vmul.f32 %v1080, %v1219
    %v1280 = vmul.f32 %v1082, %v1219
    %v1281 = vmul.f32 %v1084, %v1220
    %v1282 = vmul.f32 %v1086, %v1220
    %v1283 = vmul.f32 %v1088, %v1221
    %v1284 = vmul.f32 %v1090, %v1221
    %v1285 = vmul.f32 %v1092, %v1222
    %v1286 = vmul.f32 %v1094, %v1222
    %v1287 = vpack.c.bf16 %v1225, %v1223
    %v1288 = vpack.c.bf16 %v1226, %v1224
    %v1289 = vpack.c.bf16 %v1229, %v1227
    %v1290 = vpack.c.bf16 %v1230, %v1228
    %v1291 = vpack.c.bf16 %v1233, %v1231
    %v1292 = vpack.c.bf16 %v1234, %v1232
    %v1293 = vpack.c.bf16 %v1237, %v1235
    %v1294 = vpack.c.bf16 %v1238, %v1236
    %v1295 = vpack.c.bf16 %v1241, %v1239
    %v1296 = vpack.c.bf16 %v1242, %v1240
    %v1297 = vpack.c.bf16 %v1245, %v1243
    %v1298 = vpack.c.bf16 %v1246, %v1244
    %v1299 = vpack.c.bf16 %v1249, %v1247
    %v1300 = vpack.c.bf16 %v1250, %v1248
    %v1301 = vpack.c.bf16 %v1253, %v1251
    %v1302 = vpack.c.bf16 %v1254, %v1252
    %v1303 = vpack.c.bf16 %v1257, %v1255
    %v1304 = vpack.c.bf16 %v1258, %v1256
    %v1305 = vpack.c.bf16 %v1261, %v1259
    %v1306 = vpack.c.bf16 %v1262, %v1260
    %v1307 = vpack.c.bf16 %v1265, %v1263
    %v1308 = vpack.c.bf16 %v1266, %v1264
    %v1309 = vpack.c.bf16 %v1269, %v1267
    %v1310 = vpack.c.bf16 %v1270, %v1268
    %v1311 = vpack.c.bf16 %v1273, %v1271
    %v1312 = vpack.c.bf16 %v1274, %v1272
    %v1313 = vpack.c.bf16 %v1277, %v1275
    %v1314 = vpack.c.bf16 %v1278, %v1276
    %v1315 = vpack.c.bf16 %v1281, %v1279
    %v1316 = vpack.c.bf16 %v1282, %v1280
    %v1317 = vpack.c.bf16 %v1285, %v1283
    %v1318 = vpack.c.bf16 %v1286, %v1284
    %1319 = vrot.lane.b32.xlu0 %v340, 64
    %v1320 = vpop.permute.xlu0 %1319
    %1321 = vrot.lane.b32.xlu0 %v341, 64
    %v1322 = vpop.permute.xlu0 %1321
    %1323 = vrot.lane.b32.xlu0 %v342, 64
    %v1324 = vpop.permute.xlu0 %1323
    %1325 = vrot.lane.b32.xlu0 %v343, 64
    %v1326 = vpop.permute.xlu0 %1325
    %1327 = vrot.lane.b32.xlu0 %v344, 64
    %v1328 = vpop.permute.xlu0 %1327
    %1329 = vrot.lane.b32.xlu0 %v345, 64
    %v1330 = vpop.permute.xlu0 %1329
    %1331 = vrot.lane.b32.xlu0 %v346, 64
    %v1332 = vpop.permute.xlu0 %1331
    %1333 = vrot.lane.b32.xlu0 %v347, 64
    %v1334 = vpop.permute.xlu0 %1333
    %1335 = vrot.lane.b32.xlu0 %v348, 64
    %v1336 = vpop.permute.xlu0 %1335
    %1337 = vrot.lane.b32.xlu0 %v349, 64
    %v1338 = vpop.permute.xlu0 %1337
    %1339 = vrot.lane.b32.xlu0 %v350, 64
    %v1340 = vpop.permute.xlu0 %1339
    %1341 = vrot.lane.b32.xlu0 %v351, 64
    %v1342 = vpop.permute.xlu0 %1341
    %1343 = vrot.lane.b32.xlu0 %v352, 64
    %v1344 = vpop.permute.xlu0 %1343
    %1345 = vrot.lane.b32.xlu0 %v353, 64
    %v1346 = vpop.permute.xlu0 %1345
    %1347 = vrot.lane.b32.xlu0 %v354, 64
    %v1348 = vpop.permute.xlu0 %1347
    %1349 = vrot.lane.b32.xlu0 %v355, 64
    %v1350 = vpop.permute.xlu0 %1349
    %1367 = vmatpush.bf16.msra.mxu0 %v1334
    %1368 = vmatpush.bf16.msra.mxu0 %v1332
    %1369 = vmatpush.bf16.msra.mxu0 %v1330
    %1370 = vmatpush.bf16.msra.mxu0 %v1328
    %1371 = vmatpush.bf16.msra.mxu0 %v1326
    %1372 = vmatpush.bf16.msra.mxu0 %v1324
    %1373 = vmatpush.bf16.msra.mxu0 %v1322
    %1374 = vmatpush.bf16.msra.mxu0 %v1320
    %1375 = vmatmul.bf16.gmra.mxu0 %v1287
    %v1376 = vpop.f32.mrf.mxu0
    %v1377 = vadd.f32 0.0, %v1376
    %v1378 = vpop.f32.mrf.mxu0
    %v1379 = vadd.f32 0.0, %v1378
    %1380 = vmatmul.bf16.gmra.mxu0 %v1289
    %v1381 = vpop.f32.mrf.mxu0
    %v1382 = vadd.f32 0.0, %v1381
    %v1383 = vpop.f32.mrf.mxu0
    %v1384 = vadd.f32 0.0, %v1383
    %1385 = vmatmul.bf16.gmra.mxu0 %v1291
    %v1386 = vpop.f32.mrf.mxu0
    %v1387 = vadd.f32 0.0, %v1386
    %v1388 = vpop.f32.mrf.mxu0
    %v1389 = vadd.f32 0.0, %v1388
    %1390 = vmatmul.bf16.gmra.mxu0 %v1293
    %v1391 = vpop.f32.mrf.mxu0
    %v1392 = vadd.f32 0.0, %v1391
    %v1393 = vpop.f32.mrf.mxu0
    %v1394 = vadd.f32 0.0, %v1393
    %1395 = vmatmul.bf16.gmra.mxu0 %v1295
    %v1396 = vpop.f32.mrf.mxu0
    %v1397 = vadd.f32 0.0, %v1396
    %v1398 = vpop.f32.mrf.mxu0
    %v1399 = vadd.f32 0.0, %v1398
    %1400 = vmatmul.bf16.gmra.mxu0 %v1297
    %v1401 = vpop.f32.mrf.mxu0
    %v1402 = vadd.f32 0.0, %v1401
    %v1403 = vpop.f32.mrf.mxu0
    %v1404 = vadd.f32 0.0, %v1403
    %1405 = vmatmul.bf16.gmra.mxu0 %v1299
    %v1406 = vpop.f32.mrf.mxu0
    %v1407 = vadd.f32 0.0, %v1406
    %v1408 = vpop.f32.mrf.mxu0
    %v1409 = vadd.f32 0.0, %v1408
    %1410 = vmatmul.bf16.gmra.mxu0 %v1301
    %v1411 = vpop.f32.mrf.mxu0
    %v1412 = vadd.f32 0.0, %v1411
    %v1413 = vpop.f32.mrf.mxu0
    %v1414 = vadd.f32 0.0, %v1413
    %1415 = vmatmul.bf16.gmra.mxu0 %v1303
    %v1416 = vpop.f32.mrf.mxu0
    %v1417 = vadd.f32 0.0, %v1416
    %v1418 = vpop.f32.mrf.mxu0
    %v1419 = vadd.f32 0.0, %v1418
    %1420 = vmatmul.bf16.gmra.mxu0 %v1305
    %v1421 = vpop.f32.mrf.mxu0
    %v1422 = vadd.f32 0.0, %v1421
    %v1423 = vpop.f32.mrf.mxu0
    %v1424 = vadd.f32 0.0, %v1423
    %1425 = vmatmul.bf16.gmra.mxu0 %v1307
    %v1426 = vpop.f32.mrf.mxu0
    %v1427 = vadd.f32 0.0, %v1426
    %v1428 = vpop.f32.mrf.mxu0
    %v1429 = vadd.f32 0.0, %v1428
    %1430 = vmatmul.bf16.gmra.mxu0 %v1309
    %v1431 = vpop.f32.mrf.mxu0
    %v1432 = vadd.f32 0.0, %v1431
    %v1433 = vpop.f32.mrf.mxu0
    %v1434 = vadd.f32 0.0, %v1433
    %1435 = vmatmul.bf16.gmra.mxu0 %v1311
    %v1436 = vpop.f32.mrf.mxu0
    %v1437 = vadd.f32 0.0, %v1436
    %v1438 = vpop.f32.mrf.mxu0
    %v1439 = vadd.f32 0.0, %v1438
    %1440 = vmatmul.bf16.gmra.mxu0 %v1313
    %v1441 = vpop.f32.mrf.mxu0
    %v1442 = vadd.f32 0.0, %v1441
    %v1443 = vpop.f32.mrf.mxu0
    %v1444 = vadd.f32 0.0, %v1443
    %1445 = vmatmul.bf16.gmra.mxu0 %v1315
    %v1446 = vpop.f32.mrf.mxu0
    %v1447 = vadd.f32 0.0, %v1446
    %v1448 = vpop.f32.mrf.mxu0
    %v1449 = vadd.f32 0.0, %v1448
    %1450 = vmatmul.bf16.gmra.mxu0 %v1317
    %v1451 = vpop.f32.mrf.mxu0
    %v1452 = vadd.f32 0.0, %v1451
    %v1453 = vpop.f32.mrf.mxu0
    %v1454 = vadd.f32 0.0, %v1453
    %1455 = vdwg.mxu0
    %1456 = vmatpush.bf16.msra.mxu0 %v1350
    %1457 = vmatpush.bf16.msra.mxu0 %v1348
    %1458 = vmatpush.bf16.msra.mxu0 %v1346
    %1459 = vmatpush.bf16.msra.mxu0 %v1344
    %1460 = vmatpush.bf16.msra.mxu0 %v1342
    %1461 = vmatpush.bf16.msra.mxu0 %v1340
    %1462 = vmatpush.bf16.msra.mxu0 %v1338
    %1463 = vmatpush.bf16.msra.mxu0 %v1336
    %1464 = vmatmul.bf16.gmra.mxu0 %v1288
    %v1465 = vpop.f32.mrf.mxu0
    %v1466 = vadd.f32 %v1377, %v1465
    %v1467 = vpop.f32.mrf.mxu0
    %v1468 = vadd.f32 %v1379, %v1467
    %1469 = vmatmul.bf16.gmra.mxu0 %v1290
    %v1470 = vpop.f32.mrf.mxu0
    %v1471 = vadd.f32 %v1382, %v1470
    %v1472 = vpop.f32.mrf.mxu0
    %v1473 = vadd.f32 %v1384, %v1472
    %1474 = vmatmul.bf16.gmra.mxu0 %v1292
    %v1475 = vpop.f32.mrf.mxu0
    %v1476 = vadd.f32 %v1387, %v1475
    %v1477 = vpop.f32.mrf.mxu0
    %v1478 = vadd.f32 %v1389, %v1477
    %1479 = vmatmul.bf16.gmra.mxu0 %v1294
    %v1480 = vpop.f32.mrf.mxu0
    %v1481 = vadd.f32 %v1392, %v1480
    %v1482 = vpop.f32.mrf.mxu0
    %v1483 = vadd.f32 %v1394, %v1482
    %1484 = vmatmul.bf16.gmra.mxu0 %v1296
    %v1485 = vpop.f32.mrf.mxu0
    %v1486 = vadd.f32 %v1397, %v1485
    %v1487 = vpop.f32.mrf.mxu0
    %v1488 = vadd.f32 %v1399, %v1487
    %1489 = vmatmul.bf16.gmra.mxu0 %v1298
    %v1490 = vpop.f32.mrf.mxu0
    %v1491 = vadd.f32 %v1402, %v1490
    %v1492 = vpop.f32.mrf.mxu0
    %v1493 = vadd.f32 %v1404, %v1492
    %1494 = vmatmul.bf16.gmra.mxu0 %v1300
    %v1495 = vpop.f32.mrf.mxu0
    %v1496 = vadd.f32 %v1407, %v1495
    %v1497 = vpop.f32.mrf.mxu0
    %v1498 = vadd.f32 %v1409, %v1497
    %1499 = vmatmul.bf16.gmra.mxu0 %v1302
    %v1500 = vpop.f32.mrf.mxu0
    %v1501 = vadd.f32 %v1412, %v1500
    %v1502 = vpop.f32.mrf.mxu0
    %v1503 = vadd.f32 %v1414, %v1502
    %1504 = vmatmul.bf16.gmra.mxu0 %v1304
    %v1505 = vpop.f32.mrf.mxu0
    %v1506 = vadd.f32 %v1417, %v1505
    %v1507 = vpop.f32.mrf.mxu0
    %v1508 = vadd.f32 %v1419, %v1507
    %1509 = vmatmul.bf16.gmra.mxu0 %v1306
    %v1510 = vpop.f32.mrf.mxu0
    %v1511 = vadd.f32 %v1422, %v1510
    %v1512 = vpop.f32.mrf.mxu0
    %v1513 = vadd.f32 %v1424, %v1512
    %1514 = vmatmul.bf16.gmra.mxu0 %v1308
    %v1515 = vpop.f32.mrf.mxu0
    %v1516 = vadd.f32 %v1427, %v1515
    %v1517 = vpop.f32.mrf.mxu0
    %v1518 = vadd.f32 %v1429, %v1517
    %1519 = vmatmul.bf16.gmra.mxu0 %v1310
    %v1520 = vpop.f32.mrf.mxu0
    %v1521 = vadd.f32 %v1432, %v1520
    %v1522 = vpop.f32.mrf.mxu0
    %v1523 = vadd.f32 %v1434, %v1522
    %1524 = vmatmul.bf16.gmra.mxu0 %v1312
    %v1525 = vpop.f32.mrf.mxu0
    %v1526 = vadd.f32 %v1437, %v1525
    %v1527 = vpop.f32.mrf.mxu0
    %v1528 = vadd.f32 %v1439, %v1527
    %1529 = vmatmul.bf16.gmra.mxu0 %v1314
    %v1530 = vpop.f32.mrf.mxu0
    %v1531 = vadd.f32 %v1442, %v1530
    %v1532 = vpop.f32.mrf.mxu0
    %v1533 = vadd.f32 %v1444, %v1532
    %1534 = vmatmul.bf16.gmra.mxu0 %v1316
    %v1535 = vpop.f32.mrf.mxu0
    %v1536 = vadd.f32 %v1447, %v1535
    %v1537 = vpop.f32.mrf.mxu0
    %v1538 = vadd.f32 %v1449, %v1537
    %1539 = vmatmul.bf16.gmra.mxu0 %v1318
    %v1540 = vpop.f32.mrf.mxu0
    %v1541 = vadd.f32 %v1452, %v1540
    %v1542 = vpop.f32.mrf.mxu0
    %v1543 = vadd.f32 %v1454, %v1542
    %1544 = vdwg.mxu0
    %1546 = vset.pattern.permute.xlu0 0
    %1547 = vperm.xlu0 %1546, %v113
    %v1548 = vpop.permute.xlu0 %1547
    %1551 = vset.pattern.permute.xlu0 0
    %1552 = vperm.xlu0 %1551, %v114
    %v1553 = vpop.permute.xlu0 %1552
    %1556 = vset.pattern.permute.xlu0 0
    %1557 = vperm.xlu0 %1556, %v115
    %v1558 = vpop.permute.xlu0 %1557
    %1561 = vset.pattern.permute.xlu0 0
    %1562 = vperm.xlu0 %1561, %v116
    %v1563 = vpop.permute.xlu0 %1562
    %1566 = vset.pattern.permute.xlu0 0
    %1567 = vperm.xlu0 %1566, %v117
    %v1568 = vpop.permute.xlu0 %1567
    %1571 = vset.pattern.permute.xlu0 0
    %1572 = vperm.xlu0 %1571, %v118
    %v1573 = vpop.permute.xlu0 %1572
    %1576 = vset.pattern.permute.xlu0 0
    %1577 = vperm.xlu0 %1576, %v119
    %v1578 = vpop.permute.xlu0 %1577
    %1581 = vset.pattern.permute.xlu0 0
    %1582 = vperm.xlu0 %1581, %v120
    %v1583 = vpop.permute.xlu0 %1582
    %1586 = vset.pattern.permute.xlu0 0
    %1587 = vperm.xlu0 %1586, %v121
    %v1588 = vpop.permute.xlu0 %1587
    %1591 = vset.pattern.permute.xlu0 0
    %1592 = vperm.xlu0 %1591, %v122
    %v1593 = vpop.permute.xlu0 %1592
    %1596 = vset.pattern.permute.xlu0 0
    %1597 = vperm.xlu0 %1596, %v123
    %v1598 = vpop.permute.xlu0 %1597
    %1601 = vset.pattern.permute.xlu0 0
    %1602 = vperm.xlu0 %1601, %v124
    %v1603 = vpop.permute.xlu0 %1602
    %1606 = vset.pattern.permute.xlu0 0
    %1607 = vperm.xlu0 %1606, %v125
    %v1608 = vpop.permute.xlu0 %1607
    %1611 = vset.pattern.permute.xlu0 0
    %1612 = vperm.xlu0 %1611, %v126
    %v1613 = vpop.permute.xlu0 %1612
    %1616 = vset.pattern.permute.xlu0 0
    %1617 = vperm.xlu0 %1616, %v127
    %v1618 = vpop.permute.xlu0 %1617
    %1621 = vset.pattern.permute.xlu0 0
    %1622 = vperm.xlu0 %1621, %v128
    %v1623 = vpop.permute.xlu0 %1622
    %1626 = vset.pattern.permute.xlu0 0
    %1627 = vperm.xlu0 %1626, %v129
    %v1628 = vpop.permute.xlu0 %1627
    %1631 = vset.pattern.permute.xlu0 0
    %1632 = vperm.xlu0 %1631, %v130
    %v1633 = vpop.permute.xlu0 %1632
    %1636 = vset.pattern.permute.xlu0 0
    %1637 = vperm.xlu0 %1636, %v131
    %v1638 = vpop.permute.xlu0 %1637
    %1641 = vset.pattern.permute.xlu0 0
    %1642 = vperm.xlu0 %1641, %v132
    %v1643 = vpop.permute.xlu0 %1642
    %1646 = vset.pattern.permute.xlu0 0
    %1647 = vperm.xlu0 %1646, %v133
    %v1648 = vpop.permute.xlu0 %1647
    %1651 = vset.pattern.permute.xlu0 0
    %1652 = vperm.xlu0 %1651, %v134
    %v1653 = vpop.permute.xlu0 %1652
    %1656 = vset.pattern.permute.xlu0 0
    %1657 = vperm.xlu0 %1656, %v135
    %v1658 = vpop.permute.xlu0 %1657
    %1661 = vset.pattern.permute.xlu0 0
    %1662 = vperm.xlu0 %1661, %v136
    %v1663 = vpop.permute.xlu0 %1662
    %1666 = vset.pattern.permute.xlu0 0
    %1667 = vperm.xlu0 %1666, %v137
    %v1668 = vpop.permute.xlu0 %1667
    %1671 = vset.pattern.permute.xlu0 0
    %1672 = vperm.xlu0 %1671, %v138
    %v1673 = vpop.permute.xlu0 %1672
    %1676 = vset.pattern.permute.xlu0 0
    %1677 = vperm.xlu0 %1676, %v139
    %v1678 = vpop.permute.xlu0 %1677
    %1681 = vset.pattern.permute.xlu0 0
    %1682 = vperm.xlu0 %1681, %v140
    %v1683 = vpop.permute.xlu0 %1682
    %1686 = vset.pattern.permute.xlu0 0
    %1687 = vperm.xlu0 %1686, %v141
    %v1688 = vpop.permute.xlu0 %1687
    %1691 = vset.pattern.permute.xlu0 0
    %1692 = vperm.xlu0 %1691, %v142
    %v1693 = vpop.permute.xlu0 %1692
    %1696 = vset.pattern.permute.xlu0 0
    %1697 = vperm.xlu0 %1696, %v143
    %v1698 = vpop.permute.xlu0 %1697
    %1701 = vset.pattern.permute.xlu0 0
    %1702 = vperm.xlu0 %1701, %v144
    %v1703 = vpop.permute.xlu0 %1702
    %v1705 = vmul.f32 %v1466, %v1548
    %v1706 = vmul.f32 %v1468, %v1553
    %v1707 = vmul.f32 %v1471, %v1558
    %v1708 = vmul.f32 %v1473, %v1563
    %v1709 = vmul.f32 %v1476, %v1568
    %v1710 = vmul.f32 %v1478, %v1573
    %v1711 = vmul.f32 %v1481, %v1578
    %v1712 = vmul.f32 %v1483, %v1583
    %v1713 = vmul.f32 %v1486, %v1588
    %v1714 = vmul.f32 %v1488, %v1593
    %v1715 = vmul.f32 %v1491, %v1598
    %v1716 = vmul.f32 %v1493, %v1603
    %v1717 = vmul.f32 %v1496, %v1608
    %v1718 = vmul.f32 %v1498, %v1613
    %v1719 = vmul.f32 %v1501, %v1618
    %v1720 = vmul.f32 %v1503, %v1623
    %v1721 = vmul.f32 %v1506, %v1628
    %v1722 = vmul.f32 %v1508, %v1633
    %v1723 = vmul.f32 %v1511, %v1638
    %v1724 = vmul.f32 %v1513, %v1643
    %v1725 = vmul.f32 %v1516, %v1648
    %v1726 = vmul.f32 %v1518, %v1653
    %v1727 = vmul.f32 %v1521, %v1658
    %v1728 = vmul.f32 %v1523, %v1663
    %v1729 = vmul.f32 %v1526, %v1668
    %v1730 = vmul.f32 %v1528, %v1673
    %v1731 = vmul.f32 %v1531, %v1678
    %v1732 = vmul.f32 %v1533, %v1683
    %v1733 = vmul.f32 %v1536, %v1688
    %v1734 = vmul.f32 %v1538, %v1693
    %v1735 = vmul.f32 %v1541, %v1698
    %v1736 = vmul.f32 %v1543, %v1703
    %1769 = vrot.lane.b32.xlu0 %v261, 32
    %v1770 = vpop.permute.xlu0 %1769
    %1771 = vrot.lane.b32.xlu0 %v263, 32
    %v1772 = vpop.permute.xlu0 %1771
    %1773 = vrot.lane.b32.xlu0 %v266, 32
    %v1774 = vpop.permute.xlu0 %1773
    %1775 = vrot.lane.b32.xlu0 %v268, 32
    %v1776 = vpop.permute.xlu0 %1775
    %1777 = vrot.lane.b32.xlu0 %v271, 32
    %v1778 = vpop.permute.xlu0 %1777
    %1779 = vrot.lane.b32.xlu0 %v273, 32
    %v1780 = vpop.permute.xlu0 %1779
    %1781 = vrot.lane.b32.xlu0 %v276, 32
    %v1782 = vpop.permute.xlu0 %1781
    %1783 = vrot.lane.b32.xlu0 %v278, 32
    %v1784 = vpop.permute.xlu0 %1783
    %1785 = vrot.lane.b32.xlu0 %v281, 32
    %v1786 = vpop.permute.xlu0 %1785
    %1787 = vrot.lane.b32.xlu0 %v283, 32
    %v1788 = vpop.permute.xlu0 %1787
    %1789 = vrot.lane.b32.xlu0 %v286, 32
    %v1790 = vpop.permute.xlu0 %1789
    %1791 = vrot.lane.b32.xlu0 %v288, 32
    %v1792 = vpop.permute.xlu0 %1791
    %1793 = vrot.lane.b32.xlu0 %v291, 32
    %v1794 = vpop.permute.xlu0 %1793
    %1795 = vrot.lane.b32.xlu0 %v293, 32
    %v1796 = vpop.permute.xlu0 %1795
    %1797 = vrot.lane.b32.xlu0 %v296, 32
    %v1798 = vpop.permute.xlu0 %1797
    %1799 = vrot.lane.b32.xlu0 %v298, 32
    %v1800 = vpop.permute.xlu0 %1799
    %1801 = vrot.lane.b32.xlu0 %v301, 32
    %v1802 = vpop.permute.xlu0 %1801
    %1803 = vrot.lane.b32.xlu0 %v303, 32
    %v1804 = vpop.permute.xlu0 %1803
    %1805 = vrot.lane.b32.xlu0 %v306, 32
    %v1806 = vpop.permute.xlu0 %1805
    %1807 = vrot.lane.b32.xlu0 %v308, 32
    %v1808 = vpop.permute.xlu0 %1807
    %1809 = vrot.lane.b32.xlu0 %v311, 32
    %v1810 = vpop.permute.xlu0 %1809
    %1811 = vrot.lane.b32.xlu0 %v313, 32
    %v1812 = vpop.permute.xlu0 %1811
    %1813 = vrot.lane.b32.xlu0 %v316, 32
    %v1814 = vpop.permute.xlu0 %1813
    %1815 = vrot.lane.b32.xlu0 %v318, 32
    %v1816 = vpop.permute.xlu0 %1815
    %1817 = vrot.lane.b32.xlu0 %v321, 32
    %v1818 = vpop.permute.xlu0 %1817
    %1819 = vrot.lane.b32.xlu0 %v323, 32
    %v1820 = vpop.permute.xlu0 %1819
    %1821 = vrot.lane.b32.xlu0 %v326, 32
    %v1822 = vpop.permute.xlu0 %1821
    %1823 = vrot.lane.b32.xlu0 %v328, 32
    %v1824 = vpop.permute.xlu0 %1823
    %1825 = vrot.lane.b32.xlu0 %v331, 32
    %v1826 = vpop.permute.xlu0 %1825
    %1827 = vrot.lane.b32.xlu0 %v333, 32
    %v1828 = vpop.permute.xlu0 %1827
    %1829 = vrot.lane.b32.xlu0 %v336, 32
    %v1830 = vpop.permute.xlu0 %1829
    %1831 = vrot.lane.b32.xlu0 %v338, 32
    %v1832 = vpop.permute.xlu0 %1831
    %v1865 = vadd.f32 %v1705, %v1770
    %v1866 = vadd.f32 %v1706, %v1772
    %v1867 = vadd.f32 %v1707, %v1774
    %v1868 = vadd.f32 %v1708, %v1776
    %v1869 = vadd.f32 %v1709, %v1778
    %v1870 = vadd.f32 %v1710, %v1780
    %v1871 = vadd.f32 %v1711, %v1782
    %v1872 = vadd.f32 %v1712, %v1784
    %v1873 = vadd.f32 %v1713, %v1786
    %v1874 = vadd.f32 %v1714, %v1788
    %v1875 = vadd.f32 %v1715, %v1790
    %v1876 = vadd.f32 %v1716, %v1792
    %v1877 = vadd.f32 %v1717, %v1794
    %v1878 = vadd.f32 %v1718, %v1796
    %v1879 = vadd.f32 %v1719, %v1798
    %v1880 = vadd.f32 %v1720, %v1800
    %v1881 = vadd.f32 %v1721, %v1802
    %v1882 = vadd.f32 %v1722, %v1804
    %v1883 = vadd.f32 %v1723, %v1806
    %v1884 = vadd.f32 %v1724, %v1808
    %v1885 = vadd.f32 %v1725, %v1810
    %v1886 = vadd.f32 %v1726, %v1812
    %v1887 = vadd.f32 %v1727, %v1814
    %v1888 = vadd.f32 %v1728, %v1816
    %v1889 = vadd.f32 %v1729, %v1818
    %v1890 = vadd.f32 %v1730, %v1820
    %v1891 = vadd.f32 %v1731, %v1822
    %v1892 = vadd.f32 %v1732, %v1824
    %v1893 = vadd.f32 %v1733, %v1826
    %v1894 = vadd.f32 %v1734, %v1828
    %v1895 = vadd.f32 %v1735, %v1830
    %v1896 = vadd.f32 %v1736, %v1832
    %v1897 = vmax.f32 %v1865, 0.0
    %v1898 = vmax.f32 %v1866, 0.0
    %v1899 = vmax.f32 %v1867, 0.0
    %v1900 = vmax.f32 %v1868, 0.0
    %v1901 = vmax.f32 %v1869, 0.0
    %v1902 = vmax.f32 %v1870, 0.0
    %v1903 = vmax.f32 %v1871, 0.0
    %v1904 = vmax.f32 %v1872, 0.0
    %v1905 = vmax.f32 %v1873, 0.0
    %v1906 = vmax.f32 %v1874, 0.0
    %v1907 = vmax.f32 %v1875, 0.0
    %v1908 = vmax.f32 %v1876, 0.0
    %v1909 = vmax.f32 %v1877, 0.0
    %v1910 = vmax.f32 %v1878, 0.0
    %v1911 = vmax.f32 %v1879, 0.0
    %v1912 = vmax.f32 %v1880, 0.0
    %v1913 = vmax.f32 %v1881, 0.0
    %v1914 = vmax.f32 %v1882, 0.0
    %v1915 = vmax.f32 %v1883, 0.0
    %v1916 = vmax.f32 %v1884, 0.0
    %v1917 = vmax.f32 %v1885, 0.0
    %v1918 = vmax.f32 %v1886, 0.0
    %v1919 = vmax.f32 %v1887, 0.0
    %v1920 = vmax.f32 %v1888, 0.0
    %v1921 = vmax.f32 %v1889, 0.0
    %v1922 = vmax.f32 %v1890, 0.0
    %v1923 = vmax.f32 %v1891, 0.0
    %v1924 = vmax.f32 %v1892, 0.0
    %v1925 = vmax.f32 %v1893, 0.0
    %v1926 = vmax.f32 %v1894, 0.0
    %v1927 = vmax.f32 %v1895, 0.0
    %v1928 = vmax.f32 %v1896, 0.0
    %v1929 = vld [vmem:[#allocation2] sm:$0xf]
    %v1930 = vld [vmem:[#allocation2 + $0x4] sm:$0xf]
    %v1931 = vld [vmem:[#allocation2 + $0x8] sm:$0xf]
    %v1932 = vld [vmem:[#allocation2 + $0xc] sm:$0xf]
    %v1933 = vld [vmem:[%s6] sm:$0x1]
    %v1934 = vpack.c.bf16 %v1898, %v1897
    %v1935 = vpack.c.bf16 %v1900, %v1899
    %v1936 = vpack.c.bf16 %v1902, %v1901
    %v1937 = vpack.c.bf16 %v1904, %v1903
    %v1938 = vpack.c.bf16 %v1906, %v1905
    %v1939 = vpack.c.bf16 %v1908, %v1907
    %v1940 = vpack.c.bf16 %v1910, %v1909
    %v1941 = vpack.c.bf16 %v1912, %v1911
    %v1942 = vpack.c.bf16 %v1914, %v1913
    %v1943 = vpack.c.bf16 %v1916, %v1915
    %v1944 = vpack.c.bf16 %v1918, %v1917
    %v1945 = vpack.c.bf16 %v1920, %v1919
    %v1946 = vpack.c.bf16 %v1922, %v1921
    %v1947 = vpack.c.bf16 %v1924, %v1923
    %v1948 = vpack.c.bf16 %v1926, %v1925
    %v1949 = vpack.c.bf16 %v1928, %v1927
    %v1951 = vperm.slane %v1933, 0
    %v1957 = vunpack.c.l.b16 %v1929
    %v1958 = vunpack.c.l.b16 %v1930
    %v1959 = vunpack.c.l.b16 %v1931
    %v1960 = vunpack.c.l.b16 %v1932
    %v1961 = vpack.c.b16 %v1958, %v1957
    %v1962 = vpack.c.b16 %v1960, %v1959
    %v1966 = vsel %vm404, %v1934, 0
    %v1969 = vsel %vm404, %v1935, 0
    %v1972 = vsel %vm404, %v1936, 0
    %v1975 = vsel %vm404, %v1937, 0
    %v1978 = vsel %vm404, %v1938, 0
    %v1981 = vsel %vm404, %v1939, 0
    %v1984 = vsel %vm404, %v1940, 0
    %v1987 = vsel %vm404, %v1941, 0
    %v1990 = vsel %vm404, %v1942, 0
    %v1993 = vsel %vm404, %v1943, 0
    %v1996 = vsel %vm404, %v1944, 0
    %v1999 = vsel %vm404, %v1945, 0
    %v2002 = vsel %vm404, %v1946, 0
    %v2005 = vsel %vm404, %v1947, 0
    %v2008 = vsel %vm404, %v1948, 0
    %v2011 = vsel %vm404, %v1949, 0
    %2013 = vmatpush.bf16.msra.mxu0 0
    %2014 = vmatpush.bf16.msra.mxu0 0
    %2015 = vmatpush.bf16.msra.mxu0 0
    %2016 = vmatpush.bf16.msra.mxu0 0
    %2017 = vmatpush.bf16.msra.mxu0 0
    %2018 = vmatpush.bf16.msra.mxu0 0
    %2019 = vmatpush.bf16.msra.mxu0 %v1962
    %2020 = vmatpush.bf16.msra.mxu0 %v1961
    %2021 = vmatmul.bf16.gmra.mxu0 %v1966
    %v2022 = vpop.f32.mrf.mxu0
    %v2023 = vadd.f32 %v1951, %v2022
    %v2024 = vpop.f32.mrf.mxu0
    %v2025 = vadd.f32 %v1951, %v2024
    %2026 = vmatmul.bf16.gmra.mxu0 %v1969
    %v2027 = vpop.f32.mrf.mxu0
    %v2028 = vadd.f32 %v1951, %v2027
    %v2029 = vpop.f32.mrf.mxu0
    %v2030 = vadd.f32 %v1951, %v2029
    %2031 = vmatmul.bf16.gmra.mxu0 %v1972
    %v2032 = vpop.f32.mrf.mxu0
    %v2033 = vadd.f32 %v1951, %v2032
    %v2034 = vpop.f32.mrf.mxu0
    %v2035 = vadd.f32 %v1951, %v2034
    %2036 = vmatmul.bf16.gmra.mxu0 %v1975
    %v2037 = vpop.f32.mrf.mxu0
    %v2038 = vadd.f32 %v1951, %v2037
    %v2039 = vpop.f32.mrf.mxu0
    %v2040 = vadd.f32 %v1951, %v2039
    %2041 = vmatmul.bf16.gmra.mxu0 %v1978
    %v2042 = vpop.f32.mrf.mxu0
    %v2043 = vadd.f32 %v1951, %v2042
    %v2044 = vpop.f32.mrf.mxu0
    %v2045 = vadd.f32 %v1951, %v2044
    %2046 = vmatmul.bf16.gmra.mxu0 %v1981
    %v2047 = vpop.f32.mrf.mxu0
    %v2048 = vadd.f32 %v1951, %v2047
    %v2049 = vpop.f32.mrf.mxu0
    %v2050 = vadd.f32 %v1951, %v2049
    %2051 = vmatmul.bf16.gmra.mxu0 %v1984
    %v2052 = vpop.f32.mrf.mxu0
    %v2053 = vadd.f32 %v1951, %v2052
    %v2054 = vpop.f32.mrf.mxu0
    %v2055 = vadd.f32 %v1951, %v2054
    %2056 = vmatmul.bf16.gmra.mxu0 %v1987
    %v2057 = vpop.f32.mrf.mxu0
    %v2058 = vadd.f32 %v1951, %v2057
    %v2059 = vpop.f32.mrf.mxu0
    %v2060 = vadd.f32 %v1951, %v2059
    %2061 = vmatmul.bf16.gmra.mxu0 %v1990
    %v2062 = vpop.f32.mrf.mxu0
    %v2063 = vadd.f32 %v1951, %v2062
    %v2064 = vpop.f32.mrf.mxu0
    %v2065 = vadd.f32 %v1951, %v2064
    %2066 = vmatmul.bf16.gmra.mxu0 %v1993
    %v2067 = vpop.f32.mrf.mxu0
    %v2068 = vadd.f32 %v1951, %v2067
    %v2069 = vpop.f32.mrf.mxu0
    %v2070 = vadd.f32 %v1951, %v2069
    %2071 = vmatmul.bf16.gmra.mxu0 %v1996
    %v2072 = vpop.f32.mrf.mxu0
    %v2073 = vadd.f32 %v1951, %v2072
    %v2074 = vpop.f32.mrf.mxu0
    %v2075 = vadd.f32 %v1951, %v2074
    %2076 = vmatmul.bf16.gmra.mxu0 %v1999
    %v2077 = vpop.f32.mrf.mxu0
    %v2078 = vadd.f32 %v1951, %v2077
    %v2079 = vpop.f32.mrf.mxu0
    %v2080 = vadd.f32 %v1951, %v2079
    %2081 = vmatmul.bf16.gmra.mxu0 %v2002
    %v2082 = vpop.f32.mrf.mxu0
    %v2083 = vadd.f32 %v1951, %v2082
    %v2084 = vpop.f32.mrf.mxu0
    %v2085 = vadd.f32 %v1951, %v2084
    %2086 = vmatmul.bf16.gmra.mxu0 %v2005
    %v2087 = vpop.f32.mrf.mxu0
    %v2088 = vadd.f32 %v1951, %v2087
    %v2089 = vpop.f32.mrf.mxu0
    %v2090 = vadd.f32 %v1951, %v2089
    %2091 = vmatmul.bf16.gmra.mxu0 %v2008
    %v2092 = vpop.f32.mrf.mxu0
    %v2093 = vadd.f32 %v1951, %v2092
    %v2094 = vpop.f32.mrf.mxu0
    %v2095 = vadd.f32 %v1951, %v2094
    %2096 = vmatmul.bf16.gmra.mxu0 %v2011
    %v2097 = vpop.f32.mrf.mxu0
    %v2098 = vadd.f32 %v1951, %v2097
    %v2099 = vpop.f32.mrf.mxu0
    %v2100 = vadd.f32 %v1951, %v2099
    %2101 = vdwg.mxu0
    %v2102 = vpack.c.bf16 %v2025, %v2023
    %v2103 = vpack.c.bf16 %v2030, %v2028
    %v2104 = vpack.c.bf16 %v2035, %v2033
    %v2105 = vpack.c.bf16 %v2040, %v2038
    %v2106 = vpack.c.bf16 %v2045, %v2043
    %v2107 = vpack.c.bf16 %v2050, %v2048
    %v2108 = vpack.c.bf16 %v2055, %v2053
    %v2109 = vpack.c.bf16 %v2060, %v2058
    %v2110 = vpack.c.bf16 %v2065, %v2063
    %v2111 = vpack.c.bf16 %v2070, %v2068
    %v2112 = vpack.c.bf16 %v2075, %v2073
    %v2113 = vpack.c.bf16 %v2080, %v2078
    %v2114 = vpack.c.bf16 %v2085, %v2083
    %v2115 = vpack.c.bf16 %v2090, %v2088
    %v2116 = vpack.c.bf16 %v2095, %v2093
    %v2117 = vpack.c.bf16 %v2100, %v2098
    %2134 = vrot.lane.b32.xlu0 %v2102, 96
    %v2135 = vpop.permute.xlu0 %2134
    %2136 = vrot.lane.b32.xlu0 %v2103, 96
    %v2137 = vpop.permute.xlu0 %2136
    %2138 = vrot.lane.b32.xlu0 %v2104, 96
    %v2139 = vpop.permute.xlu0 %2138
    %2140 = vrot.lane.b32.xlu0 %v2105, 96
    %v2141 = vpop.permute.xlu0 %2140
    %2142 = vrot.lane.b32.xlu0 %v2106, 96
    %v2143 = vpop.permute.xlu0 %2142
    %2144 = vrot.lane.b32.xlu0 %v2107, 96
    %v2145 = vpop.permute.xlu0 %2144
    %2146 = vrot.lane.b32.xlu0 %v2108, 96
    %v2147 = vpop.permute.xlu0 %2146
    %2148 = vrot.lane.b32.xlu0 %v2109, 96
    %v2149 = vpop.permute.xlu0 %2148
    %2150 = vrot.lane.b32.xlu0 %v2110, 96
    %v2151 = vpop.permute.xlu0 %2150
    %2152 = vrot.lane.b32.xlu0 %v2111, 96
    %v2153 = vpop.permute.xlu0 %2152
    %2154 = vrot.lane.b32.xlu0 %v2112, 96
    %v2155 = vpop.permute.xlu0 %2154
    %2156 = vrot.lane.b32.xlu0 %v2113, 96
    %v2157 = vpop.permute.xlu0 %2156
    %2158 = vrot.lane.b32.xlu0 %v2114, 96
    %v2159 = vpop.permute.xlu0 %2158
    %2160 = vrot.lane.b32.xlu0 %v2115, 96
    %v2161 = vpop.permute.xlu0 %2160
    %2162 = vrot.lane.b32.xlu0 %v2116, 96
    %v2163 = vpop.permute.xlu0 %2162
    %2164 = vrot.lane.b32.xlu0 %v2117, 96
    %v2165 = vpop.permute.xlu0 %2164
    %v2167 = vsel %vm404, %v2102, 0
    %v2170 = vsel %vm404, %v2103, 0
    %v2173 = vsel %vm404, %v2104, 0
    %v2176 = vsel %vm404, %v2105, 0
    %v2179 = vsel %vm404, %v2106, 0
    %v2182 = vsel %vm404, %v2107, 0
    %v2185 = vsel %vm404, %v2108, 0
    %v2188 = vsel %vm404, %v2109, 0
    %v2191 = vsel %vm404, %v2110, 0
    %v2194 = vsel %vm404, %v2111, 0
    %v2197 = vsel %vm404, %v2112, 0
    %v2200 = vsel %vm404, %v2113, 0
    %v2203 = vsel %vm404, %v2114, 0
    %v2206 = vsel %vm404, %v2115, 0
    %v2209 = vsel %vm404, %v2116, 0
    %v2212 = vsel %vm404, %v2117, 0
    %v2215 = vsel %vm404, %v2135, 0
    %v2218 = vsel %vm404, %v2137, 0
    %v2221 = vsel %vm404, %v2139, 0
    %v2224 = vsel %vm404, %v2141, 0
    %v2227 = vsel %vm404, %v2143, 0
    %v2230 = vsel %vm404, %v2145, 0
    %v2233 = vsel %vm404, %v2147, 0
    %v2236 = vsel %vm404, %v2149, 0
    %v2239 = vsel %vm404, %v2151, 0
    %v2242 = vsel %vm404, %v2153, 0
    %v2245 = vsel %vm404, %v2155, 0
    %v2248 = vsel %vm404, %v2157, 0
    %v2251 = vsel %vm404, %v2159, 0
    %v2254 = vsel %vm404, %v2161, 0
    %v2257 = vsel %vm404, %v2163, 0
    %v2260 = vsel %vm404, %v2165, 0
    %2262 = vmatpush.bf16.xpose.msra.mxu0 %v2236
    %2263 = vmatpush.bf16.xpose.msra.mxu0 %v2233
    %2264 = vmatpush.bf16.xpose.msra.mxu0 %v2230
    %2265 = vmatpush.bf16.xpose.msra.mxu0 %v2227
    %2266 = vmatpush.bf16.xpose.msra.mxu0 %v2224
    %2267 = vmatpush.bf16.xpose.msra.mxu0 %v2221
    %2268 = vmatpush.bf16.xpose.msra.mxu0 %v2218
    %2269 = vmatpush.bf16.xpose.msra.mxu0 %v2215
    %2270 = vmatmul.bf16.gmra.mxu0 %v2167
    %v2271 = vpop.f32.mrf.mxu0
    %v2272 = vadd.f32 0.0, %v2271
    %v2273 = vpop.f32.mrf.mxu0
    %v2274 = vadd.f32 0.0, %v2273
    %2275 = vmatmul.bf16.gmra.mxu0 %v2170
    %v2276 = vpop.f32.mrf.mxu0
    %v2277 = vadd.f32 0.0, %v2276
    %v2278 = vpop.f32.mrf.mxu0
    %v2279 = vadd.f32 0.0, %v2278
    %2280 = vmatmul.bf16.gmra.mxu0 %v2173
    %v2281 = vpop.f32.mrf.mxu0
    %v2282 = vadd.f32 0.0, %v2281
    %v2283 = vpop.f32.mrf.mxu0
    %v2284 = vadd.f32 0.0, %v2283
    %2285 = vmatmul.bf16.gmra.mxu0 %v2176
    %v2286 = vpop.f32.mrf.mxu0
    %v2287 = vadd.f32 0.0, %v2286
    %v2288 = vpop.f32.mrf.mxu0
    %v2289 = vadd.f32 0.0, %v2288
    %2290 = vmatmul.bf16.gmra.mxu0 %v2179
    %v2291 = vpop.f32.mrf.mxu0
    %v2292 = vadd.f32 0.0, %v2291
    %v2293 = vpop.f32.mrf.mxu0
    %v2294 = vadd.f32 0.0, %v2293
    %2295 = vmatmul.bf16.gmra.mxu0 %v2182
    %v2296 = vpop.f32.mrf.mxu0
    %v2297 = vadd.f32 0.0, %v2296
    %v2298 = vpop.f32.mrf.mxu0
    %v2299 = vadd.f32 0.0, %v2298
    %2300 = vmatmul.bf16.gmra.mxu0 %v2185
    %v2301 = vpop.f32.mrf.mxu0
    %v2302 = vadd.f32 0.0, %v2301
    %v2303 = vpop.f32.mrf.mxu0
    %v2304 = vadd.f32 0.0, %v2303
    %2305 = vmatmul.bf16.gmra.mxu0 %v2188
    %v2306 = vpop.f32.mrf.mxu0
    %v2307 = vadd.f32 0.0, %v2306
    %v2308 = vpop.f32.mrf.mxu0
    %v2309 = vadd.f32 0.0, %v2308
    %2310 = vmatmul.bf16.gmra.mxu0 %v2191
    %v2311 = vpop.f32.mrf.mxu0
    %v2312 = vadd.f32 0.0, %v2311
    %v2313 = vpop.f32.mrf.mxu0
    %v2314 = vadd.f32 0.0, %v2313
    %2315 = vmatmul.bf16.gmra.mxu0 %v2194
    %v2316 = vpop.f32.mrf.mxu0
    %v2317 = vadd.f32 0.0, %v2316
    %v2318 = vpop.f32.mrf.mxu0
    %v2319 = vadd.f32 0.0, %v2318
    %2320 = vmatmul.bf16.gmra.mxu0 %v2197
    %v2321 = vpop.f32.mrf.mxu0
    %v2322 = vadd.f32 0.0, %v2321
    %v2323 = vpop.f32.mrf.mxu0
    %v2324 = vadd.f32 0.0, %v2323
    %2325 = vmatmul.bf16.gmra.mxu0 %v2200
    %v2326 = vpop.f32.mrf.mxu0
    %v2327 = vadd.f32 0.0, %v2326
    %v2328 = vpop.f32.mrf.mxu0
    %v2329 = vadd.f32 0.0, %v2328
    %2330 = vmatmul.bf16.gmra.mxu0 %v2203
    %v2331 = vpop.f32.mrf.mxu0
    %v2332 = vadd.f32 0.0, %v2331
    %v2333 = vpop.f32.mrf.mxu0
    %v2334 = vadd.f32 0.0, %v2333
    %2335 = vmatmul.bf16.gmra.mxu0 %v2206
    %v2336 = vpop.f32.mrf.mxu0
    %v2337 = vadd.f32 0.0, %v2336
    %v2338 = vpop.f32.mrf.mxu0
    %v2339 = vadd.f32 0.0, %v2338
    %2340 = vmatmul.bf16.gmra.mxu0 %v2209
    %v2341 = vpop.f32.mrf.mxu0
    %v2342 = vadd.f32 0.0, %v2341
    %v2343 = vpop.f32.mrf.mxu0
    %v2344 = vadd.f32 0.0, %v2343
    %2345 = vmatmul.bf16.gmra.mxu0 %v2212
    %v2346 = vpop.f32.mrf.mxu0
    %v2347 = vadd.f32 0.0, %v2346
    %v2348 = vpop.f32.mrf.mxu0
    %v2349 = vadd.f32 0.0, %v2348
    %2350 = vdwg.mxu0
    %2351 = vmatpush.bf16.xpose.msra.mxu0 %v2260
    %2352 = vmatpush.bf16.xpose.msra.mxu0 %v2257
    %2353 = vmatpush.bf16.xpose.msra.mxu0 %v2254
    %2354 = vmatpush.bf16.xpose.msra.mxu0 %v2251
    %2355 = vmatpush.bf16.xpose.msra.mxu0 %v2248
    %2356 = vmatpush.bf16.xpose.msra.mxu0 %v2245
    %2357 = vmatpush.bf16.xpose.msra.mxu0 %v2242
    %2358 = vmatpush.bf16.xpose.msra.mxu0 %v2239
    %2359 = vmatmul.bf16.gmra.mxu0 %v2167
    %v2360 = vpop.f32.mrf.mxu0
    %v2361 = vadd.f32 0.0, %v2360
    %v2362 = vpop.f32.mrf.mxu0
    %v2363 = vadd.f32 0.0, %v2362
    %2364 = vmatmul.bf16.gmra.mxu0 %v2170
    %v2365 = vpop.f32.mrf.mxu0
    %v2366 = vadd.f32 0.0, %v2365
    %v2367 = vpop.f32.mrf.mxu0
    %v2368 = vadd.f32 0.0, %v2367
    %2369 = vmatmul.bf16.gmra.mxu0 %v2173
    %v2370 = vpop.f32.mrf.mxu0
    %v2371 = vadd.f32 0.0, %v2370
    %v2372 = vpop.f32.mrf.mxu0
    %v2373 = vadd.f32 0.0, %v2372
    %2374 = vmatmul.bf16.gmra.mxu0 %v2176
    %v2375 = vpop.f32.mrf.mxu0
    %v2376 = vadd.f32 0.0, %v2375
    %v2377 = vpop.f32.mrf.mxu0
    %v2378 = vadd.f32 0.0, %v2377
    %2379 = vmatmul.bf16.gmra.mxu0 %v2179
    %v2380 = vpop.f32.mrf.mxu0
    %v2381 = vadd.f32 0.0, %v2380
    %v2382 = vpop.f32.mrf.mxu0
    %v2383 = vadd.f32 0.0, %v2382
    %2384 = vmatmul.bf16.gmra.mxu0 %v2182
    %v2385 = vpop.f32.mrf.mxu0
    %v2386 = vadd.f32 0.0, %v2385
    %v2387 = vpop.f32.mrf.mxu0
    %v2388 = vadd.f32 0.0, %v2387
    %2389 = vmatmul.bf16.gmra.mxu0 %v2185
    %v2390 = vpop.f32.mrf.mxu0
    %v2391 = vadd.f32 0.0, %v2390
    %v2392 = vpop.f32.mrf.mxu0
    %v2393 = vadd.f32 0.0, %v2392
    %2394 = vmatmul.bf16.gmra.mxu0 %v2188
    %v2395 = vpop.f32.mrf.mxu0
    %v2396 = vadd.f32 0.0, %v2395
    %v2397 = vpop.f32.mrf.mxu0
    %v2398 = vadd.f32 0.0, %v2397
    %2399 = vmatmul.bf16.gmra.mxu0 %v2191
    %v2400 = vpop.f32.mrf.mxu0
    %v2401 = vadd.f32 0.0, %v2400
    %v2402 = vpop.f32.mrf.mxu0
    %v2403 = vadd.f32 0.0, %v2402
    %2404 = vmatmul.bf16.gmra.mxu0 %v2194
    %v2405 = vpop.f32.mrf.mxu0
    %v2406 = vadd.f32 0.0, %v2405
    %v2407 = vpop.f32.mrf.mxu0
    %v2408 = vadd.f32 0.0, %v2407
    %2409 = vmatmul.bf16.gmra.mxu0 %v2197
    %v2410 = vpop.f32.mrf.mxu0
    %v2411 = vadd.f32 0.0, %v2410
    %v2412 = vpop.f32.mrf.mxu0
    %v2413 = vadd.f32 0.0, %v2412
    %2414 = vmatmul.bf16.gmra.mxu0 %v2200
    %v2415 = vpop.f32.mrf.mxu0
    %v2416 = vadd.f32 0.0, %v2415
    %v2417 = vpop.f32.mrf.mxu0
    %v2418 = vadd.f32 0.0, %v2417
    %2419 = vmatmul.bf16.gmra.mxu0 %v2203
    %v2420 = vpop.f32.mrf.mxu0
    %v2421 = vadd.f32 0.0, %v2420
    %v2422 = vpop.f32.mrf.mxu0
    %v2423 = vadd.f32 0.0, %v2422
    %2424 = vmatmul.bf16.gmra.mxu0 %v2206
    %v2425 = vpop.f32.mrf.mxu0
    %v2426 = vadd.f32 0.0, %v2425
    %v2427 = vpop.f32.mrf.mxu0
    %v2428 = vadd.f32 0.0, %v2427
    %2429 = vmatmul.bf16.gmra.mxu0 %v2209
    %v2430 = vpop.f32.mrf.mxu0
    %v2431 = vadd.f32 0.0, %v2430
    %v2432 = vpop.f32.mrf.mxu0
    %v2433 = vadd.f32 0.0, %v2432
    %2434 = vmatmul.bf16.gmra.mxu0 %v2212
    %v2435 = vpop.f32.mrf.mxu0
    %v2436 = vadd.f32 0.0, %v2435
    %v2437 = vpop.f32.mrf.mxu0
    %v2438 = vadd.f32 0.0, %v2437
    %2439 = vdwg.mxu0
    %v2440 = vmul.f32 %v2272, 0.17677669
    %v2441 = vmul.f32 %v2361, 0.17677669
    %v2442 = vmul.f32 %v2274, 0.17677669
    %v2443 = vmul.f32 %v2363, 0.17677669
    %v2444 = vmul.f32 %v2277, 0.17677669
    %v2445 = vmul.f32 %v2366, 0.17677669
    %v2446 = vmul.f32 %v2279, 0.17677669
    %v2447 = vmul.f32 %v2368, 0.17677669
    %v2448 = vmul.f32 %v2282, 0.17677669
    %v2449 = vmul.f32 %v2371, 0.17677669
    %v2450 = vmul.f32 %v2284, 0.17677669
    %v2451 = vmul.f32 %v2373, 0.17677669
    %v2452 = vmul.f32 %v2287, 0.17677669
    %v2453 = vmul.f32 %v2376, 0.17677669
    %v2454 = vmul.f32 %v2289, 0.17677669
    %v2455 = vmul.f32 %v2378, 0.17677669
    %v2456 = vmul.f32 %v2292, 0.17677669
    %v2457 = vmul.f32 %v2381, 0.17677669
    %v2458 = vmul.f32 %v2294, 0.17677669
    %v2459 = vmul.f32 %v2383, 0.17677669
    %v2460 = vmul.f32 %v2297, 0.17677669
    %v2461 = vmul.f32 %v2386, 0.17677669
    %v2462 = vmul.f32 %v2299, 0.17677669
    %v2463 = vmul.f32 %v2388, 0.17677669
    %v2464 = vmul.f32 %v2302, 0.17677669
    %v2465 = vmul.f32 %v2391, 0.17677669
    %v2466 = vmul.f32 %v2304, 0.17677669
    %v2467 = vmul.f32 %v2393, 0.17677669
    %v2468 = vmul.f32 %v2307, 0.17677669
    %v2469 = vmul.f32 %v2396, 0.17677669
    %v2470 = vmul.f32 %v2309, 0.17677669
    %v2471 = vmul.f32 %v2398, 0.17677669
    %v2472 = vmul.f32 %v2312, 0.17677669
    %v2473 = vmul.f32 %v2401, 0.17677669
    %v2474 = vmul.f32 %v2314, 0.17677669
    %v2475 = vmul.f32 %v2403, 0.17677669
    %v2476 = vmul.f32 %v2317, 0.17677669
    %v2477 = vmul.f32 %v2406, 0.17677669
    %v2478 = vmul.f32 %v2319, 0.17677669
    %v2479 = vmul.f32 %v2408, 0.17677669
    %v2480 = vmul.f32 %v2322, 0.17677669
    %v2481 = vmul.f32 %v2411, 0.17677669
    %v2482 = vmul.f32 %v2324, 0.17677669
    %v2483 = vmul.f32 %v2413, 0.17677669
    %v2484 = vmul.f32 %v2327, 0.17677669
    %v2485 = vmul.f32 %v2416, 0.17677669
    %v2486 = vmul.f32 %v2329, 0.17677669
    %v2487 = vmul.f32 %v2418, 0.17677669
    %v2488 = vmul.f32 %v2332, 0.17677669
    %v2489 = vmul.f32 %v2421, 0.17677669
    %v2490 = vmul.f32 %v2334, 0.17677669
    %v2491 = vmul.f32 %v2423, 0.17677669
    %v2492 = vmul.f32 %v2337, 0.17677669
    %v2493 = vmul.f32 %v2426, 0.17677669
    %v2494 = vmul.f32 %v2339, 0.17677669
    %v2495 = vmul.f32 %v2428, 0.17677669
    %v2496 = vmul.f32 %v2342, 0.17677669
    %v2497 = vmul.f32 %v2431, 0.17677669
    %v2498 = vmul.f32 %v2344, 0.17677669
    %v2499 = vmul.f32 %v2433, 0.17677669
    %v2500 = vmul.f32 %v2347, 0.17677669
    %v2501 = vmul.f32 %v2436, 0.17677669
    %v2502 = vmul.f32 %v2349, 0.17677669
    %v2503 = vmul.f32 %v2438, 0.17677669
    %v2504 = vadd.f32 %v2440, %v49
    %v2505 = vadd.f32 %v2441, %v50
    %v2506 = vadd.f32 %v2442, %v51
    %v2507 = vadd.f32 %v2443, %v52
    %v2508 = vadd.f32 %v2444, %v53
    %v2509 = vadd.f32 %v2445, %v54
    %v2510 = vadd.f32 %v2446, %v55
    %v2511 = vadd.f32 %v2447, %v56
    %v2512 = vadd.f32 %v2448, %v57
    %v2513 = vadd.f32 %v2449, %v58
    %v2514 = vadd.f32 %v2450, %v59
    %v2515 = vadd.f32 %v2451, %v60
    %v2516 = vadd.f32 %v2452, %v61
    %v2517 = vadd.f32 %v2453, %v62
    %v2518 = vadd.f32 %v2454, %v63
    %v2519 = vadd.f32 %v2455, %v64
    %v2520 = vadd.f32 %v2456, %v65
    %v2521 = vadd.f32 %v2457, %v66
    %v2522 = vadd.f32 %v2458, %v67
    %v2523 = vadd.f32 %v2459, %v68
    %v2524 = vadd.f32 %v2460, %v69
    %v2525 = vadd.f32 %v2461, %v70
    %v2526 = vadd.f32 %v2462, %v71
    %v2527 = vadd.f32 %v2463, %v72
    %v2528 = vadd.f32 %v2464, %v73
    %v2529 = vadd.f32 %v2465, %v74
    %v2530 = vadd.f32 %v2466, %v75
    %v2531 = vadd.f32 %v2467, %v76
    %v2532 = vadd.f32 %v2468, %v77
    %v2533 = vadd.f32 %v2469, %v78
    %v2534 = vadd.f32 %v2470, %v79
    %v2535 = vadd.f32 %v2471, %v80
    %v2536 = vadd.f32 %v2472, %v81
    %v2537 = vadd.f32 %v2473, %v82
    %v2538 = vadd.f32 %v2474, %v83
    %v2539 = vadd.f32 %v2475, %v84
    %v2540 = vadd.f32 %v2476, %v85
    %v2541 = vadd.f32 %v2477, %v86
    %v2542 = vadd.f32 %v2478, %v87
    %v2543 = vadd.f32 %v2479, %v88
    %v2544 = vadd.f32 %v2480, %v89
    %v2545 = vadd.f32 %v2481, %v90
    %v2546 = vadd.f32 %v2482, %v91
    %v2547 = vadd.f32 %v2483, %v92
    %v2548 = vadd.f32 %v2484, %v93
    %v2549 = vadd.f32 %v2485, %v94
    %v2550 = vadd.f32 %v2486, %v95
    %v2551 = vadd.f32 %v2487, %v96
    %v2552 = vadd.f32 %v2488, %v97
    %v2553 = vadd.f32 %v2489, %v98
    %v2554 = vadd.f32 %v2490, %v99
    %v2555 = vadd.f32 %v2491, %v100
    %v2556 = vadd.f32 %v2492, %v101
    %v2557 = vadd.f32 %v2493, %v102
    %v2558 = vadd.f32 %v2494, %v103
    %v2559 = vadd.f32 %v2495, %v104
    %v2560 = vadd.f32 %v2496, %v105
    %v2561 = vadd.f32 %v2497, %v106
    %v2562 = vadd.f32 %v2498, %v107
    %v2563 = vadd.f32 %v2499, %v108
    %v2564 = vadd.f32 %v2500, %v109
    %v2565 = vadd.f32 %v2501, %v110
    %v2566 = vadd.f32 %v2502, %v111
    %v2567 = vadd.f32 %v2503, %v112
    %v2568 = vmax.f32 %v2504, %v2505
    %2569 = vmax.xlane.f32.xlu0 %v2568
    %v2570 = vpop.xlane.xlu0 %2569
    %v2571 = vmax.f32 %v2506, %v2507
    %2572 = vmax.xlane.f32.xlu0 %v2571
    %v2573 = vpop.xlane.xlu0 %2572
    %v2574 = vmax.f32 %v2508, %v2509
    %2575 = vmax.xlane.f32.xlu0 %v2574
    %v2576 = vpop.xlane.xlu0 %2575
    %v2577 = vmax.f32 %v2510, %v2511
    %2578 = vmax.xlane.f32.xlu0 %v2577
    %v2579 = vpop.xlane.xlu0 %2578
    %v2580 = vmax.f32 %v2512, %v2513
    %2581 = vmax.xlane.f32.xlu0 %v2580
    %v2582 = vpop.xlane.xlu0 %2581
    %v2583 = vmax.f32 %v2514, %v2515
    %2584 = vmax.xlane.f32.xlu0 %v2583
    %v2585 = vpop.xlane.xlu0 %2584
    %v2586 = vmax.f32 %v2516, %v2517
    %2587 = vmax.xlane.f32.xlu0 %v2586
    %v2588 = vpop.xlane.xlu0 %2587
    %v2589 = vmax.f32 %v2518, %v2519
    %2590 = vmax.xlane.f32.xlu0 %v2589
    %v2591 = vpop.xlane.xlu0 %2590
    %v2592 = vmax.f32 %v2520, %v2521
    %2593 = vmax.xlane.f32.xlu0 %v2592
    %v2594 = vpop.xlane.xlu0 %2593
    %v2595 = vmax.f32 %v2522, %v2523
    %2596 = vmax.xlane.f32.xlu0 %v2595
    %v2597 = vpop.xlane.xlu0 %2596
    %v2598 = vmax.f32 %v2524, %v2525
    %2599 = vmax.xlane.f32.xlu0 %v2598
    %v2600 = vpop.xlane.xlu0 %2599
    %v2601 = vmax.f32 %v2526, %v2527
    %2602 = vmax.xlane.f32.xlu0 %v2601
    %v2603 = vpop.xlane.xlu0 %2602
    %v2604 = vmax.f32 %v2528, %v2529
    %2605 = vmax.xlane.f32.xlu0 %v2604
    %v2606 = vpop.xlane.xlu0 %2605
    %v2607 = vmax.f32 %v2530, %v2531
    %2608 = vmax.xlane.f32.xlu0 %v2607
    %v2609 = vpop.xlane.xlu0 %2608
    %v2610 = vmax.f32 %v2532, %v2533
    %2611 = vmax.xlane.f32.xlu0 %v2610
    %v2612 = vpop.xlane.xlu0 %2611
    %v2613 = vmax.f32 %v2534, %v2535
    %2614 = vmax.xlane.f32.xlu0 %v2613
    %v2615 = vpop.xlane.xlu0 %2614
    %v2616 = vmax.f32 %v2536, %v2537
    %2617 = vmax.xlane.f32.xlu0 %v2616
    %v2618 = vpop.xlane.xlu0 %2617
    %v2619 = vmax.f32 %v2538, %v2539
    %2620 = vmax.xlane.f32.xlu0 %v2619
    %v2621 = vpop.xlane.xlu0 %2620
    %v2622 = vmax.f32 %v2540, %v2541
    %2623 = vmax.xlane.f32.xlu0 %v2622
    %v2624 = vpop.xlane.xlu0 %2623
    %v2625 = vmax.f32 %v2542, %v2543
    %2626 = vmax.xlane.f32.xlu0 %v2625
    %v2627 = vpop.xlane.xlu0 %2626
    %v2628 = vmax.f32 %v2544, %v2545
    %2629 = vmax.xlane.f32.xlu0 %v2628
    %v2630 = vpop.xlane.xlu0 %2629
    %v2631 = vmax.f32 %v2546, %v2547
    %2632 = vmax.xlane.f32.xlu0 %v2631
    %v2633 = vpop.xlane.xlu0 %2632
    %v2634 = vmax.f32 %v2548, %v2549
    %2635 = vmax.xlane.f32.xlu0 %v2634
    %v2636 = vpop.xlane.xlu0 %2635
    %v2637 = vmax.f32 %v2550, %v2551
    %2638 = vmax.xlane.f32.xlu0 %v2637
    %v2639 = vpop.xlane.xlu0 %2638
    %v2640 = vmax.f32 %v2552, %v2553
    %2641 = vmax.xlane.f32.xlu0 %v2640
    %v2642 = vpop.xlane.xlu0 %2641
    %v2643 = vmax.f32 %v2554, %v2555
    %2644 = vmax.xlane.f32.xlu0 %v2643
    %v2645 = vpop.xlane.xlu0 %2644
    %v2646 = vmax.f32 %v2556, %v2557
    %2647 = vmax.xlane.f32.xlu0 %v2646
    %v2648 = vpop.xlane.xlu0 %2647
    %v2649 = vmax.f32 %v2558, %v2559
    %2650 = vmax.xlane.f32.xlu0 %v2649
    %v2651 = vpop.xlane.xlu0 %2650
    %v2652 = vmax.f32 %v2560, %v2561
    %2653 = vmax.xlane.f32.xlu0 %v2652
    %v2654 = vpop.xlane.xlu0 %2653
    %v2655 = vmax.f32 %v2562, %v2563
    %2656 = vmax.xlane.f32.xlu0 %v2655
    %v2657 = vpop.xlane.xlu0 %2656
    %v2658 = vmax.f32 %v2564, %v2565
    %2659 = vmax.xlane.f32.xlu0 %v2658
    %v2660 = vpop.xlane.xlu0 %2659
    %v2661 = vmax.f32 %v2566, %v2567
    %2662 = vmax.xlane.f32.xlu0 %v2661
    %v2663 = vpop.xlane.xlu0 %2662
    %v2664 = vsub.f32 %v2504, %v2570
    %v2665 = vsub.f32 %v2505, %v2570
    %v2666 = vsub.f32 %v2506, %v2573
    %v2667 = vsub.f32 %v2507, %v2573
    %v2668 = vsub.f32 %v2508, %v2576
    %v2669 = vsub.f32 %v2509, %v2576
    %v2670 = vsub.f32 %v2510, %v2579
    %v2671 = vsub.f32 %v2511, %v2579
    %v2672 = vsub.f32 %v2512, %v2582
    %v2673 = vsub.f32 %v2513, %v2582
    %v2674 = vsub.f32 %v2514, %v2585
    %v2675 = vsub.f32 %v2515, %v2585
    %v2676 = vsub.f32 %v2516, %v2588
    %v2677 = vsub.f32 %v2517, %v2588
    %v2678 = vsub.f32 %v2518, %v2591
    %v2679 = vsub.f32 %v2519, %v2591
    %v2680 = vsub.f32 %v2520, %v2594
    %v2681 = vsub.f32 %v2521, %v2594
    %v2682 = vsub.f32 %v2522, %v2597
    %v2683 = vsub.f32 %v2523, %v2597
    %v2684 = vsub.f32 %v2524, %v2600
    %v2685 = vsub.f32 %v2525, %v2600
    %v2686 = vsub.f32 %v2526, %v2603
    %v2687 = vsub.f32 %v2527, %v2603
    %v2688 = vsub.f32 %v2528, %v2606
    %v2689 = vsub.f32 %v2529, %v2606
    %v2690 = vsub.f32 %v2530, %v2609
    %v2691 = vsub.f32 %v2531, %v2609
    %v2692 = vsub.f32 %v2532, %v2612
    %v2693 = vsub.f32 %v2533, %v2612
    %v2694 = vsub.f32 %v2534, %v2615
    %v2695 = vsub.f32 %v2535, %v2615
    %v2696 = vsub.f32 %v2536, %v2618
    %v2697 = vsub.f32 %v2537, %v2618
    %v2698 = vsub.f32 %v2538, %v2621
    %v2699 = vsub.f32 %v2539, %v2621
    %v2700 = vsub.f32 %v2540, %v2624
    %v2701 = vsub.f32 %v2541, %v2624
    %v2702 = vsub.f32 %v2542, %v2627
    %v2703 = vsub.f32 %v2543, %v2627
    %v2704 = vsub.f32 %v2544, %v2630
    %v2705 = vsub.f32 %v2545, %v2630
    %v2706 = vsub.f32 %v2546, %v2633
    %v2707 = vsub.f32 %v2547, %v2633
    %v2708 = vsub.f32 %v2548, %v2636
    %v2709 = vsub.f32 %v2549, %v2636
    %v2710 = vsub.f32 %v2550, %v2639
    %v2711 = vsub.f32 %v2551, %v2639
    %v2712 = vsub.f32 %v2552, %v2642
    %v2713 = vsub.f32 %v2553, %v2642
    %v2714 = vsub.f32 %v2554, %v2645
    %v2715 = vsub.f32 %v2555, %v2645
    %v2716 = vsub.f32 %v2556, %v2648
    %v2717 = vsub.f32 %v2557, %v2648
    %v2718 = vsub.f32 %v2558, %v2651
    %v2719 = vsub.f32 %v2559, %v2651
    %v2720 = vsub.f32 %v2560, %v2654
    %v2721 = vsub.f32 %v2561, %v2654
    %v2722 = vsub.f32 %v2562, %v2657
    %v2723 = vsub.f32 %v2563, %v2657
    %v2724 = vsub.f32 %v2564, %v2660
    %v2725 = vsub.f32 %v2565, %v2660
    %v2726 = vsub.f32 %v2566, %v2663
    %v2727 = vsub.f32 %v2567, %v2663
    %v2728 = vmul.f32 %v2664, 1.442695
    %v2729 = vpow.pop %v2728
    %v2730 = vmul.f32 %v2665, 1.442695
    %v2731 = vpow.pop %v2730
    %v2732 = vmul.f32 %v2666, 1.442695
    %v2733 = vpow.pop %v2732
    %v2734 = vmul.f32 %v2667, 1.442695
    %v2735 = vpow.pop %v2734
    %v2736 = vmul.f32 %v2668, 1.442695
    %v2737 = vpow.pop %v2736
    %v2738 = vmul.f32 %v2669, 1.442695
    %v2739 = vpow.pop %v2738
    %v2740 = vmul.f32 %v2670, 1.442695
    %v2741 = vpow.pop %v2740
    %v2742 = vmul.f32 %v2671, 1.442695
    %v2743 = vpow.pop %v2742
    %v2744 = vmul.f32 %v2672, 1.442695
    %v2745 = vpow.pop %v2744
    %v2746 = vmul.f32 %v2673, 1.442695
    %v2747 = vpow.pop %v2746
    %v2748 = vmul.f32 %v2674, 1.442695
    %v2749 = vpow.pop %v2748
    %v2750 = vmul.f32 %v2675, 1.442695
    %v2751 = vpow.pop %v2750
    %v2752 = vmul.f32 %v2676, 1.442695
    %v2753 = vpow.pop %v2752
    %v2754 = vmul.f32 %v2677, 1.442695
    %v2755 = vpow.pop %v2754
    %v2756 = vmul.f32 %v2678, 1.442695
    %v2757 = vpow.pop %v2756
    %v2758 = vmul.f32 %v2679, 1.442695
    %v2759 = vpow.pop %v2758
    %v2760 = vmul.f32 %v2680, 1.442695
    %v2761 = vpow.pop %v2760
    %v2762 = vmul.f32 %v2681, 1.442695
    %v2763 = vpow.pop %v2762
    %v2764 = vmul.f32 %v2682, 1.442695
    %v2765 = vpow.pop %v2764
    %v2766 = vmul.f32 %v2683, 1.442695
    %v2767 = vpow.pop %v2766
    %v2768 = vmul.f32 %v2684, 1.442695
    %v2769 = vpow.pop %v2768
    %v2770 = vmul.f32 %v2685, 1.442695
    %v2771 = vpow.pop %v2770
    %v2772 = vmul.f32 %v2686, 1.442695
    %v2773 = vpow.pop %v2772
    %v2774 = vmul.f32 %v2687, 1.442695
    %v2775 = vpow.pop %v2774
    %v2776 = vmul.f32 %v2688, 1.442695
    %v2777 = vpow.pop %v2776
    %v2778 = vmul.f32 %v2689, 1.442695
    %v2779 = vpow.pop %v2778
    %v2780 = vmul.f32 %v2690, 1.442695
    %v2781 = vpow.pop %v2780
    %v2782 = vmul.f32 %v2691, 1.442695
    %v2783 = vpow.pop %v2782
    %v2784 = vmul.f32 %v2692, 1.442695
    %v2785 = vpow.pop %v2784
    %v2786 = vmul.f32 %v2693, 1.442695
    %v2787 = vpow.pop %v2786
    %v2788 = vmul.f32 %v2694, 1.442695
    %v2789 = vpow.pop %v2788
    %v2790 = vmul.f32 %v2695, 1.442695
    %v2791 = vpow.pop %v2790
    %v2792 = vmul.f32 %v2696, 1.442695
    %v2793 = vpow.pop %v2792
    %v2794 = vmul.f32 %v2697, 1.442695
    %v2795 = vpow.pop %v2794
    %v2796 = vmul.f32 %v2698, 1.442695
    %v2797 = vpow.pop %v2796
    %v2798 = vmul.f32 %v2699, 1.442695
    %v2799 = vpow.pop %v2798
    %v2800 = vmul.f32 %v2700, 1.442695
    %v2801 = vpow.pop %v2800
    %v2802 = vmul.f32 %v2701, 1.442695
    %v2803 = vpow.pop %v2802
    %v2804 = vmul.f32 %v2702, 1.442695
    %v2805 = vpow.pop %v2804
    %v2806 = vmul.f32 %v2703, 1.442695
    %v2807 = vpow.pop %v2806
    %v2808 = vmul.f32 %v2704, 1.442695
    %v2809 = vpow.pop %v2808
    %v2810 = vmul.f32 %v2705, 1.442695
    %v2811 = vpow.pop %v2810
    %v2812 = vmul.f32 %v2706, 1.442695
    %v2813 = vpow.pop %v2812
    %v2814 = vmul.f32 %v2707, 1.442695
    %v2815 = vpow.pop %v2814
    %v2816 = vmul.f32 %v2708, 1.442695
    %v2817 = vpow.pop %v2816
    %v2818 = vmul.f32 %v2709, 1.442695
    %v2819 = vpow.pop %v2818
    %v2820 = vmul.f32 %v2710, 1.442695
    %v2821 = vpow.pop %v2820
    %v2822 = vmul.f32 %v2711, 1.442695
    %v2823 = vpow.pop %v2822
    %v2824 = vmul.f32 %v2712, 1.442695
    %v2825 = vpow.pop %v2824
    %v2826 = vmul.f32 %v2713, 1.442695
    %v2827 = vpow.pop %v2826
    %v2828 = vmul.f32 %v2714, 1.442695
    %v2829 = vpow.pop %v2828
    %v2830 = vmul.f32 %v2715, 1.442695
    %v2831 = vpow.pop %v2830
    %v2832 = vmul.f32 %v2716, 1.442695
    %v2833 = vpow.pop %v2832
    %v2834 = vmul.f32 %v2717, 1.442695
    %v2835 = vpow.pop %v2834
    %v2836 = vmul.f32 %v2718, 1.442695
    %v2837 = vpow.pop %v2836
    %v2838 = vmul.f32 %v2719, 1.442695
    %v2839 = vpow.pop %v2838
    %v2840 = vmul.f32 %v2720, 1.442695
    %v2841 = vpow.pop %v2840
    %v2842 = vmul.f32 %v2721, 1.442695
    %v2843 = vpow.pop %v2842
    %v2844 = vmul.f32 %v2722, 1.442695
    %v2845 = vpow.pop %v2844
    %v2846 = vmul.f32 %v2723, 1.442695
    %v2847 = vpow.pop %v2846
    %v2848 = vmul.f32 %v2724, 1.442695
    %v2849 = vpow.pop %v2848
    %v2850 = vmul.f32 %v2725, 1.442695
    %v2851 = vpow.pop %v2850
    %v2852 = vmul.f32 %v2726, 1.442695
    %v2853 = vpow.pop %v2852
    %v2854 = vmul.f32 %v2727, 1.442695
    %v2855 = vpow.pop %v2854
    %v2856 = vadd.f32 %v2729, %v2731
    %2857 = vadd.xlane.f32.xlu0 %v2856
    %v2858 = vpop.xlane.xlu0 %2857
    %v2859 = vadd.f32 %v2733, %v2735
    %2860 = vadd.xlane.f32.xlu0 %v2859
    %v2861 = vpop.xlane.xlu0 %2860
    %v2862 = vadd.f32 %v2737, %v2739
    %2863 = vadd.xlane.f32.xlu0 %v2862
    %v2864 = vpop.xlane.xlu0 %2863
    %v2865 = vadd.f32 %v2741, %v2743
    %2866 = vadd.xlane.f32.xlu0 %v2865
    %v2867 = vpop.xlane.xlu0 %2866
    %v2868 = vadd.f32 %v2745, %v2747
    %2869 = vadd.xlane.f32.xlu0 %v2868
    %v2870 = vpop.xlane.xlu0 %2869
    %v2871 = vadd.f32 %v2749, %v2751
    %2872 = vadd.xlane.f32.xlu0 %v2871
    %v2873 = vpop.xlane.xlu0 %2872
    %v2874 = vadd.f32 %v2753, %v2755
    %2875 = vadd.xlane.f32.xlu0 %v2874
    %v2876 = vpop.xlane.xlu0 %2875
    %v2877 = vadd.f32 %v2757, %v2759
    %2878 = vadd.xlane.f32.xlu0 %v2877
    %v2879 = vpop.xlane.xlu0 %2878
    %v2880 = vadd.f32 %v2761, %v2763
    %2881 = vadd.xlane.f32.xlu0 %v2880
    %v2882 = vpop.xlane.xlu0 %2881
    %v2883 = vadd.f32 %v2765, %v2767
    %2884 = vadd.xlane.f32.xlu0 %v2883
    %v2885 = vpop.xlane.xlu0 %2884
    %v2886 = vadd.f32 %v2769, %v2771
    %2887 = vadd.xlane.f32.xlu0 %v2886
    %v2888 = vpop.xlane.xlu0 %2887
    %v2889 = vadd.f32 %v2773, %v2775
    %2890 = vadd.xlane.f32.xlu0 %v2889
    %v2891 = vpop.xlane.xlu0 %2890
    %v2892 = vadd.f32 %v2777, %v2779
    %2893 = vadd.xlane.f32.xlu0 %v2892
    %v2894 = vpop.xlane.xlu0 %2893
    %v2895 = vadd.f32 %v2781, %v2783
    %2896 = vadd.xlane.f32.xlu0 %v2895
    %v2897 = vpop.xlane.xlu0 %2896
    %v2898 = vadd.f32 %v2785, %v2787
    %2899 = vadd.xlane.f32.xlu0 %v2898
    %v2900 = vpop.xlane.xlu0 %2899
    %v2901 = vadd.f32 %v2789, %v2791
    %2902 = vadd.xlane.f32.xlu0 %v2901
    %v2903 = vpop.xlane.xlu0 %2902
    %v2904 = vadd.f32 %v2793, %v2795
    %2905 = vadd.xlane.f32.xlu0 %v2904
    %v2906 = vpop.xlane.xlu0 %2905
    %v2907 = vadd.f32 %v2797, %v2799
    %2908 = vadd.xlane.f32.xlu0 %v2907
    %v2909 = vpop.xlane.xlu0 %2908
    %v2910 = vadd.f32 %v2801, %v2803
    %2911 = vadd.xlane.f32.xlu0 %v2910
    %v2912 = vpop.xlane.xlu0 %2911
    %v2913 = vadd.f32 %v2805, %v2807
    %2914 = vadd.xlane.f32.xlu0 %v2913
    %v2915 = vpop.xlane.xlu0 %2914
    %v2916 = vadd.f32 %v2809, %v2811
    %2917 = vadd.xlane.f32.xlu0 %v2916
    %v2918 = vpop.xlane.xlu0 %2917
    %v2919 = vadd.f32 %v2813, %v2815
    %2920 = vadd.xlane.f32.xlu0 %v2919
    %v2921 = vpop.xlane.xlu0 %2920
    %v2922 = vadd.f32 %v2817, %v2819
    %2923 = vadd.xlane.f32.xlu0 %v2922
    %v2924 = vpop.xlane.xlu0 %2923
    %v2925 = vadd.f32 %v2821, %v2823
    %2926 = vadd.xlane.f32.xlu0 %v2925
    %v2927 = vpop.xlane.xlu0 %2926
    %v2928 = vadd.f32 %v2825, %v2827
    %2929 = vadd.xlane.f32.xlu0 %v2928
    %v2930 = vpop.xlane.xlu0 %2929
    %v2931 = vadd.f32 %v2829, %v2831
    %2932 = vadd.xlane.f32.xlu0 %v2931
    %v2933 = vpop.xlane.xlu0 %2932
    %v2934 = vadd.f32 %v2833, %v2835
    %2935 = vadd.xlane.f32.xlu0 %v2934
    %v2936 = vpop.xlane.xlu0 %2935
    %v2937 = vadd.f32 %v2837, %v2839
    %2938 = vadd.xlane.f32.xlu0 %v2937
    %v2939 = vpop.xlane.xlu0 %2938
    %v2940 = vadd.f32 %v2841, %v2843
    %2941 = vadd.xlane.f32.xlu0 %v2940
    %v2942 = vpop.xlane.xlu0 %2941
    %v2943 = vadd.f32 %v2845, %v2847
    %2944 = vadd.xlane.f32.xlu0 %v2943
    %v2945 = vpop.xlane.xlu0 %2944
    %v2946 = vadd.f32 %v2849, %v2851
    %2947 = vadd.xlane.f32.xlu0 %v2946
    %v2948 = vpop.xlane.xlu0 %2947
    %v2949 = vadd.f32 %v2853, %v2855
    %2950 = vadd.xlane.f32.xlu0 %v2949
    %v2951 = vpop.xlane.xlu0 %2950
    %v2952 = vrcp.pop %v2858
    %v2953 = vrcp.pop %v2861
    %v2954 = vrcp.pop %v2864
    %v2955 = vrcp.pop %v2867
    %v2956 = vrcp.pop %v2870
    %v2957 = vrcp.pop %v2873
    %v2958 = vrcp.pop %v2876
    %v2959 = vrcp.pop %v2879
    %v2960 = vrcp.pop %v2882
    %v2961 = vrcp.pop %v2885
    %v2962 = vrcp.pop %v2888
    %v2963 = vrcp.pop %v2891
    %v2964 = vrcp.pop %v2894
    %v2965 = vrcp.pop %v2897
    %v2966 = vrcp.pop %v2900
    %v2967 = vrcp.pop %v2903
    %v2968 = vrcp.pop %v2906
    %v2969 = vrcp.pop %v2909
    %v2970 = vrcp.pop %v2912
    %v2971 = vrcp.pop %v2915
    %v2972 = vrcp.pop %v2918
    %v2973 = vrcp.pop %v2921
    %v2974 = vrcp.pop %v2924
    %v2975 = vrcp.pop %v2927
    %v2976 = vrcp.pop %v2930
    %v2977 = vrcp.pop %v2933
    %v2978 = vrcp.pop %v2936
    %v2979 = vrcp.pop %v2939
    %v2980 = vrcp.pop %v2942
    %v2981 = vrcp.pop %v2945
    %v2982 = vrcp.pop %v2948
    %v2983 = vrcp.pop %v2951
    %v2984 = vmul.f32 %v2729, %v2952
    %v2985 = vmul.f32 %v2731, %v2952
    %v2986 = vmul.f32 %v2733, %v2953
    %v2987 = vmul.f32 %v2735, %v2953
    %v2988 = vmul.f32 %v2737, %v2954
    %v2989 = vmul.f32 %v2739, %v2954
    %v2990 = vmul.f32 %v2741, %v2955
    %v2991 = vmul.f32 %v2743, %v2955
    %v2992 = vmul.f32 %v2745, %v2956
    %v2993 = vmul.f32 %v2747, %v2956
    %v2994 = vmul.f32 %v2749, %v2957
    %v2995 = vmul.f32 %v2751, %v2957
    %v2996 = vmul.f32 %v2753, %v2958
    %v2997 = vmul.f32 %v2755, %v2958
    %v2998 = vmul.f32 %v2757, %v2959
    %v2999 = vmul.f32 %v2759, %v2959
    %v3000 = vmul.f32 %v2761, %v2960
    %v3001 = vmul.f32 %v2763, %v2960
    %v3002 = vmul.f32 %v2765, %v2961
    %v3003 = vmul.f32 %v2767, %v2961
    %v3004 = vmul.f32 %v2769, %v2962
    %v3005 = vmul.f32 %v2771, %v2962
    %v3006 = vmul.f32 %v2773, %v2963
    %v3007 = vmul.f32 %v2775, %v2963
    %v3008 = vmul.f32 %v2777, %v2964
    %v3009 = vmul.f32 %v2779, %v2964
    %v3010 = vmul.f32 %v2781, %v2965
    %v3011 = vmul.f32 %v2783, %v2965
    %v3012 = vmul.f32 %v2785, %v2966
    %v3013 = vmul.f32 %v2787, %v2966
    %v3014 = vmul.f32 %v2789, %v2967
    %v3015 = vmul.f32 %v2791, %v2967
    %v3016 = vmul.f32 %v2793, %v2968
    %v3017 = vmul.f32 %v2795, %v2968
    %v3018 = vmul.f32 %v2797, %v2969
    %v3019 = vmul.f32 %v2799, %v2969
    %v3020 = vmul.f32 %v2801, %v2970
    %v3021 = vmul.f32 %v2803, %v2970
    %v3022 = vmul.f32 %v2805, %v2971
    %v3023 = vmul.f32 %v2807, %v2971
    %v3024 = vmul.f32 %v2809, %v2972
    %v3025 = vmul.f32 %v2811, %v2972
    %v3026 = vmul.f32 %v2813, %v2973
    %v3027 = vmul.f32 %v2815, %v2973
    %v3028 = vmul.f32 %v2817, %v2974
    %v3029 = vmul.f32 %v2819, %v2974
    %v3030 = vmul.f32 %v2821, %v2975
    %v3031 = vmul.f32 %v2823, %v2975
    %v3032 = vmul.f32 %v2825, %v2976
    %v3033 = vmul.f32 %v2827, %v2976
    %v3034 = vmul.f32 %v2829, %v2977
    %v3035 = vmul.f32 %v2831, %v2977
    %v3036 = vmul.f32 %v2833, %v2978
    %v3037 = vmul.f32 %v2835, %v2978
    %v3038 = vmul.f32 %v2837, %v2979
    %v3039 = vmul.f32 %v2839, %v2979
    %v3040 = vmul.f32 %v2841, %v2980
    %v3041 = vmul.f32 %v2843, %v2980
    %v3042 = vmul.f32 %v2845, %v2981
    %v3043 = vmul.f32 %v2847, %v2981
    %v3044 = vmul.f32 %v2849, %v2982
    %v3045 = vmul.f32 %v2851, %v2982
    %v3046 = vmul.f32 %v2853, %v2983
    %v3047 = vmul.f32 %v2855, %v2983
    %v3048 = vpack.c.bf16 %v2986, %v2984
    %v3049 = vpack.c.bf16 %v2987, %v2985
    %v3050 = vpack.c.bf16 %v2990, %v2988
    %v3051 = vpack.c.bf16 %v2991, %v2989
    %v3052 = vpack.c.bf16 %v2994, %v2992
    %v3053 = vpack.c.bf16 %v2995, %v2993
    %v3054 = vpack.c.bf16 %v2998, %v2996
    %v3055 = vpack.c.bf16 %v2999, %v2997
    %v3056 = vpack.c.bf16 %v3002, %v3000
    %v3057 = vpack.c.bf16 %v3003, %v3001
    %v3058 = vpack.c.bf16 %v3006, %v3004
    %v3059 = vpack.c.bf16 %v3007, %v3005
    %v3060 = vpack.c.bf16 %v3010, %v3008
    %v3061 = vpack.c.bf16 %v3011, %v3009
    %v3062 = vpack.c.bf16 %v3014, %v3012
    %v3063 = vpack.c.bf16 %v3015, %v3013
    %v3064 = vpack.c.bf16 %v3018, %v3016
    %v3065 = vpack.c.bf16 %v3019, %v3017
    %v3066 = vpack.c.bf16 %v3022, %v3020
    %v3067 = vpack.c.bf16 %v3023, %v3021
    %v3068 = vpack.c.bf16 %v3026, %v3024
    %v3069 = vpack.c.bf16 %v3027, %v3025
    %v3070 = vpack.c.bf16 %v3030, %v3028
    %v3071 = vpack.c.bf16 %v3031, %v3029
    %v3072 = vpack.c.bf16 %v3034, %v3032
    %v3073 = vpack.c.bf16 %v3035, %v3033
    %v3074 = vpack.c.bf16 %v3038, %v3036
    %v3075 = vpack.c.bf16 %v3039, %v3037
    %v3076 = vpack.c.bf16 %v3042, %v3040
    %v3077 = vpack.c.bf16 %v3043, %v3041
    %v3078 = vpack.c.bf16 %v3046, %v3044
    %v3079 = vpack.c.bf16 %v3047, %v3045
    %3080 = vrot.lane.b32.xlu0 %v2102, 64
    %v3081 = vpop.permute.xlu0 %3080
    %3082 = vrot.lane.b32.xlu0 %v2103, 64
    %v3083 = vpop.permute.xlu0 %3082
    %3084 = vrot.lane.b32.xlu0 %v2104, 64
    %v3085 = vpop.permute.xlu0 %3084
    %3086 = vrot.lane.b32.xlu0 %v2105, 64
    %v3087 = vpop.permute.xlu0 %3086
    %3088 = vrot.lane.b32.xlu0 %v2106, 64
    %v3089 = vpop.permute.xlu0 %3088
    %3090 = vrot.lane.b32.xlu0 %v2107, 64
    %v3091 = vpop.permute.xlu0 %3090
    %3092 = vrot.lane.b32.xlu0 %v2108, 64
    %v3093 = vpop.permute.xlu0 %3092
    %3094 = vrot.lane.b32.xlu0 %v2109, 64
    %v3095 = vpop.permute.xlu0 %3094
    %3096 = vrot.lane.b32.xlu0 %v2110, 64
    %v3097 = vpop.permute.xlu0 %3096
    %3098 = vrot.lane.b32.xlu0 %v2111, 64
    %v3099 = vpop.permute.xlu0 %3098
    %3100 = vrot.lane.b32.xlu0 %v2112, 64
    %v3101 = vpop.permute.xlu0 %3100
    %3102 = vrot.lane.b32.xlu0 %v2113, 64
    %v3103 = vpop.permute.xlu0 %3102
    %3104 = vrot.lane.b32.xlu0 %v2114, 64
    %v3105 = vpop.permute.xlu0 %3104
    %3106 = vrot.lane.b32.xlu0 %v2115, 64
    %v3107 = vpop.permute.xlu0 %3106
    %3108 = vrot.lane.b32.xlu0 %v2116, 64
    %v3109 = vpop.permute.xlu0 %3108
    %3110 = vrot.lane.b32.xlu0 %v2117, 64
    %v3111 = vpop.permute.xlu0 %3110
    %3128 = vmatpush.bf16.msra.mxu0 %v3095
    %3129 = vmatpush.bf16.msra.mxu0 %v3093
    %3130 = vmatpush.bf16.msra.mxu0 %v3091
    %3131 = vmatpush.bf16.msra.mxu0 %v3089
    %3132 = vmatpush.bf16.msra.mxu0 %v3087
    %3133 = vmatpush.bf16.msra.mxu0 %v3085
    %3134 = vmatpush.bf16.msra.mxu0 %v3083
    %3135 = vmatpush.bf16.msra.mxu0 %v3081
    %3136 = vmatmul.bf16.gmra.mxu0 %v3048
    %v3137 = vpop.f32.mrf.mxu0
    %v3138 = vadd.f32 0.0, %v3137
    %v3139 = vpop.f32.mrf.mxu0
    %v3140 = vadd.f32 0.0, %v3139
    %3141 = vmatmul.bf16.gmra.mxu0 %v3050
    %v3142 = vpop.f32.mrf.mxu0
    %v3143 = vadd.f32 0.0, %v3142
    %v3144 = vpop.f32.mrf.mxu0
    %v3145 = vadd.f32 0.0, %v3144
    %3146 = vmatmul.bf16.gmra.mxu0 %v3052
    %v3147 = vpop.f32.mrf.mxu0
    %v3148 = vadd.f32 0.0, %v3147
    %v3149 = vpop.f32.mrf.mxu0
    %v3150 = vadd.f32 0.0, %v3149
    %3151 = vmatmul.bf16.gmra.mxu0 %v3054
    %v3152 = vpop.f32.mrf.mxu0
    %v3153 = vadd.f32 0.0, %v3152
    %v3154 = vpop.f32.mrf.mxu0
    %v3155 = vadd.f32 0.0, %v3154
    %3156 = vmatmul.bf16.gmra.mxu0 %v3056
    %v3157 = vpop.f32.mrf.mxu0
    %v3158 = vadd.f32 0.0, %v3157
    %v3159 = vpop.f32.mrf.mxu0
    %v3160 = vadd.f32 0.0, %v3159
    %3161 = vmatmul.bf16.gmra.mxu0 %v3058
    %v3162 = vpop.f32.mrf.mxu0
    %v3163 = vadd.f32 0.0, %v3162
    %v3164 = vpop.f32.mrf.mxu0
    %v3165 = vadd.f32 0.0, %v3164
    %3166 = vmatmul.bf16.gmra.mxu0 %v3060
    %v3167 = vpop.f32.mrf.mxu0
    %v3168 = vadd.f32 0.0, %v3167
    %v3169 = vpop.f32.mrf.mxu0
    %v3170 = vadd.f32 0.0, %v3169
    %3171 = vmatmul.bf16.gmra.mxu0 %v3062
    %v3172 = vpop.f32.mrf.mxu0
    %v3173 = vadd.f32 0.0, %v3172
    %v3174 = vpop.f32.mrf.mxu0
    %v3175 = vadd.f32 0.0, %v3174
    %3176 = vmatmul.bf16.gmra.mxu0 %v3064
    %v3177 = vpop.f32.mrf.mxu0
    %v3178 = vadd.f32 0.0, %v3177
    %v3179 = vpop.f32.mrf.mxu0
    %v3180 = vadd.f32 0.0, %v3179
    %3181 = vmatmul.bf16.gmra.mxu0 %v3066
    %v3182 = vpop.f32.mrf.mxu0
    %v3183 = vadd.f32 0.0, %v3182
    %v3184 = vpop.f32.mrf.mxu0
    %v3185 = vadd.f32 0.0, %v3184
    %3186 = vmatmul.bf16.gmra.mxu0 %v3068
    %v3187 = vpop.f32.mrf.mxu0
    %v3188 = vadd.f32 0.0, %v3187
    %v3189 = vpop.f32.mrf.mxu0
    %v3190 = vadd.f32 0.0, %v3189
    %3191 = vmatmul.bf16.gmra.mxu0 %v3070
    %v3192 = vpop.f32.mrf.mxu0
    %v3193 = vadd.f32 0.0, %v3192
    %v3194 = vpop.f32.mrf.mxu0
    %v3195 = vadd.f32 0.0, %v3194
    %3196 = vmatmul.bf16.gmra.mxu0 %v3072
    %v3197 = vpop.f32.mrf.mxu0
    %v3198 = vadd.f32 0.0, %v3197
    %v3199 = vpop.f32.mrf.mxu0
    %v3200 = vadd.f32 0.0, %v3199
    %3201 = vmatmul.bf16.gmra.mxu0 %v3074
    %v3202 = vpop.f32.mrf.mxu0
    %v3203 = vadd.f32 0.0, %v3202
    %v3204 = vpop.f32.mrf.mxu0
    %v3205 = vadd.f32 0.0, %v3204
    %3206 = vmatmul.bf16.gmra.mxu0 %v3076
    %v3207 = vpop.f32.mrf.mxu0
    %v3208 = vadd.f32 0.0, %v3207
    %v3209 = vpop.f32.mrf.mxu0
    %v3210 = vadd.f32 0.0, %v3209
    %3211 = vmatmul.bf16.gmra.mxu0 %v3078
    %v3212 = vpop.f32.mrf.mxu0
    %v3213 = vadd.f32 0.0, %v3212
    %v3214 = vpop.f32.mrf.mxu0
    %v3215 = vadd.f32 0.0, %v3214
    %3216 = vdwg.mxu0
    %3217 = vmatpush.bf16.msra.mxu0 %v3111
    %3218 = vmatpush.bf16.msra.mxu0 %v3109
    %3219 = vmatpush.bf16.msra.mxu0 %v3107
    %3220 = vmatpush.bf16.msra.mxu0 %v3105
    %3221 = vmatpush.bf16.msra.mxu0 %v3103
    %3222 = vmatpush.bf16.msra.mxu0 %v3101
    %3223 = vmatpush.bf16.msra.mxu0 %v3099
    %3224 = vmatpush.bf16.msra.mxu0 %v3097
    %3225 = vmatmul.bf16.gmra.mxu0 %v3049
    %v3226 = vpop.f32.mrf.mxu0
    %v3227 = vadd.f32 %v3138, %v3226
    %v3228 = vpop.f32.mrf.mxu0
    %v3229 = vadd.f32 %v3140, %v3228
    %3230 = vmatmul.bf16.gmra.mxu0 %v3051
    %v3231 = vpop.f32.mrf.mxu0
    %v3232 = vadd.f32 %v3143, %v3231
    %v3233 = vpop.f32.mrf.mxu0
    %v3234 = vadd.f32 %v3145, %v3233
    %3235 = vmatmul.bf16.gmra.mxu0 %v3053
    %v3236 = vpop.f32.mrf.mxu0
    %v3237 = vadd.f32 %v3148, %v3236
    %v3238 = vpop.f32.mrf.mxu0
    %v3239 = vadd.f32 %v3150, %v3238
    %3240 = vmatmul.bf16.gmra.mxu0 %v3055
    %v3241 = vpop.f32.mrf.mxu0
    %v3242 = vadd.f32 %v3153, %v3241
    %v3243 = vpop.f32.mrf.mxu0
    %v3244 = vadd.f32 %v3155, %v3243
    %3245 = vmatmul.bf16.gmra.mxu0 %v3057
    %v3246 = vpop.f32.mrf.mxu0
    %v3247 = vadd.f32 %v3158, %v3246
    %v3248 = vpop.f32.mrf.mxu0
    %v3249 = vadd.f32 %v3160, %v3248
    %3250 = vmatmul.bf16.gmra.mxu0 %v3059
    %v3251 = vpop.f32.mrf.mxu0
    %v3252 = vadd.f32 %v3163, %v3251
    %v3253 = vpop.f32.mrf.mxu0
    %v3254 = vadd.f32 %v3165, %v3253
    %3255 = vmatmul.bf16.gmra.mxu0 %v3061
    %v3256 = vpop.f32.mrf.mxu0
    %v3257 = vadd.f32 %v3168, %v3256
    %v3258 = vpop.f32.mrf.mxu0
    %v3259 = vadd.f32 %v3170, %v3258
    %3260 = vmatmul.bf16.gmra.mxu0 %v3063
    %v3261 = vpop.f32.mrf.mxu0
    %v3262 = vadd.f32 %v3173, %v3261
    %v3263 = vpop.f32.mrf.mxu0
    %v3264 = vadd.f32 %v3175, %v3263
    %3265 = vmatmul.bf16.gmra.mxu0 %v3065
    %v3266 = vpop.f32.mrf.mxu0
    %v3267 = vadd.f32 %v3178, %v3266
    %v3268 = vpop.f32.mrf.mxu0
    %v3269 = vadd.f32 %v3180, %v3268
    %3270 = vmatmul.bf16.gmra.mxu0 %v3067
    %v3271 = vpop.f32.mrf.mxu0
    %v3272 = vadd.f32 %v3183, %v3271
    %v3273 = vpop.f32.mrf.mxu0
    %v3274 = vadd.f32 %v3185, %v3273
    %3275 = vmatmul.bf16.gmra.mxu0 %v3069
    %v3276 = vpop.f32.mrf.mxu0
    %v3277 = vadd.f32 %v3188, %v3276
    %v3278 = vpop.f32.mrf.mxu0
    %v3279 = vadd.f32 %v3190, %v3278
    %3280 = vmatmul.bf16.gmra.mxu0 %v3071
    %v3281 = vpop.f32.mrf.mxu0
    %v3282 = vadd.f32 %v3193, %v3281
    %v3283 = vpop.f32.mrf.mxu0
    %v3284 = vadd.f32 %v3195, %v3283
    %3285 = vmatmul.bf16.gmra.mxu0 %v3073
    %v3286 = vpop.f32.mrf.mxu0
    %v3287 = vadd.f32 %v3198, %v3286
    %v3288 = vpop.f32.mrf.mxu0
    %v3289 = vadd.f32 %v3200, %v3288
    %3290 = vmatmul.bf16.gmra.mxu0 %v3075
    %v3291 = vpop.f32.mrf.mxu0
    %v3292 = vadd.f32 %v3203, %v3291
    %v3293 = vpop.f32.mrf.mxu0
    %v3294 = vadd.f32 %v3205, %v3293
    %3295 = vmatmul.bf16.gmra.mxu0 %v3077
    %v3296 = vpop.f32.mrf.mxu0
    %v3297 = vadd.f32 %v3208, %v3296
    %v3298 = vpop.f32.mrf.mxu0
    %v3299 = vadd.f32 %v3210, %v3298
    %3300 = vmatmul.bf16.gmra.mxu0 %v3079
    %v3301 = vpop.f32.mrf.mxu0
    %v3302 = vadd.f32 %v3213, %v3301
    %v3303 = vpop.f32.mrf.mxu0
    %v3304 = vadd.f32 %v3215, %v3303
    %3305 = vdwg.mxu0
    %v3306 = vmul.f32 %v3227, %v1548
    %v3307 = vmul.f32 %v3229, %v1553
    %v3308 = vmul.f32 %v3232, %v1558
    %v3309 = vmul.f32 %v3234, %v1563
    %v3310 = vmul.f32 %v3237, %v1568
    %v3311 = vmul.f32 %v3239, %v1573
    %v3312 = vmul.f32 %v3242, %v1578
    %v3313 = vmul.f32 %v3244, %v1583
    %v3314 = vmul.f32 %v3247, %v1588
    %v3315 = vmul.f32 %v3249, %v1593
    %v3316 = vmul.f32 %v3252, %v1598
    %v3317 = vmul.f32 %v3254, %v1603
    %v3318 = vmul.f32 %v3257, %v1608
    %v3319 = vmul.f32 %v3259, %v1613
    %v3320 = vmul.f32 %v3262, %v1618
    %v3321 = vmul.f32 %v3264, %v1623
    %v3322 = vmul.f32 %v3267, %v1628
    %v3323 = vmul.f32 %v3269, %v1633
    %v3324 = vmul.f32 %v3272, %v1638
    %v3325 = vmul.f32 %v3274, %v1643
    %v3326 = vmul.f32 %v3277, %v1648
    %v3327 = vmul.f32 %v3279, %v1653
    %v3328 = vmul.f32 %v3282, %v1658
    %v3329 = vmul.f32 %v3284, %v1663
    %v3330 = vmul.f32 %v3287, %v1668
    %v3331 = vmul.f32 %v3289, %v1673
    %v3332 = vmul.f32 %v3292, %v1678
    %v3333 = vmul.f32 %v3294, %v1683
    %v3334 = vmul.f32 %v3297, %v1688
    %v3335 = vmul.f32 %v3299, %v1693
    %v3336 = vmul.f32 %v3302, %v1698
    %v3337 = vmul.f32 %v3304, %v1703
    %3370 = vrot.lane.b32.xlu0 %v2023, 32
    %v3371 = vpop.permute.xlu0 %3370
    %3372 = vrot.lane.b32.xlu0 %v2025, 32
    %v3373 = vpop.permute.xlu0 %3372
    %3374 = vrot.lane.b32.xlu0 %v2028, 32
    %v3375 = vpop.permute.xlu0 %3374
    %3376 = vrot.lane.b32.xlu0 %v2030, 32
    %v3377 = vpop.permute.xlu0 %3376
    %3378 = vrot.lane.b32.xlu0 %v2033, 32
    %v3379 = vpop.permute.xlu0 %3378
    %3380 = vrot.lane.b32.xlu0 %v2035, 32
    %v3381 = vpop.permute.xlu0 %3380
    %3382 = vrot.lane.b32.xlu0 %v2038, 32
    %v3383 = vpop.permute.xlu0 %3382
    %3384 = vrot.lane.b32.xlu0 %v2040, 32
    %v3385 = vpop.permute.xlu0 %3384
    %3386 = vrot.lane.b32.xlu0 %v2043, 32
    %v3387 = vpop.permute.xlu0 %3386
    %3388 = vrot.lane.b32.xlu0 %v2045, 32
    %v3389 = vpop.permute.xlu0 %3388
    %3390 = vrot.lane.b32.xlu0 %v2048, 32
    %v3391 = vpop.permute.xlu0 %3390
    %3392 = vrot.lane.b32.xlu0 %v2050, 32
    %v3393 = vpop.permute.xlu0 %3392
    %3394 = vrot.lane.b32.xlu0 %v2053, 32
    %v3395 = vpop.permute.xlu0 %3394
    %3396 = vrot.lane.b32.xlu0 %v2055, 32
    %v3397 = vpop.permute.xlu0 %3396
    %3398 = vrot.lane.b32.xlu0 %v2058, 32
    %v3399 = vpop.permute.xlu0 %3398
    %3400 = vrot.lane.b32.xlu0 %v2060, 32
    %v3401 = vpop.permute.xlu0 %3400
    %3402 = vrot.lane.b32.xlu0 %v2063, 32
    %v3403 = vpop.permute.xlu0 %3402
    %3404 = vrot.lane.b32.xlu0 %v2065, 32
    %v3405 = vpop.permute.xlu0 %3404
    %3406 = vrot.lane.b32.xlu0 %v2068, 32
    %v3407 = vpop.permute.xlu0 %3406
    %3408 = vrot.lane.b32.xlu0 %v2070, 32
    %v3409 = vpop.permute.xlu0 %3408
    %3410 = vrot.lane.b32.xlu0 %v2073, 32
    %v3411 = vpop.permute.xlu0 %3410
    %3412 = vrot.lane.b32.xlu0 %v2075, 32
    %v3413 = vpop.permute.xlu0 %3412
    %3414 = vrot.lane.b32.xlu0 %v2078, 32
    %v3415 = vpop.permute.xlu0 %3414
    %3416 = vrot.lane.b32.xlu0 %v2080, 32
    %v3417 = vpop.permute.xlu0 %3416
    %3418 = vrot.lane.b32.xlu0 %v2083, 32
    %v3419 = vpop.permute.xlu0 %3418
    %3420 = vrot.lane.b32.xlu0 %v2085, 32
    %v3421 = vpop.permute.xlu0 %3420
    %3422 = vrot.lane.b32.xlu0 %v2088, 32
    %v3423 = vpop.permute.xlu0 %3422
    %3424 = vrot.lane.b32.xlu0 %v2090, 32
    %v3425 = vpop.permute.xlu0 %3424
    %3426 = vrot.lane.b32.xlu0 %v2093, 32
    %v3427 = vpop.permute.xlu0 %3426
    %3428 = vrot.lane.b32.xlu0 %v2095, 32
    %v3429 = vpop.permute.xlu0 %3428
    %3430 = vrot.lane.b32.xlu0 %v2098, 32
    %v3431 = vpop.permute.xlu0 %3430
    %3432 = vrot.lane.b32.xlu0 %v2100, 32
    %v3433 = vpop.permute.xlu0 %3432
    %v3466 = vadd.f32 %v3306, %v3371
    %v3467 = vadd.f32 %v3307, %v3373
    %v3468 = vadd.f32 %v3308, %v3375
    %v3469 = vadd.f32 %v3309, %v3377
    %v3470 = vadd.f32 %v3310, %v3379
    %v3471 = vadd.f32 %v3311, %v3381
    %v3472 = vadd.f32 %v3312, %v3383
    %v3473 = vadd.f32 %v3313, %v3385
    %v3474 = vadd.f32 %v3314, %v3387
    %v3475 = vadd.f32 %v3315, %v3389
    %v3476 = vadd.f32 %v3316, %v3391
    %v3477 = vadd.f32 %v3317, %v3393
    %v3478 = vadd.f32 %v3318, %v3395
    %v3479 = vadd.f32 %v3319, %v3397
    %v3480 = vadd.f32 %v3320, %v3399
    %v3481 = vadd.f32 %v3321, %v3401
    %v3482 = vadd.f32 %v3322, %v3403
    %v3483 = vadd.f32 %v3323, %v3405
    %v3484 = vadd.f32 %v3324, %v3407
    %v3485 = vadd.f32 %v3325, %v3409
    %v3486 = vadd.f32 %v3326, %v3411
    %v3487 = vadd.f32 %v3327, %v3413
    %v3488 = vadd.f32 %v3328, %v3415
    %v3489 = vadd.f32 %v3329, %v3417
    %v3490 = vadd.f32 %v3330, %v3419
    %v3491 = vadd.f32 %v3331, %v3421
    %v3492 = vadd.f32 %v3332, %v3423
    %v3493 = vadd.f32 %v3333, %v3425
    %v3494 = vadd.f32 %v3334, %v3427
    %v3495 = vadd.f32 %v3335, %v3429
    %v3496 = vadd.f32 %v3336, %v3431
    %v3497 = vadd.f32 %v3337, %v3433
    %v3498 = vmax.f32 %v3466, 0.0
    %v3499 = vmax.f32 %v3467, 0.0
    %v3500 = vmax.f32 %v3468, 0.0
    %v3501 = vmax.f32 %v3469, 0.0
    %v3502 = vmax.f32 %v3470, 0.0
    %v3503 = vmax.f32 %v3471, 0.0
    %v3504 = vmax.f32 %v3472, 0.0
    %v3505 = vmax.f32 %v3473, 0.0
    %v3506 = vmax.f32 %v3474, 0.0
    %v3507 = vmax.f32 %v3475, 0.0
    %v3508 = vmax.f32 %v3476, 0.0
    %v3509 = vmax.f32 %v3477, 0.0
    %v3510 = vmax.f32 %v3478, 0.0
    %v3511 = vmax.f32 %v3479, 0.0
    %v3512 = vmax.f32 %v3480, 0.0
    %v3513 = vmax.f32 %v3481, 0.0
    %v3514 = vmax.f32 %v3482, 0.0
    %v3515 = vmax.f32 %v3483, 0.0
    %v3516 = vmax.f32 %v3484, 0.0
    %v3517 = vmax.f32 %v3485, 0.0
    %v3518 = vmax.f32 %v3486, 0.0
    %v3519 = vmax.f32 %v3487, 0.0
    %v3520 = vmax.f32 %v3488, 0.0
    %v3521 = vmax.f32 %v3489, 0.0
    %v3522 = vmax.f32 %v3490, 0.0
    %v3523 = vmax.f32 %v3491, 0.0
    %v3524 = vmax.f32 %v3492, 0.0
    %v3525 = vmax.f32 %v3493, 0.0
    %v3526 = vmax.f32 %v3494, 0.0
    %v3527 = vmax.f32 %v3495, 0.0
    %v3528 = vmax.f32 %v3496, 0.0
    %v3529 = vmax.f32 %v3497, 0.0
    %s3530 = scalar_lea.vmem [#allocation2], 16
    %v3531 = vld [vmem:[%s3530] sm:$0xf]
    %v3532 = vld [vmem:[%s3530 + $0x4] sm:$0xf]
    %v3533 = vld [vmem:[%s3530 + $0x8] sm:$0xf]
    %v3534 = vld [vmem:[%s3530 + $0xc] sm:$0xf]
    %s3535 = scalar_lea.vmem %s6, 1
    %v3536 = vld [vmem:[%s3535] sm:$0x1]
    %v3537 = vpack.c.bf16 %v3499, %v3498
    %v3538 = vpack.c.bf16 %v3501, %v3500
    %v3539 = vpack.c.bf16 %v3503, %v3502
    %v3540 = vpack.c.bf16 %v3505, %v3504
    %v3541 = vpack.c.bf16 %v3507, %v3506
    %v3542 = vpack.c.bf16 %v3509, %v3508
    %v3543 = vpack.c.bf16 %v3511, %v3510
    %v3544 = vpack.c.bf16 %v3513, %v3512
    %v3545 = vpack.c.bf16 %v3515, %v3514
    %v3546 = vpack.c.bf16 %v3517, %v3516
    %v3547 = vpack.c.bf16 %v3519, %v3518
    %v3548 = vpack.c.bf16 %v3521, %v3520
    %v3549 = vpack.c.bf16 %v3523, %v3522
    %v3550 = vpack.c.bf16 %v3525, %v3524
    %v3551 = vpack.c.bf16 %v3527, %v3526
    %v3552 = vpack.c.bf16 %v3529, %v3528
    %v3554 = vperm.slane %v3536, 0
    %v3560 = vunpack.c.l.b16 %v3531
    %v3561 = vunpack.c.l.b16 %v3532
    %v3562 = vunpack.c.l.b16 %v3533
    %v3563 = vunpack.c.l.b16 %v3534
    %v3564 = vpack.c.b16 %v3561, %v3560
    %v3565 = vpack.c.b16 %v3563, %v3562
    %v3569 = vsel %vm404, %v3537, 0
    %v3572 = vsel %vm404, %v3538, 0
    %v3575 = vsel %vm404, %v3539, 0
    %v3578 = vsel %vm404, %v3540, 0
    %v3581 = vsel %vm404, %v3541, 0
    %v3584 = vsel %vm404, %v3542, 0
    %v3587 = vsel %vm404, %v3543, 0
    %v3590 = vsel %vm404, %v3544, 0
    %v3593 = vsel %vm404, %v3545, 0
    %v3596 = vsel %vm404, %v3546, 0
    %v3599 = vsel %vm404, %v3547, 0
    %v3602 = vsel %vm404, %v3548, 0
    %v3605 = vsel %vm404, %v3549, 0
    %v3608 = vsel %vm404, %v3550, 0
    %v3611 = vsel %vm404, %v3551, 0
    %v3614 = vsel %vm404, %v3552, 0
    %3616 = vmatpush.bf16.msra.mxu0 0
    %3617 = vmatpush.bf16.msra.mxu0 0
    %3618 = vmatpush.bf16.msra.mxu0 0
    %3619 = vmatpush.bf16.msra.mxu0 0
    %3620 = vmatpush.bf16.msra.mxu0 0
    %3621 = vmatpush.bf16.msra.mxu0 0
    %3622 = vmatpush.bf16.msra.mxu0 %v3565
    %3623 = vmatpush.bf16.msra.mxu0 %v3564
    %3624 = vmatmul.bf16.gmra.mxu0 %v3569
    %v3625 = vpop.f32.mrf.mxu0
    %v3626 = vadd.f32 %v3554, %v3625
    %v3627 = vpop.f32.mrf.mxu0
    %v3628 = vadd.f32 %v3554, %v3627
    %3629 = vmatmul.bf16.gmra.mxu0 %v3572
    %v3630 = vpop.f32.mrf.mxu0
    %v3631 = vadd.f32 %v3554, %v3630
    %v3632 = vpop.f32.mrf.mxu0
    %v3633 = vadd.f32 %v3554, %v3632
    %3634 = vmatmul.bf16.gmra.mxu0 %v3575
    %v3635 = vpop.f32.mrf.mxu0
    %v3636 = vadd.f32 %v3554, %v3635
    %v3637 = vpop.f32.mrf.mxu0
    %v3638 = vadd.f32 %v3554, %v3637
    %3639 = vmatmul.bf16.gmra.mxu0 %v3578
    %v3640 = vpop.f32.mrf.mxu0
    %v3641 = vadd.f32 %v3554, %v3640
    %v3642 = vpop.f32.mrf.mxu0
    %v3643 = vadd.f32 %v3554, %v3642
    %3644 = vmatmul.bf16.gmra.mxu0 %v3581
    %v3645 = vpop.f32.mrf.mxu0
    %v3646 = vadd.f32 %v3554, %v3645
    %v3647 = vpop.f32.mrf.mxu0
    %v3648 = vadd.f32 %v3554, %v3647
    %3649 = vmatmul.bf16.gmra.mxu0 %v3584
    %v3650 = vpop.f32.mrf.mxu0
    %v3651 = vadd.f32 %v3554, %v3650
    %v3652 = vpop.f32.mrf.mxu0
    %v3653 = vadd.f32 %v3554, %v3652
    %3654 = vmatmul.bf16.gmra.mxu0 %v3587
    %v3655 = vpop.f32.mrf.mxu0
    %v3656 = vadd.f32 %v3554, %v3655
    %v3657 = vpop.f32.mrf.mxu0
    %v3658 = vadd.f32 %v3554, %v3657
    %3659 = vmatmul.bf16.gmra.mxu0 %v3590
    %v3660 = vpop.f32.mrf.mxu0
    %v3661 = vadd.f32 %v3554, %v3660
    %v3662 = vpop.f32.mrf.mxu0
    %v3663 = vadd.f32 %v3554, %v3662
    %3664 = vmatmul.bf16.gmra.mxu0 %v3593
    %v3665 = vpop.f32.mrf.mxu0
    %v3666 = vadd.f32 %v3554, %v3665
    %v3667 = vpop.f32.mrf.mxu0
    %v3668 = vadd.f32 %v3554, %v3667
    %3669 = vmatmul.bf16.gmra.mxu0 %v3596
    %v3670 = vpop.f32.mrf.mxu0
    %v3671 = vadd.f32 %v3554, %v3670
    %v3672 = vpop.f32.mrf.mxu0
    %v3673 = vadd.f32 %v3554, %v3672
    %3674 = vmatmul.bf16.gmra.mxu0 %v3599
    %v3675 = vpop.f32.mrf.mxu0
    %v3676 = vadd.f32 %v3554, %v3675
    %v3677 = vpop.f32.mrf.mxu0
    %v3678 = vadd.f32 %v3554, %v3677
    %3679 = vmatmul.bf16.gmra.mxu0 %v3602
    %v3680 = vpop.f32.mrf.mxu0
    %v3681 = vadd.f32 %v3554, %v3680
    %v3682 = vpop.f32.mrf.mxu0
    %v3683 = vadd.f32 %v3554, %v3682
    %3684 = vmatmul.bf16.gmra.mxu0 %v3605
    %v3685 = vpop.f32.mrf.mxu0
    %v3686 = vadd.f32 %v3554, %v3685
    %v3687 = vpop.f32.mrf.mxu0
    %v3688 = vadd.f32 %v3554, %v3687
    %3689 = vmatmul.bf16.gmra.mxu0 %v3608
    %v3690 = vpop.f32.mrf.mxu0
    %v3691 = vadd.f32 %v3554, %v3690
    %v3692 = vpop.f32.mrf.mxu0
    %v3693 = vadd.f32 %v3554, %v3692
    %3694 = vmatmul.bf16.gmra.mxu0 %v3611
    %v3695 = vpop.f32.mrf.mxu0
    %v3696 = vadd.f32 %v3554, %v3695
    %v3697 = vpop.f32.mrf.mxu0
    %v3698 = vadd.f32 %v3554, %v3697
    %3699 = vmatmul.bf16.gmra.mxu0 %v3614
    %v3700 = vpop.f32.mrf.mxu0
    %v3701 = vadd.f32 %v3554, %v3700
    %v3702 = vpop.f32.mrf.mxu0
    %v3703 = vadd.f32 %v3554, %v3702
    %3704 = vdwg.mxu0
    %v3705 = vpack.c.bf16 %v3628, %v3626
    %v3706 = vpack.c.bf16 %v3633, %v3631
    %v3707 = vpack.c.bf16 %v3638, %v3636
    %v3708 = vpack.c.bf16 %v3643, %v3641
    %v3709 = vpack.c.bf16 %v3648, %v3646
    %v3710 = vpack.c.bf16 %v3653, %v3651
    %v3711 = vpack.c.bf16 %v3658, %v3656
    %v3712 = vpack.c.bf16 %v3663, %v3661
    %v3713 = vpack.c.bf16 %v3668, %v3666
    %v3714 = vpack.c.bf16 %v3673, %v3671
    %v3715 = vpack.c.bf16 %v3678, %v3676
    %v3716 = vpack.c.bf16 %v3683, %v3681
    %v3717 = vpack.c.bf16 %v3688, %v3686
    %v3718 = vpack.c.bf16 %v3693, %v3691
    %v3719 = vpack.c.bf16 %v3698, %v3696
    %v3720 = vpack.c.bf16 %v3703, %v3701
    %3737 = vrot.lane.b32.xlu0 %v3705, 96
    %v3738 = vpop.permute.xlu0 %3737
    %3739 = vrot.lane.b32.xlu0 %v3706, 96
    %v3740 = vpop.permute.xlu0 %3739
    %3741 = vrot.lane.b32.xlu0 %v3707, 96
    %v3742 = vpop.permute.xlu0 %3741
    %3743 = vrot.lane.b32.xlu0 %v3708, 96
    %v3744 = vpop.permute.xlu0 %3743
    %3745 = vrot.lane.b32.xlu0 %v3709, 96
    %v3746 = vpop.permute.xlu0 %3745
    %3747 = vrot.lane.b32.xlu0 %v3710, 96
    %v3748 = vpop.permute.xlu0 %3747
    %3749 = vrot.lane.b32.xlu0 %v3711, 96
    %v3750 = vpop.permute.xlu0 %3749
    %3751 = vrot.lane.b32.xlu0 %v3712, 96
    %v3752 = vpop.permute.xlu0 %3751
    %3753 = vrot.lane.b32.xlu0 %v3713, 96
    %v3754 = vpop.permute.xlu0 %3753
    %3755 = vrot.lane.b32.xlu0 %v3714, 96
    %v3756 = vpop.permute.xlu0 %3755
    %3757 = vrot.lane.b32.xlu0 %v3715, 96
    %v3758 = vpop.permute.xlu0 %3757
    %3759 = vrot.lane.b32.xlu0 %v3716, 96
    %v3760 = vpop.permute.xlu0 %3759
    %3761 = vrot.lane.b32.xlu0 %v3717, 96
    %v3762 = vpop.permute.xlu0 %3761
    %3763 = vrot.lane.b32.xlu0 %v3718, 96
    %v3764 = vpop.permute.xlu0 %3763
    %3765 = vrot.lane.b32.xlu0 %v3719, 96
    %v3766 = vpop.permute.xlu0 %3765
    %3767 = vrot.lane.b32.xlu0 %v3720, 96
    %v3768 = vpop.permute.xlu0 %3767
    %v3770 = vsel %vm404, %v3705, 0
    %v3773 = vsel %vm404, %v3706, 0
    %v3776 = vsel %vm404, %v3707, 0
    %v3779 = vsel %vm404, %v3708, 0
    %v3782 = vsel %vm404, %v3709, 0
    %v3785 = vsel %vm404, %v3710, 0
    %v3788 = vsel %vm404, %v3711, 0
    %v3791 = vsel %vm404, %v3712, 0
    %v3794 = vsel %vm404, %v3713, 0
    %v3797 = vsel %vm404, %v3714, 0
    %v3800 = vsel %vm404, %v3715, 0
    %v3803 = vsel %vm404, %v3716, 0
    %v3806 = vsel %vm404, %v3717, 0
    %v3809 = vsel %vm404, %v3718, 0
    %v3812 = vsel %vm404, %v3719, 0
    %v3815 = vsel %vm404, %v3720, 0
    %v3818 = vsel %vm404, %v3738, 0
    %v3821 = vsel %vm404, %v3740, 0
    %v3824 = vsel %vm404, %v3742, 0
    %v3827 = vsel %vm404, %v3744, 0
    %v3830 = vsel %vm404, %v3746, 0
    %v3833 = vsel %vm404, %v3748, 0
    %v3836 = vsel %vm404, %v3750, 0
    %v3839 = vsel %vm404, %v3752, 0
    %v3842 = vsel %vm404, %v3754, 0
    %v3845 = vsel %vm404, %v3756, 0
    %v3848 = vsel %vm404, %v3758, 0
    %v3851 = vsel %vm404, %v3760, 0
    %v3854 = vsel %vm404, %v3762, 0
    %v3857 = vsel %vm404, %v3764, 0
    %v3860 = vsel %vm404, %v3766, 0
    %v3863 = vsel %vm404, %v3768, 0
    %3865 = vmatpush.bf16.xpose.msra.mxu0 %v3839
    %3866 = vmatpush.bf16.xpose.msra.mxu0 %v3836
    %3867 = vmatpush.bf16.xpose.msra.mxu0 %v3833
    %3868 = vmatpush.bf16.xpose.msra.mxu0 %v3830
    %3869 = vmatpush.bf16.xpose.msra.mxu0 %v3827
    %3870 = vmatpush.bf16.xpose.msra.mxu0 %v3824
    %3871 = vmatpush.bf16.xpose.msra.mxu0 %v3821
    %3872 = vmatpush.bf16.xpose.msra.mxu0 %v3818
    %3873 = vmatmul.bf16.gmra.mxu0 %v3770
    %v3874 = vpop.f32.mrf.mxu0
    %v3875 = vadd.f32 0.0, %v3874
    %v3876 = vpop.f32.mrf.mxu0
    %v3877 = vadd.f32 0.0, %v3876
    %3878 = vmatmul.bf16.gmra.mxu0 %v3773
    %v3879 = vpop.f32.mrf.mxu0
    %v3880 = vadd.f32 0.0, %v3879
    %v3881 = vpop.f32.mrf.mxu0
    %v3882 = vadd.f32 0.0, %v3881
    %3883 = vmatmul.bf16.gmra.mxu0 %v3776
    %v3884 = vpop.f32.mrf.mxu0
    %v3885 = vadd.f32 0.0, %v3884
    %v3886 = vpop.f32.mrf.mxu0
    %v3887 = vadd.f32 0.0, %v3886
    %3888 = vmatmul.bf16.gmra.mxu0 %v3779
    %v3889 = vpop.f32.mrf.mxu0
    %v3890 = vadd.f32 0.0, %v3889
    %v3891 = vpop.f32.mrf.mxu0
    %v3892 = vadd.f32 0.0, %v3891
    %3893 = vmatmul.bf16.gmra.mxu0 %v3782
    %v3894 = vpop.f32.mrf.mxu0
    %v3895 = vadd.f32 0.0, %v3894
    %v3896 = vpop.f32.mrf.mxu0
    %v3897 = vadd.f32 0.0, %v3896
    %3898 = vmatmul.bf16.gmra.mxu0 %v3785
    %v3899 = vpop.f32.mrf.mxu0
    %v3900 = vadd.f32 0.0, %v3899
    %v3901 = vpop.f32.mrf.mxu0
    %v3902 = vadd.f32 0.0, %v3901
    %3903 = vmatmul.bf16.gmra.mxu0 %v3788
    %v3904 = vpop.f32.mrf.mxu0
    %v3905 = vadd.f32 0.0, %v3904
    %v3906 = vpop.f32.mrf.mxu0
    %v3907 = vadd.f32 0.0, %v3906
    %3908 = vmatmul.bf16.gmra.mxu0 %v3791
    %v3909 = vpop.f32.mrf.mxu0
    %v3910 = vadd.f32 0.0, %v3909
    %v3911 = vpop.f32.mrf.mxu0
    %v3912 = vadd.f32 0.0, %v3911
    %3913 = vmatmul.bf16.gmra.mxu0 %v3794
    %v3914 = vpop.f32.mrf.mxu0
    %v3915 = vadd.f32 0.0, %v3914
    %v3916 = vpop.f32.mrf.mxu0
    %v3917 = vadd.f32 0.0, %v3916
    %3918 = vmatmul.bf16.gmra.mxu0 %v3797
    %v3919 = vpop.f32.mrf.mxu0
    %v3920 = vadd.f32 0.0, %v3919
    %v3921 = vpop.f32.mrf.mxu0
    %v3922 = vadd.f32 0.0, %v3921
    %3923 = vmatmul.bf16.gmra.mxu0 %v3800
    %v3924 = vpop.f32.mrf.mxu0
    %v3925 = vadd.f32 0.0, %v3924
    %v3926 = vpop.f32.mrf.mxu0
    %v3927 = vadd.f32 0.0, %v3926
    %3928 = vmatmul.bf16.gmra.mxu0 %v3803
    %v3929 = vpop.f32.mrf.mxu0
    %v3930 = vadd.f32 0.0, %v3929
    %v3931 = vpop.f32.mrf.mxu0
    %v3932 = vadd.f32 0.0, %v3931
    %3933 = vmatmul.bf16.gmra.mxu0 %v3806
    %v3934 = vpop.f32.mrf.mxu0
    %v3935 = vadd.f32 0.0, %v3934
    %v3936 = vpop.f32.mrf.mxu0
    %v3937 = vadd.f32 0.0, %v3936
    %3938 = vmatmul.bf16.gmra.mxu0 %v3809
    %v3939 = vpop.f32.mrf.mxu0
    %v3940 = vadd.f32 0.0, %v3939
    %v3941 = vpop.f32.mrf.mxu0
    %v3942 = vadd.f32 0.0, %v3941
    %3943 = vmatmul.bf16.gmra.mxu0 %v3812
    %v3944 = vpop.f32.mrf.mxu0
    %v3945 = vadd.f32 0.0, %v3944
    %v3946 = vpop.f32.mrf.mxu0
    %v3947 = vadd.f32 0.0, %v3946
    %3948 = vmatmul.bf16.gmra.mxu0 %v3815
    %v3949 = vpop.f32.mrf.mxu0
    %v3950 = vadd.f32 0.0, %v3949
    %v3951 = vpop.f32.mrf.mxu0
    %v3952 = vadd.f32 0.0, %v3951
    %3953 = vdwg.mxu0
    %3954 = vmatpush.bf16.xpose.msra.mxu0 %v3863
    %3955 = vmatpush.bf16.xpose.msra.mxu0 %v3860
    %3956 = vmatpush.bf16.xpose.msra.mxu0 %v3857
    %3957 = vmatpush.bf16.xpose.msra.mxu0 %v3854
    %3958 = vmatpush.bf16.xpose.msra.mxu0 %v3851
    %3959 = vmatpush.bf16.xpose.msra.mxu0 %v3848
    %3960 = vmatpush.bf16.xpose.msra.mxu0 %v3845
    %3961 = vmatpush.bf16.xpose.msra.mxu0 %v3842
    %3962 = vmatmul.bf16.gmra.mxu0 %v3770
    %v3963 = vpop.f32.mrf.mxu0
    %v3964 = vadd.f32 0.0, %v3963
    %v3965 = vpop.f32.mrf.mxu0
    %v3966 = vadd.f32 0.0, %v3965
    %3967 = vmatmul.bf16.gmra.mxu0 %v3773
    %v3968 = vpop.f32.mrf.mxu0
    %v3969 = vadd.f32 0.0, %v3968
    %v3970 = vpop.f32.mrf.mxu0
    %v3971 = vadd.f32 0.0, %v3970
    %3972 = vmatmul.bf16.gmra.mxu0 %v3776
    %v3973 = vpop.f32.mrf.mxu0
    %v3974 = vadd.f32 0.0, %v3973
    %v3975 = vpop.f32.mrf.mxu0
    %v3976 = vadd.f32 0.0, %v3975
    %3977 = vmatmul.bf16.gmra.mxu0 %v3779
    %v3978 = vpop.f32.mrf.mxu0
    %v3979 = vadd.f32 0.0, %v3978
    %v3980 = vpop.f32.mrf.mxu0
    %v3981 = vadd.f32 0.0, %v3980
    %3982 = vmatmul.bf16.gmra.mxu0 %v3782
    %v3983 = vpop.f32.mrf.mxu0
    %v3984 = vadd.f32 0.0, %v3983
    %v3985 = vpop.f32.mrf.mxu0
    %v3986 = vadd.f32 0.0, %v3985
    %3987 = vmatmul.bf16.gmra.mxu0 %v3785
    %v3988 = vpop.f32.mrf.mxu0
    %v3989 = vadd.f32 0.0, %v3988
    %v3990 = vpop.f32.mrf.mxu0
    %v3991 = vadd.f32 0.0, %v3990
    %3992 = vmatmul.bf16.gmra.mxu0 %v3788
    %v3993 = vpop.f32.mrf.mxu0
    %v3994 = vadd.f32 0.0, %v3993
    %v3995 = vpop.f32.mrf.mxu0
    %v3996 = vadd.f32 0.0, %v3995
    %3997 = vmatmul.bf16.gmra.mxu0 %v3791
    %v3998 = vpop.f32.mrf.mxu0
    %v3999 = vadd.f32 0.0, %v3998
    %v4000 = vpop.f32.mrf.mxu0
    %v4001 = vadd.f32 0.0, %v4000
    %4002 = vmatmul.bf16.gmra.mxu0 %v3794
    %v4003 = vpop.f32.mrf.mxu0
    %v4004 = vadd.f32 0.0, %v4003
    %v4005 = vpop.f32.mrf.mxu0
    %v4006 = vadd.f32 0.0, %v4005
    %4007 = vmatmul.bf16.gmra.mxu0 %v3797
    %v4008 = vpop.f32.mrf.mxu0
    %v4009 = vadd.f32 0.0, %v4008
    %v4010 = vpop.f32.mrf.mxu0
    %v4011 = vadd.f32 0.0, %v4010
    %4012 = vmatmul.bf16.gmra.mxu0 %v3800
    %v4013 = vpop.f32.mrf.mxu0
    %v4014 = vadd.f32 0.0, %v4013
    %v4015 = vpop.f32.mrf.mxu0
    %v4016 = vadd.f32 0.0, %v4015
    %4017 = vmatmul.bf16.gmra.mxu0 %v3803
    %v4018 = vpop.f32.mrf.mxu0
    %v4019 = vadd.f32 0.0, %v4018
    %v4020 = vpop.f32.mrf.mxu0
    %v4021 = vadd.f32 0.0, %v4020
    %4022 = vmatmul.bf16.gmra.mxu0 %v3806
    %v4023 = vpop.f32.mrf.mxu0
    %v4024 = vadd.f32 0.0, %v4023
    %v4025 = vpop.f32.mrf.mxu0
    %v4026 = vadd.f32 0.0, %v4025
    %4027 = vmatmul.bf16.gmra.mxu0 %v3809
    %v4028 = vpop.f32.mrf.mxu0
    %v4029 = vadd.f32 0.0, %v4028
    %v4030 = vpop.f32.mrf.mxu0
    %v4031 = vadd.f32 0.0, %v4030
    %4032 = vmatmul.bf16.gmra.mxu0 %v3812
    %v4033 = vpop.f32.mrf.mxu0
    %v4034 = vadd.f32 0.0, %v4033
    %v4035 = vpop.f32.mrf.mxu0
    %v4036 = vadd.f32 0.0, %v4035
    %4037 = vmatmul.bf16.gmra.mxu0 %v3815
    %v4038 = vpop.f32.mrf.mxu0
    %v4039 = vadd.f32 0.0, %v4038
    %v4040 = vpop.f32.mrf.mxu0
    %v4041 = vadd.f32 0.0, %v4040
    %4042 = vdwg.mxu0
    %v4043 = vmul.f32 %v3875, 0.17677669
    %v4044 = vmul.f32 %v3964, 0.17677669
    %v4045 = vmul.f32 %v3877, 0.17677669
    %v4046 = vmul.f32 %v3966, 0.17677669
    %v4047 = vmul.f32 %v3880, 0.17677669
    %v4048 = vmul.f32 %v3969, 0.17677669
    %v4049 = vmul.f32 %v3882, 0.17677669
    %v4050 = vmul.f32 %v3971, 0.17677669
    %v4051 = vmul.f32 %v3885, 0.17677669
    %v4052 = vmul.f32 %v3974, 0.17677669
    %v4053 = vmul.f32 %v3887, 0.17677669
    %v4054 = vmul.f32 %v3976, 0.17677669
    %v4055 = vmul.f32 %v3890, 0.17677669
    %v4056 = vmul.f32 %v3979, 0.17677669
    %v4057 = vmul.f32 %v3892, 0.17677669
    %v4058 = vmul.f32 %v3981, 0.17677669
    %v4059 = vmul.f32 %v3895, 0.17677669
    %v4060 = vmul.f32 %v3984, 0.17677669
    %v4061 = vmul.f32 %v3897, 0.17677669
    %v4062 = vmul.f32 %v3986, 0.17677669
    %v4063 = vmul.f32 %v3900, 0.17677669
    %v4064 = vmul.f32 %v3989, 0.17677669
    %v4065 = vmul.f32 %v3902, 0.17677669
    %v4066 = vmul.f32 %v3991, 0.17677669
    %v4067 = vmul.f32 %v3905, 0.17677669
    %v4068 = vmul.f32 %v3994, 0.17677669
    %v4069 = vmul.f32 %v3907, 0.17677669
    %v4070 = vmul.f32 %v3996, 0.17677669
    %v4071 = vmul.f32 %v3910, 0.17677669
    %v4072 = vmul.f32 %v3999, 0.17677669
    %v4073 = vmul.f32 %v3912, 0.17677669
    %v4074 = vmul.f32 %v4001, 0.17677669
    %v4075 = vmul.f32 %v3915, 0.17677669
    %v4076 = vmul.f32 %v4004, 0.17677669
    %v4077 = vmul.f32 %v3917, 0.17677669
    %v4078 = vmul.f32 %v4006, 0.17677669
    %v4079 = vmul.f32 %v3920, 0.17677669
    %v4080 = vmul.f32 %v4009, 0.17677669
    %v4081 = vmul.f32 %v3922, 0.17677669
    %v4082 = vmul.f32 %v4011, 0.17677669
    %v4083 = vmul.f32 %v3925, 0.17677669
    %v4084 = vmul.f32 %v4014, 0.17677669
    %v4085 = vmul.f32 %v3927, 0.17677669
    %v4086 = vmul.f32 %v4016, 0.17677669
    %v4087 = vmul.f32 %v3930, 0.17677669
    %v4088 = vmul.f32 %v4019, 0.17677669
    %v4089 = vmul.f32 %v3932, 0.17677669
    %v4090 = vmul.f32 %v4021, 0.17677669
    %v4091 = vmul.f32 %v3935, 0.17677669
    %v4092 = vmul.f32 %v4024, 0.17677669
    %v4093 = vmul.f32 %v3937, 0.17677669
    %v4094 = vmul.f32 %v4026, 0.17677669
    %v4095 = vmul.f32 %v3940, 0.17677669
    %v4096 = vmul.f32 %v4029, 0.17677669
    %v4097 = vmul.f32 %v3942, 0.17677669
    %v4098 = vmul.f32 %v4031, 0.17677669
    %v4099 = vmul.f32 %v3945, 0.17677669
    %v4100 = vmul.f32 %v4034, 0.17677669
    %v4101 = vmul.f32 %v3947, 0.17677669
    %v4102 = vmul.f32 %v4036, 0.17677669
    %v4103 = vmul.f32 %v3950, 0.17677669
    %v4104 = vmul.f32 %v4039, 0.17677669
    %v4105 = vmul.f32 %v3952, 0.17677669
    %v4106 = vmul.f32 %v4041, 0.17677669
    %v4107 = vadd.f32 %v4043, %v49
    %v4108 = vadd.f32 %v4044, %v50
    %v4109 = vadd.f32 %v4045, %v51
    %v4110 = vadd.f32 %v4046, %v52
    %v4111 = vadd.f32 %v4047, %v53
    %v4112 = vadd.f32 %v4048, %v54
    %v4113 = vadd.f32 %v4049, %v55
    %v4114 = vadd.f32 %v4050, %v56
    %v4115 = vadd.f32 %v4051, %v57
    %v4116 = vadd.f32 %v4052, %v58
    %v4117 = vadd.f32 %v4053, %v59
    %v4118 = vadd.f32 %v4054, %v60
    %v4119 = vadd.f32 %v4055, %v61
    %v4120 = vadd.f32 %v4056, %v62
    %v4121 = vadd.f32 %v4057, %v63
    %v4122 = vadd.f32 %v4058, %v64
    %v4123 = vadd.f32 %v4059, %v65
    %v4124 = vadd.f32 %v4060, %v66
    %v4125 = vadd.f32 %v4061, %v67
    %v4126 = vadd.f32 %v4062, %v68
    %v4127 = vadd.f32 %v4063, %v69
    %v4128 = vadd.f32 %v4064, %v70
    %v4129 = vadd.f32 %v4065, %v71
    %v4130 = vadd.f32 %v4066, %v72
    %v4131 = vadd.f32 %v4067, %v73
    %v4132 = vadd.f32 %v4068, %v74
    %v4133 = vadd.f32 %v4069, %v75
    %v4134 = vadd.f32 %v4070, %v76
    %v4135 = vadd.f32 %v4071, %v77
    %v4136 = vadd.f32 %v4072, %v78
    %v4137 = vadd.f32 %v4073, %v79
    %v4138 = vadd.f32 %v4074, %v80
    %v4139 = vadd.f32 %v4075, %v81
    %v4140 = vadd.f32 %v4076, %v82
    %v4141 = vadd.f32 %v4077, %v83
    %v4142 = vadd.f32 %v4078, %v84
    %v4143 = vadd.f32 %v4079, %v85
    %v4144 = vadd.f32 %v4080, %v86
    %v4145 = vadd.f32 %v4081, %v87
    %v4146 = vadd.f32 %v4082, %v88
    %v4147 = vadd.f32 %v4083, %v89
    %v4148 = vadd.f32 %v4084, %v90
    %v4149 = vadd.f32 %v4085, %v91
    %v4150 = vadd.f32 %v4086, %v92
    %v4151 = vadd.f32 %v4087, %v93
    %v4152 = vadd.f32 %v4088, %v94
    %v4153 = vadd.f32 %v4089, %v95
    %v4154 = vadd.f32 %v4090, %v96
    %v4155 = vadd.f32 %v4091, %v97
    %v4156 = vadd.f32 %v4092, %v98
    %v4157 = vadd.f32 %v4093, %v99
    %v4158 = vadd.f32 %v4094, %v100
    %v4159 = vadd.f32 %v4095, %v101
    %v4160 = vadd.f32 %v4096, %v102
    %v4161 = vadd.f32 %v4097, %v103
    %v4162 = vadd.f32 %v4098, %v104
    %v4163 = vadd.f32 %v4099, %v105
    %v4164 = vadd.f32 %v4100, %v106
    %v4165 = vadd.f32 %v4101, %v107
    %v4166 = vadd.f32 %v4102, %v108
    %v4167 = vadd.f32 %v4103, %v109
    %v4168 = vadd.f32 %v4104, %v110
    %v4169 = vadd.f32 %v4105, %v111
    %v4170 = vadd.f32 %v4106, %v112
    %v4171 = vmax.f32 %v4107, %v4108
    %4172 = vmax.xlane.f32.xlu0 %v4171
    %v4173 = vpop.xlane.xlu0 %4172
    %v4174 = vmax.f32 %v4109, %v4110
    %4175 = vmax.xlane.f32.xlu0 %v4174
    %v4176 = vpop.xlane.xlu0 %4175
    %v4177 = vmax.f32 %v4111, %v4112
    %4178 = vmax.xlane.f32.xlu0 %v4177
    %v4179 = vpop.xlane.xlu0 %4178
    %v4180 = vmax.f32 %v4113, %v4114
    %4181 = vmax.xlane.f32.xlu0 %v4180
    %v4182 = vpop.xlane.xlu0 %4181
    %v4183 = vmax.f32 %v4115, %v4116
    %4184 = vmax.xlane.f32.xlu0 %v4183
    %v4185 = vpop.xlane.xlu0 %4184
    %v4186 = vmax.f32 %v4117, %v4118
    %4187 = vmax.xlane.f32.xlu0 %v4186
    %v4188 = vpop.xlane.xlu0 %4187
    %v4189 = vmax.f32 %v4119, %v4120
    %4190 = vmax.xlane.f32.xlu0 %v4189
    %v4191 = vpop.xlane.xlu0 %4190
    %v4192 = vmax.f32 %v4121, %v4122
    %4193 = vmax.xlane.f32.xlu0 %v4192
    %v4194 = vpop.xlane.xlu0 %4193
    %v4195 = vmax.f32 %v4123, %v4124
    %4196 = vmax.xlane.f32.xlu0 %v4195
    %v4197 = vpop.xlane.xlu0 %4196
    %v4198 = vmax.f32 %v4125, %v4126
    %4199 = vmax.xlane.f32.xlu0 %v4198
    %v4200 = vpop.xlane.xlu0 %4199
    %v4201 = vmax.f32 %v4127, %v4128
    %4202 = vmax.xlane.f32.xlu0 %v4201
    %v4203 = vpop.xlane.xlu0 %4202
    %v4204 = vmax.f32 %v4129, %v4130
    %4205 = vmax.xlane.f32.xlu0 %v4204
    %v4206 = vpop.xlane.xlu0 %4205
    %v4207 = vmax.f32 %v4131, %v4132
    %4208 = vmax.xlane.f32.xlu0 %v4207
    %v4209 = vpop.xlane.xlu0 %4208
    %v4210 = vmax.f32 %v4133, %v4134
    %4211 = vmax.xlane.f32.xlu0 %v4210
    %v4212 = vpop.xlane.xlu0 %4211
    %v4213 = vmax.f32 %v4135, %v4136
    %4214 = vmax.xlane.f32.xlu0 %v4213
    %v4215 = vpop.xlane.xlu0 %4214
    %v4216 = vmax.f32 %v4137, %v4138
    %4217 = vmax.xlane.f32.xlu0 %v4216
    %v4218 = vpop.xlane.xlu0 %4217
    %v4219 = vmax.f32 %v4139, %v4140
    %4220 = vmax.xlane.f32.xlu0 %v4219
    %v4221 = vpop.xlane.xlu0 %4220
    %v4222 = vmax.f32 %v4141, %v4142
    %4223 = vmax.xlane.f32.xlu0 %v4222
    %v4224 = vpop.xlane.xlu0 %4223
    %v4225 = vmax.f32 %v4143, %v4144
    %4226 = vmax.xlane.f32.xlu0 %v4225
    %v4227 = vpop.xlane.xlu0 %4226
    %v4228 = vmax.f32 %v4145, %v4146
    %4229 = vmax.xlane.f32.xlu0 %v4228
    %v4230 = vpop.xlane.xlu0 %4229
    %v4231 = vmax.f32 %v4147, %v4148
    %4232 = vmax.xlane.f32.xlu0 %v4231
    %v4233 = vpop.xlane.xlu0 %4232
    %v4234 = vmax.f32 %v4149, %v4150
    %4235 = vmax.xlane.f32.xlu0 %v4234
    %v4236 = vpop.xlane.xlu0 %4235
    %v4237 = vmax.f32 %v4151, %v4152
    %4238 = vmax.xlane.f32.xlu0 %v4237
    %v4239 = vpop.xlane.xlu0 %4238
    %v4240 = vmax.f32 %v4153, %v4154
    %4241 = vmax.xlane.f32.xlu0 %v4240
    %v4242 = vpop.xlane.xlu0 %4241
    %v4243 = vmax.f32 %v4155, %v4156
    %4244 = vmax.xlane.f32.xlu0 %v4243
    %v4245 = vpop.xlane.xlu0 %4244
    %v4246 = vmax.f32 %v4157, %v4158
    %4247 = vmax.xlane.f32.xlu0 %v4246
    %v4248 = vpop.xlane.xlu0 %4247
    %v4249 = vmax.f32 %v4159, %v4160
    %4250 = vmax.xlane.f32.xlu0 %v4249
    %v4251 = vpop.xlane.xlu0 %4250
    %v4252 = vmax.f32 %v4161, %v4162
    %4253 = vmax.xlane.f32.xlu0 %v4252
    %v4254 = vpop.xlane.xlu0 %4253
    %v4255 = vmax.f32 %v4163, %v4164
    %4256 = vmax.xlane.f32.xlu0 %v4255
    %v4257 = vpop.xlane.xlu0 %4256
    %v4258 = vmax.f32 %v4165, %v4166
    %4259 = vmax.xlane.f32.xlu0 %v4258
    %v4260 = vpop.xlane.xlu0 %4259
    %v4261 = vmax.f32 %v4167, %v4168
    %4262 = vmax.xlane.f32.xlu0 %v4261
    %v4263 = vpop.xlane.xlu0 %4262
    %v4264 = vmax.f32 %v4169, %v4170
    %4265 = vmax.xlane.f32.xlu0 %v4264
    %v4266 = vpop.xlane.xlu0 %4265
    %v4267 = vsub.f32 %v4107, %v4173
    %v4268 = vsub.f32 %v4108, %v4173
    %v4269 = vsub.f32 %v4109, %v4176
    %v4270 = vsub.f32 %v4110, %v4176
    %v4271 = vsub.f32 %v4111, %v4179
    %v4272 = vsub.f32 %v4112, %v4179
    %v4273 = vsub.f32 %v4113, %v4182
    %v4274 = vsub.f32 %v4114, %v4182
    %v4275 = vsub.f32 %v4115, %v4185
    %v4276 = vsub.f32 %v4116, %v4185
    %v4277 = vsub.f32 %v4117, %v4188
    %v4278 = vsub.f32 %v4118, %v4188
    %v4279 = vsub.f32 %v4119, %v4191
    %v4280 = vsub.f32 %v4120, %v4191
    %v4281 = vsub.f32 %v4121, %v4194
    %v4282 = vsub.f32 %v4122, %v4194
    %v4283 = vsub.f32 %v4123, %v4197
    %v4284 = vsub.f32 %v4124, %v4197
    %v4285 = vsub.f32 %v4125, %v4200
    %v4286 = vsub.f32 %v4126, %v4200
    %v4287 = vsub.f32 %v4127, %v4203
    %v4288 = vsub.f32 %v4128, %v4203
    %v4289 = vsub.f32 %v4129, %v4206
    %v4290 = vsub.f32 %v4130, %v4206
    %v4291 = vsub.f32 %v4131, %v4209
    %v4292 = vsub.f32 %v4132, %v4209
    %v4293 = vsub.f32 %v4133, %v4212
    %v4294 = vsub.f32 %v4134, %v4212
    %v4295 = vsub.f32 %v4135, %v4215
    %v4296 = vsub.f32 %v4136, %v4215
    %v4297 = vsub.f32 %v4137, %v4218
    %v4298 = vsub.f32 %v4138, %v4218
    %v4299 = vsub.f32 %v4139, %v4221
    %v4300 = vsub.f32 %v4140, %v4221
    %v4301 = vsub.f32 %v4141, %v4224
    %v4302 = vsub.f32 %v4142, %v4224
    %v4303 = vsub.f32 %v4143, %v4227
    %v4304 = vsub.f32 %v4144, %v4227
    %v4305 = vsub.f32 %v4145, %v4230
    %v4306 = vsub.f32 %v4146, %v4230
    %v4307 = vsub.f32 %v4147, %v4233
    %v4308 = vsub.f32 %v4148, %v4233
    %v4309 = vsub.f32 %v4149, %v4236
    %v4310 = vsub.f32 %v4150, %v4236
    %v4311 = vsub.f32 %v4151, %v4239
    %v4312 = vsub.f32 %v4152, %v4239
    %v4313 = vsub.f32 %v4153, %v4242
    %v4314 = vsub.f32 %v4154, %v4242
    %v4315 = vsub.f32 %v4155, %v4245
    %v4316 = vsub.f32 %v4156, %v4245
    %v4317 = vsub.f32 %v4157, %v4248
    %v4318 = vsub.f32 %v4158, %v4248
    %v4319 = vsub.f32 %v4159, %v4251
    %v4320 = vsub.f32 %v4160, %v4251
    %v4321 = vsub.f32 %v4161, %v4254
    %v4322 = vsub.f32 %v4162, %v4254
    %v4323 = vsub.f32 %v4163, %v4257
    %v4324 = vsub.f32 %v4164, %v4257
    %v4325 = vsub.f32 %v4165, %v4260
    %v4326 = vsub.f32 %v4166, %v4260
    %v4327 = vsub.f32 %v4167, %v4263
    %v4328 = vsub.f32 %v4168, %v4263
    %v4329 = vsub.f32 %v4169, %v4266
    %v4330 = vsub.f32 %v4170, %v4266
    %v4331 = vmul.f32 %v4267, 1.442695
    %v4332 = vpow.pop %v4331
    %v4333 = vmul.f32 %v4268, 1.442695
    %v4334 = vpow.pop %v4333
    %v4335 = vmul.f32 %v4269, 1.442695
    %v4336 = vpow.pop %v4335
    %v4337 = vmul.f32 %v4270, 1.442695
    %v4338 = vpow.pop %v4337
    %v4339 = vmul.f32 %v4271, 1.442695
    %v4340 = vpow.pop %v4339
    %v4341 = vmul.f32 %v4272, 1.442695
    %v4342 = vpow.pop %v4341
    %v4343 = vmul.f32 %v4273, 1.442695
    %v4344 = vpow.pop %v4343
    %v4345 = vmul.f32 %v4274, 1.442695
    %v4346 = vpow.pop %v4345
    %v4347 = vmul.f32 %v4275, 1.442695
    %v4348 = vpow.pop %v4347
    %v4349 = vmul.f32 %v4276, 1.442695
    %v4350 = vpow.pop %v4349
    %v4351 = vmul.f32 %v4277, 1.442695
    %v4352 = vpow.pop %v4351
    %v4353 = vmul.f32 %v4278, 1.442695
    %v4354 = vpow.pop %v4353
    %v4355 = vmul.f32 %v4279, 1.442695
    %v4356 = vpow.pop %v4355
    %v4357 = vmul.f32 %v4280, 1.442695
    %v4358 = vpow.pop %v4357
    %v4359 = vmul.f32 %v4281, 1.442695
    %v4360 = vpow.pop %v4359
    %v4361 = vmul.f32 %v4282, 1.442695
    %v4362 = vpow.pop %v4361
    %v4363 = vmul.f32 %v4283, 1.442695
    %v4364 = vpow.pop %v4363
    %v4365 = vmul.f32 %v4284, 1.442695
    %v4366 = vpow.pop %v4365
    %v4367 = vmul.f32 %v4285, 1.442695
    %v4368 = vpow.pop %v4367
    %v4369 = vmul.f32 %v4286, 1.442695
    %v4370 = vpow.pop %v4369
    %v4371 = vmul.f32 %v4287, 1.442695
    %v4372 = vpow.pop %v4371
    %v4373 = vmul.f32 %v4288, 1.442695
    %v4374 = vpow.pop %v4373
    %v4375 = vmul.f32 %v4289, 1.442695
    %v4376 = vpow.pop %v4375
    %v4377 = vmul.f32 %v4290, 1.442695
    %v4378 = vpow.pop %v4377
    %v4379 = vmul.f32 %v4291, 1.442695
    %v4380 = vpow.pop %v4379
    %v4381 = vmul.f32 %v4292, 1.442695
    %v4382 = vpow.pop %v4381
    %v4383 = vmul.f32 %v4293, 1.442695
    %v4384 = vpow.pop %v4383
    %v4385 = vmul.f32 %v4294, 1.442695
    %v4386 = vpow.pop %v4385
    %v4387 = vmul.f32 %v4295, 1.442695
    %v4388 = vpow.pop %v4387
    %v4389 = vmul.f32 %v4296, 1.442695
    %v4390 = vpow.pop %v4389
    %v4391 = vmul.f32 %v4297, 1.442695
    %v4392 = vpow.pop %v4391
    %v4393 = vmul.f32 %v4298, 1.442695
    %v4394 = vpow.pop %v4393
    %v4395 = vmul.f32 %v4299, 1.442695
    %v4396 = vpow.pop %v4395
    %v4397 = vmul.f32 %v4300, 1.442695
    %v4398 = vpow.pop %v4397
    %v4399 = vmul.f32 %v4301, 1.442695
    %v4400 = vpow.pop %v4399
    %v4401 = vmul.f32 %v4302, 1.442695
    %v4402 = vpow.pop %v4401
    %v4403 = vmul.f32 %v4303, 1.442695
    %v4404 = vpow.pop %v4403
    %v4405 = vmul.f32 %v4304, 1.442695
    %v4406 = vpow.pop %v4405
    %v4407 = vmul.f32 %v4305, 1.442695
    %v4408 = vpow.pop %v4407
    %v4409 = vmul.f32 %v4306, 1.442695
    %v4410 = vpow.pop %v4409
    %v4411 = vmul.f32 %v4307, 1.442695
    %v4412 = vpow.pop %v4411
    %v4413 = vmul.f32 %v4308, 1.442695
    %v4414 = vpow.pop %v4413
    %v4415 = vmul.f32 %v4309, 1.442695
    %v4416 = vpow.pop %v4415
    %v4417 = vmul.f32 %v4310, 1.442695
    %v4418 = vpow.pop %v4417
    %v4419 = vmul.f32 %v4311, 1.442695
    %v4420 = vpow.pop %v4419
    %v4421 = vmul.f32 %v4312, 1.442695
    %v4422 = vpow.pop %v4421
    %v4423 = vmul.f32 %v4313, 1.442695
    %v4424 = vpow.pop %v4423
    %v4425 = vmul.f32 %v4314, 1.442695
    %v4426 = vpow.pop %v4425
    %v4427 = vmul.f32 %v4315, 1.442695
    %v4428 = vpow.pop %v4427
    %v4429 = vmul.f32 %v4316, 1.442695
    %v4430 = vpow.pop %v4429
    %v4431 = vmul.f32 %v4317, 1.442695
    %v4432 = vpow.pop %v4431
    %v4433 = vmul.f32 %v4318, 1.442695
    %v4434 = vpow.pop %v4433
    %v4435 = vmul.f32 %v4319, 1.442695
    %v4436 = vpow.pop %v4435
    %v4437 = vmul.f32 %v4320, 1.442695
    %v4438 = vpow.pop %v4437
    %v4439 = vmul.f32 %v4321, 1.442695
    %v4440 = vpow.pop %v4439
    %v4441 = vmul.f32 %v4322, 1.442695
    %v4442 = vpow.pop %v4441
    %v4443 = vmul.f32 %v4323, 1.442695
    %v4444 = vpow.pop %v4443
    %v4445 = vmul.f32 %v4324, 1.442695
    %v4446 = vpow.pop %v4445
    %v4447 = vmul.f32 %v4325, 1.442695
    %v4448 = vpow.pop %v4447
    %v4449 = vmul.f32 %v4326, 1.442695
    %v4450 = vpow.pop %v4449
    %v4451 = vmul.f32 %v4327, 1.442695
    %v4452 = vpow.pop %v4451
    %v4453 = vmul.f32 %v4328, 1.442695
    %v4454 = vpow.pop %v4453
    %v4455 = vmul.f32 %v4329, 1.442695
    %v4456 = vpow.pop %v4455
    %v4457 = vmul.f32 %v4330, 1.442695
    %v4458 = vpow.pop %v4457
    %v4459 = vadd.f32 %v4332, %v4334
    %4460 = vadd.xlane.f32.xlu0 %v4459
    %v4461 = vpop.xlane.xlu0 %4460
    %v4462 = vadd.f32 %v4336, %v4338
    %4463 = vadd.xlane.f32.xlu0 %v4462
    %v4464 = vpop.xlane.xlu0 %4463
    %v4465 = vadd.f32 %v4340, %v4342
    %4466 = vadd.xlane.f32.xlu0 %v4465
    %v4467 = vpop.xlane.xlu0 %4466
    %v4468 = vadd.f32 %v4344, %v4346
    %4469 = vadd.xlane.f32.xlu0 %v4468
    %v4470 = vpop.xlane.xlu0 %4469
    %v4471 = vadd.f32 %v4348, %v4350
    %4472 = vadd.xlane.f32.xlu0 %v4471
    %v4473 = vpop.xlane.xlu0 %4472
    %v4474 = vadd.f32 %v4352, %v4354
    %4475 = vadd.xlane.f32.xlu0 %v4474
    %v4476 = vpop.xlane.xlu0 %4475
    %v4477 = vadd.f32 %v4356, %v4358
    %4478 = vadd.xlane.f32.xlu0 %v4477
    %v4479 = vpop.xlane.xlu0 %4478
    %v4480 = vadd.f32 %v4360, %v4362
    %4481 = vadd.xlane.f32.xlu0 %v4480
    %v4482 = vpop.xlane.xlu0 %4481
    %v4483 = vadd.f32 %v4364, %v4366
    %4484 = vadd.xlane.f32.xlu0 %v4483
    %v4485 = vpop.xlane.xlu0 %4484
    %v4486 = vadd.f32 %v4368, %v4370
    %4487 = vadd.xlane.f32.xlu0 %v4486
    %v4488 = vpop.xlane.xlu0 %4487
    %v4489 = vadd.f32 %v4372, %v4374
    %4490 = vadd.xlane.f32.xlu0 %v4489
    %v4491 = vpop.xlane.xlu0 %4490
    %v4492 = vadd.f32 %v4376, %v4378
    %4493 = vadd.xlane.f32.xlu0 %v4492
    %v4494 = vpop.xlane.xlu0 %4493
    %v4495 = vadd.f32 %v4380, %v4382
    %4496 = vadd.xlane.f32.xlu0 %v4495
    %v4497 = vpop.xlane.xlu0 %4496
    %v4498 = vadd.f32 %v4384, %v4386
    %4499 = vadd.xlane.f32.xlu0 %v4498
    %v4500 = vpop.xlane.xlu0 %4499
    %v4501 = vadd.f32 %v4388, %v4390
    %4502 = vadd.xlane.f32.xlu0 %v4501
    %v4503 = vpop.xlane.xlu0 %4502
    %v4504 = vadd.f32 %v4392, %v4394
    %4505 = vadd.xlane.f32.xlu0 %v4504
    %v4506 = vpop.xlane.xlu0 %4505
    %v4507 = vadd.f32 %v4396, %v4398
    %4508 = vadd.xlane.f32.xlu0 %v4507
    %v4509 = vpop.xlane.xlu0 %4508
    %v4510 = vadd.f32 %v4400, %v4402
    %4511 = vadd.xlane.f32.xlu0 %v4510
    %v4512 = vpop.xlane.xlu0 %4511
    %v4513 = vadd.f32 %v4404, %v4406
    %4514 = vadd.xlane.f32.xlu0 %v4513
    %v4515 = vpop.xlane.xlu0 %4514
    %v4516 = vadd.f32 %v4408, %v4410
    %4517 = vadd.xlane.f32.xlu0 %v4516
    %v4518 = vpop.xlane.xlu0 %4517
    %v4519 = vadd.f32 %v4412, %v4414
    %4520 = vadd.xlane.f32.xlu0 %v4519
    %v4521 = vpop.xlane.xlu0 %4520
    %v4522 = vadd.f32 %v4416, %v4418
    %4523 = vadd.xlane.f32.xlu0 %v4522
    %v4524 = vpop.xlane.xlu0 %4523
    %v4525 = vadd.f32 %v4420, %v4422
    %4526 = vadd.xlane.f32.xlu0 %v4525
    %v4527 = vpop.xlane.xlu0 %4526
    %v4528 = vadd.f32 %v4424, %v4426
    %4529 = vadd.xlane.f32.xlu0 %v4528
    %v4530 = vpop.xlane.xlu0 %4529
    %v4531 = vadd.f32 %v4428, %v4430
    %4532 = vadd.xlane.f32.xlu0 %v4531
    %v4533 = vpop.xlane.xlu0 %4532
    %v4534 = vadd.f32 %v4432, %v4434
    %4535 = vadd.xlane.f32.xlu0 %v4534
    %v4536 = vpop.xlane.xlu0 %4535
    %v4537 = vadd.f32 %v4436, %v4438
    %4538 = vadd.xlane.f32.xlu0 %v4537
    %v4539 = vpop.xlane.xlu0 %4538
    %v4540 = vadd.f32 %v4440, %v4442
    %4541 = vadd.xlane.f32.xlu0 %v4540
    %v4542 = vpop.xlane.xlu0 %4541
    %v4543 = vadd.f32 %v4444, %v4446
    %4544 = vadd.xlane.f32.xlu0 %v4543
    %v4545 = vpop.xlane.xlu0 %4544
    %v4546 = vadd.f32 %v4448, %v4450
    %4547 = vadd.xlane.f32.xlu0 %v4546
    %v4548 = vpop.xlane.xlu0 %4547
    %v4549 = vadd.f32 %v4452, %v4454
    %4550 = vadd.xlane.f32.xlu0 %v4549
    %v4551 = vpop.xlane.xlu0 %4550
    %v4552 = vadd.f32 %v4456, %v4458
    %4553 = vadd.xlane.f32.xlu0 %v4552
    %v4554 = vpop.xlane.xlu0 %4553
    %v4555 = vrcp.pop %v4461
    %v4556 = vrcp.pop %v4464
    %v4557 = vrcp.pop %v4467
    %v4558 = vrcp.pop %v4470
    %v4559 = vrcp.pop %v4473
    %v4560 = vrcp.pop %v4476
    %v4561 = vrcp.pop %v4479
    %v4562 = vrcp.pop %v4482
    %v4563 = vrcp.pop %v4485
    %v4564 = vrcp.pop %v4488
    %v4565 = vrcp.pop %v4491
    %v4566 = vrcp.pop %v4494
    %v4567 = vrcp.pop %v4497
    %v4568 = vrcp.pop %v4500
    %v4569 = vrcp.pop %v4503
    %v4570 = vrcp.pop %v4506
    %v4571 = vrcp.pop %v4509
    %v4572 = vrcp.pop %v4512
    %v4573 = vrcp.pop %v4515
    %v4574 = vrcp.pop %v4518
    %v4575 = vrcp.pop %v4521
    %v4576 = vrcp.pop %v4524
    %v4577 = vrcp.pop %v4527
    %v4578 = vrcp.pop %v4530
    %v4579 = vrcp.pop %v4533
    %v4580 = vrcp.pop %v4536
    %v4581 = vrcp.pop %v4539
    %v4582 = vrcp.pop %v4542
    %v4583 = vrcp.pop %v4545
    %v4584 = vrcp.pop %v4548
    %v4585 = vrcp.pop %v4551
    %v4586 = vrcp.pop %v4554
    %v4587 = vmul.f32 %v4332, %v4555
    %v4588 = vmul.f32 %v4334, %v4555
    %v4589 = vmul.f32 %v4336, %v4556
    %v4590 = vmul.f32 %v4338, %v4556
    %v4591 = vmul.f32 %v4340, %v4557
    %v4592 = vmul.f32 %v4342, %v4557
    %v4593 = vmul.f32 %v4344, %v4558
    %v4594 = vmul.f32 %v4346, %v4558
    %v4595 = vmul.f32 %v4348, %v4559
    %v4596 = vmul.f32 %v4350, %v4559
    %v4597 = vmul.f32 %v4352, %v4560
    %v4598 = vmul.f32 %v4354, %v4560
    %v4599 = vmul.f32 %v4356, %v4561
    %v4600 = vmul.f32 %v4358, %v4561
    %v4601 = vmul.f32 %v4360, %v4562
    %v4602 = vmul.f32 %v4362, %v4562
    %v4603 = vmul.f32 %v4364, %v4563
    %v4604 = vmul.f32 %v4366, %v4563
    %v4605 = vmul.f32 %v4368, %v4564
    %v4606 = vmul.f32 %v4370, %v4564
    %v4607 = vmul.f32 %v4372, %v4565
    %v4608 = vmul.f32 %v4374, %v4565
    %v4609 = vmul.f32 %v4376, %v4566
    %v4610 = vmul.f32 %v4378, %v4566
    %v4611 = vmul.f32 %v4380, %v4567
    %v4612 = vmul.f32 %v4382, %v4567
    %v4613 = vmul.f32 %v4384, %v4568
    %v4614 = vmul.f32 %v4386, %v4568
    %v4615 = vmul.f32 %v4388, %v4569
    %v4616 = vmul.f32 %v4390, %v4569
    %v4617 = vmul.f32 %v4392, %v4570
    %v4618 = vmul.f32 %v4394, %v4570
    %v4619 = vmul.f32 %v4396, %v4571
    %v4620 = vmul.f32 %v4398, %v4571
    %v4621 = vmul.f32 %v4400, %v4572
    %v4622 = vmul.f32 %v4402, %v4572
    %v4623 = vmul.f32 %v4404, %v4573
    %v4624 = vmul.f32 %v4406, %v4573
    %v4625 = vmul.f32 %v4408, %v4574
    %v4626 = vmul.f32 %v4410, %v4574
    %v4627 = vmul.f32 %v4412, %v4575
    %v4628 = vmul.f32 %v4414, %v4575
    %v4629 = vmul.f32 %v4416, %v4576
    %v4630 = vmul.f32 %v4418, %v4576
    %v4631 = vmul.f32 %v4420, %v4577
    %v4632 = vmul.f32 %v4422, %v4577
    %v4633 = vmul.f32 %v4424, %v4578
    %v4634 = vmul.f32 %v4426, %v4578
    %v4635 = vmul.f32 %v4428, %v4579
    %v4636 = vmul.f32 %v4430, %v4579
    %v4637 = vmul.f32 %v4432, %v4580
    %v4638 = vmul.f32 %v4434, %v4580
    %v4639 = vmul.f32 %v4436, %v4581
    %v4640 = vmul.f32 %v4438, %v4581
    %v4641 = vmul.f32 %v4440, %v4582
    %v4642 = vmul.f32 %v4442, %v4582
    %v4643 = vmul.f32 %v4444, %v4583
    %v4644 = vmul.f32 %v4446, %v4583
    %v4645 = vmul.f32 %v4448, %v4584
    %v4646 = vmul.f32 %v4450, %v4584
    %v4647 = vmul.f32 %v4452, %v4585
    %v4648 = vmul.f32 %v4454, %v4585
    %v4649 = vmul.f32 %v4456, %v4586
    %v4650 = vmul.f32 %v4458, %v4586
    %v4651 = vpack.c.bf16 %v4589, %v4587
    %v4652 = vpack.c.bf16 %v4590, %v4588
    %v4653 = vpack.c.bf16 %v4593, %v4591
    %v4654 = vpack.c.bf16 %v4594, %v4592
    %v4655 = vpack.c.bf16 %v4597, %v4595
    %v4656 = vpack.c.bf16 %v4598, %v4596
    %v4657 = vpack.c.bf16 %v4601, %v4599
    %v4658 = vpack.c.bf16 %v4602, %v4600
    %v4659 = vpack.c.bf16 %v4605, %v4603
    %v4660 = vpack.c.bf16 %v4606, %v4604
    %v4661 = vpack.c.bf16 %v4609, %v4607
    %v4662 = vpack.c.bf16 %v4610, %v4608
    %v4663 = vpack.c.bf16 %v4613, %v4611
    %v4664 = vpack.c.bf16 %v4614, %v4612
    %v4665 = vpack.c.bf16 %v4617, %v4615
    %v4666 = vpack.c.bf16 %v4618, %v4616
    %v4667 = vpack.c.bf16 %v4621, %v4619
    %v4668 = vpack.c.bf16 %v4622, %v4620
    %v4669 = vpack.c.bf16 %v4625, %v4623
    %v4670 = vpack.c.bf16 %v4626, %v4624
    %v4671 = vpack.c.bf16 %v4629, %v4627
    %v4672 = vpack.c.bf16 %v4630, %v4628
    %v4673 = vpack.c.bf16 %v4633, %v4631
    %v4674 = vpack.c.bf16 %v4634, %v4632
    %v4675 = vpack.c.bf16 %v4637, %v4635
    %v4676 = vpack.c.bf16 %v4638, %v4636
    %v4677 = vpack.c.bf16 %v4641, %v4639
    %v4678 = vpack.c.bf16 %v4642, %v4640
    %v4679 = vpack.c.bf16 %v4645, %v4643
    %v4680 = vpack.c.bf16 %v4646, %v4644
    %v4681 = vpack.c.bf16 %v4649, %v4647
    %v4682 = vpack.c.bf16 %v4650, %v4648
    %4683 = vrot.lane.b32.xlu0 %v3705, 64
    %v4684 = vpop.permute.xlu0 %4683
    %4685 = vrot.lane.b32.xlu0 %v3706, 64
    %v4686 = vpop.permute.xlu0 %4685
    %4687 = vrot.lane.b32.xlu0 %v3707, 64
    %v4688 = vpop.permute.xlu0 %4687
    %4689 = vrot.lane.b32.xlu0 %v3708, 64
    %v4690 = vpop.permute.xlu0 %4689
    %4691 = vrot.lane.b32.xlu0 %v3709, 64
    %v4692 = vpop.permute.xlu0 %4691
    %4693 = vrot.lane.b32.xlu0 %v3710, 64
    %v4694 = vpop.permute.xlu0 %4693
    %4695 = vrot.lane.b32.xlu0 %v3711, 64
    %v4696 = vpop.permute.xlu0 %4695
    %4697 = vrot.lane.b32.xlu0 %v3712, 64
    %v4698 = vpop.permute.xlu0 %4697
    %4699 = vrot.lane.b32.xlu0 %v3713, 64
    %v4700 = vpop.permute.xlu0 %4699
    %4701 = vrot.lane.b32.xlu0 %v3714, 64
    %v4702 = vpop.permute.xlu0 %4701
    %4703 = vrot.lane.b32.xlu0 %v3715, 64
    %v4704 = vpop.permute.xlu0 %4703
    %4705 = vrot.lane.b32.xlu0 %v3716, 64
    %v4706 = vpop.permute.xlu0 %4705
    %4707 = vrot.lane.b32.xlu0 %v3717, 64
    %v4708 = vpop.permute.xlu0 %4707
    %4709 = vrot.lane.b32.xlu0 %v3718, 64
    %v4710 = vpop.permute.xlu0 %4709
    %4711 = vrot.lane.b32.xlu0 %v3719, 64
    %v4712 = vpop.permute.xlu0 %4711
    %4713 = vrot.lane.b32.xlu0 %v3720, 64
    %v4714 = vpop.permute.xlu0 %4713
    %4731 = vmatpush.bf16.msra.mxu0 %v4698
    %4732 = vmatpush.bf16.msra.mxu0 %v4696
    %4733 = vmatpush.bf16.msra.mxu0 %v4694
    %4734 = vmatpush.bf16.msra.mxu0 %v4692
    %4735 = vmatpush.bf16.msra.mxu0 %v4690
    %4736 = vmatpush.bf16.msra.mxu0 %v4688
    %4737 = vmatpush.bf16.msra.mxu0 %v4686
    %4738 = vmatpush.bf16.msra.mxu0 %v4684
    %4739 = vmatmul.bf16.gmra.mxu0 %v4651
    %v4740 = vpop.f32.mrf.mxu0
    %v4741 = vadd.f32 0.0, %v4740
    %v4742 = vpop.f32.mrf.mxu0
    %v4743 = vadd.f32 0.0, %v4742
    %4744 = vmatmul.bf16.gmra.mxu0 %v4653
    %v4745 = vpop.f32.mrf.mxu0
    %v4746 = vadd.f32 0.0, %v4745
    %v4747 = vpop.f32.mrf.mxu0
    %v4748 = vadd.f32 0.0, %v4747
    %4749 = vmatmul.bf16.gmra.mxu0 %v4655
    %v4750 = vpop.f32.mrf.mxu0
    %v4751 = vadd.f32 0.0, %v4750
    %v4752 = vpop.f32.mrf.mxu0
    %v4753 = vadd.f32 0.0, %v4752
    %4754 = vmatmul.bf16.gmra.mxu0 %v4657
    %v4755 = vpop.f32.mrf.mxu0
    %v4756 = vadd.f32 0.0, %v4755
    %v4757 = vpop.f32.mrf.mxu0
    %v4758 = vadd.f32 0.0, %v4757
    %4759 = vmatmul.bf16.gmra.mxu0 %v4659
    %v4760 = vpop.f32.mrf.mxu0
    %v4761 = vadd.f32 0.0, %v4760
    %v4762 = vpop.f32.mrf.mxu0
    %v4763 = vadd.f32 0.0, %v4762
    %4764 = vmatmul.bf16.gmra.mxu0 %v4661
    %v4765 = vpop.f32.mrf.mxu0
    %v4766 = vadd.f32 0.0, %v4765
    %v4767 = vpop.f32.mrf.mxu0
    %v4768 = vadd.f32 0.0, %v4767
    %4769 = vmatmul.bf16.gmra.mxu0 %v4663
    %v4770 = vpop.f32.mrf.mxu0
    %v4771 = vadd.f32 0.0, %v4770
    %v4772 = vpop.f32.mrf.mxu0
    %v4773 = vadd.f32 0.0, %v4772
    %4774 = vmatmul.bf16.gmra.mxu0 %v4665
    %v4775 = vpop.f32.mrf.mxu0
    %v4776 = vadd.f32 0.0, %v4775
    %v4777 = vpop.f32.mrf.mxu0
    %v4778 = vadd.f32 0.0, %v4777
    %4779 = vmatmul.bf16.gmra.mxu0 %v4667
    %v4780 = vpop.f32.mrf.mxu0
    %v4781 = vadd.f32 0.0, %v4780
    %v4782 = vpop.f32.mrf.mxu0
    %v4783 = vadd.f32 0.0, %v4782
    %4784 = vmatmul.bf16.gmra.mxu0 %v4669
    %v4785 = vpop.f32.mrf.mxu0
    %v4786 = vadd.f32 0.0, %v4785
    %v4787 = vpop.f32.mrf.mxu0
    %v4788 = vadd.f32 0.0, %v4787
    %4789 = vmatmul.bf16.gmra.mxu0 %v4671
    %v4790 = vpop.f32.mrf.mxu0
    %v4791 = vadd.f32 0.0, %v4790
    %v4792 = vpop.f32.mrf.mxu0
    %v4793 = vadd.f32 0.0, %v4792
    %4794 = vmatmul.bf16.gmra.mxu0 %v4673
    %v4795 = vpop.f32.mrf.mxu0
    %v4796 = vadd.f32 0.0, %v4795
    %v4797 = vpop.f32.mrf.mxu0
    %v4798 = vadd.f32 0.0, %v4797
    %4799 = vmatmul.bf16.gmra.mxu0 %v4675
    %v4800 = vpop.f32.mrf.mxu0
    %v4801 = vadd.f32 0.0, %v4800
    %v4802 = vpop.f32.mrf.mxu0
    %v4803 = vadd.f32 0.0, %v4802
    %4804 = vmatmul.bf16.gmra.mxu0 %v4677
    %v4805 = vpop.f32.mrf.mxu0
    %v4806 = vadd.f32 0.0, %v4805
    %v4807 = vpop.f32.mrf.mxu0
    %v4808 = vadd.f32 0.0, %v4807
    %4809 = vmatmul.bf16.gmra.mxu0 %v4679
    %v4810 = vpop.f32.mrf.mxu0
    %v4811 = vadd.f32 0.0, %v4810
    %v4812 = vpop.f32.mrf.mxu0
    %v4813 = vadd.f32 0.0, %v4812
    %4814 = vmatmul.bf16.gmra.mxu0 %v4681
    %v4815 = vpop.f32.mrf.mxu0
    %v4816 = vadd.f32 0.0, %v4815
    %v4817 = vpop.f32.mrf.mxu0
    %v4818 = vadd.f32 0.0, %v4817
    %4819 = vdwg.mxu0
    %4820 = vmatpush.bf16.msra.mxu0 %v4714
    %4821 = vmatpush.bf16.msra.mxu0 %v4712
    %4822 = vmatpush.bf16.msra.mxu0 %v4710
    %4823 = vmatpush.bf16.msra.mxu0 %v4708
    %4824 = vmatpush.bf16.msra.mxu0 %v4706
    %4825 = vmatpush.bf16.msra.mxu0 %v4704
    %4826 = vmatpush.bf16.msra.mxu0 %v4702
    %4827 = vmatpush.bf16.msra.mxu0 %v4700
    %4828 = vmatmul.bf16.gmra.mxu0 %v4652
    %v4829 = vpop.f32.mrf.mxu0
    %v4830 = vadd.f32 %v4741, %v4829
    %v4831 = vpop.f32.mrf.mxu0
    %v4832 = vadd.f32 %v4743, %v4831
    %4833 = vmatmul.bf16.gmra.mxu0 %v4654
    %v4834 = vpop.f32.mrf.mxu0
    %v4835 = vadd.f32 %v4746, %v4834
    %v4836 = vpop.f32.mrf.mxu0
    %v4837 = vadd.f32 %v4748, %v4836
    %4838 = vmatmul.bf16.gmra.mxu0 %v4656
    %v4839 = vpop.f32.mrf.mxu0
    %v4840 = vadd.f32 %v4751, %v4839
    %v4841 = vpop.f32.mrf.mxu0
    %v4842 = vadd.f32 %v4753, %v4841
    %4843 = vmatmul.bf16.gmra.mxu0 %v4658
    %v4844 = vpop.f32.mrf.mxu0
    %v4845 = vadd.f32 %v4756, %v4844
    %v4846 = vpop.f32.mrf.mxu0
    %v4847 = vadd.f32 %v4758, %v4846
    %4848 = vmatmul.bf16.gmra.mxu0 %v4660
    %v4849 = vpop.f32.mrf.mxu0
    %v4850 = vadd.f32 %v4761, %v4849
    %v4851 = vpop.f32.mrf.mxu0
    %v4852 = vadd.f32 %v4763, %v4851
    %4853 = vmatmul.bf16.gmra.mxu0 %v4662
    %v4854 = vpop.f32.mrf.mxu0
    %v4855 = vadd.f32 %v4766, %v4854
    %v4856 = vpop.f32.mrf.mxu0
    %v4857 = vadd.f32 %v4768, %v4856
    %4858 = vmatmul.bf16.gmra.mxu0 %v4664
    %v4859 = vpop.f32.mrf.mxu0
    %v4860 = vadd.f32 %v4771, %v4859
    %v4861 = vpop.f32.mrf.mxu0
    %v4862 = vadd.f32 %v4773, %v4861
    %4863 = vmatmul.bf16.gmra.mxu0 %v4666
    %v4864 = vpop.f32.mrf.mxu0
    %v4865 = vadd.f32 %v4776, %v4864
    %v4866 = vpop.f32.mrf.mxu0
    %v4867 = vadd.f32 %v4778, %v4866
    %4868 = vmatmul.bf16.gmra.mxu0 %v4668
    %v4869 = vpop.f32.mrf.mxu0
    %v4870 = vadd.f32 %v4781, %v4869
    %v4871 = vpop.f32.mrf.mxu0
    %v4872 = vadd.f32 %v4783, %v4871
    %4873 = vmatmul.bf16.gmra.mxu0 %v4670
    %v4874 = vpop.f32.mrf.mxu0
    %v4875 = vadd.f32 %v4786, %v4874
    %v4876 = vpop.f32.mrf.mxu0
    %v4877 = vadd.f32 %v4788, %v4876
    %4878 = vmatmul.bf16.gmra.mxu0 %v4672
    %v4879 = vpop.f32.mrf.mxu0
    %v4880 = vadd.f32 %v4791, %v4879
    %v4881 = vpop.f32.mrf.mxu0
    %v4882 = vadd.f32 %v4793, %v4881
    %4883 = vmatmul.bf16.gmra.mxu0 %v4674
    %v4884 = vpop.f32.mrf.mxu0
    %v4885 = vadd.f32 %v4796, %v4884
    %v4886 = vpop.f32.mrf.mxu0
    %v4887 = vadd.f32 %v4798, %v4886
    %4888 = vmatmul.bf16.gmra.mxu0 %v4676
    %v4889 = vpop.f32.mrf.mxu0
    %v4890 = vadd.f32 %v4801, %v4889
    %v4891 = vpop.f32.mrf.mxu0
    %v4892 = vadd.f32 %v4803, %v4891
    %4893 = vmatmul.bf16.gmra.mxu0 %v4678
    %v4894 = vpop.f32.mrf.mxu0
    %v4895 = vadd.f32 %v4806, %v4894
    %v4896 = vpop.f32.mrf.mxu0
    %v4897 = vadd.f32 %v4808, %v4896
    %4898 = vmatmul.bf16.gmra.mxu0 %v4680
    %v4899 = vpop.f32.mrf.mxu0
    %v4900 = vadd.f32 %v4811, %v4899
    %v4901 = vpop.f32.mrf.mxu0
    %v4902 = vadd.f32 %v4813, %v4901
    %4903 = vmatmul.bf16.gmra.mxu0 %v4682
    %v4904 = vpop.f32.mrf.mxu0
    %v4905 = vadd.f32 %v4816, %v4904
    %v4906 = vpop.f32.mrf.mxu0
    %v4907 = vadd.f32 %v4818, %v4906
    %4908 = vdwg.mxu0
    %v4909 = vmul.f32 %v4830, %v1548
    %v4910 = vmul.f32 %v4832, %v1553
    %v4911 = vmul.f32 %v4835, %v1558
    %v4912 = vmul.f32 %v4837, %v1563
    %v4913 = vmul.f32 %v4840, %v1568
    %v4914 = vmul.f32 %v4842, %v1573
    %v4915 = vmul.f32 %v4845, %v1578
    %v4916 = vmul.f32 %v4847, %v1583
    %v4917 = vmul.f32 %v4850, %v1588
    %v4918 = vmul.f32 %v4852, %v1593
    %v4919 = vmul.f32 %v4855, %v1598
    %v4920 = vmul.f32 %v4857, %v1603
    %v4921 = vmul.f32 %v4860, %v1608
    %v4922 = vmul.f32 %v4862, %v1613
    %v4923 = vmul.f32 %v4865, %v1618
    %v4924 = vmul.f32 %v4867, %v1623
    %v4925 = vmul.f32 %v4870, %v1628
    %v4926 = vmul.f32 %v4872, %v1633
    %v4927 = vmul.f32 %v4875, %v1638
    %v4928 = vmul.f32 %v4877, %v1643
    %v4929 = vmul.f32 %v4880, %v1648
    %v4930 = vmul.f32 %v4882, %v1653
    %v4931 = vmul.f32 %v4885, %v1658
    %v4932 = vmul.f32 %v4887, %v1663
    %v4933 = vmul.f32 %v4890, %v1668
    %v4934 = vmul.f32 %v4892, %v1673
    %v4935 = vmul.f32 %v4895, %v1678
    %v4936 = vmul.f32 %v4897, %v1683
    %v4937 = vmul.f32 %v4900, %v1688
    %v4938 = vmul.f32 %v4902, %v1693
    %v4939 = vmul.f32 %v4905, %v1698
    %v4940 = vmul.f32 %v4907, %v1703
    %4973 = vrot.lane.b32.xlu0 %v3626, 32
    %v4974 = vpop.permute.xlu0 %4973
    %4975 = vrot.lane.b32.xlu0 %v3628, 32
    %v4976 = vpop.permute.xlu0 %4975
    %4977 = vrot.lane.b32.xlu0 %v3631, 32
    %v4978 = vpop.permute.xlu0 %4977
    %4979 = vrot.lane.b32.xlu0 %v3633, 32
    %v4980 = vpop.permute.xlu0 %4979
    %4981 = vrot.lane.b32.xlu0 %v3636, 32
    %v4982 = vpop.permute.xlu0 %4981
    %4983 = vrot.lane.b32.xlu0 %v3638, 32
    %v4984 = vpop.permute.xlu0 %4983
    %4985 = vrot.lane.b32.xlu0 %v3641, 32
    %v4986 = vpop.permute.xlu0 %4985
    %4987 = vrot.lane.b32.xlu0 %v3643, 32
    %v4988 = vpop.permute.xlu0 %4987
    %4989 = vrot.lane.b32.xlu0 %v3646, 32
    %v4990 = vpop.permute.xlu0 %4989
    %4991 = vrot.lane.b32.xlu0 %v3648, 32
    %v4992 = vpop.permute.xlu0 %4991
    %4993 = vrot.lane.b32.xlu0 %v3651, 32
    %v4994 = vpop.permute.xlu0 %4993
    %4995 = vrot.lane.b32.xlu0 %v3653, 32
    %v4996 = vpop.permute.xlu0 %4995
    %4997 = vrot.lane.b32.xlu0 %v3656, 32
    %v4998 = vpop.permute.xlu0 %4997
    %4999 = vrot.lane.b32.xlu0 %v3658, 32
    %v5000 = vpop.permute.xlu0 %4999
    %5001 = vrot.lane.b32.xlu0 %v3661, 32
    %v5002 = vpop.permute.xlu0 %5001
    %5003 = vrot.lane.b32.xlu0 %v3663, 32
    %v5004 = vpop.permute.xlu0 %5003
    %5005 = vrot.lane.b32.xlu0 %v3666, 32
    %v5006 = vpop.permute.xlu0 %5005
    %5007 = vrot.lane.b32.xlu0 %v3668, 32
    %v5008 = vpop.permute.xlu0 %5007
    %5009 = vrot.lane.b32.xlu0 %v3671, 32
    %v5010 = vpop.permute.xlu0 %5009
    %5011 = vrot.lane.b32.xlu0 %v3673, 32
    %v5012 = vpop.permute.xlu0 %5011
    %5013 = vrot.lane.b32.xlu0 %v3676, 32
    %v5014 = vpop.permute.xlu0 %5013
    %5015 = vrot.lane.b32.xlu0 %v3678, 32
    %v5016 = vpop.permute.xlu0 %5015
    %5017 = vrot.lane.b32.xlu0 %v3681, 32
    %v5018 = vpop.permute.xlu0 %5017
    %5019 = vrot.lane.b32.xlu0 %v3683, 32
    %v5020 = vpop.permute.xlu0 %5019
    %5021 = vrot.lane.b32.xlu0 %v3686, 32
    %v5022 = vpop.permute.xlu0 %5021
    %5023 = vrot.lane.b32.xlu0 %v3688, 32
    %v5024 = vpop.permute.xlu0 %5023
    %5025 = vrot.lane.b32.xlu0 %v3691, 32
    %v5026 = vpop.permute.xlu0 %5025
    %5027 = vrot.lane.b32.xlu0 %v3693, 32
    %v5028 = vpop.permute.xlu0 %5027
    %5029 = vrot.lane.b32.xlu0 %v3696, 32
    %v5030 = vpop.permute.xlu0 %5029
    %5031 = vrot.lane.b32.xlu0 %v3698, 32
    %v5032 = vpop.permute.xlu0 %5031
    %5033 = vrot.lane.b32.xlu0 %v3701, 32
    %v5034 = vpop.permute.xlu0 %5033
    %5035 = vrot.lane.b32.xlu0 %v3703, 32
    %v5036 = vpop.permute.xlu0 %5035
    %v5069 = vadd.f32 %v4909, %v4974
    %v5070 = vadd.f32 %v4910, %v4976
    %v5071 = vadd.f32 %v4911, %v4978
    %v5072 = vadd.f32 %v4912, %v4980
    %v5073 = vadd.f32 %v4913, %v4982
    %v5074 = vadd.f32 %v4914, %v4984
    %v5075 = vadd.f32 %v4915, %v4986
    %v5076 = vadd.f32 %v4916, %v4988
    %v5077 = vadd.f32 %v4917, %v4990
    %v5078 = vadd.f32 %v4918, %v4992
    %v5079 = vadd.f32 %v4919, %v4994
    %v5080 = vadd.f32 %v4920, %v4996
    %v5081 = vadd.f32 %v4921, %v4998
    %v5082 = vadd.f32 %v4922, %v5000
    %v5083 = vadd.f32 %v4923, %v5002
    %v5084 = vadd.f32 %v4924, %v5004
    %v5085 = vadd.f32 %v4925, %v5006
    %v5086 = vadd.f32 %v4926, %v5008
    %v5087 = vadd.f32 %v4927, %v5010
    %v5088 = vadd.f32 %v4928, %v5012
    %v5089 = vadd.f32 %v4929, %v5014
    %v5090 = vadd.f32 %v4930, %v5016
    %v5091 = vadd.f32 %v4931, %v5018
    %v5092 = vadd.f32 %v4932, %v5020
    %v5093 = vadd.f32 %v4933, %v5022
    %v5094 = vadd.f32 %v4934, %v5024
    %v5095 = vadd.f32 %v4935, %v5026
    %v5096 = vadd.f32 %v4936, %v5028
    %v5097 = vadd.f32 %v4937, %v5030
    %v5098 = vadd.f32 %v4938, %v5032
    %v5099 = vadd.f32 %v4939, %v5034
    %v5100 = vadd.f32 %v4940, %v5036
    %v5101 = vmax.f32 %v5069, 0.0
    %v5102 = vmax.f32 %v5070, 0.0
    %v5103 = vmax.f32 %v5071, 0.0
    %v5104 = vmax.f32 %v5072, 0.0
    %v5105 = vmax.f32 %v5073, 0.0
    %v5106 = vmax.f32 %v5074, 0.0
    %v5107 = vmax.f32 %v5075, 0.0
    %v5108 = vmax.f32 %v5076, 0.0
    %v5109 = vmax.f32 %v5077, 0.0
    %v5110 = vmax.f32 %v5078, 0.0
    %v5111 = vmax.f32 %v5079, 0.0
    %v5112 = vmax.f32 %v5080, 0.0
    %v5113 = vmax.f32 %v5081, 0.0
    %v5114 = vmax.f32 %v5082, 0.0
    %v5115 = vmax.f32 %v5083, 0.0
    %v5116 = vmax.f32 %v5084, 0.0
    %v5117 = vmax.f32 %v5085, 0.0
    %v5118 = vmax.f32 %v5086, 0.0
    %v5119 = vmax.f32 %v5087, 0.0
    %v5120 = vmax.f32 %v5088, 0.0
    %v5121 = vmax.f32 %v5089, 0.0
    %v5122 = vmax.f32 %v5090, 0.0
    %v5123 = vmax.f32 %v5091, 0.0
    %v5124 = vmax.f32 %v5092, 0.0
    %v5125 = vmax.f32 %v5093, 0.0
    %v5126 = vmax.f32 %v5094, 0.0
    %v5127 = vmax.f32 %v5095, 0.0
    %v5128 = vmax.f32 %v5096, 0.0
    %v5129 = vmax.f32 %v5097, 0.0
    %v5130 = vmax.f32 %v5098, 0.0
    %v5131 = vmax.f32 %v5099, 0.0
    %v5132 = vmax.f32 %v5100, 0.0
    %s5133 = scalar_lea.vmem [#allocation2], 32
    %v5134 = vld [vmem:[%s5133] sm:$0xf]
    %v5135 = vld [vmem:[%s5133 + $0x4] sm:$0xf]
    %v5136 = vld [vmem:[%s5133 + $0x8] sm:$0xf]
    %v5137 = vld [vmem:[%s5133 + $0xc] sm:$0xf]
    %s5138 = scalar_lea.vmem %s6, 2
    %v5139 = vld [vmem:[%s5138] sm:$0x1]
    %v5140 = vpack.c.bf16 %v5102, %v5101
    %v5141 = vpack.c.bf16 %v5104, %v5103
    %v5142 = vpack.c.bf16 %v5106, %v5105
    %v5143 = vpack.c.bf16 %v5108, %v5107
    %v5144 = vpack.c.bf16 %v5110, %v5109
    %v5145 = vpack.c.bf16 %v5112, %v5111
    %v5146 = vpack.c.bf16 %v5114, %v5113
    %v5147 = vpack.c.bf16 %v5116, %v5115
    %v5148 = vpack.c.bf16 %v5118, %v5117
    %v5149 = vpack.c.bf16 %v5120, %v5119
    %v5150 = vpack.c.bf16 %v5122, %v5121
    %v5151 = vpack.c.bf16 %v5124, %v5123
    %v5152 = vpack.c.bf16 %v5126, %v5125
    %v5153 = vpack.c.bf16 %v5128, %v5127
    %v5154 = vpack.c.bf16 %v5130, %v5129
    %v5155 = vpack.c.bf16 %v5132, %v5131
    %v5157 = vperm.slane %v5139, 0
    %v5163 = vunpack.c.l.b16 %v5134
    %v5164 = vunpack.c.l.b16 %v5135
    %v5165 = vunpack.c.l.b16 %v5136
    %v5166 = vunpack.c.l.b16 %v5137
    %v5167 = vpack.c.b16 %v5164, %v5163
    %v5168 = vpack.c.b16 %v5166, %v5165
    %v5172 = vsel %vm404, %v5140, 0
    %v5175 = vsel %vm404, %v5141, 0
    %v5178 = vsel %vm404, %v5142, 0
    %v5181 = vsel %vm404, %v5143, 0
    %v5184 = vsel %vm404, %v5144, 0
    %v5187 = vsel %vm404, %v5145, 0
    %v5190 = vsel %vm404, %v5146, 0
    %v5193 = vsel %vm404, %v5147, 0
    %v5196 = vsel %vm404, %v5148, 0
    %v5199 = vsel %vm404, %v5149, 0
    %v5202 = vsel %vm404, %v5150, 0
    %v5205 = vsel %vm404, %v5151, 0
    %v5208 = vsel %vm404, %v5152, 0
    %v5211 = vsel %vm404, %v5153, 0
    %v5214 = vsel %vm404, %v5154, 0
    %v5217 = vsel %vm404, %v5155, 0
    %5219 = vmatpush.bf16.msra.mxu0 0
    %5220 = vmatpush.bf16.msra.mxu0 0
    %5221 = vmatpush.bf16.msra.mxu0 0
    %5222 = vmatpush.bf16.msra.mxu0 0
    %5223 = vmatpush.bf16.msra.mxu0 0
    %5224 = vmatpush.bf16.msra.mxu0 0
    %5225 = vmatpush.bf16.msra.mxu0 %v5168
    %5226 = vmatpush.bf16.msra.mxu0 %v5167
    %5227 = vmatmul.bf16.gmra.mxu0 %v5172
    %v5228 = vpop.f32.mrf.mxu0
    %v5229 = vadd.f32 %v5157, %v5228
    %v5230 = vpop.f32.mrf.mxu0
    %v5231 = vadd.f32 %v5157, %v5230
    %5232 = vmatmul.bf16.gmra.mxu0 %v5175
    %v5233 = vpop.f32.mrf.mxu0
    %v5234 = vadd.f32 %v5157, %v5233
    %v5235 = vpop.f32.mrf.mxu0
    %v5236 = vadd.f32 %v5157, %v5235
    %5237 = vmatmul.bf16.gmra.mxu0 %v5178
    %v5238 = vpop.f32.mrf.mxu0
    %v5239 = vadd.f32 %v5157, %v5238
    %v5240 = vpop.f32.mrf.mxu0
    %v5241 = vadd.f32 %v5157, %v5240
    %5242 = vmatmul.bf16.gmra.mxu0 %v5181
    %v5243 = vpop.f32.mrf.mxu0
    %v5244 = vadd.f32 %v5157, %v5243
    %v5245 = vpop.f32.mrf.mxu0
    %v5246 = vadd.f32 %v5157, %v5245
    %5247 = vmatmul.bf16.gmra.mxu0 %v5184
    %v5248 = vpop.f32.mrf.mxu0
    %v5249 = vadd.f32 %v5157, %v5248
    %v5250 = vpop.f32.mrf.mxu0
    %v5251 = vadd.f32 %v5157, %v5250
    %5252 = vmatmul.bf16.gmra.mxu0 %v5187
    %v5253 = vpop.f32.mrf.mxu0
    %v5254 = vadd.f32 %v5157, %v5253
    %v5255 = vpop.f32.mrf.mxu0
    %v5256 = vadd.f32 %v5157, %v5255
    %5257 = vmatmul.bf16.gmra.mxu0 %v5190
    %v5258 = vpop.f32.mrf.mxu0
    %v5259 = vadd.f32 %v5157, %v5258
    %v5260 = vpop.f32.mrf.mxu0
    %v5261 = vadd.f32 %v5157, %v5260
    %5262 = vmatmul.bf16.gmra.mxu0 %v5193
    %v5263 = vpop.f32.mrf.mxu0
    %v5264 = vadd.f32 %v5157, %v5263
    %v5265 = vpop.f32.mrf.mxu0
    %v5266 = vadd.f32 %v5157, %v5265
    %5267 = vmatmul.bf16.gmra.mxu0 %v5196
    %v5268 = vpop.f32.mrf.mxu0
    %v5269 = vadd.f32 %v5157, %v5268
    %v5270 = vpop.f32.mrf.mxu0
    %v5271 = vadd.f32 %v5157, %v5270
    %5272 = vmatmul.bf16.gmra.mxu0 %v5199
    %v5273 = vpop.f32.mrf.mxu0
    %v5274 = vadd.f32 %v5157, %v5273
    %v5275 = vpop.f32.mrf.mxu0
    %v5276 = vadd.f32 %v5157, %v5275
    %5277 = vmatmul.bf16.gmra.mxu0 %v5202
    %v5278 = vpop.f32.mrf.mxu0
    %v5279 = vadd.f32 %v5157, %v5278
    %v5280 = vpop.f32.mrf.mxu0
    %v5281 = vadd.f32 %v5157, %v5280
    %5282 = vmatmul.bf16.gmra.mxu0 %v5205
    %v5283 = vpop.f32.mrf.mxu0
    %v5284 = vadd.f32 %v5157, %v5283
    %v5285 = vpop.f32.mrf.mxu0
    %v5286 = vadd.f32 %v5157, %v5285
    %5287 = vmatmul.bf16.gmra.mxu0 %v5208
    %v5288 = vpop.f32.mrf.mxu0
    %v5289 = vadd.f32 %v5157, %v5288
    %v5290 = vpop.f32.mrf.mxu0
    %v5291 = vadd.f32 %v5157, %v5290
    %5292 = vmatmul.bf16.gmra.mxu0 %v5211
    %v5293 = vpop.f32.mrf.mxu0
    %v5294 = vadd.f32 %v5157, %v5293
    %v5295 = vpop.f32.mrf.mxu0
    %v5296 = vadd.f32 %v5157, %v5295
    %5297 = vmatmul.bf16.gmra.mxu0 %v5214
    %v5298 = vpop.f32.mrf.mxu0
    %v5299 = vadd.f32 %v5157, %v5298
    %v5300 = vpop.f32.mrf.mxu0
    %v5301 = vadd.f32 %v5157, %v5300
    %5302 = vmatmul.bf16.gmra.mxu0 %v5217
    %v5303 = vpop.f32.mrf.mxu0
    %v5304 = vadd.f32 %v5157, %v5303
    %v5305 = vpop.f32.mrf.mxu0
    %v5306 = vadd.f32 %v5157, %v5305
    %5307 = vdwg.mxu0
    %v5308 = vpack.c.bf16 %v5231, %v5229
    %v5309 = vpack.c.bf16 %v5236, %v5234
    %v5310 = vpack.c.bf16 %v5241, %v5239
    %v5311 = vpack.c.bf16 %v5246, %v5244
    %v5312 = vpack.c.bf16 %v5251, %v5249
    %v5313 = vpack.c.bf16 %v5256, %v5254
    %v5314 = vpack.c.bf16 %v5261, %v5259
    %v5315 = vpack.c.bf16 %v5266, %v5264
    %v5316 = vpack.c.bf16 %v5271, %v5269
    %v5317 = vpack.c.bf16 %v5276, %v5274
    %v5318 = vpack.c.bf16 %v5281, %v5279
    %v5319 = vpack.c.bf16 %v5286, %v5284
    %v5320 = vpack.c.bf16 %v5291, %v5289
    %v5321 = vpack.c.bf16 %v5296, %v5294
    %v5322 = vpack.c.bf16 %v5301, %v5299
    %v5323 = vpack.c.bf16 %v5306, %v5304
    %5340 = vrot.lane.b32.xlu0 %v5308, 96
    %v5341 = vpop.permute.xlu0 %5340
    %5342 = vrot.lane.b32.xlu0 %v5309, 96
    %v5343 = vpop.permute.xlu0 %5342
    %5344 = vrot.lane.b32.xlu0 %v5310, 96
    %v5345 = vpop.permute.xlu0 %5344
    %5346 = vrot.lane.b32.xlu0 %v5311, 96
    %v5347 = vpop.permute.xlu0 %5346
    %5348 = vrot.lane.b32.xlu0 %v5312, 96
    %v5349 = vpop.permute.xlu0 %5348
    %5350 = vrot.lane.b32.xlu0 %v5313, 96
    %v5351 = vpop.permute.xlu0 %5350
    %5352 = vrot.lane.b32.xlu0 %v5314, 96
    %v5353 = vpop.permute.xlu0 %5352
    %5354 = vrot.lane.b32.xlu0 %v5315, 96
    %v5355 = vpop.permute.xlu0 %5354
    %5356 = vrot.lane.b32.xlu0 %v5316, 96
    %v5357 = vpop.permute.xlu0 %5356
    %5358 = vrot.lane.b32.xlu0 %v5317, 96
    %v5359 = vpop.permute.xlu0 %5358
    %5360 = vrot.lane.b32.xlu0 %v5318, 96
    %v5361 = vpop.permute.xlu0 %5360
    %5362 = vrot.lane.b32.xlu0 %v5319, 96
    %v5363 = vpop.permute.xlu0 %5362
    %5364 = vrot.lane.b32.xlu0 %v5320, 96
    %v5365 = vpop.permute.xlu0 %5364
    %5366 = vrot.lane.b32.xlu0 %v5321, 96
    %v5367 = vpop.permute.xlu0 %5366
    %5368 = vrot.lane.b32.xlu0 %v5322, 96
    %v5369 = vpop.permute.xlu0 %5368
    %5370 = vrot.lane.b32.xlu0 %v5323, 96
    %v5371 = vpop.permute.xlu0 %5370
    %v5373 = vsel %vm404, %v5308, 0
    %v5376 = vsel %vm404, %v5309, 0
    %v5379 = vsel %vm404, %v5310, 0
    %v5382 = vsel %vm404, %v5311, 0
    %v5385 = vsel %vm404, %v5312, 0
    %v5388 = vsel %vm404, %v5313, 0
    %v5391 = vsel %vm404, %v5314, 0
    %v5394 = vsel %vm404, %v5315, 0
    %v5397 = vsel %vm404, %v5316, 0
    %v5400 = vsel %vm404, %v5317, 0
    %v5403 = vsel %vm404, %v5318, 0
    %v5406 = vsel %vm404, %v5319, 0
    %v5409 = vsel %vm404, %v5320, 0
    %v5412 = vsel %vm404, %v5321, 0
    %v5415 = vsel %vm404, %v5322, 0
    %v5418 = vsel %vm404, %v5323, 0
    %v5421 = vsel %vm404, %v5341, 0
    %v5424 = vsel %vm404, %v5343, 0
    %v5427 = vsel %vm404, %v5345, 0
    %v5430 = vsel %vm404, %v5347, 0
    %v5433 = vsel %vm404, %v5349, 0
    %v5436 = vsel %vm404, %v5351, 0
    %v5439 = vsel %vm404, %v5353, 0
    %v5442 = vsel %vm404, %v5355, 0
    %v5445 = vsel %vm404, %v5357, 0
    %v5448 = vsel %vm404, %v5359, 0
    %v5451 = vsel %vm404, %v5361, 0
    %v5454 = vsel %vm404, %v5363, 0
    %v5457 = vsel %vm404, %v5365, 0
    %v5460 = vsel %vm404, %v5367, 0
    %v5463 = vsel %vm404, %v5369, 0
    %v5466 = vsel %vm404, %v5371, 0
    %5468 = vmatpush.bf16.xpose.msra.mxu0 %v5442
    %5469 = vmatpush.bf16.xpose.msra.mxu0 %v5439
    %5470 = vmatpush.bf16.xpose.msra.mxu0 %v5436
    %5471 = vmatpush.bf16.xpose.msra.mxu0 %v5433
    %5472 = vmatpush.bf16.xpose.msra.mxu0 %v5430
    %5473 = vmatpush.bf16.xpose.msra.mxu0 %v5427
    %5474 = vmatpush.bf16.xpose.msra.mxu0 %v5424
    %5475 = vmatpush.bf16.xpose.msra.mxu0 %v5421
    %5476 = vmatmul.bf16.gmra.mxu0 %v5373
    %v5477 = vpop.f32.mrf.mxu0
    %v5478 = vadd.f32 0.0, %v5477
    %v5479 = vpop.f32.mrf.mxu0
    %v5480 = vadd.f32 0.0, %v5479
    %5481 = vmatmul.bf16.gmra.mxu0 %v5376
    %v5482 = vpop.f32.mrf.mxu0
    %v5483 = vadd.f32 0.0, %v5482
    %v5484 = vpop.f32.mrf.mxu0
    %v5485 = vadd.f32 0.0, %v5484
    %5486 = vmatmul.bf16.gmra.mxu0 %v5379
    %v5487 = vpop.f32.mrf.mxu0
    %v5488 = vadd.f32 0.0, %v5487
    %v5489 = vpop.f32.mrf.mxu0
    %v5490 = vadd.f32 0.0, %v5489
    %5491 = vmatmul.bf16.gmra.mxu0 %v5382
    %v5492 = vpop.f32.mrf.mxu0
    %v5493 = vadd.f32 0.0, %v5492
    %v5494 = vpop.f32.mrf.mxu0
    %v5495 = vadd.f32 0.0, %v5494
    %5496 = vmatmul.bf16.gmra.mxu0 %v5385
    %v5497 = vpop.f32.mrf.mxu0
    %v5498 = vadd.f32 0.0, %v5497
    %v5499 = vpop.f32.mrf.mxu0
    %v5500 = vadd.f32 0.0, %v5499
    %5501 = vmatmul.bf16.gmra.mxu0 %v5388
    %v5502 = vpop.f32.mrf.mxu0
    %v5503 = vadd.f32 0.0, %v5502
    %v5504 = vpop.f32.mrf.mxu0
    %v5505 = vadd.f32 0.0, %v5504
    %5506 = vmatmul.bf16.gmra.mxu0 %v5391
    %v5507 = vpop.f32.mrf.mxu0
    %v5508 = vadd.f32 0.0, %v5507
    %v5509 = vpop.f32.mrf.mxu0
    %v5510 = vadd.f32 0.0, %v5509
    %5511 = vmatmul.bf16.gmra.mxu0 %v5394
    %v5512 = vpop.f32.mrf.mxu0
    %v5513 = vadd.f32 0.0, %v5512
    %v5514 = vpop.f32.mrf.mxu0
    %v5515 = vadd.f32 0.0, %v5514
    %5516 = vmatmul.bf16.gmra.mxu0 %v5397
    %v5517 = vpop.f32.mrf.mxu0
    %v5518 = vadd.f32 0.0, %v5517
    %v5519 = vpop.f32.mrf.mxu0
    %v5520 = vadd.f32 0.0, %v5519
    %5521 = vmatmul.bf16.gmra.mxu0 %v5400
    %v5522 = vpop.f32.mrf.mxu0
    %v5523 = vadd.f32 0.0, %v5522
    %v5524 = vpop.f32.mrf.mxu0
    %v5525 = vadd.f32 0.0, %v5524
    %5526 = vmatmul.bf16.gmra.mxu0 %v5403
    %v5527 = vpop.f32.mrf.mxu0
    %v5528 = vadd.f32 0.0, %v5527
    %v5529 = vpop.f32.mrf.mxu0
    %v5530 = vadd.f32 0.0, %v5529
    %5531 = vmatmul.bf16.gmra.mxu0 %v5406
    %v5532 = vpop.f32.mrf.mxu0
    %v5533 = vadd.f32 0.0, %v5532
    %v5534 = vpop.f32.mrf.mxu0
    %v5535 = vadd.f32 0.0, %v5534
    %5536 = vmatmul.bf16.gmra.mxu0 %v5409
    %v5537 = vpop.f32.mrf.mxu0
    %v5538 = vadd.f32 0.0, %v5537
    %v5539 = vpop.f32.mrf.mxu0
    %v5540 = vadd.f32 0.0, %v5539
    %5541 = vmatmul.bf16.gmra.mxu0 %v5412
    %v5542 = vpop.f32.mrf.mxu0
    %v5543 = vadd.f32 0.0, %v5542
    %v5544 = vpop.f32.mrf.mxu0
    %v5545 = vadd.f32 0.0, %v5544
    %5546 = vmatmul.bf16.gmra.mxu0 %v5415
    %v5547 = vpop.f32.mrf.mxu0
    %v5548 = vadd.f32 0.0, %v5547
    %v5549 = vpop.f32.mrf.mxu0
    %v5550 = vadd.f32 0.0, %v5549
    %5551 = vmatmul.bf16.gmra.mxu0 %v5418
    %v5552 = vpop.f32.mrf.mxu0
    %v5553 = vadd.f32 0.0, %v5552
    %v5554 = vpop.f32.mrf.mxu0
    %v5555 = vadd.f32 0.0, %v5554
    %5556 = vdwg.mxu0
    %5557 = vmatpush.bf16.xpose.msra.mxu0 %v5466
    %5558 = vmatpush.bf16.xpose.msra.mxu0 %v5463
    %5559 = vmatpush.bf16.xpose.msra.mxu0 %v5460
    %5560 = vmatpush.bf16.xpose.msra.mxu0 %v5457
    %5561 = vmatpush.bf16.xpose.msra.mxu0 %v5454
    %5562 = vmatpush.bf16.xpose.msra.mxu0 %v5451
    %5563 = vmatpush.bf16.xpose.msra.mxu0 %v5448
    %5564 = vmatpush.bf16.xpose.msra.mxu0 %v5445
    %5565 = vmatmul.bf16.gmra.mxu0 %v5373
    %v5566 = vpop.f32.mrf.mxu0
    %v5567 = vadd.f32 0.0, %v5566
    %v5568 = vpop.f32.mrf.mxu0
    %v5569 = vadd.f32 0.0, %v5568
    %5570 = vmatmul.bf16.gmra.mxu0 %v5376
    %v5571 = vpop.f32.mrf.mxu0
    %v5572 = vadd.f32 0.0, %v5571
    %v5573 = vpop.f32.mrf.mxu0
    %v5574 = vadd.f32 0.0, %v5573
    %5575 = vmatmul.bf16.gmra.mxu0 %v5379
    %v5576 = vpop.f32.mrf.mxu0
    %v5577 = vadd.f32 0.0, %v5576
    %v5578 = vpop.f32.mrf.mxu0
    %v5579 = vadd.f32 0.0, %v5578
    %5580 = vmatmul.bf16.gmra.mxu0 %v5382
    %v5581 = vpop.f32.mrf.mxu0
    %v5582 = vadd.f32 0.0, %v5581
    %v5583 = vpop.f32.mrf.mxu0
    %v5584 = vadd.f32 0.0, %v5583
    %5585 = vmatmul.bf16.gmra.mxu0 %v5385
    %v5586 = vpop.f32.mrf.mxu0
    %v5587 = vadd.f32 0.0, %v5586
    %v5588 = vpop.f32.mrf.mxu0
    %v5589 = vadd.f32 0.0, %v5588
    %5590 = vmatmul.bf16.gmra.mxu0 %v5388
    %v5591 = vpop.f32.mrf.mxu0
    %v5592 = vadd.f32 0.0, %v5591
    %v5593 = vpop.f32.mrf.mxu0
    %v5594 = vadd.f32 0.0, %v5593
    %5595 = vmatmul.bf16.gmra.mxu0 %v5391
    %v5596 = vpop.f32.mrf.mxu0
    %v5597 = vadd.f32 0.0, %v5596
    %v5598 = vpop.f32.mrf.mxu0
    %v5599 = vadd.f32 0.0, %v5598
    %5600 = vmatmul.bf16.gmra.mxu0 %v5394
    %v5601 = vpop.f32.mrf.mxu0
    %v5602 = vadd.f32 0.0, %v5601
    %v5603 = vpop.f32.mrf.mxu0
    %v5604 = vadd.f32 0.0, %v5603
    %5605 = vmatmul.bf16.gmra.mxu0 %v5397
    %v5606 = vpop.f32.mrf.mxu0
    %v5607 = vadd.f32 0.0, %v5606
    %v5608 = vpop.f32.mrf.mxu0
    %v5609 = vadd.f32 0.0, %v5608
    %5610 = vmatmul.bf16.gmra.mxu0 %v5400
    %v5611 = vpop.f32.mrf.mxu0
    %v5612 = vadd.f32 0.0, %v5611
    %v5613 = vpop.f32.mrf.mxu0
    %v5614 = vadd.f32 0.0, %v5613
    %5615 = vmatmul.bf16.gmra.mxu0 %v5403
    %v5616 = vpop.f32.mrf.mxu0
    %v5617 = vadd.f32 0.0, %v5616
    %v5618 = vpop.f32.mrf.mxu0
    %v5619 = vadd.f32 0.0, %v5618
    %5620 = vmatmul.bf16.gmra.mxu0 %v5406
    %v5621 = vpop.f32.mrf.mxu0
    %v5622 = vadd.f32 0.0, %v5621
    %v5623 = vpop.f32.mrf.mxu0
    %v5624 = vadd.f32 0.0, %v5623
    %5625 = vmatmul.bf16.gmra.mxu0 %v5409
    %v5626 = vpop.f32.mrf.mxu0
    %v5627 = vadd.f32 0.0, %v5626
    %v5628 = vpop.f32.mrf.mxu0
    %v5629 = vadd.f32 0.0, %v5628
    %5630 = vmatmul.bf16.gmra.mxu0 %v5412
    %v5631 = vpop.f32.mrf.mxu0
    %v5632 = vadd.f32 0.0, %v5631
    %v5633 = vpop.f32.mrf.mxu0
    %v5634 = vadd.f32 0.0, %v5633
    %5635 = vmatmul.bf16.gmra.mxu0 %v5415
    %v5636 = vpop.f32.mrf.mxu0
    %v5637 = vadd.f32 0.0, %v5636
    %v5638 = vpop.f32.mrf.mxu0
    %v5639 = vadd.f32 0.0, %v5638
    %5640 = vmatmul.bf16.gmra.mxu0 %v5418
    %v5641 = vpop.f32.mrf.mxu0
    %v5642 = vadd.f32 0.0, %v5641
    %v5643 = vpop.f32.mrf.mxu0
    %v5644 = vadd.f32 0.0, %v5643
    %5645 = vdwg.mxu0
    %v5646 = vmul.f32 %v5478, 0.17677669
    %v5647 = vmul.f32 %v5567, 0.17677669
    %v5648 = vmul.f32 %v5480, 0.17677669
    %v5649 = vmul.f32 %v5569, 0.17677669
    %v5650 = vmul.f32 %v5483, 0.17677669
    %v5651 = vmul.f32 %v5572, 0.17677669
    %v5652 = vmul.f32 %v5485, 0.17677669
    %v5653 = vmul.f32 %v5574, 0.17677669
    %v5654 = vmul.f32 %v5488, 0.17677669
    %v5655 = vmul.f32 %v5577, 0.17677669
    %v5656 = vmul.f32 %v5490, 0.17677669
    %v5657 = vmul.f32 %v5579, 0.17677669
    %v5658 = vmul.f32 %v5493, 0.17677669
    %v5659 = vmul.f32 %v5582, 0.17677669
    %v5660 = vmul.f32 %v5495, 0.17677669
    %v5661 = vmul.f32 %v5584, 0.17677669
    %v5662 = vmul.f32 %v5498, 0.17677669
    %v5663 = vmul.f32 %v5587, 0.17677669
    %v5664 = vmul.f32 %v5500, 0.17677669
    %v5665 = vmul.f32 %v5589, 0.17677669
    %v5666 = vmul.f32 %v5503, 0.17677669
    %v5667 = vmul.f32 %v5592, 0.17677669
    %v5668 = vmul.f32 %v5505, 0.17677669
    %v5669 = vmul.f32 %v5594, 0.17677669
    %v5670 = vmul.f32 %v5508, 0.17677669
    %v5671 = vmul.f32 %v5597, 0.17677669
    %v5672 = vmul.f32 %v5510, 0.17677669
    %v5673 = vmul.f32 %v5599, 0.17677669
    %v5674 = vmul.f32 %v5513, 0.17677669
    %v5675 = vmul.f32 %v5602, 0.17677669
    %v5676 = vmul.f32 %v5515, 0.17677669
    %v5677 = vmul.f32 %v5604, 0.17677669
    %v5678 = vmul.f32 %v5518, 0.17677669
    %v5679 = vmul.f32 %v5607, 0.17677669
    %v5680 = vmul.f32 %v5520, 0.17677669
    %v5681 = vmul.f32 %v5609, 0.17677669
    %v5682 = vmul.f32 %v5523, 0.17677669
    %v5683 = vmul.f32 %v5612, 0.17677669
    %v5684 = vmul.f32 %v5525, 0.17677669
    %v5685 = vmul.f32 %v5614, 0.17677669
    %v5686 = vmul.f32 %v5528, 0.17677669
    %v5687 = vmul.f32 %v5617, 0.17677669
    %v5688 = vmul.f32 %v5530, 0.17677669
    %v5689 = vmul.f32 %v5619, 0.17677669
    %v5690 = vmul.f32 %v5533, 0.17677669
    %v5691 = vmul.f32 %v5622, 0.17677669
    %v5692 = vmul.f32 %v5535, 0.17677669
    %v5693 = vmul.f32 %v5624, 0.17677669
    %v5694 = vmul.f32 %v5538, 0.17677669
    %v5695 = vmul.f32 %v5627, 0.17677669
    %v5696 = vmul.f32 %v5540, 0.17677669
    %v5697 = vmul.f32 %v5629, 0.17677669
    %v5698 = vmul.f32 %v5543, 0.17677669
    %v5699 = vmul.f32 %v5632, 0.17677669
    %v5700 = vmul.f32 %v5545, 0.17677669
    %v5701 = vmul.f32 %v5634, 0.17677669
    %v5702 = vmul.f32 %v5548, 0.17677669
    %v5703 = vmul.f32 %v5637, 0.17677669
    %v5704 = vmul.f32 %v5550, 0.17677669
    %v5705 = vmul.f32 %v5639, 0.17677669
    %v5706 = vmul.f32 %v5553, 0.17677669
    %v5707 = vmul.f32 %v5642, 0.17677669
    %v5708 = vmul.f32 %v5555, 0.17677669
    %v5709 = vmul.f32 %v5644, 0.17677669
    %v5710 = vadd.f32 %v5646, %v49
    %v5711 = vadd.f32 %v5647, %v50
    %v5712 = vadd.f32 %v5648, %v51
    %v5713 = vadd.f32 %v5649, %v52
    %v5714 = vadd.f32 %v5650, %v53
    %v5715 = vadd.f32 %v5651, %v54
    %v5716 = vadd.f32 %v5652, %v55
    %v5717 = vadd.f32 %v5653, %v56
    %v5718 = vadd.f32 %v5654, %v57
    %v5719 = vadd.f32 %v5655, %v58
    %v5720 = vadd.f32 %v5656, %v59
    %v5721 = vadd.f32 %v5657, %v60
    %v5722 = vadd.f32 %v5658, %v61
    %v5723 = vadd.f32 %v5659, %v62
    %v5724 = vadd.f32 %v5660, %v63
    %v5725 = vadd.f32 %v5661, %v64
    %v5726 = vadd.f32 %v5662, %v65
    %v5727 = vadd.f32 %v5663, %v66
    %v5728 = vadd.f32 %v5664, %v67
    %v5729 = vadd.f32 %v5665, %v68
    %v5730 = vadd.f32 %v5666, %v69
    %v5731 = vadd.f32 %v5667, %v70
    %v5732 = vadd.f32 %v5668, %v71
    %v5733 = vadd.f32 %v5669, %v72
    %v5734 = vadd.f32 %v5670, %v73
    %v5735 = vadd.f32 %v5671, %v74
    %v5736 = vadd.f32 %v5672, %v75
    %v5737 = vadd.f32 %v5673, %v76
    %v5738 = vadd.f32 %v5674, %v77
    %v5739 = vadd.f32 %v5675, %v78
    %v5740 = vadd.f32 %v5676, %v79
    %v5741 = vadd.f32 %v5677, %v80
    %v5742 = vadd.f32 %v5678, %v81
    %v5743 = vadd.f32 %v5679, %v82
    %v5744 = vadd.f32 %v5680, %v83
    %v5745 = vadd.f32 %v5681, %v84
    %v5746 = vadd.f32 %v5682, %v85
    %v5747 = vadd.f32 %v5683, %v86
    %v5748 = vadd.f32 %v5684, %v87
    %v5749 = vadd.f32 %v5685, %v88
    %v5750 = vadd.f32 %v5686, %v89
    %v5751 = vadd.f32 %v5687, %v90
    %v5752 = vadd.f32 %v5688, %v91
    %v5753 = vadd.f32 %v5689, %v92
    %v5754 = vadd.f32 %v5690, %v93
    %v5755 = vadd.f32 %v5691, %v94
    %v5756 = vadd.f32 %v5692, %v95
    %v5757 = vadd.f32 %v5693, %v96
    %v5758 = vadd.f32 %v5694, %v97
    %v5759 = vadd.f32 %v5695, %v98
    %v5760 = vadd.f32 %v5696, %v99
    %v5761 = vadd.f32 %v5697, %v100
    %v5762 = vadd.f32 %v5698, %v101
    %v5763 = vadd.f32 %v5699, %v102
    %v5764 = vadd.f32 %v5700, %v103
    %v5765 = vadd.f32 %v5701, %v104
    %v5766 = vadd.f32 %v5702, %v105
    %v5767 = vadd.f32 %v5703, %v106
    %v5768 = vadd.f32 %v5704, %v107
    %v5769 = vadd.f32 %v5705, %v108
    %v5770 = vadd.f32 %v5706, %v109
    %v5771 = vadd.f32 %v5707, %v110
    %v5772 = vadd.f32 %v5708, %v111
    %v5773 = vadd.f32 %v5709, %v112
    %v5774 = vmax.f32 %v5710, %v5711
    %5775 = vmax.xlane.f32.xlu0 %v5774
    %v5776 = vpop.xlane.xlu0 %5775
    %v5777 = vmax.f32 %v5712, %v5713
    %5778 = vmax.xlane.f32.xlu0 %v5777
    %v5779 = vpop.xlane.xlu0 %5778
    %v5780 = vmax.f32 %v5714, %v5715
    %5781 = vmax.xlane.f32.xlu0 %v5780
    %v5782 = vpop.xlane.xlu0 %5781
    %v5783 = vmax.f32 %v5716, %v5717
    %5784 = vmax.xlane.f32.xlu0 %v5783
    %v5785 = vpop.xlane.xlu0 %5784
    %v5786 = vmax.f32 %v5718, %v5719
    %5787 = vmax.xlane.f32.xlu0 %v5786
    %v5788 = vpop.xlane.xlu0 %5787
    %v5789 = vmax.f32 %v5720, %v5721
    %5790 = vmax.xlane.f32.xlu0 %v5789
    %v5791 = vpop.xlane.xlu0 %5790
    %v5792 = vmax.f32 %v5722, %v5723
    %5793 = vmax.xlane.f32.xlu0 %v5792
    %v5794 = vpop.xlane.xlu0 %5793
    %v5795 = vmax.f32 %v5724, %v5725
    %5796 = vmax.xlane.f32.xlu0 %v5795
    %v5797 = vpop.xlane.xlu0 %5796
    %v5798 = vmax.f32 %v5726, %v5727
    %5799 = vmax.xlane.f32.xlu0 %v5798
    %v5800 = vpop.xlane.xlu0 %5799
    %v5801 = vmax.f32 %v5728, %v5729
    %5802 = vmax.xlane.f32.xlu0 %v5801
    %v5803 = vpop.xlane.xlu0 %5802
    %v5804 = vmax.f32 %v5730, %v5731
    %5805 = vmax.xlane.f32.xlu0 %v5804
    %v5806 = vpop.xlane.xlu0 %5805
    %v5807 = vmax.f32 %v5732, %v5733
    %5808 = vmax.xlane.f32.xlu0 %v5807
    %v5809 = vpop.xlane.xlu0 %5808
    %v5810 = vmax.f32 %v5734, %v5735
    %5811 = vmax.xlane.f32.xlu0 %v5810
    %v5812 = vpop.xlane.xlu0 %5811
    %v5813 = vmax.f32 %v5736, %v5737
    %5814 = vmax.xlane.f32.xlu0 %v5813
    %v5815 = vpop.xlane.xlu0 %5814
    %v5816 = vmax.f32 %v5738, %v5739
    %5817 = vmax.xlane.f32.xlu0 %v5816
    %v5818 = vpop.xlane.xlu0 %5817
    %v5819 = vmax.f32 %v5740, %v5741
    %5820 = vmax.xlane.f32.xlu0 %v5819
    %v5821 = vpop.xlane.xlu0 %5820
    %v5822 = vmax.f32 %v5742, %v5743
    %5823 = vmax.xlane.f32.xlu0 %v5822
    %v5824 = vpop.xlane.xlu0 %5823
    %v5825 = vmax.f32 %v5744, %v5745
    %5826 = vmax.xlane.f32.xlu0 %v5825
    %v5827 = vpop.xlane.xlu0 %5826
    %v5828 = vmax.f32 %v5746, %v5747
    %5829 = vmax.xlane.f32.xlu0 %v5828
    %v5830 = vpop.xlane.xlu0 %5829
    %v5831 = vmax.f32 %v5748, %v5749
    %5832 = vmax.xlane.f32.xlu0 %v5831
    %v5833 = vpop.xlane.xlu0 %5832
    %v5834 = vmax.f32 %v5750, %v5751
    %5835 = vmax.xlane.f32.xlu0 %v5834
    %v5836 = vpop.xlane.xlu0 %5835
    %v5837 = vmax.f32 %v5752, %v5753
    %5838 = vmax.xlane.f32.xlu0 %v5837
    %v5839 = vpop.xlane.xlu0 %5838
    %v5840 = vmax.f32 %v5754, %v5755
    %5841 = vmax.xlane.f32.xlu0 %v5840
    %v5842 = vpop.xlane.xlu0 %5841
    %v5843 = vmax.f32 %v5756, %v5757
    %5844 = vmax.xlane.f32.xlu0 %v5843
    %v5845 = vpop.xlane.xlu0 %5844
    %v5846 = vmax.f32 %v5758, %v5759
    %5847 = vmax.xlane.f32.xlu0 %v5846
    %v5848 = vpop.xlane.xlu0 %5847
    %v5849 = vmax.f32 %v5760, %v5761
    %5850 = vmax.xlane.f32.xlu0 %v5849
    %v5851 = vpop.xlane.xlu0 %5850
    %v5852 = vmax.f32 %v5762, %v5763
    %5853 = vmax.xlane.f32.xlu0 %v5852
    %v5854 = vpop.xlane.xlu0 %5853
    %v5855 = vmax.f32 %v5764, %v5765
    %5856 = vmax.xlane.f32.xlu0 %v5855
    %v5857 = vpop.xlane.xlu0 %5856
    %v5858 = vmax.f32 %v5766, %v5767
    %5859 = vmax.xlane.f32.xlu0 %v5858
    %v5860 = vpop.xlane.xlu0 %5859
    %v5861 = vmax.f32 %v5768, %v5769
    %5862 = vmax.xlane.f32.xlu0 %v5861
    %v5863 = vpop.xlane.xlu0 %5862
    %v5864 = vmax.f32 %v5770, %v5771
    %5865 = vmax.xlane.f32.xlu0 %v5864
    %v5866 = vpop.xlane.xlu0 %5865
    %v5867 = vmax.f32 %v5772, %v5773
    %5868 = vmax.xlane.f32.xlu0 %v5867
    %v5869 = vpop.xlane.xlu0 %5868
    %v5870 = vsub.f32 %v5710, %v5776
    %v5871 = vsub.f32 %v5711, %v5776
    %v5872 = vsub.f32 %v5712, %v5779
    %v5873 = vsub.f32 %v5713, %v5779
    %v5874 = vsub.f32 %v5714, %v5782
    %v5875 = vsub.f32 %v5715, %v5782
    %v5876 = vsub.f32 %v5716, %v5785
    %v5877 = vsub.f32 %v5717, %v5785
    %v5878 = vsub.f32 %v5718, %v5788
    %v5879 = vsub.f32 %v5719, %v5788
    %v5880 = vsub.f32 %v5720, %v5791
    %v5881 = vsub.f32 %v5721, %v5791
    %v5882 = vsub.f32 %v5722, %v5794
    %v5883 = vsub.f32 %v5723, %v5794
    %v5884 = vsub.f32 %v5724, %v5797
    %v5885 = vsub.f32 %v5725, %v5797
    %v5886 = vsub.f32 %v5726, %v5800
    %v5887 = vsub.f32 %v5727, %v5800
    %v5888 = vsub.f32 %v5728, %v5803
    %v5889 = vsub.f32 %v5729, %v5803
    %v5890 = vsub.f32 %v5730, %v5806
    %v5891 = vsub.f32 %v5731, %v5806
    %v5892 = vsub.f32 %v5732, %v5809
    %v5893 = vsub.f32 %v5733, %v5809
    %v5894 = vsub.f32 %v5734, %v5812
    %v5895 = vsub.f32 %v5735, %v5812
    %v5896 = vsub.f32 %v5736, %v5815
    %v5897 = vsub.f32 %v5737, %v5815
    %v5898 = vsub.f32 %v5738, %v5818
    %v5899 = vsub.f32 %v5739, %v5818
    %v5900 = vsub.f32 %v5740, %v5821
    %v5901 = vsub.f32 %v5741, %v5821
    %v5902 = vsub.f32 %v5742, %v5824
    %v5903 = vsub.f32 %v5743, %v5824
    %v5904 = vsub.f32 %v5744, %v5827
    %v5905 = vsub.f32 %v5745, %v5827
    %v5906 = vsub.f32 %v5746, %v5830
    %v5907 = vsub.f32 %v5747, %v5830
    %v5908 = vsub.f32 %v5748, %v5833
    %v5909 = vsub.f32 %v5749, %v5833
    %v5910 = vsub.f32 %v5750, %v5836
    %v5911 = vsub.f32 %v5751, %v5836
    %v5912 = vsub.f32 %v5752, %v5839
    %v5913 = vsub.f32 %v5753, %v5839
    %v5914 = vsub.f32 %v5754, %v5842
    %v5915 = vsub.f32 %v5755, %v5842
    %v5916 = vsub.f32 %v5756, %v5845
    %v5917 = vsub.f32 %v5757, %v5845
    %v5918 = vsub.f32 %v5758, %v5848
    %v5919 = vsub.f32 %v5759, %v5848
    %v5920 = vsub.f32 %v5760, %v5851
    %v5921 = vsub.f32 %v5761, %v5851
    %v5922 = vsub.f32 %v5762, %v5854
    %v5923 = vsub.f32 %v5763, %v5854
    %v5924 = vsub.f32 %v5764, %v5857
    %v5925 = vsub.f32 %v5765, %v5857
    %v5926 = vsub.f32 %v5766, %v5860
    %v5927 = vsub.f32 %v5767, %v5860
    %v5928 = vsub.f32 %v5768, %v5863
    %v5929 = vsub.f32 %v5769, %v5863
    %v5930 = vsub.f32 %v5770, %v5866
    %v5931 = vsub.f32 %v5771, %v5866
    %v5932 = vsub.f32 %v5772, %v5869
    %v5933 = vsub.f32 %v5773, %v5869
    %v5934 = vmul.f32 %v5870, 1.442695
    %v5935 = vpow.pop %v5934
    %v5936 = vmul.f32 %v5871, 1.442695
    %v5937 = vpow.pop %v5936
    %v5938 = vmul.f32 %v5872, 1.442695
    %v5939 = vpow.pop %v5938
    %v5940 = vmul.f32 %v5873, 1.442695
    %v5941 = vpow.pop %v5940
    %v5942 = vmul.f32 %v5874, 1.442695
    %v5943 = vpow.pop %v5942
    %v5944 = vmul.f32 %v5875, 1.442695
    %v5945 = vpow.pop %v5944
    %v5946 = vmul.f32 %v5876, 1.442695
    %v5947 = vpow.pop %v5946
    %v5948 = vmul.f32 %v5877, 1.442695
    %v5949 = vpow.pop %v5948
    %v5950 = vmul.f32 %v5878, 1.442695
    %v5951 = vpow.pop %v5950
    %v5952 = vmul.f32 %v5879, 1.442695
    %v5953 = vpow.pop %v5952
    %v5954 = vmul.f32 %v5880, 1.442695
    %v5955 = vpow.pop %v5954
    %v5956 = vmul.f32 %v5881, 1.442695
    %v5957 = vpow.pop %v5956
    %v5958 = vmul.f32 %v5882, 1.442695
    %v5959 = vpow.pop %v5958
    %v5960 = vmul.f32 %v5883, 1.442695
    %v5961 = vpow.pop %v5960
    %v5962 = vmul.f32 %v5884, 1.442695
    %v5963 = vpow.pop %v5962
    %v5964 = vmul.f32 %v5885, 1.442695
    %v5965 = vpow.pop %v5964
    %v5966 = vmul.f32 %v5886, 1.442695
    %v5967 = vpow.pop %v5966
    %v5968 = vmul.f32 %v5887, 1.442695
    %v5969 = vpow.pop %v5968
    %v5970 = vmul.f32 %v5888, 1.442695
    %v5971 = vpow.pop %v5970
    %v5972 = vmul.f32 %v5889, 1.442695
    %v5973 = vpow.pop %v5972
    %v5974 = vmul.f32 %v5890, 1.442695
    %v5975 = vpow.pop %v5974
    %v5976 = vmul.f32 %v5891, 1.442695
    %v5977 = vpow.pop %v5976
    %v5978 = vmul.f32 %v5892, 1.442695
    %v5979 = vpow.pop %v5978
    %v5980 = vmul.f32 %v5893, 1.442695
    %v5981 = vpow.pop %v5980
    %v5982 = vmul.f32 %v5894, 1.442695
    %v5983 = vpow.pop %v5982
    %v5984 = vmul.f32 %v5895, 1.442695
    %v5985 = vpow.pop %v5984
    %v5986 = vmul.f32 %v5896, 1.442695
    %v5987 = vpow.pop %v5986
    %v5988 = vmul.f32 %v5897, 1.442695
    %v5989 = vpow.pop %v5988
    %v5990 = vmul.f32 %v5898, 1.442695
    %v5991 = vpow.pop %v5990
    %v5992 = vmul.f32 %v5899, 1.442695
    %v5993 = vpow.pop %v5992
    %v5994 = vmul.f32 %v5900, 1.442695
    %v5995 = vpow.pop %v5994
    %v5996 = vmul.f32 %v5901, 1.442695
    %v5997 = vpow.pop %v5996
    %v5998 = vmul.f32 %v5902, 1.442695
    %v5999 = vpow.pop %v5998
    %v6000 = vmul.f32 %v5903, 1.442695
    %v6001 = vpow.pop %v6000
    %v6002 = vmul.f32 %v5904, 1.442695
    %v6003 = vpow.pop %v6002
    %v6004 = vmul.f32 %v5905, 1.442695
    %v6005 = vpow.pop %v6004
    %v6006 = vmul.f32 %v5906, 1.442695
    %v6007 = vpow.pop %v6006
    %v6008 = vmul.f32 %v5907, 1.442695
    %v6009 = vpow.pop %v6008
    %v6010 = vmul.f32 %v5908, 1.442695
    %v6011 = vpow.pop %v6010
    %v6012 = vmul.f32 %v5909, 1.442695
    %v6013 = vpow.pop %v6012
    %v6014 = vmul.f32 %v5910, 1.442695
    %v6015 = vpow.pop %v6014
    %v6016 = vmul.f32 %v5911, 1.442695
    %v6017 = vpow.pop %v6016
    %v6018 = vmul.f32 %v5912, 1.442695
    %v6019 = vpow.pop %v6018
    %v6020 = vmul.f32 %v5913, 1.442695
    %v6021 = vpow.pop %v6020
    %v6022 = vmul.f32 %v5914, 1.442695
    %v6023 = vpow.pop %v6022
    %v6024 = vmul.f32 %v5915, 1.442695
    %v6025 = vpow.pop %v6024
    %v6026 = vmul.f32 %v5916, 1.442695
    %v6027 = vpow.pop %v6026
    %v6028 = vmul.f32 %v5917, 1.442695
    %v6029 = vpow.pop %v6028
    %v6030 = vmul.f32 %v5918, 1.442695
    %v6031 = vpow.pop %v6030
    %v6032 = vmul.f32 %v5919, 1.442695
    %v6033 = vpow.pop %v6032
    %v6034 = vmul.f32 %v5920, 1.442695
    %v6035 = vpow.pop %v6034
    %v6036 = vmul.f32 %v5921, 1.442695
    %v6037 = vpow.pop %v6036
    %v6038 = vmul.f32 %v5922, 1.442695
    %v6039 = vpow.pop %v6038
    %v6040 = vmul.f32 %v5923, 1.442695
    %v6041 = vpow.pop %v6040
    %v6042 = vmul.f32 %v5924, 1.442695
    %v6043 = vpow.pop %v6042
    %v6044 = vmul.f32 %v5925, 1.442695
    %v6045 = vpow.pop %v6044
    %v6046 = vmul.f32 %v5926, 1.442695
    %v6047 = vpow.pop %v6046
    %v6048 = vmul.f32 %v5927, 1.442695
    %v6049 = vpow.pop %v6048
    %v6050 = vmul.f32 %v5928, 1.442695
    %v6051 = vpow.pop %v6050
    %v6052 = vmul.f32 %v5929, 1.442695
    %v6053 = vpow.pop %v6052
    %v6054 = vmul.f32 %v5930, 1.442695
    %v6055 = vpow.pop %v6054
    %v6056 = vmul.f32 %v5931, 1.442695
    %v6057 = vpow.pop %v6056
    %v6058 = vmul.f32 %v5932, 1.442695
    %v6059 = vpow.pop %v6058
    %v6060 = vmul.f32 %v5933, 1.442695
    %v6061 = vpow.pop %v6060
    %v6062 = vadd.f32 %v5935, %v5937
    %6063 = vadd.xlane.f32.xlu0 %v6062
    %v6064 = vpop.xlane.xlu0 %6063
    %v6065 = vadd.f32 %v5939, %v5941
    %6066 = vadd.xlane.f32.xlu0 %v6065
    %v6067 = vpop.xlane.xlu0 %6066
    %v6068 = vadd.f32 %v5943, %v5945
    %6069 = vadd.xlane.f32.xlu0 %v6068
    %v6070 = vpop.xlane.xlu0 %6069
    %v6071 = vadd.f32 %v5947, %v5949
    %6072 = vadd.xlane.f32.xlu0 %v6071
    %v6073 = vpop.xlane.xlu0 %6072
    %v6074 = vadd.f32 %v5951, %v5953
    %6075 = vadd.xlane.f32.xlu0 %v6074
    %v6076 = vpop.xlane.xlu0 %6075
    %v6077 = vadd.f32 %v5955, %v5957
    %6078 = vadd.xlane.f32.xlu0 %v6077
    %v6079 = vpop.xlane.xlu0 %6078
    %v6080 = vadd.f32 %v5959, %v5961
    %6081 = vadd.xlane.f32.xlu0 %v6080
    %v6082 = vpop.xlane.xlu0 %6081
    %v6083 = vadd.f32 %v5963, %v5965
    %6084 = vadd.xlane.f32.xlu0 %v6083
    %v6085 = vpop.xlane.xlu0 %6084
    %v6086 = vadd.f32 %v5967, %v5969
    %6087 = vadd.xlane.f32.xlu0 %v6086
    %v6088 = vpop.xlane.xlu0 %6087
    %v6089 = vadd.f32 %v5971, %v5973
    %6090 = vadd.xlane.f32.xlu0 %v6089
    %v6091 = vpop.xlane.xlu0 %6090
    %v6092 = vadd.f32 %v5975, %v5977
    %6093 = vadd.xlane.f32.xlu0 %v6092
    %v6094 = vpop.xlane.xlu0 %6093
    %v6095 = vadd.f32 %v5979, %v5981
    %6096 = vadd.xlane.f32.xlu0 %v6095
    %v6097 = vpop.xlane.xlu0 %6096
    %v6098 = vadd.f32 %v5983, %v5985
    %6099 = vadd.xlane.f32.xlu0 %v6098
    %v6100 = vpop.xlane.xlu0 %6099
    %v6101 = vadd.f32 %v5987, %v5989
    %6102 = vadd.xlane.f32.xlu0 %v6101
    %v6103 = vpop.xlane.xlu0 %6102
    %v6104 = vadd.f32 %v5991, %v5993
    %6105 = vadd.xlane.f32.xlu0 %v6104
    %v6106 = vpop.xlane.xlu0 %6105
    %v6107 = vadd.f32 %v5995, %v5997
    %6108 = vadd.xlane.f32.xlu0 %v6107
    %v6109 = vpop.xlane.xlu0 %6108
    %v6110 = vadd.f32 %v5999, %v6001
    %6111 = vadd.xlane.f32.xlu0 %v6110
    %v6112 = vpop.xlane.xlu0 %6111
    %v6113 = vadd.f32 %v6003, %v6005
    %6114 = vadd.xlane.f32.xlu0 %v6113
    %v6115 = vpop.xlane.xlu0 %6114
    %v6116 = vadd.f32 %v6007, %v6009
    %6117 = vadd.xlane.f32.xlu0 %v6116
    %v6118 = vpop.xlane.xlu0 %6117
    %v6119 = vadd.f32 %v6011, %v6013
    %6120 = vadd.xlane.f32.xlu0 %v6119
    %v6121 = vpop.xlane.xlu0 %6120
    %v6122 = vadd.f32 %v6015, %v6017
    %6123 = vadd.xlane.f32.xlu0 %v6122
    %v6124 = vpop.xlane.xlu0 %6123
    %v6125 = vadd.f32 %v6019, %v6021
    %6126 = vadd.xlane.f32.xlu0 %v6125
    %v6127 = vpop.xlane.xlu0 %6126
    %v6128 = vadd.f32 %v6023, %v6025
    %6129 = vadd.xlane.f32.xlu0 %v6128
    %v6130 = vpop.xlane.xlu0 %6129
    %v6131 = vadd.f32 %v6027, %v6029
    %6132 = vadd.xlane.f32.xlu0 %v6131
    %v6133 = vpop.xlane.xlu0 %6132
    %v6134 = vadd.f32 %v6031, %v6033
    %6135 = vadd.xlane.f32.xlu0 %v6134
    %v6136 = vpop.xlane.xlu0 %6135
    %v6137 = vadd.f32 %v6035, %v6037
    %6138 = vadd.xlane.f32.xlu0 %v6137
    %v6139 = vpop.xlane.xlu0 %6138
    %v6140 = vadd.f32 %v6039, %v6041
    %6141 = vadd.xlane.f32.xlu0 %v6140
    %v6142 = vpop.xlane.xlu0 %6141
    %v6143 = vadd.f32 %v6043, %v6045
    %6144 = vadd.xlane.f32.xlu0 %v6143
    %v6145 = vpop.xlane.xlu0 %6144
    %v6146 = vadd.f32 %v6047, %v6049
    %6147 = vadd.xlane.f32.xlu0 %v6146
    %v6148 = vpop.xlane.xlu0 %6147
    %v6149 = vadd.f32 %v6051, %v6053
    %6150 = vadd.xlane.f32.xlu0 %v6149
    %v6151 = vpop.xlane.xlu0 %6150
    %v6152 = vadd.f32 %v6055, %v6057
    %6153 = vadd.xlane.f32.xlu0 %v6152
    %v6154 = vpop.xlane.xlu0 %6153
    %v6155 = vadd.f32 %v6059, %v6061
    %6156 = vadd.xlane.f32.xlu0 %v6155
    %v6157 = vpop.xlane.xlu0 %6156
    %v6158 = vrcp.pop %v6064
    %v6159 = vrcp.pop %v6067
    %v6160 = vrcp.pop %v6070
    %v6161 = vrcp.pop %v6073
    %v6162 = vrcp.pop %v6076
    %v6163 = vrcp.pop %v6079
    %v6164 = vrcp.pop %v6082
    %v6165 = vrcp.pop %v6085
    %v6166 = vrcp.pop %v6088
    %v6167 = vrcp.pop %v6091
    %v6168 = vrcp.pop %v6094
    %v6169 = vrcp.pop %v6097
    %v6170 = vrcp.pop %v6100
    %v6171 = vrcp.pop %v6103
    %v6172 = vrcp.pop %v6106
    %v6173 = vrcp.pop %v6109
    %v6174 = vrcp.pop %v6112
    %v6175 = vrcp.pop %v6115
    %v6176 = vrcp.pop %v6118
    %v6177 = vrcp.pop %v6121
    %v6178 = vrcp.pop %v6124
    %v6179 = vrcp.pop %v6127
    %v6180 = vrcp.pop %v6130
    %v6181 = vrcp.pop %v6133
    %v6182 = vrcp.pop %v6136
    %v6183 = vrcp.pop %v6139
    %v6184 = vrcp.pop %v6142
    %v6185 = vrcp.pop %v6145
    %v6186 = vrcp.pop %v6148
    %v6187 = vrcp.pop %v6151
    %v6188 = vrcp.pop %v6154
    %v6189 = vrcp.pop %v6157
    %v6190 = vmul.f32 %v5935, %v6158
    %v6191 = vmul.f32 %v5937, %v6158
    %v6192 = vmul.f32 %v5939, %v6159
    %v6193 = vmul.f32 %v5941, %v6159
    %v6194 = vmul.f32 %v5943, %v6160
    %v6195 = vmul.f32 %v5945, %v6160
    %v6196 = vmul.f32 %v5947, %v6161
    %v6197 = vmul.f32 %v5949, %v6161
    %v6198 = vmul.f32 %v5951, %v6162
    %v6199 = vmul.f32 %v5953, %v6162
    %v6200 = vmul.f32 %v5955, %v6163
    %v6201 = vmul.f32 %v5957, %v6163
    %v6202 = vmul.f32 %v5959, %v6164
    %v6203 = vmul.f32 %v5961, %v6164
    %v6204 = vmul.f32 %v5963, %v6165
    %v6205 = vmul.f32 %v5965, %v6165
    %v6206 = vmul.f32 %v5967, %v6166
    %v6207 = vmul.f32 %v5969, %v6166
    %v6208 = vmul.f32 %v5971, %v6167
    %v6209 = vmul.f32 %v5973, %v6167
    %v6210 = vmul.f32 %v5975, %v6168
    %v6211 = vmul.f32 %v5977, %v6168
    %v6212 = vmul.f32 %v5979, %v6169
    %v6213 = vmul.f32 %v5981, %v6169
    %v6214 = vmul.f32 %v5983, %v6170
    %v6215 = vmul.f32 %v5985, %v6170
    %v6216 = vmul.f32 %v5987, %v6171
    %v6217 = vmul.f32 %v5989, %v6171
    %v6218 = vmul.f32 %v5991, %v6172
    %v6219 = vmul.f32 %v5993, %v6172
    %v6220 = vmul.f32 %v5995, %v6173
    %v6221 = vmul.f32 %v5997, %v6173
    %v6222 = vmul.f32 %v5999, %v6174
    %v6223 = vmul.f32 %v6001, %v6174
    %v6224 = vmul.f32 %v6003, %v6175
    %v6225 = vmul.f32 %v6005, %v6175
    %v6226 = vmul.f32 %v6007, %v6176
    %v6227 = vmul.f32 %v6009, %v6176
    %v6228 = vmul.f32 %v6011, %v6177
    %v6229 = vmul.f32 %v6013, %v6177
    %v6230 = vmul.f32 %v6015, %v6178
    %v6231 = vmul.f32 %v6017, %v6178
    %v6232 = vmul.f32 %v6019, %v6179
    %v6233 = vmul.f32 %v6021, %v6179
    %v6234 = vmul.f32 %v6023, %v6180
    %v6235 = vmul.f32 %v6025, %v6180
    %v6236 = vmul.f32 %v6027, %v6181
    %v6237 = vmul.f32 %v6029, %v6181
    %v6238 = vmul.f32 %v6031, %v6182
    %v6239 = vmul.f32 %v6033, %v6182
    %v6240 = vmul.f32 %v6035, %v6183
    %v6241 = vmul.f32 %v6037, %v6183
    %v6242 = vmul.f32 %v6039, %v6184
    %v6243 = vmul.f32 %v6041, %v6184
    %v6244 = vmul.f32 %v6043, %v6185
    %v6245 = vmul.f32 %v6045, %v6185
    %v6246 = vmul.f32 %v6047, %v6186
    %v6247 = vmul.f32 %v6049, %v6186
    %v6248 = vmul.f32 %v6051, %v6187
    %v6249 = vmul.f32 %v6053, %v6187
    %v6250 = vmul.f32 %v6055, %v6188
    %v6251 = vmul.f32 %v6057, %v6188
    %v6252 = vmul.f32 %v6059, %v6189
    %v6253 = vmul.f32 %v6061, %v6189
    %v6254 = vpack.c.bf16 %v6192, %v6190
    %v6255 = vpack.c.bf16 %v6193, %v6191
    %v6256 = vpack.c.bf16 %v6196, %v6194
    %v6257 = vpack.c.bf16 %v6197, %v6195
    %v6258 = vpack.c.bf16 %v6200, %v6198
    %v6259 = vpack.c.bf16 %v6201, %v6199
    %v6260 = vpack.c.bf16 %v6204, %v6202
    %v6261 = vpack.c.bf16 %v6205, %v6203
    %v6262 = vpack.c.bf16 %v6208, %v6206
    %v6263 = vpack.c.bf16 %v6209, %v6207
    %v6264 = vpack.c.bf16 %v6212, %v6210
    %v6265 = vpack.c.bf16 %v6213, %v6211
    %v6266 = vpack.c.bf16 %v6216, %v6214
    %v6267 = vpack.c.bf16 %v6217, %v6215
    %v6268 = vpack.c.bf16 %v6220, %v6218
    %v6269 = vpack.c.bf16 %v6221, %v6219
    %v6270 = vpack.c.bf16 %v6224, %v6222
    %v6271 = vpack.c.bf16 %v6225, %v6223
    %v6272 = vpack.c.bf16 %v6228, %v6226
    %v6273 = vpack.c.bf16 %v6229, %v6227
    %v6274 = vpack.c.bf16 %v6232, %v6230
    %v6275 = vpack.c.bf16 %v6233, %v6231
    %v6276 = vpack.c.bf16 %v6236, %v6234
    %v6277 = vpack.c.bf16 %v6237, %v6235
    %v6278 = vpack.c.bf16 %v6240, %v6238
    %v6279 = vpack.c.bf16 %v6241, %v6239
    %v6280 = vpack.c.bf16 %v6244, %v6242
    %v6281 = vpack.c.bf16 %v6245, %v6243
    %v6282 = vpack.c.bf16 %v6248, %v6246
    %v6283 = vpack.c.bf16 %v6249, %v6247
    %v6284 = vpack.c.bf16 %v6252, %v6250
    %v6285 = vpack.c.bf16 %v6253, %v6251
    %6286 = vrot.lane.b32.xlu0 %v5308, 64
    %v6287 = vpop.permute.xlu0 %6286
    %6288 = vrot.lane.b32.xlu0 %v5309, 64
    %v6289 = vpop.permute.xlu0 %6288
    %6290 = vrot.lane.b32.xlu0 %v5310, 64
    %v6291 = vpop.permute.xlu0 %6290
    %6292 = vrot.lane.b32.xlu0 %v5311, 64
    %v6293 = vpop.permute.xlu0 %6292
    %6294 = vrot.lane.b32.xlu0 %v5312, 64
    %v6295 = vpop.permute.xlu0 %6294
    %6296 = vrot.lane.b32.xlu0 %v5313, 64
    %v6297 = vpop.permute.xlu0 %6296
    %6298 = vrot.lane.b32.xlu0 %v5314, 64
    %v6299 = vpop.permute.xlu0 %6298
    %6300 = vrot.lane.b32.xlu0 %v5315, 64
    %v6301 = vpop.permute.xlu0 %6300
    %6302 = vrot.lane.b32.xlu0 %v5316, 64
    %v6303 = vpop.permute.xlu0 %6302
    %6304 = vrot.lane.b32.xlu0 %v5317, 64
    %v6305 = vpop.permute.xlu0 %6304
    %6306 = vrot.lane.b32.xlu0 %v5318, 64
    %v6307 = vpop.permute.xlu0 %6306
    %6308 = vrot.lane.b32.xlu0 %v5319, 64
    %v6309 = vpop.permute.xlu0 %6308
    %6310 = vrot.lane.b32.xlu0 %v5320, 64
    %v6311 = vpop.permute.xlu0 %6310
    %6312 = vrot.lane.b32.xlu0 %v5321, 64
    %v6313 = vpop.permute.xlu0 %6312
    %6314 = vrot.lane.b32.xlu0 %v5322, 64
    %v6315 = vpop.permute.xlu0 %6314
    %6316 = vrot.lane.b32.xlu0 %v5323, 64
    %v6317 = vpop.permute.xlu0 %6316
    %6334 = vmatpush.bf16.msra.mxu0 %v6301
    %6335 = vmatpush.bf16.msra.mxu0 %v6299
    %6336 = vmatpush.bf16.msra.mxu0 %v6297
    %6337 = vmatpush.bf16.msra.mxu0 %v6295
    %6338 = vmatpush.bf16.msra.mxu0 %v6293
    %6339 = vmatpush.bf16.msra.mxu0 %v6291
    %6340 = vmatpush.bf16.msra.mxu0 %v6289
    %6341 = vmatpush.bf16.msra.mxu0 %v6287
    %6342 = vmatmul.bf16.gmra.mxu0 %v6254
    %v6343 = vpop.f32.mrf.mxu0
    %v6344 = vadd.f32 0.0, %v6343
    %v6345 = vpop.f32.mrf.mxu0
    %v6346 = vadd.f32 0.0, %v6345
    %6347 = vmatmul.bf16.gmra.mxu0 %v6256
    %v6348 = vpop.f32.mrf.mxu0
    %v6349 = vadd.f32 0.0, %v6348
    %v6350 = vpop.f32.mrf.mxu0
    %v6351 = vadd.f32 0.0, %v6350
    %6352 = vmatmul.bf16.gmra.mxu0 %v6258
    %v6353 = vpop.f32.mrf.mxu0
    %v6354 = vadd.f32 0.0, %v6353
    %v6355 = vpop.f32.mrf.mxu0
    %v6356 = vadd.f32 0.0, %v6355
    %6357 = vmatmul.bf16.gmra.mxu0 %v6260
    %v6358 = vpop.f32.mrf.mxu0
    %v6359 = vadd.f32 0.0, %v6358
    %v6360 = vpop.f32.mrf.mxu0
    %v6361 = vadd.f32 0.0, %v6360
    %6362 = vmatmul.bf16.gmra.mxu0 %v6262
    %v6363 = vpop.f32.mrf.mxu0
    %v6364 = vadd.f32 0.0, %v6363
    %v6365 = vpop.f32.mrf.mxu0
    %v6366 = vadd.f32 0.0, %v6365
    %6367 = vmatmul.bf16.gmra.mxu0 %v6264
    %v6368 = vpop.f32.mrf.mxu0
    %v6369 = vadd.f32 0.0, %v6368
    %v6370 = vpop.f32.mrf.mxu0
    %v6371 = vadd.f32 0.0, %v6370
    %6372 = vmatmul.bf16.gmra.mxu0 %v6266
    %v6373 = vpop.f32.mrf.mxu0
    %v6374 = vadd.f32 0.0, %v6373
    %v6375 = vpop.f32.mrf.mxu0
    %v6376 = vadd.f32 0.0, %v6375
    %6377 = vmatmul.bf16.gmra.mxu0 %v6268
    %v6378 = vpop.f32.mrf.mxu0
    %v6379 = vadd.f32 0.0, %v6378
    %v6380 = vpop.f32.mrf.mxu0
    %v6381 = vadd.f32 0.0, %v6380
    %6382 = vmatmul.bf16.gmra.mxu0 %v6270
    %v6383 = vpop.f32.mrf.mxu0
    %v6384 = vadd.f32 0.0, %v6383
    %v6385 = vpop.f32.mrf.mxu0
    %v6386 = vadd.f32 0.0, %v6385
    %6387 = vmatmul.bf16.gmra.mxu0 %v6272
    %v6388 = vpop.f32.mrf.mxu0
    %v6389 = vadd.f32 0.0, %v6388
    %v6390 = vpop.f32.mrf.mxu0
    %v6391 = vadd.f32 0.0, %v6390
    %6392 = vmatmul.bf16.gmra.mxu0 %v6274
    %v6393 = vpop.f32.mrf.mxu0
    %v6394 = vadd.f32 0.0, %v6393
    %v6395 = vpop.f32.mrf.mxu0
    %v6396 = vadd.f32 0.0, %v6395
    %6397 = vmatmul.bf16.gmra.mxu0 %v6276
    %v6398 = vpop.f32.mrf.mxu0
    %v6399 = vadd.f32 0.0, %v6398
    %v6400 = vpop.f32.mrf.mxu0
    %v6401 = vadd.f32 0.0, %v6400
    %6402 = vmatmul.bf16.gmra.mxu0 %v6278
    %v6403 = vpop.f32.mrf.mxu0
    %v6404 = vadd.f32 0.0, %v6403
    %v6405 = vpop.f32.mrf.mxu0
    %v6406 = vadd.f32 0.0, %v6405
    %6407 = vmatmul.bf16.gmra.mxu0 %v6280
    %v6408 = vpop.f32.mrf.mxu0
    %v6409 = vadd.f32 0.0, %v6408
    %v6410 = vpop.f32.mrf.mxu0
    %v6411 = vadd.f32 0.0, %v6410
    %6412 = vmatmul.bf16.gmra.mxu0 %v6282
    %v6413 = vpop.f32.mrf.mxu0
    %v6414 = vadd.f32 0.0, %v6413
    %v6415 = vpop.f32.mrf.mxu0
    %v6416 = vadd.f32 0.0, %v6415
    %6417 = vmatmul.bf16.gmra.mxu0 %v6284
    %v6418 = vpop.f32.mrf.mxu0
    %v6419 = vadd.f32 0.0, %v6418
    %v6420 = vpop.f32.mrf.mxu0
    %v6421 = vadd.f32 0.0, %v6420
    %6422 = vdwg.mxu0
    %6423 = vmatpush.bf16.msra.mxu0 %v6317
    %6424 = vmatpush.bf16.msra.mxu0 %v6315
    %6425 = vmatpush.bf16.msra.mxu0 %v6313
    %6426 = vmatpush.bf16.msra.mxu0 %v6311
    %6427 = vmatpush.bf16.msra.mxu0 %v6309
    %6428 = vmatpush.bf16.msra.mxu0 %v6307
    %6429 = vmatpush.bf16.msra.mxu0 %v6305
    %6430 = vmatpush.bf16.msra.mxu0 %v6303
    %6431 = vmatmul.bf16.gmra.mxu0 %v6255
    %v6432 = vpop.f32.mrf.mxu0
    %v6433 = vadd.f32 %v6344, %v6432
    %v6434 = vpop.f32.mrf.mxu0
    %v6435 = vadd.f32 %v6346, %v6434
    %6436 = vmatmul.bf16.gmra.mxu0 %v6257
    %v6437 = vpop.f32.mrf.mxu0
    %v6438 = vadd.f32 %v6349, %v6437
    %v6439 = vpop.f32.mrf.mxu0
    %v6440 = vadd.f32 %v6351, %v6439
    %6441 = vmatmul.bf16.gmra.mxu0 %v6259
    %v6442 = vpop.f32.mrf.mxu0
    %v6443 = vadd.f32 %v6354, %v6442
    %v6444 = vpop.f32.mrf.mxu0
    %v6445 = vadd.f32 %v6356, %v6444
    %6446 = vmatmul.bf16.gmra.mxu0 %v6261
    %v6447 = vpop.f32.mrf.mxu0
    %v6448 = vadd.f32 %v6359, %v6447
    %v6449 = vpop.f32.mrf.mxu0
    %v6450 = vadd.f32 %v6361, %v6449
    %6451 = vmatmul.bf16.gmra.mxu0 %v6263
    %v6452 = vpop.f32.mrf.mxu0
    %v6453 = vadd.f32 %v6364, %v6452
    %v6454 = vpop.f32.mrf.mxu0
    %v6455 = vadd.f32 %v6366, %v6454
    %6456 = vmatmul.bf16.gmra.mxu0 %v6265
    %v6457 = vpop.f32.mrf.mxu0
    %v6458 = vadd.f32 %v6369, %v6457
    %v6459 = vpop.f32.mrf.mxu0
    %v6460 = vadd.f32 %v6371, %v6459
    %6461 = vmatmul.bf16.gmra.mxu0 %v6267
    %v6462 = vpop.f32.mrf.mxu0
    %v6463 = vadd.f32 %v6374, %v6462
    %v6464 = vpop.f32.mrf.mxu0
    %v6465 = vadd.f32 %v6376, %v6464
    %6466 = vmatmul.bf16.gmra.mxu0 %v6269
    %v6467 = vpop.f32.mrf.mxu0
    %v6468 = vadd.f32 %v6379, %v6467
    %v6469 = vpop.f32.mrf.mxu0
    %v6470 = vadd.f32 %v6381, %v6469
    %6471 = vmatmul.bf16.gmra.mxu0 %v6271
    %v6472 = vpop.f32.mrf.mxu0
    %v6473 = vadd.f32 %v6384, %v6472
    %v6474 = vpop.f32.mrf.mxu0
    %v6475 = vadd.f32 %v6386, %v6474
    %6476 = vmatmul.bf16.gmra.mxu0 %v6273
    %v6477 = vpop.f32.mrf.mxu0
    %v6478 = vadd.f32 %v6389, %v6477
    %v6479 = vpop.f32.mrf.mxu0
    %v6480 = vadd.f32 %v6391, %v6479
    %6481 = vmatmul.bf16.gmra.mxu0 %v6275
    %v6482 = vpop.f32.mrf.mxu0
    %v6483 = vadd.f32 %v6394, %v6482
    %v6484 = vpop.f32.mrf.mxu0
    %v6485 = vadd.f32 %v6396, %v6484
    %6486 = vmatmul.bf16.gmra.mxu0 %v6277
    %v6487 = vpop.f32.mrf.mxu0
    %v6488 = vadd.f32 %v6399, %v6487
    %v6489 = vpop.f32.mrf.mxu0
    %v6490 = vadd.f32 %v6401, %v6489
    %6491 = vmatmul.bf16.gmra.mxu0 %v6279
    %v6492 = vpop.f32.mrf.mxu0
    %v6493 = vadd.f32 %v6404, %v6492
    %v6494 = vpop.f32.mrf.mxu0
    %v6495 = vadd.f32 %v6406, %v6494
    %6496 = vmatmul.bf16.gmra.mxu0 %v6281
    %v6497 = vpop.f32.mrf.mxu0
    %v6498 = vadd.f32 %v6409, %v6497
    %v6499 = vpop.f32.mrf.mxu0
    %v6500 = vadd.f32 %v6411, %v6499
    %6501 = vmatmul.bf16.gmra.mxu0 %v6283
    %v6502 = vpop.f32.mrf.mxu0
    %v6503 = vadd.f32 %v6414, %v6502
    %v6504 = vpop.f32.mrf.mxu0
    %v6505 = vadd.f32 %v6416, %v6504
    %6506 = vmatmul.bf16.gmra.mxu0 %v6285
    %v6507 = vpop.f32.mrf.mxu0
    %v6508 = vadd.f32 %v6419, %v6507
    %v6509 = vpop.f32.mrf.mxu0
    %v6510 = vadd.f32 %v6421, %v6509
    %6511 = vdwg.mxu0
    %v6512 = vmul.f32 %v6433, %v1548
    %v6513 = vmul.f32 %v6435, %v1553
    %v6514 = vmul.f32 %v6438, %v1558
    %v6515 = vmul.f32 %v6440, %v1563
    %v6516 = vmul.f32 %v6443, %v1568
    %v6517 = vmul.f32 %v6445, %v1573
    %v6518 = vmul.f32 %v6448, %v1578
    %v6519 = vmul.f32 %v6450, %v1583
    %v6520 = vmul.f32 %v6453, %v1588
    %v6521 = vmul.f32 %v6455, %v1593
    %v6522 = vmul.f32 %v6458, %v1598
    %v6523 = vmul.f32 %v6460, %v1603
    %v6524 = vmul.f32 %v6463, %v1608
    %v6525 = vmul.f32 %v6465, %v1613
    %v6526 = vmul.f32 %v6468, %v1618
    %v6527 = vmul.f32 %v6470, %v1623
    %v6528 = vmul.f32 %v6473, %v1628
    %v6529 = vmul.f32 %v6475, %v1633
    %v6530 = vmul.f32 %v6478, %v1638
    %v6531 = vmul.f32 %v6480, %v1643
    %v6532 = vmul.f32 %v6483, %v1648
    %v6533 = vmul.f32 %v6485, %v1653
    %v6534 = vmul.f32 %v6488, %v1658
    %v6535 = vmul.f32 %v6490, %v1663
    %v6536 = vmul.f32 %v6493, %v1668
    %v6537 = vmul.f32 %v6495, %v1673
    %v6538 = vmul.f32 %v6498, %v1678
    %v6539 = vmul.f32 %v6500, %v1683
    %v6540 = vmul.f32 %v6503, %v1688
    %v6541 = vmul.f32 %v6505, %v1693
    %v6542 = vmul.f32 %v6508, %v1698
    %v6543 = vmul.f32 %v6510, %v1703
    %6576 = vrot.lane.b32.xlu0 %v5229, 32
    %v6577 = vpop.permute.xlu0 %6576
    %6578 = vrot.lane.b32.xlu0 %v5231, 32
    %v6579 = vpop.permute.xlu0 %6578
    %6580 = vrot.lane.b32.xlu0 %v5234, 32
    %v6581 = vpop.permute.xlu0 %6580
    %6582 = vrot.lane.b32.xlu0 %v5236, 32
    %v6583 = vpop.permute.xlu0 %6582
    %6584 = vrot.lane.b32.xlu0 %v5239, 32
    %v6585 = vpop.permute.xlu0 %6584
    %6586 = vrot.lane.b32.xlu0 %v5241, 32
    %v6587 = vpop.permute.xlu0 %6586
    %6588 = vrot.lane.b32.xlu0 %v5244, 32
    %v6589 = vpop.permute.xlu0 %6588
    %6590 = vrot.lane.b32.xlu0 %v5246, 32
    %v6591 = vpop.permute.xlu0 %6590
    %6592 = vrot.lane.b32.xlu0 %v5249, 32
    %v6593 = vpop.permute.xlu0 %6592
    %6594 = vrot.lane.b32.xlu0 %v5251, 32
    %v6595 = vpop.permute.xlu0 %6594
    %6596 = vrot.lane.b32.xlu0 %v5254, 32
    %v6597 = vpop.permute.xlu0 %6596
    %6598 = vrot.lane.b32.xlu0 %v5256, 32
    %v6599 = vpop.permute.xlu0 %6598
    %6600 = vrot.lane.b32.xlu0 %v5259, 32
    %v6601 = vpop.permute.xlu0 %6600
    %6602 = vrot.lane.b32.xlu0 %v5261, 32
    %v6603 = vpop.permute.xlu0 %6602
    %6604 = vrot.lane.b32.xlu0 %v5264, 32
    %v6605 = vpop.permute.xlu0 %6604
    %6606 = vrot.lane.b32.xlu0 %v5266, 32
    %v6607 = vpop.permute.xlu0 %6606
    %6608 = vrot.lane.b32.xlu0 %v5269, 32
    %v6609 = vpop.permute.xlu0 %6608
    %6610 = vrot.lane.b32.xlu0 %v5271, 32
    %v6611 = vpop.permute.xlu0 %6610
    %6612 = vrot.lane.b32.xlu0 %v5274, 32
    %v6613 = vpop.permute.xlu0 %6612
    %6614 = vrot.lane.b32.xlu0 %v5276, 32
    %v6615 = vpop.permute.xlu0 %6614
    %6616 = vrot.lane.b32.xlu0 %v5279, 32
    %v6617 = vpop.permute.xlu0 %6616
    %6618 = vrot.lane.b32.xlu0 %v5281, 32
    %v6619 = vpop.permute.xlu0 %6618
    %6620 = vrot.lane.b32.xlu0 %v5284, 32
    %v6621 = vpop.permute.xlu0 %6620
    %6622 = vrot.lane.b32.xlu0 %v5286, 32
    %v6623 = vpop.permute.xlu0 %6622
    %6624 = vrot.lane.b32.xlu0 %v5289, 32
    %v6625 = vpop.permute.xlu0 %6624
    %6626 = vrot.lane.b32.xlu0 %v5291, 32
    %v6627 = vpop.permute.xlu0 %6626
    %6628 = vrot.lane.b32.xlu0 %v5294, 32
    %v6629 = vpop.permute.xlu0 %6628
    %6630 = vrot.lane.b32.xlu0 %v5296, 32
    %v6631 = vpop.permute.xlu0 %6630
    %6632 = vrot.lane.b32.xlu0 %v5299, 32
    %v6633 = vpop.permute.xlu0 %6632
    %6634 = vrot.lane.b32.xlu0 %v5301, 32
    %v6635 = vpop.permute.xlu0 %6634
    %6636 = vrot.lane.b32.xlu0 %v5304, 32
    %v6637 = vpop.permute.xlu0 %6636
    %6638 = vrot.lane.b32.xlu0 %v5306, 32
    %v6639 = vpop.permute.xlu0 %6638
    %v6672 = vadd.f32 %v6512, %v6577
    %v6673 = vadd.f32 %v6513, %v6579
    %v6674 = vadd.f32 %v6514, %v6581
    %v6675 = vadd.f32 %v6515, %v6583
    %v6676 = vadd.f32 %v6516, %v6585
    %v6677 = vadd.f32 %v6517, %v6587
    %v6678 = vadd.f32 %v6518, %v6589
    %v6679 = vadd.f32 %v6519, %v6591
    %v6680 = vadd.f32 %v6520, %v6593
    %v6681 = vadd.f32 %v6521, %v6595
    %v6682 = vadd.f32 %v6522, %v6597
    %v6683 = vadd.f32 %v6523, %v6599
    %v6684 = vadd.f32 %v6524, %v6601
    %v6685 = vadd.f32 %v6525, %v6603
    %v6686 = vadd.f32 %v6526, %v6605
    %v6687 = vadd.f32 %v6527, %v6607
    %v6688 = vadd.f32 %v6528, %v6609
    %v6689 = vadd.f32 %v6529, %v6611
    %v6690 = vadd.f32 %v6530, %v6613
    %v6691 = vadd.f32 %v6531, %v6615
    %v6692 = vadd.f32 %v6532, %v6617
    %v6693 = vadd.f32 %v6533, %v6619
    %v6694 = vadd.f32 %v6534, %v6621
    %v6695 = vadd.f32 %v6535, %v6623
    %v6696 = vadd.f32 %v6536, %v6625
    %v6697 = vadd.f32 %v6537, %v6627
    %v6698 = vadd.f32 %v6538, %v6629
    %v6699 = vadd.f32 %v6539, %v6631
    %v6700 = vadd.f32 %v6540, %v6633
    %v6701 = vadd.f32 %v6541, %v6635
    %v6702 = vadd.f32 %v6542, %v6637
    %v6703 = vadd.f32 %v6543, %v6639
    %v6704 = vmax.f32 %v6672, 0.0
    %v6705 = vmax.f32 %v6673, 0.0
    %v6706 = vmax.f32 %v6674, 0.0
    %v6707 = vmax.f32 %v6675, 0.0
    %v6708 = vmax.f32 %v6676, 0.0
    %v6709 = vmax.f32 %v6677, 0.0
    %v6710 = vmax.f32 %v6678, 0.0
    %v6711 = vmax.f32 %v6679, 0.0
    %v6712 = vmax.f32 %v6680, 0.0
    %v6713 = vmax.f32 %v6681, 0.0
    %v6714 = vmax.f32 %v6682, 0.0
    %v6715 = vmax.f32 %v6683, 0.0
    %v6716 = vmax.f32 %v6684, 0.0
    %v6717 = vmax.f32 %v6685, 0.0
    %v6718 = vmax.f32 %v6686, 0.0
    %v6719 = vmax.f32 %v6687, 0.0
    %v6720 = vmax.f32 %v6688, 0.0
    %v6721 = vmax.f32 %v6689, 0.0
    %v6722 = vmax.f32 %v6690, 0.0
    %v6723 = vmax.f32 %v6691, 0.0
    %v6724 = vmax.f32 %v6692, 0.0
    %v6725 = vmax.f32 %v6693, 0.0
    %v6726 = vmax.f32 %v6694, 0.0
    %v6727 = vmax.f32 %v6695, 0.0
    %v6728 = vmax.f32 %v6696, 0.0
    %v6729 = vmax.f32 %v6697, 0.0
    %v6730 = vmax.f32 %v6698, 0.0
    %v6731 = vmax.f32 %v6699, 0.0
    %v6732 = vmax.f32 %v6700, 0.0
    %v6733 = vmax.f32 %v6701, 0.0
    %v6734 = vmax.f32 %v6702, 0.0
    %v6735 = vmax.f32 %v6703, 0.0
    %s6736 = scalar_lea.vmem [#allocation2], 48
    %v6737 = vld [vmem:[%s6736] sm:$0xf]
    %v6738 = vld [vmem:[%s6736 + $0x4] sm:$0xf]
    %v6739 = vld [vmem:[%s6736 + $0x8] sm:$0xf]
    %v6740 = vld [vmem:[%s6736 + $0xc] sm:$0xf]
    %s6741 = scalar_lea.vmem %s6, 3
    %v6742 = vld [vmem:[%s6741] sm:$0x1]
    %v6743 = vpack.c.bf16 %v6705, %v6704
    %v6744 = vpack.c.bf16 %v6707, %v6706
    %v6745 = vpack.c.bf16 %v6709, %v6708
    %v6746 = vpack.c.bf16 %v6711, %v6710
    %v6747 = vpack.c.bf16 %v6713, %v6712
    %v6748 = vpack.c.bf16 %v6715, %v6714
    %v6749 = vpack.c.bf16 %v6717, %v6716
    %v6750 = vpack.c.bf16 %v6719, %v6718
    %v6751 = vpack.c.bf16 %v6721, %v6720
    %v6752 = vpack.c.bf16 %v6723, %v6722
    %v6753 = vpack.c.bf16 %v6725, %v6724
    %v6754 = vpack.c.bf16 %v6727, %v6726
    %v6755 = vpack.c.bf16 %v6729, %v6728
    %v6756 = vpack.c.bf16 %v6731, %v6730
    %v6757 = vpack.c.bf16 %v6733, %v6732
    %v6758 = vpack.c.bf16 %v6735, %v6734
    %v6760 = vperm.slane %v6742, 0
    %v6766 = vunpack.c.l.b16 %v6737
    %v6767 = vunpack.c.l.b16 %v6738
    %v6768 = vunpack.c.l.b16 %v6739
    %v6769 = vunpack.c.l.b16 %v6740
    %v6770 = vpack.c.b16 %v6767, %v6766
    %v6771 = vpack.c.b16 %v6769, %v6768
    %v6775 = vsel %vm404, %v6743, 0
    %v6778 = vsel %vm404, %v6744, 0
    %v6781 = vsel %vm404, %v6745, 0
    %v6784 = vsel %vm404, %v6746, 0
    %v6787 = vsel %vm404, %v6747, 0
    %v6790 = vsel %vm404, %v6748, 0
    %v6793 = vsel %vm404, %v6749, 0
    %v6796 = vsel %vm404, %v6750, 0
    %v6799 = vsel %vm404, %v6751, 0
    %v6802 = vsel %vm404, %v6752, 0
    %v6805 = vsel %vm404, %v6753, 0
    %v6808 = vsel %vm404, %v6754, 0
    %v6811 = vsel %vm404, %v6755, 0
    %v6814 = vsel %vm404, %v6756, 0
    %v6817 = vsel %vm404, %v6757, 0
    %v6820 = vsel %vm404, %v6758, 0
    %6822 = vmatpush.bf16.msra.mxu0 0
    %6823 = vmatpush.bf16.msra.mxu0 0
    %6824 = vmatpush.bf16.msra.mxu0 0
    %6825 = vmatpush.bf16.msra.mxu0 0
    %6826 = vmatpush.bf16.msra.mxu0 0
    %6827 = vmatpush.bf16.msra.mxu0 0
    %6828 = vmatpush.bf16.msra.mxu0 %v6771
    %6829 = vmatpush.bf16.msra.mxu0 %v6770
    %6830 = vmatmul.bf16.gmra.mxu0 %v6775
    %v6831 = vpop.f32.mrf.mxu0
    %v6832 = vadd.f32 %v6760, %v6831
    %v6833 = vpop.f32.mrf.mxu0
    %v6834 = vadd.f32 %v6760, %v6833
    %6835 = vmatmul.bf16.gmra.mxu0 %v6778
    %v6836 = vpop.f32.mrf.mxu0
    %v6837 = vadd.f32 %v6760, %v6836
    %v6838 = vpop.f32.mrf.mxu0
    %v6839 = vadd.f32 %v6760, %v6838
    %6840 = vmatmul.bf16.gmra.mxu0 %v6781
    %v6841 = vpop.f32.mrf.mxu0
    %v6842 = vadd.f32 %v6760, %v6841
    %v6843 = vpop.f32.mrf.mxu0
    %v6844 = vadd.f32 %v6760, %v6843
    %6845 = vmatmul.bf16.gmra.mxu0 %v6784
    %v6846 = vpop.f32.mrf.mxu0
    %v6847 = vadd.f32 %v6760, %v6846
    %v6848 = vpop.f32.mrf.mxu0
    %v6849 = vadd.f32 %v6760, %v6848
    %6850 = vmatmul.bf16.gmra.mxu0 %v6787
    %v6851 = vpop.f32.mrf.mxu0
    %v6852 = vadd.f32 %v6760, %v6851
    %v6853 = vpop.f32.mrf.mxu0
    %v6854 = vadd.f32 %v6760, %v6853
    %6855 = vmatmul.bf16.gmra.mxu0 %v6790
    %v6856 = vpop.f32.mrf.mxu0
    %v6857 = vadd.f32 %v6760, %v6856
    %v6858 = vpop.f32.mrf.mxu0
    %v6859 = vadd.f32 %v6760, %v6858
    %6860 = vmatmul.bf16.gmra.mxu0 %v6793
    %v6861 = vpop.f32.mrf.mxu0
    %v6862 = vadd.f32 %v6760, %v6861
    %v6863 = vpop.f32.mrf.mxu0
    %v6864 = vadd.f32 %v6760, %v6863
    %6865 = vmatmul.bf16.gmra.mxu0 %v6796
    %v6866 = vpop.f32.mrf.mxu0
    %v6867 = vadd.f32 %v6760, %v6866
    %v6868 = vpop.f32.mrf.mxu0
    %v6869 = vadd.f32 %v6760, %v6868
    %6870 = vmatmul.bf16.gmra.mxu0 %v6799
    %v6871 = vpop.f32.mrf.mxu0
    %v6872 = vadd.f32 %v6760, %v6871
    %v6873 = vpop.f32.mrf.mxu0
    %v6874 = vadd.f32 %v6760, %v6873
    %6875 = vmatmul.bf16.gmra.mxu0 %v6802
    %v6876 = vpop.f32.mrf.mxu0
    %v6877 = vadd.f32 %v6760, %v6876
    %v6878 = vpop.f32.mrf.mxu0
    %v6879 = vadd.f32 %v6760, %v6878
    %6880 = vmatmul.bf16.gmra.mxu0 %v6805
    %v6881 = vpop.f32.mrf.mxu0
    %v6882 = vadd.f32 %v6760, %v6881
    %v6883 = vpop.f32.mrf.mxu0
    %v6884 = vadd.f32 %v6760, %v6883
    %6885 = vmatmul.bf16.gmra.mxu0 %v6808
    %v6886 = vpop.f32.mrf.mxu0
    %v6887 = vadd.f32 %v6760, %v6886
    %v6888 = vpop.f32.mrf.mxu0
    %v6889 = vadd.f32 %v6760, %v6888
    %6890 = vmatmul.bf16.gmra.mxu0 %v6811
    %v6891 = vpop.f32.mrf.mxu0
    %v6892 = vadd.f32 %v6760, %v6891
    %v6893 = vpop.f32.mrf.mxu0
    %v6894 = vadd.f32 %v6760, %v6893
    %6895 = vmatmul.bf16.gmra.mxu0 %v6814
    %v6896 = vpop.f32.mrf.mxu0
    %v6897 = vadd.f32 %v6760, %v6896
    %v6898 = vpop.f32.mrf.mxu0
    %v6899 = vadd.f32 %v6760, %v6898
    %6900 = vmatmul.bf16.gmra.mxu0 %v6817
    %v6901 = vpop.f32.mrf.mxu0
    %v6902 = vadd.f32 %v6760, %v6901
    %v6903 = vpop.f32.mrf.mxu0
    %v6904 = vadd.f32 %v6760, %v6903
    %6905 = vmatmul.bf16.gmra.mxu0 %v6820
    %v6906 = vpop.f32.mrf.mxu0
    %v6907 = vadd.f32 %v6760, %v6906
    %v6908 = vpop.f32.mrf.mxu0
    %v6909 = vadd.f32 %v6760, %v6908
    %6910 = vdwg.mxu0
    %v6911 = vpack.c.bf16 %v6834, %v6832
    %v6912 = vpack.c.bf16 %v6839, %v6837
    %v6913 = vpack.c.bf16 %v6844, %v6842
    %v6914 = vpack.c.bf16 %v6849, %v6847
    %v6915 = vpack.c.bf16 %v6854, %v6852
    %v6916 = vpack.c.bf16 %v6859, %v6857
    %v6917 = vpack.c.bf16 %v6864, %v6862
    %v6918 = vpack.c.bf16 %v6869, %v6867
    %v6919 = vpack.c.bf16 %v6874, %v6872
    %v6920 = vpack.c.bf16 %v6879, %v6877
    %v6921 = vpack.c.bf16 %v6884, %v6882
    %v6922 = vpack.c.bf16 %v6889, %v6887
    %v6923 = vpack.c.bf16 %v6894, %v6892
    %v6924 = vpack.c.bf16 %v6899, %v6897
    %v6925 = vpack.c.bf16 %v6904, %v6902
    %v6926 = vpack.c.bf16 %v6909, %v6907
    %6943 = vrot.lane.b32.xlu0 %v6911, 96
    %v6944 = vpop.permute.xlu0 %6943
    %6945 = vrot.lane.b32.xlu0 %v6912, 96
    %v6946 = vpop.permute.xlu0 %6945
    %6947 = vrot.lane.b32.xlu0 %v6913, 96
    %v6948 = vpop.permute.xlu0 %6947
    %6949 = vrot.lane.b32.xlu0 %v6914, 96
    %v6950 = vpop.permute.xlu0 %6949
    %6951 = vrot.lane.b32.xlu0 %v6915, 96
    %v6952 = vpop.permute.xlu0 %6951
    %6953 = vrot.lane.b32.xlu0 %v6916, 96
    %v6954 = vpop.permute.xlu0 %6953
    %6955 = vrot.lane.b32.xlu0 %v6917, 96
    %v6956 = vpop.permute.xlu0 %6955
    %6957 = vrot.lane.b32.xlu0 %v6918, 96
    %v6958 = vpop.permute.xlu0 %6957
    %6959 = vrot.lane.b32.xlu0 %v6919, 96
    %v6960 = vpop.permute.xlu0 %6959
    %6961 = vrot.lane.b32.xlu0 %v6920, 96
    %v6962 = vpop.permute.xlu0 %6961
    %6963 = vrot.lane.b32.xlu0 %v6921, 96
    %v6964 = vpop.permute.xlu0 %6963
    %6965 = vrot.lane.b32.xlu0 %v6922, 96
    %v6966 = vpop.permute.xlu0 %6965
    %6967 = vrot.lane.b32.xlu0 %v6923, 96
    %v6968 = vpop.permute.xlu0 %6967
    %6969 = vrot.lane.b32.xlu0 %v6924, 96
    %v6970 = vpop.permute.xlu0 %6969
    %6971 = vrot.lane.b32.xlu0 %v6925, 96
    %v6972 = vpop.permute.xlu0 %6971
    %6973 = vrot.lane.b32.xlu0 %v6926, 96
    %v6974 = vpop.permute.xlu0 %6973
    %v6976 = vsel %vm404, %v6911, 0
    %v6979 = vsel %vm404, %v6912, 0
    %v6982 = vsel %vm404, %v6913, 0
    %v6985 = vsel %vm404, %v6914, 0
    %v6988 = vsel %vm404, %v6915, 0
    %v6991 = vsel %vm404, %v6916, 0
    %v6994 = vsel %vm404, %v6917, 0
    %v6997 = vsel %vm404, %v6918, 0
    %v7000 = vsel %vm404, %v6919, 0
    %v7003 = vsel %vm404, %v6920, 0
    %v7006 = vsel %vm404, %v6921, 0
    %v7009 = vsel %vm404, %v6922, 0
    %v7012 = vsel %vm404, %v6923, 0
    %v7015 = vsel %vm404, %v6924, 0
    %v7018 = vsel %vm404, %v6925, 0
    %v7021 = vsel %vm404, %v6926, 0
    %v7024 = vsel %vm404, %v6944, 0
    %v7027 = vsel %vm404, %v6946, 0
    %v7030 = vsel %vm404, %v6948, 0
    %v7033 = vsel %vm404, %v6950, 0
    %v7036 = vsel %vm404, %v6952, 0
    %v7039 = vsel %vm404, %v6954, 0
    %v7042 = vsel %vm404, %v6956, 0
    %v7045 = vsel %vm404, %v6958, 0
    %v7048 = vsel %vm404, %v6960, 0
    %v7051 = vsel %vm404, %v6962, 0
    %v7054 = vsel %vm404, %v6964, 0
    %v7057 = vsel %vm404, %v6966, 0
    %v7060 = vsel %vm404, %v6968, 0
    %v7063 = vsel %vm404, %v6970, 0
    %v7066 = vsel %vm404, %v6972, 0
    %v7069 = vsel %vm404, %v6974, 0
    %7071 = vmatpush.bf16.xpose.msra.mxu0 %v7045
    %7072 = vmatpush.bf16.xpose.msra.mxu0 %v7042
    %7073 = vmatpush.bf16.xpose.msra.mxu0 %v7039
    %7074 = vmatpush.bf16.xpose.msra.mxu0 %v7036
    %7075 = vmatpush.bf16.xpose.msra.mxu0 %v7033
    %7076 = vmatpush.bf16.xpose.msra.mxu0 %v7030
    %7077 = vmatpush.bf16.xpose.msra.mxu0 %v7027
    %7078 = vmatpush.bf16.xpose.msra.mxu0 %v7024
    %7079 = vmatmul.bf16.gmra.mxu0 %v6976
    %v7080 = vpop.f32.mrf.mxu0
    %v7081 = vadd.f32 0.0, %v7080
    %v7082 = vpop.f32.mrf.mxu0
    %v7083 = vadd.f32 0.0, %v7082
    %7084 = vmatmul.bf16.gmra.mxu0 %v6979
    %v7085 = vpop.f32.mrf.mxu0
    %v7086 = vadd.f32 0.0, %v7085
    %v7087 = vpop.f32.mrf.mxu0
    %v7088 = vadd.f32 0.0, %v7087
    %7089 = vmatmul.bf16.gmra.mxu0 %v6982
    %v7090 = vpop.f32.mrf.mxu0
    %v7091 = vadd.f32 0.0, %v7090
    %v7092 = vpop.f32.mrf.mxu0
    %v7093 = vadd.f32 0.0, %v7092
    %7094 = vmatmul.bf16.gmra.mxu0 %v6985
    %v7095 = vpop.f32.mrf.mxu0
    %v7096 = vadd.f32 0.0, %v7095
    %v7097 = vpop.f32.mrf.mxu0
    %v7098 = vadd.f32 0.0, %v7097
    %7099 = vmatmul.bf16.gmra.mxu0 %v6988
    %v7100 = vpop.f32.mrf.mxu0
    %v7101 = vadd.f32 0.0, %v7100
    %v7102 = vpop.f32.mrf.mxu0
    %v7103 = vadd.f32 0.0, %v7102
    %7104 = vmatmul.bf16.gmra.mxu0 %v6991
    %v7105 = vpop.f32.mrf.mxu0
    %v7106 = vadd.f32 0.0, %v7105
    %v7107 = vpop.f32.mrf.mxu0
    %v7108 = vadd.f32 0.0, %v7107
    %7109 = vmatmul.bf16.gmra.mxu0 %v6994
    %v7110 = vpop.f32.mrf.mxu0
    %v7111 = vadd.f32 0.0, %v7110
    %v7112 = vpop.f32.mrf.mxu0
    %v7113 = vadd.f32 0.0, %v7112
    %7114 = vmatmul.bf16.gmra.mxu0 %v6997
    %v7115 = vpop.f32.mrf.mxu0
    %v7116 = vadd.f32 0.0, %v7115
    %v7117 = vpop.f32.mrf.mxu0
    %v7118 = vadd.f32 0.0, %v7117
    %7119 = vmatmul.bf16.gmra.mxu0 %v7000
    %v7120 = vpop.f32.mrf.mxu0
    %v7121 = vadd.f32 0.0, %v7120
    %v7122 = vpop.f32.mrf.mxu0
    %v7123 = vadd.f32 0.0, %v7122
    %7124 = vmatmul.bf16.gmra.mxu0 %v7003
    %v7125 = vpop.f32.mrf.mxu0
    %v7126 = vadd.f32 0.0, %v7125
    %v7127 = vpop.f32.mrf.mxu0
    %v7128 = vadd.f32 0.0, %v7127
    %7129 = vmatmul.bf16.gmra.mxu0 %v7006
    %v7130 = vpop.f32.mrf.mxu0
    %v7131 = vadd.f32 0.0, %v7130
    %v7132 = vpop.f32.mrf.mxu0
    %v7133 = vadd.f32 0.0, %v7132
    %7134 = vmatmul.bf16.gmra.mxu0 %v7009
    %v7135 = vpop.f32.mrf.mxu0
    %v7136 = vadd.f32 0.0, %v7135
    %v7137 = vpop.f32.mrf.mxu0
    %v7138 = vadd.f32 0.0, %v7137
    %7139 = vmatmul.bf16.gmra.mxu0 %v7012
    %v7140 = vpop.f32.mrf.mxu0
    %v7141 = vadd.f32 0.0, %v7140
    %v7142 = vpop.f32.mrf.mxu0
    %v7143 = vadd.f32 0.0, %v7142
    %7144 = vmatmul.bf16.gmra.mxu0 %v7015
    %v7145 = vpop.f32.mrf.mxu0
    %v7146 = vadd.f32 0.0, %v7145
    %v7147 = vpop.f32.mrf.mxu0
    %v7148 = vadd.f32 0.0, %v7147
    %7149 = vmatmul.bf16.gmra.mxu0 %v7018
    %v7150 = vpop.f32.mrf.mxu0
    %v7151 = vadd.f32 0.0, %v7150
    %v7152 = vpop.f32.mrf.mxu0
    %v7153 = vadd.f32 0.0, %v7152
    %7154 = vmatmul.bf16.gmra.mxu0 %v7021
    %v7155 = vpop.f32.mrf.mxu0
    %v7156 = vadd.f32 0.0, %v7155
    %v7157 = vpop.f32.mrf.mxu0
    %v7158 = vadd.f32 0.0, %v7157
    %7159 = vdwg.mxu0
    %7160 = vmatpush.bf16.xpose.msra.mxu0 %v7069
    %7161 = vmatpush.bf16.xpose.msra.mxu0 %v7066
    %7162 = vmatpush.bf16.xpose.msra.mxu0 %v7063
    %7163 = vmatpush.bf16.xpose.msra.mxu0 %v7060
    %7164 = vmatpush.bf16.xpose.msra.mxu0 %v7057
    %7165 = vmatpush.bf16.xpose.msra.mxu0 %v7054
    %7166 = vmatpush.bf16.xpose.msra.mxu0 %v7051
    %7167 = vmatpush.bf16.xpose.msra.mxu0 %v7048
    %7168 = vmatmul.bf16.gmra.mxu0 %v6976
    %v7169 = vpop.f32.mrf.mxu0
    %v7170 = vadd.f32 0.0, %v7169
    %v7171 = vpop.f32.mrf.mxu0
    %v7172 = vadd.f32 0.0, %v7171
    %7173 = vmatmul.bf16.gmra.mxu0 %v6979
    %v7174 = vpop.f32.mrf.mxu0
    %v7175 = vadd.f32 0.0, %v7174
    %v7176 = vpop.f32.mrf.mxu0
    %v7177 = vadd.f32 0.0, %v7176
    %7178 = vmatmul.bf16.gmra.mxu0 %v6982
    %v7179 = vpop.f32.mrf.mxu0
    %v7180 = vadd.f32 0.0, %v7179
    %v7181 = vpop.f32.mrf.mxu0
    %v7182 = vadd.f32 0.0, %v7181
    %7183 = vmatmul.bf16.gmra.mxu0 %v6985
    %v7184 = vpop.f32.mrf.mxu0
    %v7185 = vadd.f32 0.0, %v7184
    %v7186 = vpop.f32.mrf.mxu0
    %v7187 = vadd.f32 0.0, %v7186
    %7188 = vmatmul.bf16.gmra.mxu0 %v6988
    %v7189 = vpop.f32.mrf.mxu0
    %v7190 = vadd.f32 0.0, %v7189
    %v7191 = vpop.f32.mrf.mxu0
    %v7192 = vadd.f32 0.0, %v7191
    %7193 = vmatmul.bf16.gmra.mxu0 %v6991
    %v7194 = vpop.f32.mrf.mxu0
    %v7195 = vadd.f32 0.0, %v7194
    %v7196 = vpop.f32.mrf.mxu0
    %v7197 = vadd.f32 0.0, %v7196
    %7198 = vmatmul.bf16.gmra.mxu0 %v6994
    %v7199 = vpop.f32.mrf.mxu0
    %v7200 = vadd.f32 0.0, %v7199
    %v7201 = vpop.f32.mrf.mxu0
    %v7202 = vadd.f32 0.0, %v7201
    %7203 = vmatmul.bf16.gmra.mxu0 %v6997
    %v7204 = vpop.f32.mrf.mxu0
    %v7205 = vadd.f32 0.0, %v7204
    %v7206 = vpop.f32.mrf.mxu0
    %v7207 = vadd.f32 0.0, %v7206
    %7208 = vmatmul.bf16.gmra.mxu0 %v7000
    %v7209 = vpop.f32.mrf.mxu0
    %v7210 = vadd.f32 0.0, %v7209
    %v7211 = vpop.f32.mrf.mxu0
    %v7212 = vadd.f32 0.0, %v7211
    %7213 = vmatmul.bf16.gmra.mxu0 %v7003
    %v7214 = vpop.f32.mrf.mxu0
    %v7215 = vadd.f32 0.0, %v7214
    %v7216 = vpop.f32.mrf.mxu0
    %v7217 = vadd.f32 0.0, %v7216
    %7218 = vmatmul.bf16.gmra.mxu0 %v7006
    %v7219 = vpop.f32.mrf.mxu0
    %v7220 = vadd.f32 0.0, %v7219
    %v7221 = vpop.f32.mrf.mxu0
    %v7222 = vadd.f32 0.0, %v7221
    %7223 = vmatmul.bf16.gmra.mxu0 %v7009
    %v7224 = vpop.f32.mrf.mxu0
    %v7225 = vadd.f32 0.0, %v7224
    %v7226 = vpop.f32.mrf.mxu0
    %v7227 = vadd.f32 0.0, %v7226
    %7228 = vmatmul.bf16.gmra.mxu0 %v7012
    %v7229 = vpop.f32.mrf.mxu0
    %v7230 = vadd.f32 0.0, %v7229
    %v7231 = vpop.f32.mrf.mxu0
    %v7232 = vadd.f32 0.0, %v7231
    %7233 = vmatmul.bf16.gmra.mxu0 %v7015
    %v7234 = vpop.f32.mrf.mxu0
    %v7235 = vadd.f32 0.0, %v7234
    %v7236 = vpop.f32.mrf.mxu0
    %v7237 = vadd.f32 0.0, %v7236
    %7238 = vmatmul.bf16.gmra.mxu0 %v7018
    %v7239 = vpop.f32.mrf.mxu0
    %v7240 = vadd.f32 0.0, %v7239
    %v7241 = vpop.f32.mrf.mxu0
    %v7242 = vadd.f32 0.0, %v7241
    %7243 = vmatmul.bf16.gmra.mxu0 %v7021
    %v7244 = vpop.f32.mrf.mxu0
    %v7245 = vadd.f32 0.0, %v7244
    %v7246 = vpop.f32.mrf.mxu0
    %v7247 = vadd.f32 0.0, %v7246
    %7248 = vdwg.mxu0
    %v7249 = vmul.f32 %v7081, 0.17677669
    %v7250 = vmul.f32 %v7170, 0.17677669
    %v7251 = vmul.f32 %v7083, 0.17677669
    %v7252 = vmul.f32 %v7172, 0.17677669
    %v7253 = vmul.f32 %v7086, 0.17677669
    %v7254 = vmul.f32 %v7175, 0.17677669
    %v7255 = vmul.f32 %v7088, 0.17677669
    %v7256 = vmul.f32 %v7177, 0.17677669
    %v7257 = vmul.f32 %v7091, 0.17677669
    %v7258 = vmul.f32 %v7180, 0.17677669
    %v7259 = vmul.f32 %v7093, 0.17677669
    %v7260 = vmul.f32 %v7182, 0.17677669
    %v7261 = vmul.f32 %v7096, 0.17677669
    %v7262 = vmul.f32 %v7185, 0.17677669
    %v7263 = vmul.f32 %v7098, 0.17677669
    %v7264 = vmul.f32 %v7187, 0.17677669
    %v7265 = vmul.f32 %v7101, 0.17677669
    %v7266 = vmul.f32 %v7190, 0.17677669
    %v7267 = vmul.f32 %v7103, 0.17677669
    %v7268 = vmul.f32 %v7192, 0.17677669
    %v7269 = vmul.f32 %v7106, 0.17677669
    %v7270 = vmul.f32 %v7195, 0.17677669
    %v7271 = vmul.f32 %v7108, 0.17677669
    %v7272 = vmul.f32 %v7197, 0.17677669
    %v7273 = vmul.f32 %v7111, 0.17677669
    %v7274 = vmul.f32 %v7200, 0.17677669
    %v7275 = vmul.f32 %v7113, 0.17677669
    %v7276 = vmul.f32 %v7202, 0.17677669
    %v7277 = vmul.f32 %v7116, 0.17677669
    %v7278 = vmul.f32 %v7205, 0.17677669
    %v7279 = vmul.f32 %v7118, 0.17677669
    %v7280 = vmul.f32 %v7207, 0.17677669
    %v7281 = vmul.f32 %v7121, 0.17677669
    %v7282 = vmul.f32 %v7210, 0.17677669
    %v7283 = vmul.f32 %v7123, 0.17677669
    %v7284 = vmul.f32 %v7212, 0.17677669
    %v7285 = vmul.f32 %v7126, 0.17677669
    %v7286 = vmul.f32 %v7215, 0.17677669
    %v7287 = vmul.f32 %v7128, 0.17677669
    %v7288 = vmul.f32 %v7217, 0.17677669
    %v7289 = vmul.f32 %v7131, 0.17677669
    %v7290 = vmul.f32 %v7220, 0.17677669
    %v7291 = vmul.f32 %v7133, 0.17677669
    %v7292 = vmul.f32 %v7222, 0.17677669
    %v7293 = vmul.f32 %v7136, 0.17677669
    %v7294 = vmul.f32 %v7225, 0.17677669
    %v7295 = vmul.f32 %v7138, 0.17677669
    %v7296 = vmul.f32 %v7227, 0.17677669
    %v7297 = vmul.f32 %v7141, 0.17677669
    %v7298 = vmul.f32 %v7230, 0.17677669
    %v7299 = vmul.f32 %v7143, 0.17677669
    %v7300 = vmul.f32 %v7232, 0.17677669
    %v7301 = vmul.f32 %v7146, 0.17677669
    %v7302 = vmul.f32 %v7235, 0.17677669
    %v7303 = vmul.f32 %v7148, 0.17677669
    %v7304 = vmul.f32 %v7237, 0.17677669
    %v7305 = vmul.f32 %v7151, 0.17677669
    %v7306 = vmul.f32 %v7240, 0.17677669
    %v7307 = vmul.f32 %v7153, 0.17677669
    %v7308 = vmul.f32 %v7242, 0.17677669
    %v7309 = vmul.f32 %v7156, 0.17677669
    %v7310 = vmul.f32 %v7245, 0.17677669
    %v7311 = vmul.f32 %v7158, 0.17677669
    %v7312 = vmul.f32 %v7247, 0.17677669
    %v7313 = vadd.f32 %v7249, %v49
    %v7314 = vadd.f32 %v7250, %v50
    %v7315 = vadd.f32 %v7251, %v51
    %v7316 = vadd.f32 %v7252, %v52
    %v7317 = vadd.f32 %v7253, %v53
    %v7318 = vadd.f32 %v7254, %v54
    %v7319 = vadd.f32 %v7255, %v55
    %v7320 = vadd.f32 %v7256, %v56
    %v7321 = vadd.f32 %v7257, %v57
    %v7322 = vadd.f32 %v7258, %v58
    %v7323 = vadd.f32 %v7259, %v59
    %v7324 = vadd.f32 %v7260, %v60
    %v7325 = vadd.f32 %v7261, %v61
    %v7326 = vadd.f32 %v7262, %v62
    %v7327 = vadd.f32 %v7263, %v63
    %v7328 = vadd.f32 %v7264, %v64
    %v7329 = vadd.f32 %v7265, %v65
    %v7330 = vadd.f32 %v7266, %v66
    %v7331 = vadd.f32 %v7267, %v67
    %v7332 = vadd.f32 %v7268, %v68
    %v7333 = vadd.f32 %v7269, %v69
    %v7334 = vadd.f32 %v7270, %v70
    %v7335 = vadd.f32 %v7271, %v71
    %v7336 = vadd.f32 %v7272, %v72
    %v7337 = vadd.f32 %v7273, %v73
    %v7338 = vadd.f32 %v7274, %v74
    %v7339 = vadd.f32 %v7275, %v75
    %v7340 = vadd.f32 %v7276, %v76
    %v7341 = vadd.f32 %v7277, %v77
    %v7342 = vadd.f32 %v7278, %v78
    %v7343 = vadd.f32 %v7279, %v79
    %v7344 = vadd.f32 %v7280, %v80
    %v7345 = vadd.f32 %v7281, %v81
    %v7346 = vadd.f32 %v7282, %v82
    %v7347 = vadd.f32 %v7283, %v83
    %v7348 = vadd.f32 %v7284, %v84
    %v7349 = vadd.f32 %v7285, %v85
    %v7350 = vadd.f32 %v7286, %v86
    %v7351 = vadd.f32 %v7287, %v87
    %v7352 = vadd.f32 %v7288, %v88
    %v7353 = vadd.f32 %v7289, %v89
    %v7354 = vadd.f32 %v7290, %v90
    %v7355 = vadd.f32 %v7291, %v91
    %v7356 = vadd.f32 %v7292, %v92
    %v7357 = vadd.f32 %v7293, %v93
    %v7358 = vadd.f32 %v7294, %v94
    %v7359 = vadd.f32 %v7295, %v95
    %v7360 = vadd.f32 %v7296, %v96
    %v7361 = vadd.f32 %v7297, %v97
    %v7362 = vadd.f32 %v7298, %v98
    %v7363 = vadd.f32 %v7299, %v99
    %v7364 = vadd.f32 %v7300, %v100
    %v7365 = vadd.f32 %v7301, %v101
    %v7366 = vadd.f32 %v7302, %v102
    %v7367 = vadd.f32 %v7303, %v103
    %v7368 = vadd.f32 %v7304, %v104
    %v7369 = vadd.f32 %v7305, %v105
    %v7370 = vadd.f32 %v7306, %v106
    %v7371 = vadd.f32 %v7307, %v107
    %v7372 = vadd.f32 %v7308, %v108
    %v7373 = vadd.f32 %v7309, %v109
    %v7374 = vadd.f32 %v7310, %v110
    %v7375 = vadd.f32 %v7311, %v111
    %v7376 = vadd.f32 %v7312, %v112
    %v7377 = vmax.f32 %v7313, %v7314
    %7378 = vmax.xlane.f32.xlu0 %v7377
    %v7379 = vpop.xlane.xlu0 %7378
    %v7380 = vmax.f32 %v7315, %v7316
    %7381 = vmax.xlane.f32.xlu0 %v7380
    %v7382 = vpop.xlane.xlu0 %7381
    %v7383 = vmax.f32 %v7317, %v7318
    %7384 = vmax.xlane.f32.xlu0 %v7383
    %v7385 = vpop.xlane.xlu0 %7384
    %v7386 = vmax.f32 %v7319, %v7320
    %7387 = vmax.xlane.f32.xlu0 %v7386
    %v7388 = vpop.xlane.xlu0 %7387
    %v7389 = vmax.f32 %v7321, %v7322
    %7390 = vmax.xlane.f32.xlu0 %v7389
    %v7391 = vpop.xlane.xlu0 %7390
    %v7392 = vmax.f32 %v7323, %v7324
    %7393 = vmax.xlane.f32.xlu0 %v7392
    %v7394 = vpop.xlane.xlu0 %7393
    %v7395 = vmax.f32 %v7325, %v7326
    %7396 = vmax.xlane.f32.xlu0 %v7395
    %v7397 = vpop.xlane.xlu0 %7396
    %v7398 = vmax.f32 %v7327, %v7328
    %7399 = vmax.xlane.f32.xlu0 %v7398
    %v7400 = vpop.xlane.xlu0 %7399
    %v7401 = vmax.f32 %v7329, %v7330
    %7402 = vmax.xlane.f32.xlu0 %v7401
    %v7403 = vpop.xlane.xlu0 %7402
    %v7404 = vmax.f32 %v7331, %v7332
    %7405 = vmax.xlane.f32.xlu0 %v7404
    %v7406 = vpop.xlane.xlu0 %7405
    %v7407 = vmax.f32 %v7333, %v7334
    %7408 = vmax.xlane.f32.xlu0 %v7407
    %v7409 = vpop.xlane.xlu0 %7408
    %v7410 = vmax.f32 %v7335, %v7336
    %7411 = vmax.xlane.f32.xlu0 %v7410
    %v7412 = vpop.xlane.xlu0 %7411
    %v7413 = vmax.f32 %v7337, %v7338
    %7414 = vmax.xlane.f32.xlu0 %v7413
    %v7415 = vpop.xlane.xlu0 %7414
    %v7416 = vmax.f32 %v7339, %v7340
    %7417 = vmax.xlane.f32.xlu0 %v7416
    %v7418 = vpop.xlane.xlu0 %7417
    %v7419 = vmax.f32 %v7341, %v7342
    %7420 = vmax.xlane.f32.xlu0 %v7419
    %v7421 = vpop.xlane.xlu0 %7420
    %v7422 = vmax.f32 %v7343, %v7344
    %7423 = vmax.xlane.f32.xlu0 %v7422
    %v7424 = vpop.xlane.xlu0 %7423
    %v7425 = vmax.f32 %v7345, %v7346
    %7426 = vmax.xlane.f32.xlu0 %v7425
    %v7427 = vpop.xlane.xlu0 %7426
    %v7428 = vmax.f32 %v7347, %v7348
    %7429 = vmax.xlane.f32.xlu0 %v7428
    %v7430 = vpop.xlane.xlu0 %7429
    %v7431 = vmax.f32 %v7349, %v7350
    %7432 = vmax.xlane.f32.xlu0 %v7431
    %v7433 = vpop.xlane.xlu0 %7432
    %v7434 = vmax.f32 %v7351, %v7352
    %7435 = vmax.xlane.f32.xlu0 %v7434
    %v7436 = vpop.xlane.xlu0 %7435
    %v7437 = vmax.f32 %v7353, %v7354
    %7438 = vmax.xlane.f32.xlu0 %v7437
    %v7439 = vpop.xlane.xlu0 %7438
    %v7440 = vmax.f32 %v7355, %v7356
    %7441 = vmax.xlane.f32.xlu0 %v7440
    %v7442 = vpop.xlane.xlu0 %7441
    %v7443 = vmax.f32 %v7357, %v7358
    %7444 = vmax.xlane.f32.xlu0 %v7443
    %v7445 = vpop.xlane.xlu0 %7444
    %v7446 = vmax.f32 %v7359, %v7360
    %7447 = vmax.xlane.f32.xlu0 %v7446
    %v7448 = vpop.xlane.xlu0 %7447
    %v7449 = vmax.f32 %v7361, %v7362
    %7450 = vmax.xlane.f32.xlu0 %v7449
    %v7451 = vpop.xlane.xlu0 %7450
    %v7452 = vmax.f32 %v7363, %v7364
    %7453 = vmax.xlane.f32.xlu0 %v7452
    %v7454 = vpop.xlane.xlu0 %7453
    %v7455 = vmax.f32 %v7365, %v7366
    %7456 = vmax.xlane.f32.xlu0 %v7455
    %v7457 = vpop.xlane.xlu0 %7456
    %v7458 = vmax.f32 %v7367, %v7368
    %7459 = vmax.xlane.f32.xlu0 %v7458
    %v7460 = vpop.xlane.xlu0 %7459
    %v7461 = vmax.f32 %v7369, %v7370
    %7462 = vmax.xlane.f32.xlu0 %v7461
    %v7463 = vpop.xlane.xlu0 %7462
    %v7464 = vmax.f32 %v7371, %v7372
    %7465 = vmax.xlane.f32.xlu0 %v7464
    %v7466 = vpop.xlane.xlu0 %7465
    %v7467 = vmax.f32 %v7373, %v7374
    %7468 = vmax.xlane.f32.xlu0 %v7467
    %v7469 = vpop.xlane.xlu0 %7468
    %v7470 = vmax.f32 %v7375, %v7376
    %7471 = vmax.xlane.f32.xlu0 %v7470
    %v7472 = vpop.xlane.xlu0 %7471
    %v7473 = vsub.f32 %v7313, %v7379
    %v7474 = vsub.f32 %v7314, %v7379
    %v7475 = vsub.f32 %v7315, %v7382
    %v7476 = vsub.f32 %v7316, %v7382
    %v7477 = vsub.f32 %v7317, %v7385
    %v7478 = vsub.f32 %v7318, %v7385
    %v7479 = vsub.f32 %v7319, %v7388
    %v7480 = vsub.f32 %v7320, %v7388
    %v7481 = vsub.f32 %v7321, %v7391
    %v7482 = vsub.f32 %v7322, %v7391
    %v7483 = vsub.f32 %v7323, %v7394
    %v7484 = vsub.f32 %v7324, %v7394
    %v7485 = vsub.f32 %v7325, %v7397
    %v7486 = vsub.f32 %v7326, %v7397
    %v7487 = vsub.f32 %v7327, %v7400
    %v7488 = vsub.f32 %v7328, %v7400
    %v7489 = vsub.f32 %v7329, %v7403
    %v7490 = vsub.f32 %v7330, %v7403
    %v7491 = vsub.f32 %v7331, %v7406
    %v7492 = vsub.f32 %v7332, %v7406
    %v7493 = vsub.f32 %v7333, %v7409
    %v7494 = vsub.f32 %v7334, %v7409
    %v7495 = vsub.f32 %v7335, %v7412
    %v7496 = vsub.f32 %v7336, %v7412
    %v7497 = vsub.f32 %v7337, %v7415
    %v7498 = vsub.f32 %v7338, %v7415
    %v7499 = vsub.f32 %v7339, %v7418
    %v7500 = vsub.f32 %v7340, %v7418
    %v7501 = vsub.f32 %v7341, %v7421
    %v7502 = vsub.f32 %v7342, %v7421
    %v7503 = vsub.f32 %v7343, %v7424
    %v7504 = vsub.f32 %v7344, %v7424
    %v7505 = vsub.f32 %v7345, %v7427
    %v7506 = vsub.f32 %v7346, %v7427
    %v7507 = vsub.f32 %v7347, %v7430
    %v7508 = vsub.f32 %v7348, %v7430
    %v7509 = vsub.f32 %v7349, %v7433
    %v7510 = vsub.f32 %v7350, %v7433
    %v7511 = vsub.f32 %v7351, %v7436
    %v7512 = vsub.f32 %v7352, %v7436
    %v7513 = vsub.f32 %v7353, %v7439
    %v7514 = vsub.f32 %v7354, %v7439
    %v7515 = vsub.f32 %v7355, %v7442
    %v7516 = vsub.f32 %v7356, %v7442
    %v7517 = vsub.f32 %v7357, %v7445
    %v7518 = vsub.f32 %v7358, %v7445
    %v7519 = vsub.f32 %v7359, %v7448
    %v7520 = vsub.f32 %v7360, %v7448
    %v7521 = vsub.f32 %v7361, %v7451
    %v7522 = vsub.f32 %v7362, %v7451
    %v7523 = vsub.f32 %v7363, %v7454
    %v7524 = vsub.f32 %v7364, %v7454
    %v7525 = vsub.f32 %v7365, %v7457
    %v7526 = vsub.f32 %v7366, %v7457
    %v7527 = vsub.f32 %v7367, %v7460
    %v7528 = vsub.f32 %v7368, %v7460
    %v7529 = vsub.f32 %v7369, %v7463
    %v7530 = vsub.f32 %v7370, %v7463
    %v7531 = vsub.f32 %v7371, %v7466
    %v7532 = vsub.f32 %v7372, %v7466
    %v7533 = vsub.f32 %v7373, %v7469
    %v7534 = vsub.f32 %v7374, %v7469
    %v7535 = vsub.f32 %v7375, %v7472
    %v7536 = vsub.f32 %v7376, %v7472
    %v7537 = vmul.f32 %v7473, 1.442695
    %v7538 = vpow.pop %v7537
    %v7539 = vmul.f32 %v7474, 1.442695
    %v7540 = vpow.pop %v7539
    %v7541 = vmul.f32 %v7475, 1.442695
    %v7542 = vpow.pop %v7541
    %v7543 = vmul.f32 %v7476, 1.442695
    %v7544 = vpow.pop %v7543
    %v7545 = vmul.f32 %v7477, 1.442695
    %v7546 = vpow.pop %v7545
    %v7547 = vmul.f32 %v7478, 1.442695
    %v7548 = vpow.pop %v7547
    %v7549 = vmul.f32 %v7479, 1.442695
    %v7550 = vpow.pop %v7549
    %v7551 = vmul.f32 %v7480, 1.442695
    %v7552 = vpow.pop %v7551
    %v7553 = vmul.f32 %v7481, 1.442695
    %v7554 = vpow.pop %v7553
    %v7555 = vmul.f32 %v7482, 1.442695
    %v7556 = vpow.pop %v7555
    %v7557 = vmul.f32 %v7483, 1.442695
    %v7558 = vpow.pop %v7557
    %v7559 = vmul.f32 %v7484, 1.442695
    %v7560 = vpow.pop %v7559
    %v7561 = vmul.f32 %v7485, 1.442695
    %v7562 = vpow.pop %v7561
    %v7563 = vmul.f32 %v7486, 1.442695
    %v7564 = vpow.pop %v7563
    %v7565 = vmul.f32 %v7487, 1.442695
    %v7566 = vpow.pop %v7565
    %v7567 = vmul.f32 %v7488, 1.442695
    %v7568 = vpow.pop %v7567
    %v7569 = vmul.f32 %v7489, 1.442695
    %v7570 = vpow.pop %v7569
    %v7571 = vmul.f32 %v7490, 1.442695
    %v7572 = vpow.pop %v7571
    %v7573 = vmul.f32 %v7491, 1.442695
    %v7574 = vpow.pop %v7573
    %v7575 = vmul.f32 %v7492, 1.442695
    %v7576 = vpow.pop %v7575
    %v7577 = vmul.f32 %v7493, 1.442695
    %v7578 = vpow.pop %v7577
    %v7579 = vmul.f32 %v7494, 1.442695
    %v7580 = vpow.pop %v7579
    %v7581 = vmul.f32 %v7495, 1.442695
    %v7582 = vpow.pop %v7581
    %v7583 = vmul.f32 %v7496, 1.442695
    %v7584 = vpow.pop %v7583
    %v7585 = vmul.f32 %v7497, 1.442695
    %v7586 = vpow.pop %v7585
    %v7587 = vmul.f32 %v7498, 1.442695
    %v7588 = vpow.pop %v7587
    %v7589 = vmul.f32 %v7499, 1.442695
    %v7590 = vpow.pop %v7589
    %v7591 = vmul.f32 %v7500, 1.442695
    %v7592 = vpow.pop %v7591
    %v7593 = vmul.f32 %v7501, 1.442695
    %v7594 = vpow.pop %v7593
    %v7595 = vmul.f32 %v7502, 1.442695
    %v7596 = vpow.pop %v7595
    %v7597 = vmul.f32 %v7503, 1.442695
    %v7598 = vpow.pop %v7597
    %v7599 = vmul.f32 %v7504, 1.442695
    %v7600 = vpow.pop %v7599
    %v7601 = vmul.f32 %v7505, 1.442695
    %v7602 = vpow.pop %v7601
    %v7603 = vmul.f32 %v7506, 1.442695
    %v7604 = vpow.pop %v7603
    %v7605 = vmul.f32 %v7507, 1.442695
    %v7606 = vpow.pop %v7605
    %v7607 = vmul.f32 %v7508, 1.442695
    %v7608 = vpow.pop %v7607
    %v7609 = vmul.f32 %v7509, 1.442695
    %v7610 = vpow.pop %v7609
    %v7611 = vmul.f32 %v7510, 1.442695
    %v7612 = vpow.pop %v7611
    %v7613 = vmul.f32 %v7511, 1.442695
    %v7614 = vpow.pop %v7613
    %v7615 = vmul.f32 %v7512, 1.442695
    %v7616 = vpow.pop %v7615
    %v7617 = vmul.f32 %v7513, 1.442695
    %v7618 = vpow.pop %v7617
    %v7619 = vmul.f32 %v7514, 1.442695
    %v7620 = vpow.pop %v7619
    %v7621 = vmul.f32 %v7515, 1.442695
    %v7622 = vpow.pop %v7621
    %v7623 = vmul.f32 %v7516, 1.442695
    %v7624 = vpow.pop %v7623
    %v7625 = vmul.f32 %v7517, 1.442695
    %v7626 = vpow.pop %v7625
    %v7627 = vmul.f32 %v7518, 1.442695
    %v7628 = vpow.pop %v7627
    %v7629 = vmul.f32 %v7519, 1.442695
    %v7630 = vpow.pop %v7629
    %v7631 = vmul.f32 %v7520, 1.442695
    %v7632 = vpow.pop %v7631
    %v7633 = vmul.f32 %v7521, 1.442695
    %v7634 = vpow.pop %v7633
    %v7635 = vmul.f32 %v7522, 1.442695
    %v7636 = vpow.pop %v7635
    %v7637 = vmul.f32 %v7523, 1.442695
    %v7638 = vpow.pop %v7637
    %v7639 = vmul.f32 %v7524, 1.442695
    %v7640 = vpow.pop %v7639
    %v7641 = vmul.f32 %v7525, 1.442695
    %v7642 = vpow.pop %v7641
    %v7643 = vmul.f32 %v7526, 1.442695
    %v7644 = vpow.pop %v7643
    %v7645 = vmul.f32 %v7527, 1.442695
    %v7646 = vpow.pop %v7645
    %v7647 = vmul.f32 %v7528, 1.442695
    %v7648 = vpow.pop %v7647
    %v7649 = vmul.f32 %v7529, 1.442695
    %v7650 = vpow.pop %v7649
    %v7651 = vmul.f32 %v7530, 1.442695
    %v7652 = vpow.pop %v7651
    %v7653 = vmul.f32 %v7531, 1.442695
    %v7654 = vpow.pop %v7653
    %v7655 = vmul.f32 %v7532, 1.442695
    %v7656 = vpow.pop %v7655
    %v7657 = vmul.f32 %v7533, 1.442695
    %v7658 = vpow.pop %v7657
    %v7659 = vmul.f32 %v7534, 1.442695
    %v7660 = vpow.pop %v7659
    %v7661 = vmul.f32 %v7535, 1.442695
    %v7662 = vpow.pop %v7661
    %v7663 = vmul.f32 %v7536, 1.442695
    %v7664 = vpow.pop %v7663
    %v7665 = vadd.f32 %v7538, %v7540
    %7666 = vadd.xlane.f32.xlu0 %v7665
    %v7667 = vpop.xlane.xlu0 %7666
    %v7668 = vadd.f32 %v7542, %v7544
    %7669 = vadd.xlane.f32.xlu0 %v7668
    %v7670 = vpop.xlane.xlu0 %7669
    %v7671 = vadd.f32 %v7546, %v7548
    %7672 = vadd.xlane.f32.xlu0 %v7671
    %v7673 = vpop.xlane.xlu0 %7672
    %v7674 = vadd.f32 %v7550, %v7552
    %7675 = vadd.xlane.f32.xlu0 %v7674
    %v7676 = vpop.xlane.xlu0 %7675
    %v7677 = vadd.f32 %v7554, %v7556
    %7678 = vadd.xlane.f32.xlu0 %v7677
    %v7679 = vpop.xlane.xlu0 %7678
    %v7680 = vadd.f32 %v7558, %v7560
    %7681 = vadd.xlane.f32.xlu0 %v7680
    %v7682 = vpop.xlane.xlu0 %7681
    %v7683 = vadd.f32 %v7562, %v7564
    %7684 = vadd.xlane.f32.xlu0 %v7683
    %v7685 = vpop.xlane.xlu0 %7684
    %v7686 = vadd.f32 %v7566, %v7568
    %7687 = vadd.xlane.f32.xlu0 %v7686
    %v7688 = vpop.xlane.xlu0 %7687
    %v7689 = vadd.f32 %v7570, %v7572
    %7690 = vadd.xlane.f32.xlu0 %v7689
    %v7691 = vpop.xlane.xlu0 %7690
    %v7692 = vadd.f32 %v7574, %v7576
    %7693 = vadd.xlane.f32.xlu0 %v7692
    %v7694 = vpop.xlane.xlu0 %7693
    %v7695 = vadd.f32 %v7578, %v7580
    %7696 = vadd.xlane.f32.xlu0 %v7695
    %v7697 = vpop.xlane.xlu0 %7696
    %v7698 = vadd.f32 %v7582, %v7584
    %7699 = vadd.xlane.f32.xlu0 %v7698
    %v7700 = vpop.xlane.xlu0 %7699
    %v7701 = vadd.f32 %v7586, %v7588
    %7702 = vadd.xlane.f32.xlu0 %v7701
    %v7703 = vpop.xlane.xlu0 %7702
    %v7704 = vadd.f32 %v7590, %v7592
    %7705 = vadd.xlane.f32.xlu0 %v7704
    %v7706 = vpop.xlane.xlu0 %7705
    %v7707 = vadd.f32 %v7594, %v7596
    %7708 = vadd.xlane.f32.xlu0 %v7707
    %v7709 = vpop.xlane.xlu0 %7708
    %v7710 = vadd.f32 %v7598, %v7600
    %7711 = vadd.xlane.f32.xlu0 %v7710
    %v7712 = vpop.xlane.xlu0 %7711
    %v7713 = vadd.f32 %v7602, %v7604
    %7714 = vadd.xlane.f32.xlu0 %v7713
    %v7715 = vpop.xlane.xlu0 %7714
    %v7716 = vadd.f32 %v7606, %v7608
    %7717 = vadd.xlane.f32.xlu0 %v7716
    %v7718 = vpop.xlane.xlu0 %7717
    %v7719 = vadd.f32 %v7610, %v7612
    %7720 = vadd.xlane.f32.xlu0 %v7719
    %v7721 = vpop.xlane.xlu0 %7720
    %v7722 = vadd.f32 %v7614, %v7616
    %7723 = vadd.xlane.f32.xlu0 %v7722
    %v7724 = vpop.xlane.xlu0 %7723
    %v7725 = vadd.f32 %v7618, %v7620
    %7726 = vadd.xlane.f32.xlu0 %v7725
    %v7727 = vpop.xlane.xlu0 %7726
    %v7728 = vadd.f32 %v7622, %v7624
    %7729 = vadd.xlane.f32.xlu0 %v7728
    %v7730 = vpop.xlane.xlu0 %7729
    %v7731 = vadd.f32 %v7626, %v7628
    %7732 = vadd.xlane.f32.xlu0 %v7731
    %v7733 = vpop.xlane.xlu0 %7732
    %v7734 = vadd.f32 %v7630, %v7632
    %7735 = vadd.xlane.f32.xlu0 %v7734
    %v7736 = vpop.xlane.xlu0 %7735
    %v7737 = vadd.f32 %v7634, %v7636
    %7738 = vadd.xlane.f32.xlu0 %v7737
    %v7739 = vpop.xlane.xlu0 %7738
    %v7740 = vadd.f32 %v7638, %v7640
    %7741 = vadd.xlane.f32.xlu0 %v7740
    %v7742 = vpop.xlane.xlu0 %7741
    %v7743 = vadd.f32 %v7642, %v7644
    %7744 = vadd.xlane.f32.xlu0 %v7743
    %v7745 = vpop.xlane.xlu0 %7744
    %v7746 = vadd.f32 %v7646, %v7648
    %7747 = vadd.xlane.f32.xlu0 %v7746
    %v7748 = vpop.xlane.xlu0 %7747
    %v7749 = vadd.f32 %v7650, %v7652
    %7750 = vadd.xlane.f32.xlu0 %v7749
    %v7751 = vpop.xlane.xlu0 %7750
    %v7752 = vadd.f32 %v7654, %v7656
    %7753 = vadd.xlane.f32.xlu0 %v7752
    %v7754 = vpop.xlane.xlu0 %7753
    %v7755 = vadd.f32 %v7658, %v7660
    %7756 = vadd.xlane.f32.xlu0 %v7755
    %v7757 = vpop.xlane.xlu0 %7756
    %v7758 = vadd.f32 %v7662, %v7664
    %7759 = vadd.xlane.f32.xlu0 %v7758
    %v7760 = vpop.xlane.xlu0 %7759
    %v7761 = vrcp.pop %v7667
    %v7762 = vrcp.pop %v7670
    %v7763 = vrcp.pop %v7673
    %v7764 = vrcp.pop %v7676
    %v7765 = vrcp.pop %v7679
    %v7766 = vrcp.pop %v7682
    %v7767 = vrcp.pop %v7685
    %v7768 = vrcp.pop %v7688
    %v7769 = vrcp.pop %v7691
    %v7770 = vrcp.pop %v7694
    %v7771 = vrcp.pop %v7697
    %v7772 = vrcp.pop %v7700
    %v7773 = vrcp.pop %v7703
    %v7774 = vrcp.pop %v7706
    %v7775 = vrcp.pop %v7709
    %v7776 = vrcp.pop %v7712
    %v7777 = vrcp.pop %v7715
    %v7778 = vrcp.pop %v7718
    %v7779 = vrcp.pop %v7721
    %v7780 = vrcp.pop %v7724
    %v7781 = vrcp.pop %v7727
    %v7782 = vrcp.pop %v7730
    %v7783 = vrcp.pop %v7733
    %v7784 = vrcp.pop %v7736
    %v7785 = vrcp.pop %v7739
    %v7786 = vrcp.pop %v7742
    %v7787 = vrcp.pop %v7745
    %v7788 = vrcp.pop %v7748
    %v7789 = vrcp.pop %v7751
    %v7790 = vrcp.pop %v7754
    %v7791 = vrcp.pop %v7757
    %v7792 = vrcp.pop %v7760
    %v7793 = vmul.f32 %v7538, %v7761
    %v7794 = vmul.f32 %v7540, %v7761
    %v7795 = vmul.f32 %v7542, %v7762
    %v7796 = vmul.f32 %v7544, %v7762
    %v7797 = vmul.f32 %v7546, %v7763
    %v7798 = vmul.f32 %v7548, %v7763
    %v7799 = vmul.f32 %v7550, %v7764
    %v7800 = vmul.f32 %v7552, %v7764
    %v7801 = vmul.f32 %v7554, %v7765
    %v7802 = vmul.f32 %v7556, %v7765
    %v7803 = vmul.f32 %v7558, %v7766
    %v7804 = vmul.f32 %v7560, %v7766
    %v7805 = vmul.f32 %v7562, %v7767
    %v7806 = vmul.f32 %v7564, %v7767
    %v7807 = vmul.f32 %v7566, %v7768
    %v7808 = vmul.f32 %v7568, %v7768
    %v7809 = vmul.f32 %v7570, %v7769
    %v7810 = vmul.f32 %v7572, %v7769
    %v7811 = vmul.f32 %v7574, %v7770
    %v7812 = vmul.f32 %v7576, %v7770
    %v7813 = vmul.f32 %v7578, %v7771
    %v7814 = vmul.f32 %v7580, %v7771
    %v7815 = vmul.f32 %v7582, %v7772
    %v7816 = vmul.f32 %v7584, %v7772
    %v7817 = vmul.f32 %v7586, %v7773
    %v7818 = vmul.f32 %v7588, %v7773
    %v7819 = vmul.f32 %v7590, %v7774
    %v7820 = vmul.f32 %v7592, %v7774
    %v7821 = vmul.f32 %v7594, %v7775
    %v7822 = vmul.f32 %v7596, %v7775
    %v7823 = vmul.f32 %v7598, %v7776
    %v7824 = vmul.f32 %v7600, %v7776
    %v7825 = vmul.f32 %v7602, %v7777
    %v7826 = vmul.f32 %v7604, %v7777
    %v7827 = vmul.f32 %v7606, %v7778
    %v7828 = vmul.f32 %v7608, %v7778
    %v7829 = vmul.f32 %v7610, %v7779
    %v7830 = vmul.f32 %v7612, %v7779
    %v7831 = vmul.f32 %v7614, %v7780
    %v7832 = vmul.f32 %v7616, %v7780
    %v7833 = vmul.f32 %v7618, %v7781
    %v7834 = vmul.f32 %v7620, %v7781
    %v7835 = vmul.f32 %v7622, %v7782
    %v7836 = vmul.f32 %v7624, %v7782
    %v7837 = vmul.f32 %v7626, %v7783
    %v7838 = vmul.f32 %v7628, %v7783
    %v7839 = vmul.f32 %v7630, %v7784
    %v7840 = vmul.f32 %v7632, %v7784
    %v7841 = vmul.f32 %v7634, %v7785
    %v7842 = vmul.f32 %v7636, %v7785
    %v7843 = vmul.f32 %v7638, %v7786
    %v7844 = vmul.f32 %v7640, %v7786
    %v7845 = vmul.f32 %v7642, %v7787
    %v7846 = vmul.f32 %v7644, %v7787
    %v7847 = vmul.f32 %v7646, %v7788
    %v7848 = vmul.f32 %v7648, %v7788
    %v7849 = vmul.f32 %v7650, %v7789
    %v7850 = vmul.f32 %v7652, %v7789
    %v7851 = vmul.f32 %v7654, %v7790
    %v7852 = vmul.f32 %v7656, %v7790
    %v7853 = vmul.f32 %v7658, %v7791
    %v7854 = vmul.f32 %v7660, %v7791
    %v7855 = vmul.f32 %v7662, %v7792
    %v7856 = vmul.f32 %v7664, %v7792
    %v7857 = vpack.c.bf16 %v7795, %v7793
    %v7858 = vpack.c.bf16 %v7796, %v7794
    %v7859 = vpack.c.bf16 %v7799, %v7797
    %v7860 = vpack.c.bf16 %v7800, %v7798
    %v7861 = vpack.c.bf16 %v7803, %v7801
    %v7862 = vpack.c.bf16 %v7804, %v7802
    %v7863 = vpack.c.bf16 %v7807, %v7805
    %v7864 = vpack.c.bf16 %v7808, %v7806
    %v7865 = vpack.c.bf16 %v7811, %v7809
    %v7866 = vpack.c.bf16 %v7812, %v7810
    %v7867 = vpack.c.bf16 %v7815, %v7813
    %v7868 = vpack.c.bf16 %v7816, %v7814
    %v7869 = vpack.c.bf16 %v7819, %v7817
    %v7870 = vpack.c.bf16 %v7820, %v7818
    %v7871 = vpack.c.bf16 %v7823, %v7821
    %v7872 = vpack.c.bf16 %v7824, %v7822
    %v7873 = vpack.c.bf16 %v7827, %v7825
    %v7874 = vpack.c.bf16 %v7828, %v7826
    %v7875 = vpack.c.bf16 %v7831, %v7829
    %v7876 = vpack.c.bf16 %v7832, %v7830
    %v7877 = vpack.c.bf16 %v7835, %v7833
    %v7878 = vpack.c.bf16 %v7836, %v7834
    %v7879 = vpack.c.bf16 %v7839, %v7837
    %v7880 = vpack.c.bf16 %v7840, %v7838
    %v7881 = vpack.c.bf16 %v7843, %v7841
    %v7882 = vpack.c.bf16 %v7844, %v7842
    %v7883 = vpack.c.bf16 %v7847, %v7845
    %v7884 = vpack.c.bf16 %v7848, %v7846
    %v7885 = vpack.c.bf16 %v7851, %v7849
    %v7886 = vpack.c.bf16 %v7852, %v7850
    %v7887 = vpack.c.bf16 %v7855, %v7853
    %v7888 = vpack.c.bf16 %v7856, %v7854
    %7889 = vrot.lane.b32.xlu0 %v6911, 64
    %v7890 = vpop.permute.xlu0 %7889
    %7891 = vrot.lane.b32.xlu0 %v6912, 64
    %v7892 = vpop.permute.xlu0 %7891
    %7893 = vrot.lane.b32.xlu0 %v6913, 64
    %v7894 = vpop.permute.xlu0 %7893
    %7895 = vrot.lane.b32.xlu0 %v6914, 64
    %v7896 = vpop.permute.xlu0 %7895
    %7897 = vrot.lane.b32.xlu0 %v6915, 64
    %v7898 = vpop.permute.xlu0 %7897
    %7899 = vrot.lane.b32.xlu0 %v6916, 64
    %v7900 = vpop.permute.xlu0 %7899
    %7901 = vrot.lane.b32.xlu0 %v6917, 64
    %v7902 = vpop.permute.xlu0 %7901
    %7903 = vrot.lane.b32.xlu0 %v6918, 64
    %v7904 = vpop.permute.xlu0 %7903
    %7905 = vrot.lane.b32.xlu0 %v6919, 64
    %v7906 = vpop.permute.xlu0 %7905
    %7907 = vrot.lane.b32.xlu0 %v6920, 64
    %v7908 = vpop.permute.xlu0 %7907
    %7909 = vrot.lane.b32.xlu0 %v6921, 64
    %v7910 = vpop.permute.xlu0 %7909
    %7911 = vrot.lane.b32.xlu0 %v6922, 64
    %v7912 = vpop.permute.xlu0 %7911
    %7913 = vrot.lane.b32.xlu0 %v6923, 64
    %v7914 = vpop.permute.xlu0 %7913
    %7915 = vrot.lane.b32.xlu0 %v6924, 64
    %v7916 = vpop.permute.xlu0 %7915
    %7917 = vrot.lane.b32.xlu0 %v6925, 64
    %v7918 = vpop.permute.xlu0 %7917
    %7919 = vrot.lane.b32.xlu0 %v6926, 64
    %v7920 = vpop.permute.xlu0 %7919
    %7937 = vmatpush.bf16.msra.mxu0 %v7904
    %7938 = vmatpush.bf16.msra.mxu0 %v7902
    %7939 = vmatpush.bf16.msra.mxu0 %v7900
    %7940 = vmatpush.bf16.msra.mxu0 %v7898
    %7941 = vmatpush.bf16.msra.mxu0 %v7896
    %7942 = vmatpush.bf16.msra.mxu0 %v7894
    %7943 = vmatpush.bf16.msra.mxu0 %v7892
    %7944 = vmatpush.bf16.msra.mxu0 %v7890
    %7945 = vmatmul.bf16.gmra.mxu0 %v7857
    %v7946 = vpop.f32.mrf.mxu0
    %v7947 = vadd.f32 0.0, %v7946
    %v7948 = vpop.f32.mrf.mxu0
    %v7949 = vadd.f32 0.0, %v7948
    %7950 = vmatmul.bf16.gmra.mxu0 %v7859
    %v7951 = vpop.f32.mrf.mxu0
    %v7952 = vadd.f32 0.0, %v7951
    %v7953 = vpop.f32.mrf.mxu0
    %v7954 = vadd.f32 0.0, %v7953
    %7955 = vmatmul.bf16.gmra.mxu0 %v7861
    %v7956 = vpop.f32.mrf.mxu0
    %v7957 = vadd.f32 0.0, %v7956
    %v7958 = vpop.f32.mrf.mxu0
    %v7959 = vadd.f32 0.0, %v7958
    %7960 = vmatmul.bf16.gmra.mxu0 %v7863
    %v7961 = vpop.f32.mrf.mxu0
    %v7962 = vadd.f32 0.0, %v7961
    %v7963 = vpop.f32.mrf.mxu0
    %v7964 = vadd.f32 0.0, %v7963
    %7965 = vmatmul.bf16.gmra.mxu0 %v7865
    %v7966 = vpop.f32.mrf.mxu0
    %v7967 = vadd.f32 0.0, %v7966
    %v7968 = vpop.f32.mrf.mxu0
    %v7969 = vadd.f32 0.0, %v7968
    %7970 = vmatmul.bf16.gmra.mxu0 %v7867
    %v7971 = vpop.f32.mrf.mxu0
    %v7972 = vadd.f32 0.0, %v7971
    %v7973 = vpop.f32.mrf.mxu0
    %v7974 = vadd.f32 0.0, %v7973
    %7975 = vmatmul.bf16.gmra.mxu0 %v7869
    %v7976 = vpop.f32.mrf.mxu0
    %v7977 = vadd.f32 0.0, %v7976
    %v7978 = vpop.f32.mrf.mxu0
    %v7979 = vadd.f32 0.0, %v7978
    %7980 = vmatmul.bf16.gmra.mxu0 %v7871
    %v7981 = vpop.f32.mrf.mxu0
    %v7982 = vadd.f32 0.0, %v7981
    %v7983 = vpop.f32.mrf.mxu0
    %v7984 = vadd.f32 0.0, %v7983
    %7985 = vmatmul.bf16.gmra.mxu0 %v7873
    %v7986 = vpop.f32.mrf.mxu0
    %v7987 = vadd.f32 0.0, %v7986
    %v7988 = vpop.f32.mrf.mxu0
    %v7989 = vadd.f32 0.0, %v7988
    %7990 = vmatmul.bf16.gmra.mxu0 %v7875
    %v7991 = vpop.f32.mrf.mxu0
    %v7992 = vadd.f32 0.0, %v7991
    %v7993 = vpop.f32.mrf.mxu0
    %v7994 = vadd.f32 0.0, %v7993
    %7995 = vmatmul.bf16.gmra.mxu0 %v7877
    %v7996 = vpop.f32.mrf.mxu0
    %v7997 = vadd.f32 0.0, %v7996
    %v7998 = vpop.f32.mrf.mxu0
    %v7999 = vadd.f32 0.0, %v7998
    %8000 = vmatmul.bf16.gmra.mxu0 %v7879
    %v8001 = vpop.f32.mrf.mxu0
    %v8002 = vadd.f32 0.0, %v8001
    %v8003 = vpop.f32.mrf.mxu0
    %v8004 = vadd.f32 0.0, %v8003
    %8005 = vmatmul.bf16.gmra.mxu0 %v7881
    %v8006 = vpop.f32.mrf.mxu0
    %v8007 = vadd.f32 0.0, %v8006
    %v8008 = vpop.f32.mrf.mxu0
    %v8009 = vadd.f32 0.0, %v8008
    %8010 = vmatmul.bf16.gmra.mxu0 %v7883
    %v8011 = vpop.f32.mrf.mxu0
    %v8012 = vadd.f32 0.0, %v8011
    %v8013 = vpop.f32.mrf.mxu0
    %v8014 = vadd.f32 0.0, %v8013
    %8015 = vmatmul.bf16.gmra.mxu0 %v7885
    %v8016 = vpop.f32.mrf.mxu0
    %v8017 = vadd.f32 0.0, %v8016
    %v8018 = vpop.f32.mrf.mxu0
    %v8019 = vadd.f32 0.0, %v8018
    %8020 = vmatmul.bf16.gmra.mxu0 %v7887
    %v8021 = vpop.f32.mrf.mxu0
    %v8022 = vadd.f32 0.0, %v8021
    %v8023 = vpop.f32.mrf.mxu0
    %v8024 = vadd.f32 0.0, %v8023
    %8025 = vdwg.mxu0
    %8026 = vmatpush.bf16.msra.mxu0 %v7920
    %8027 = vmatpush.bf16.msra.mxu0 %v7918
    %8028 = vmatpush.bf16.msra.mxu0 %v7916
    %8029 = vmatpush.bf16.msra.mxu0 %v7914
    %8030 = vmatpush.bf16.msra.mxu0 %v7912
    %8031 = vmatpush.bf16.msra.mxu0 %v7910
    %8032 = vmatpush.bf16.msra.mxu0 %v7908
    %8033 = vmatpush.bf16.msra.mxu0 %v7906
    %8034 = vmatmul.bf16.gmra.mxu0 %v7858
    %v8035 = vpop.f32.mrf.mxu0
    %v8036 = vadd.f32 %v7947, %v8035
    %v8037 = vpop.f32.mrf.mxu0
    %v8038 = vadd.f32 %v7949, %v8037
    %8039 = vmatmul.bf16.gmra.mxu0 %v7860
    %v8040 = vpop.f32.mrf.mxu0
    %v8041 = vadd.f32 %v7952, %v8040
    %v8042 = vpop.f32.mrf.mxu0
    %v8043 = vadd.f32 %v7954, %v8042
    %8044 = vmatmul.bf16.gmra.mxu0 %v7862
    %v8045 = vpop.f32.mrf.mxu0
    %v8046 = vadd.f32 %v7957, %v8045
    %v8047 = vpop.f32.mrf.mxu0
    %v8048 = vadd.f32 %v7959, %v8047
    %8049 = vmatmul.bf16.gmra.mxu0 %v7864
    %v8050 = vpop.f32.mrf.mxu0
    %v8051 = vadd.f32 %v7962, %v8050
    %v8052 = vpop.f32.mrf.mxu0
    %v8053 = vadd.f32 %v7964, %v8052
    %8054 = vmatmul.bf16.gmra.mxu0 %v7866
    %v8055 = vpop.f32.mrf.mxu0
    %v8056 = vadd.f32 %v7967, %v8055
    %v8057 = vpop.f32.mrf.mxu0
    %v8058 = vadd.f32 %v7969, %v8057
    %8059 = vmatmul.bf16.gmra.mxu0 %v7868
    %v8060 = vpop.f32.mrf.mxu0
    %v8061 = vadd.f32 %v7972, %v8060
    %v8062 = vpop.f32.mrf.mxu0
    %v8063 = vadd.f32 %v7974, %v8062
    %8064 = vmatmul.bf16.gmra.mxu0 %v7870
    %v8065 = vpop.f32.mrf.mxu0
    %v8066 = vadd.f32 %v7977, %v8065
    %v8067 = vpop.f32.mrf.mxu0
    %v8068 = vadd.f32 %v7979, %v8067
    %8069 = vmatmul.bf16.gmra.mxu0 %v7872
    %v8070 = vpop.f32.mrf.mxu0
    %v8071 = vadd.f32 %v7982, %v8070
    %v8072 = vpop.f32.mrf.mxu0
    %v8073 = vadd.f32 %v7984, %v8072
    %8074 = vmatmul.bf16.gmra.mxu0 %v7874
    %v8075 = vpop.f32.mrf.mxu0
    %v8076 = vadd.f32 %v7987, %v8075
    %v8077 = vpop.f32.mrf.mxu0
    %v8078 = vadd.f32 %v7989, %v8077
    %8079 = vmatmul.bf16.gmra.mxu0 %v7876
    %v8080 = vpop.f32.mrf.mxu0
    %v8081 = vadd.f32 %v7992, %v8080
    %v8082 = vpop.f32.mrf.mxu0
    %v8083 = vadd.f32 %v7994, %v8082
    %8084 = vmatmul.bf16.gmra.mxu0 %v7878
    %v8085 = vpop.f32.mrf.mxu0
    %v8086 = vadd.f32 %v7997, %v8085
    %v8087 = vpop.f32.mrf.mxu0
    %v8088 = vadd.f32 %v7999, %v8087
    %8089 = vmatmul.bf16.gmra.mxu0 %v7880
    %v8090 = vpop.f32.mrf.mxu0
    %v8091 = vadd.f32 %v8002, %v8090
    %v8092 = vpop.f32.mrf.mxu0
    %v8093 = vadd.f32 %v8004, %v8092
    %8094 = vmatmul.bf16.gmra.mxu0 %v7882
    %v8095 = vpop.f32.mrf.mxu0
    %v8096 = vadd.f32 %v8007, %v8095
    %v8097 = vpop.f32.mrf.mxu0
    %v8098 = vadd.f32 %v8009, %v8097
    %8099 = vmatmul.bf16.gmra.mxu0 %v7884
    %v8100 = vpop.f32.mrf.mxu0
    %v8101 = vadd.f32 %v8012, %v8100
    %v8102 = vpop.f32.mrf.mxu0
    %v8103 = vadd.f32 %v8014, %v8102
    %8104 = vmatmul.bf16.gmra.mxu0 %v7886
    %v8105 = vpop.f32.mrf.mxu0
    %v8106 = vadd.f32 %v8017, %v8105
    %v8107 = vpop.f32.mrf.mxu0
    %v8108 = vadd.f32 %v8019, %v8107
    %8109 = vmatmul.bf16.gmra.mxu0 %v7888
    %v8110 = vpop.f32.mrf.mxu0
    %v8111 = vadd.f32 %v8022, %v8110
    %v8112 = vpop.f32.mrf.mxu0
    %v8113 = vadd.f32 %v8024, %v8112
    %8114 = vdwg.mxu0
    %v8115 = vmul.f32 %v8036, %v1548
    %v8116 = vmul.f32 %v8038, %v1553
    %v8117 = vmul.f32 %v8041, %v1558
    %v8118 = vmul.f32 %v8043, %v1563
    %v8119 = vmul.f32 %v8046, %v1568
    %v8120 = vmul.f32 %v8048, %v1573
    %v8121 = vmul.f32 %v8051, %v1578
    %v8122 = vmul.f32 %v8053, %v1583
    %v8123 = vmul.f32 %v8056, %v1588
    %v8124 = vmul.f32 %v8058, %v1593
    %v8125 = vmul.f32 %v8061, %v1598
    %v8126 = vmul.f32 %v8063, %v1603
    %v8127 = vmul.f32 %v8066, %v1608
    %v8128 = vmul.f32 %v8068, %v1613
    %v8129 = vmul.f32 %v8071, %v1618
    %v8130 = vmul.f32 %v8073, %v1623
    %v8131 = vmul.f32 %v8076, %v1628
    %v8132 = vmul.f32 %v8078, %v1633
    %v8133 = vmul.f32 %v8081, %v1638
    %v8134 = vmul.f32 %v8083, %v1643
    %v8135 = vmul.f32 %v8086, %v1648
    %v8136 = vmul.f32 %v8088, %v1653
    %v8137 = vmul.f32 %v8091, %v1658
    %v8138 = vmul.f32 %v8093, %v1663
    %v8139 = vmul.f32 %v8096, %v1668
    %v8140 = vmul.f32 %v8098, %v1673
    %v8141 = vmul.f32 %v8101, %v1678
    %v8142 = vmul.f32 %v8103, %v1683
    %v8143 = vmul.f32 %v8106, %v1688
    %v8144 = vmul.f32 %v8108, %v1693
    %v8145 = vmul.f32 %v8111, %v1698
    %v8146 = vmul.f32 %v8113, %v1703
    %8179 = vrot.lane.b32.xlu0 %v6832, 32
    %v8180 = vpop.permute.xlu0 %8179
    %8181 = vrot.lane.b32.xlu0 %v6834, 32
    %v8182 = vpop.permute.xlu0 %8181
    %8183 = vrot.lane.b32.xlu0 %v6837, 32
    %v8184 = vpop.permute.xlu0 %8183
    %8185 = vrot.lane.b32.xlu0 %v6839, 32
    %v8186 = vpop.permute.xlu0 %8185
    %8187 = vrot.lane.b32.xlu0 %v6842, 32
    %v8188 = vpop.permute.xlu0 %8187
    %8189 = vrot.lane.b32.xlu0 %v6844, 32
    %v8190 = vpop.permute.xlu0 %8189
    %8191 = vrot.lane.b32.xlu0 %v6847, 32
    %v8192 = vpop.permute.xlu0 %8191
    %8193 = vrot.lane.b32.xlu0 %v6849, 32
    %v8194 = vpop.permute.xlu0 %8193
    %8195 = vrot.lane.b32.xlu0 %v6852, 32
    %v8196 = vpop.permute.xlu0 %8195
    %8197 = vrot.lane.b32.xlu0 %v6854, 32
    %v8198 = vpop.permute.xlu0 %8197
    %8199 = vrot.lane.b32.xlu0 %v6857, 32
    %v8200 = vpop.permute.xlu0 %8199
    %8201 = vrot.lane.b32.xlu0 %v6859, 32
    %v8202 = vpop.permute.xlu0 %8201
    %8203 = vrot.lane.b32.xlu0 %v6862, 32
    %v8204 = vpop.permute.xlu0 %8203
    %8205 = vrot.lane.b32.xlu0 %v6864, 32
    %v8206 = vpop.permute.xlu0 %8205
    %8207 = vrot.lane.b32.xlu0 %v6867, 32
    %v8208 = vpop.permute.xlu0 %8207
    %8209 = vrot.lane.b32.xlu0 %v6869, 32
    %v8210 = vpop.permute.xlu0 %8209
    %8211 = vrot.lane.b32.xlu0 %v6872, 32
    %v8212 = vpop.permute.xlu0 %8211
    %8213 = vrot.lane.b32.xlu0 %v6874, 32
    %v8214 = vpop.permute.xlu0 %8213
    %8215 = vrot.lane.b32.xlu0 %v6877, 32
    %v8216 = vpop.permute.xlu0 %8215
    %8217 = vrot.lane.b32.xlu0 %v6879, 32
    %v8218 = vpop.permute.xlu0 %8217
    %8219 = vrot.lane.b32.xlu0 %v6882, 32
    %v8220 = vpop.permute.xlu0 %8219
    %8221 = vrot.lane.b32.xlu0 %v6884, 32
    %v8222 = vpop.permute.xlu0 %8221
    %8223 = vrot.lane.b32.xlu0 %v6887, 32
    %v8224 = vpop.permute.xlu0 %8223
    %8225 = vrot.lane.b32.xlu0 %v6889, 32
    %v8226 = vpop.permute.xlu0 %8225
    %8227 = vrot.lane.b32.xlu0 %v6892, 32
    %v8228 = vpop.permute.xlu0 %8227
    %8229 = vrot.lane.b32.xlu0 %v6894, 32
    %v8230 = vpop.permute.xlu0 %8229
    %8231 = vrot.lane.b32.xlu0 %v6897, 32
    %v8232 = vpop.permute.xlu0 %8231
    %8233 = vrot.lane.b32.xlu0 %v6899, 32
    %v8234 = vpop.permute.xlu0 %8233
    %8235 = vrot.lane.b32.xlu0 %v6902, 32
    %v8236 = vpop.permute.xlu0 %8235
    %8237 = vrot.lane.b32.xlu0 %v6904, 32
    %v8238 = vpop.permute.xlu0 %8237
    %8239 = vrot.lane.b32.xlu0 %v6907, 32
    %v8240 = vpop.permute.xlu0 %8239
    %8241 = vrot.lane.b32.xlu0 %v6909, 32
    %v8242 = vpop.permute.xlu0 %8241
    %v8275 = vadd.f32 %v8115, %v8180
    %v8276 = vadd.f32 %v8116, %v8182
    %v8277 = vadd.f32 %v8117, %v8184
    %v8278 = vadd.f32 %v8118, %v8186
    %v8279 = vadd.f32 %v8119, %v8188
    %v8280 = vadd.f32 %v8120, %v8190
    %v8281 = vadd.f32 %v8121, %v8192
    %v8282 = vadd.f32 %v8122, %v8194
    %v8283 = vadd.f32 %v8123, %v8196
    %v8284 = vadd.f32 %v8124, %v8198
    %v8285 = vadd.f32 %v8125, %v8200
    %v8286 = vadd.f32 %v8126, %v8202
    %v8287 = vadd.f32 %v8127, %v8204
    %v8288 = vadd.f32 %v8128, %v8206
    %v8289 = vadd.f32 %v8129, %v8208
    %v8290 = vadd.f32 %v8130, %v8210
    %v8291 = vadd.f32 %v8131, %v8212
    %v8292 = vadd.f32 %v8132, %v8214
    %v8293 = vadd.f32 %v8133, %v8216
    %v8294 = vadd.f32 %v8134, %v8218
    %v8295 = vadd.f32 %v8135, %v8220
    %v8296 = vadd.f32 %v8136, %v8222
    %v8297 = vadd.f32 %v8137, %v8224
    %v8298 = vadd.f32 %v8138, %v8226
    %v8299 = vadd.f32 %v8139, %v8228
    %v8300 = vadd.f32 %v8140, %v8230
    %v8301 = vadd.f32 %v8141, %v8232
    %v8302 = vadd.f32 %v8142, %v8234
    %v8303 = vadd.f32 %v8143, %v8236
    %v8304 = vadd.f32 %v8144, %v8238
    %v8305 = vadd.f32 %v8145, %v8240
    %v8306 = vadd.f32 %v8146, %v8242
    %v8307 = vsel %vm404, %v8275, -inf
    %v8308 = vsel %vm404, %v8276, -inf
    %v8309 = vmax.f32 %v8307, %v8308
    %v8310 = vrot.slane %v8309, 4
    %v8311 = vmax.f32 %v8309, %v8310
    %v8312 = vrot.slane %v8311, 2
    %v8313 = vmax.f32 %v8311, %v8312
    %v8314 = vrot.slane %v8313, 1
    %v8315 = vmax.f32 %v8313, %v8314
    %v8316 = vsel %vm404, %v8277, -inf
    %v8317 = vsel %vm404, %v8278, -inf
    %v8318 = vmax.f32 %v8316, %v8317
    %v8319 = vrot.slane %v8318, 4
    %v8320 = vmax.f32 %v8318, %v8319
    %v8321 = vrot.slane %v8320, 2
    %v8322 = vmax.f32 %v8320, %v8321
    %v8323 = vrot.slane %v8322, 1
    %v8324 = vmax.f32 %v8322, %v8323
    %v8325 = vsel %vm404, %v8279, -inf
    %v8326 = vsel %vm404, %v8280, -inf
    %v8327 = vmax.f32 %v8325, %v8326
    %v8328 = vrot.slane %v8327, 4
    %v8329 = vmax.f32 %v8327, %v8328
    %v8330 = vrot.slane %v8329, 2
    %v8331 = vmax.f32 %v8329, %v8330
    %v8332 = vrot.slane %v8331, 1
    %v8333 = vmax.f32 %v8331, %v8332
    %v8334 = vsel %vm404, %v8281, -inf
    %v8335 = vsel %vm404, %v8282, -inf
    %v8336 = vmax.f32 %v8334, %v8335
    %v8337 = vrot.slane %v8336, 4
    %v8338 = vmax.f32 %v8336, %v8337
    %v8339 = vrot.slane %v8338, 2
    %v8340 = vmax.f32 %v8338, %v8339
    %v8341 = vrot.slane %v8340, 1
    %v8342 = vmax.f32 %v8340, %v8341
    %v8343 = vsel %vm404, %v8283, -inf
    %v8344 = vsel %vm404, %v8284, -inf
    %v8345 = vmax.f32 %v8343, %v8344
    %v8346 = vrot.slane %v8345, 4
    %v8347 = vmax.f32 %v8345, %v8346
    %v8348 = vrot.slane %v8347, 2
    %v8349 = vmax.f32 %v8347, %v8348
    %v8350 = vrot.slane %v8349, 1
    %v8351 = vmax.f32 %v8349, %v8350
    %v8352 = vsel %vm404, %v8285, -inf
    %v8353 = vsel %vm404, %v8286, -inf
    %v8354 = vmax.f32 %v8352, %v8353
    %v8355 = vrot.slane %v8354, 4
    %v8356 = vmax.f32 %v8354, %v8355
    %v8357 = vrot.slane %v8356, 2
    %v8358 = vmax.f32 %v8356, %v8357
    %v8359 = vrot.slane %v8358, 1
    %v8360 = vmax.f32 %v8358, %v8359
    %v8361 = vsel %vm404, %v8287, -inf
    %v8362 = vsel %vm404, %v8288, -inf
    %v8363 = vmax.f32 %v8361, %v8362
    %v8364 = vrot.slane %v8363, 4
    %v8365 = vmax.f32 %v8363, %v8364
    %v8366 = vrot.slane %v8365, 2
    %v8367 = vmax.f32 %v8365, %v8366
    %v8368 = vrot.slane %v8367, 1
    %v8369 = vmax.f32 %v8367, %v8368
    %v8370 = vsel %vm404, %v8289, -inf
    %v8371 = vsel %vm404, %v8290, -inf
    %v8372 = vmax.f32 %v8370, %v8371
    %v8373 = vrot.slane %v8372, 4
    %v8374 = vmax.f32 %v8372, %v8373
    %v8375 = vrot.slane %v8374, 2
    %v8376 = vmax.f32 %v8374, %v8375
    %v8377 = vrot.slane %v8376, 1
    %v8378 = vmax.f32 %v8376, %v8377
    %v8379 = vsel %vm404, %v8291, -inf
    %v8380 = vsel %vm404, %v8292, -inf
    %v8381 = vmax.f32 %v8379, %v8380
    %v8382 = vrot.slane %v8381, 4
    %v8383 = vmax.f32 %v8381, %v8382
    %v8384 = vrot.slane %v8383, 2
    %v8385 = vmax.f32 %v8383, %v8384
    %v8386 = vrot.slane %v8385, 1
    %v8387 = vmax.f32 %v8385, %v8386
    %v8388 = vsel %vm404, %v8293, -inf
    %v8389 = vsel %vm404, %v8294, -inf
    %v8390 = vmax.f32 %v8388, %v8389
    %v8391 = vrot.slane %v8390, 4
    %v8392 = vmax.f32 %v8390, %v8391
    %v8393 = vrot.slane %v8392, 2
    %v8394 = vmax.f32 %v8392, %v8393
    %v8395 = vrot.slane %v8394, 1
    %v8396 = vmax.f32 %v8394, %v8395
    %v8397 = vsel %vm404, %v8295, -inf
    %v8398 = vsel %vm404, %v8296, -inf
    %v8399 = vmax.f32 %v8397, %v8398
    %v8400 = vrot.slane %v8399, 4
    %v8401 = vmax.f32 %v8399, %v8400
    %v8402 = vrot.slane %v8401, 2
    %v8403 = vmax.f32 %v8401, %v8402
    %v8404 = vrot.slane %v8403, 1
    %v8405 = vmax.f32 %v8403, %v8404
    %v8406 = vsel %vm404, %v8297, -inf
    %v8407 = vsel %vm404, %v8298, -inf
    %v8408 = vmax.f32 %v8406, %v8407
    %v8409 = vrot.slane %v8408, 4
    %v8410 = vmax.f32 %v8408, %v8409
    %v8411 = vrot.slane %v8410, 2
    %v8412 = vmax.f32 %v8410, %v8411
    %v8413 = vrot.slane %v8412, 1
    %v8414 = vmax.f32 %v8412, %v8413
    %v8415 = vsel %vm404, %v8299, -inf
    %v8416 = vsel %vm404, %v8300, -inf
    %v8417 = vmax.f32 %v8415, %v8416
    %v8418 = vrot.slane %v8417, 4
    %v8419 = vmax.f32 %v8417, %v8418
    %v8420 = vrot.slane %v8419, 2
    %v8421 = vmax.f32 %v8419, %v8420
    %v8422 = vrot.slane %v8421, 1
    %v8423 = vmax.f32 %v8421, %v8422
    %v8424 = vsel %vm404, %v8301, -inf
    %v8425 = vsel %vm404, %v8302, -inf
    %v8426 = vmax.f32 %v8424, %v8425
    %v8427 = vrot.slane %v8426, 4
    %v8428 = vmax.f32 %v8426, %v8427
    %v8429 = vrot.slane %v8428, 2
    %v8430 = vmax.f32 %v8428, %v8429
    %v8431 = vrot.slane %v8430, 1
    %v8432 = vmax.f32 %v8430, %v8431
    %v8433 = vsel %vm404, %v8303, -inf
    %v8434 = vsel %vm404, %v8304, -inf
    %v8435 = vmax.f32 %v8433, %v8434
    %v8436 = vrot.slane %v8435, 4
    %v8437 = vmax.f32 %v8435, %v8436
    %v8438 = vrot.slane %v8437, 2
    %v8439 = vmax.f32 %v8437, %v8438
    %v8440 = vrot.slane %v8439, 1
    %v8441 = vmax.f32 %v8439, %v8440
    %v8442 = vsel %vm404, %v8305, -inf
    %v8443 = vsel %vm404, %v8306, -inf
    %v8444 = vmax.f32 %v8442, %v8443
    %v8445 = vrot.slane %v8444, 4
    %v8446 = vmax.f32 %v8444, %v8445
    %v8447 = vrot.slane %v8446, 2
    %v8448 = vmax.f32 %v8446, %v8447
    %v8449 = vrot.slane %v8448, 1
    %v8450 = vmax.f32 %v8448, %v8449
    %v8451 = vpack.c.bf16 %v8315, %v8315
    %v8452 = vpack.c.bf16 %v8324, %v8324
    %v8453 = vpack.c.bf16 %v8333, %v8333
    %v8454 = vpack.c.bf16 %v8342, %v8342
    %v8455 = vpack.c.bf16 %v8351, %v8351
    %v8456 = vpack.c.bf16 %v8360, %v8360
    %v8457 = vpack.c.bf16 %v8369, %v8369
    %v8458 = vpack.c.bf16 %v8378, %v8378
    %v8459 = vpack.c.bf16 %v8387, %v8387
    %v8460 = vpack.c.bf16 %v8396, %v8396
    %v8461 = vpack.c.bf16 %v8405, %v8405
    %v8462 = vpack.c.bf16 %v8414, %v8414
    %v8463 = vpack.c.bf16 %v8423, %v8423
    %v8464 = vpack.c.bf16 %v8432, %v8432
    %v8465 = vpack.c.bf16 %v8441, %v8441
    %v8466 = vpack.c.bf16 %v8450, %v8450
    %v8467 = vld [vmem:[%s7] sm:$0xf]
    %v8468 = vld [vmem:[%s7 + $0x4] sm:$0xf]
    %v8469 = vld [vmem:[%s7 + $0x8] sm:$0xf]
    %v8470 = vld [vmem:[%s7 + $0xc] sm:$0xf]
    %v8471 = vld [vmem:[%s8] sm:$0x1]
    %v8473 = vperm.slane %v8471, 0
    %v8491 = vunpack.c.l.b16 %v8451
    %v8492 = vunpack.c.l.b16 %v8452
    %v8493 = vunpack.c.l.b16 %v8453
    %v8494 = vunpack.c.l.b16 %v8454
    %v8495 = vunpack.c.l.b16 %v8455
    %v8496 = vunpack.c.l.b16 %v8456
    %v8497 = vunpack.c.l.b16 %v8457
    %v8498 = vunpack.c.l.b16 %v8458
    %v8499 = vunpack.c.l.b16 %v8459
    %v8500 = vunpack.c.l.b16 %v8460
    %v8501 = vunpack.c.l.b16 %v8461
    %v8502 = vunpack.c.l.b16 %v8462
    %v8503 = vunpack.c.l.b16 %v8463
    %v8504 = vunpack.c.l.b16 %v8464
    %v8505 = vunpack.c.l.b16 %v8465
    %v8506 = vunpack.c.l.b16 %v8466
    %vm8507 = vcmask 1041409
    %v8508 = vsel %vm8507, %v8492, %v8491
    %vm8509 = vcmask 1042434
    %v8510 = vsel %vm8509, %v8493, %v8508
    %vm8511 = vcmask 1043459
    %v8512 = vsel %vm8511, %v8494, %v8510
    %vm8513 = vcmask 1044484
    %v8514 = vsel %vm8513, %v8495, %v8512
    %vm8515 = vcmask 1045509
    %v8516 = vsel %vm8515, %v8496, %v8514
    %vm8517 = vcmask 1046534
    %v8518 = vsel %vm8517, %v8497, %v8516
    %vm8519 = vcmask 1047559
    %v8520 = vsel %vm8519, %v8498, %v8518
    %v8521 = vsel %vm8507, %v8500, %v8499
    %v8522 = vsel %vm8509, %v8501, %v8521
    %v8523 = vsel %vm8511, %v8502, %v8522
    %v8524 = vsel %vm8513, %v8503, %v8523
    %v8525 = vsel %vm8515, %v8504, %v8524
    %v8526 = vsel %vm8517, %v8505, %v8525
    %v8527 = vsel %vm8519, %v8506, %v8526
    %v8528 = vpack.c.b16 %v8527, %v8520
    %v8533 = vunpack.c.l.b16 %v8467
    %v8534 = vunpack.c.l.b16 %v8468
    %v8535 = vunpack.c.l.b16 %v8469
    %v8536 = vunpack.c.l.b16 %v8470
    %v8537 = vpack.c.b16 %v8534, %v8533
    %v8538 = vpack.c.b16 %v8536, %v8535
    %v8542 = vsel %vm404, %v8528, 0
    %8544 = vmatpush.bf16.msra.mxu0 0
    %8545 = vmatpush.bf16.msra.mxu0 0
    %8546 = vmatpush.bf16.msra.mxu0 0
    %8547 = vmatpush.bf16.msra.mxu0 0
    %8548 = vmatpush.bf16.msra.mxu0 0
    %8549 = vmatpush.bf16.msra.mxu0 0
    %8550 = vmatpush.bf16.msra.mxu0 %v8538
    %8551 = vmatpush.bf16.msra.mxu0 %v8537
    %8552 = vmatmul.bf16.gmra.mxu0 %v8542
    %v8553 = vpop.f32.mrf.mxu0
    %v8554 = vadd.f32 %v8473, %v8553
    %v8555 = vpop.f32.mrf.mxu0
    %v8556 = vadd.f32 %v8473, %v8555
    %8557 = vdwg.mxu0
    %vm8558 = vcmask 31744
    %8559 = vst.msk [vmem:[%s9] sm:$0xff] %vm8558, %v8554
    %8560 = vst.msk [vmem:[%s9 + $0x8] sm:$0xff] %vm8558, %v8556
    // Predicated region
    $region42: #{tpu_custom_call.1} parent=1 // pred_check
      _
    $region43: #{tpu_custom_call.1} parent=1 // pred_check_branch
      %8562 = sbr.rel (0) target = $region45
    $region44: #{tpu_custom_call.1} parent=1 // pred_region
      _
    $region45: #{tpu_custom_call.1} parent=1 // pred_fallthru
      _
    // Predicated region
    $region46: #{tpu_custom_call.1} parent=1 // pred_check
      _
    $region47: #{tpu_custom_call.1} parent=1 // pred_check_branch
      %8564 = sbr.rel (0) target = $region49
    $region48: #{tpu_custom_call.1} parent=1 // pred_region
      _
    $region49: #{tpu_custom_call.1} parent=1 // pred_fallthru
      _
    %8565 = vsyncpa [#allocation3], 1

</llo_original>
